<compile_context>
chip_gen: v6e
topology: v6e:2x2x1
jax: 0.10.0
libtpu: 0.0.40
codegen_flags: <defaults>
</compile_context>

<pallas_src>
import functools

import jax
import jax.numpy as jnp
from jax import lax
from jax.experimental import pallas as pl
from jax.experimental.pallas import tpu as pltpu


# ----------------------------- Pallas kernel ------------------------------ #
def lstm_dir_kernel(x_ref, w_ih_ref, w_hh_ref, b_ref, out_ref, xg_scr):
    """One LSTM layer; grid axis 0 = direction (0 = forward, 1 = backward).

    x_ref    : (dirs_in, T, N, Dp) f32   previous layer's per-direction output
                                          (dirs_in=1 with Dp=E for layer 0)
    w_ih_ref : (1, dirs_in*Dp, 4H) bf16  input->gates weight, this direction
    w_hh_ref : (1, H, 4H)          bf16  hidden->gates weight, this direction
    b_ref    : (1, 1, 4H)          f32   b_ih + b_hh, this direction
    out_ref  : (1, T, N, H)        f32   hidden-state sequence, this direction
    xg_scr   : (T, N, 4H)          bf16  scratch: hoisted input projection
    """
    dirs_in, T, N, Dp = x_ref.shape
    H = w_hh_ref.shape[1]
    d = pl.program_id(0)

    # ---- Prologue: hoisted input projection for ALL timesteps (one matmul
    # per input direction; bf16 operands, f32 accumulation). ----
    xg = None
    for di in range(dirs_in):                                    # static loop
        x2d = x_ref[di].reshape(T * N, Dp).astype(jnp.bfloat16)
        w = w_ih_ref[0, di * Dp:(di + 1) * Dp, :]                # (Dp, 4H) bf16
        part = jnp.dot(x2d, w, preferred_element_type=jnp.float32)
        xg = part if xg is None else xg + part
    xg = xg + b_ref[0]                                           # (T*N, 4H) f32
    xg_scr[...] = xg.reshape(T, N, 4 * H).astype(jnp.bfloat16)

    w_hh = w_hh_ref[0]                                           # (H, 4H) bf16

    # Gate layout on the 4H=128 lane axis: [i | f | g | o]; g gets tanh, the
    # rest sigmoid.  sigmoid(x) = 0.5*tanh(0.5*x) + 0.5, so ONE tanh (EUP)
    # pass covers the whole tile; the fix-up is plain VPU mul/add.
    lane = lax.broadcasted_iota(jnp.int32, (N, 4 * H), 1)
    g_mask = (lane >= 2 * H) & (lane < 3 * H)
    scale = jnp.where(g_mask, 1.0, 0.5).astype(jnp.float32)       # hoisted
    offset = jnp.where(g_mask, 0.0, 0.5).astype(jnp.float32)      # hoisted

    h0 = jnp.zeros((N, H), jnp.float32)
    c0 = jnp.zeros((N, H), jnp.float32)

    def make_step(reverse):
        def step(t, carry):
            h, c = carry
            tt = (T - 1 - t) if reverse else t
            # Recurrent critical path: one tiny bf16 matmul + f32 elementwise.
            gates = xg_scr[tt].astype(jnp.float32) + jnp.dot(
                h.astype(jnp.bfloat16), w_hh,
                preferred_element_type=jnp.float32)               # (N, 4H)
            act = jnp.tanh(gates * scale) * scale + offset        # 1 EUP pass
            i = act[:, 0 * H:1 * H]
            f = act[:, 1 * H:2 * H]
            g = act[:, 2 * H:3 * H]
            o = act[:, 3 * H:4 * H]
            c_new = f * c + i * g
            h_new = o * jnp.tanh(c_new)
            out_ref[0, tt] = h_new
            return (h_new, c_new)
        return step

    unroll = min(8, T)        # bounded unroll: LLO visibility w/o code blowup

    @pl.when(d == 0)
    def _():
        lax.fori_loop(0, T, make_step(False), (h0, c0), unroll=unroll)

    @pl.when(d == 1)
    def _():
        lax.fori_loop(0, T, make_step(True), (h0, c0), unroll=unroll)


def run_bilstm_layer(x_dtnd, w_ih_s, w_hh_s, b_s, hidden_size,
                     single_buffer_x=True):
    """One (possibly bidirectional) LSTM layer.

    x_dtnd : (dirs_in, T, N, Dp) time-major, per-input-direction slabs.
    w_ih_s : (dirs, dirs_in*Dp, 4H), w_hh_s: (dirs, H, 4H), b_s: (dirs, 1, 4H)
    Returns (dirs, T, N, H).
    """
    dirs_in, T, N, Dp = x_dtnd.shape
    dirs = w_ih_s.shape[0]
    H = hidden_size
    D = dirs_in * Dp

    # bf16 MXU operands (f32 accumulate inside the kernel).
    w_ih_bf16 = w_ih_s.astype(jnp.bfloat16)
    w_hh_bf16 = w_hh_s.astype(jnp.bfloat16)

    # x's block index is constant across the dirs grid: a 2nd pipeline buffer
    # would never be used, so request a single buffer (saves T*N*D*4 bytes).
    x_spec_kwargs = dict(pipeline_mode=pl.Buffered(1)) if single_buffer_x else {}

    # Rough per-layer VMEM budget; raise the scoped limit past v5e's 16 MiB
    # default when needed.
    # TODO(synk): for production-scale T on v7x (64 MiB/TC) chunk the xg
    # prologue over time (pltpu.emit_pipeline) instead of materializing the
    # whole (T, N, 4H) scratch.
    vmem_bytes = (
        (1 if single_buffer_x else 2) * dirs_in * T * N * Dp * 4   # x block
        + 2 * D * 4 * H * 2                                        # W_ih (bf16)
        + 2 * H * 4 * H * 2                                        # W_hh (bf16)
        + 2 * 4 * H * 4                                            # bias
        + 2 * T * N * H * 4                                        # out block
        + T * N * 4 * H * 2                                        # xg scratch
    )
    vmem_limit = None
    if 2 * vmem_bytes > (16 << 20):
        vmem_limit = min(2 * vmem_bytes, 128 << 20)

    return pl.pallas_call(
        lstm_dir_kernel,
        out_shape=jax.ShapeDtypeStruct((dirs, T, N, H), jnp.float32),
        grid_spec=pltpu.PrefetchScalarGridSpec(
            num_scalar_prefetch=0,
            grid=(dirs,),
            in_specs=[
                pl.BlockSpec((dirs_in, T, N, Dp), lambda d: (0, 0, 0, 0),
                             **x_spec_kwargs),                     # sequence
                pl.BlockSpec((1, D, 4 * H), lambda d: (d, 0, 0)),  # W_ih (dir d)
                pl.BlockSpec((1, H, 4 * H), lambda d: (d, 0, 0)),  # W_hh (dir d)
                pl.BlockSpec((1, 1, 4 * H), lambda d: (d, 0, 0)),  # bias (dir d)
            ],
            out_specs=pl.BlockSpec((1, T, N, H), lambda d: (d, 0, 0, 0)),
            scratch_shapes=[pltpu.VMEM((T, N, 4 * H), jnp.bfloat16)],
        ),
        compiler_params=pltpu.CompilerParams(
            # Directions are independent -> "parallel" (v7x: one per TensorCore).
            dimension_semantics=("parallel",),
            vmem_limit_bytes=vmem_limit,
        ),
    )(x_dtnd, w_ih_bf16, w_hh_bf16, b_s)


# ------------------------------- Module glue ------------------------------ #
def init_lstm_params(key, embed_size, hidden_size, num_layers, bidirectional):
    """Deterministic params matching nn.LSTM shapes, stored pre-transposed and
    stacked per direction: per layer (w_ih (dirs,D,4H), w_hh (dirs,H,4H),
    b = b_ih + b_hh (dirs,1,4H))."""
    dirs = 2 if bidirectional else 1
    bound = 1.0 / (hidden_size ** 0.5)
    params = []
    for l in range(num_layers):
        d_in = embed_size if l == 0 else hidden_size * dirs
        key, k1, k2, k3, k4 = jax.random.split(key, 5)
        w_ih = jax.random.uniform(k1, (dirs, d_in, 4 * hidden_size), jnp.float32,
                                  -bound, bound)
        w_hh = jax.random.uniform(k2, (dirs, hidden_size, 4 * hidden_size),
                                  jnp.float32, -bound, bound)
        b_ih = jax.random.uniform(k3, (dirs, 1, 4 * hidden_size), jnp.float32,
                                  -bound, bound)
        b_hh = jax.random.uniform(k4, (dirs, 1, 4 * hidden_size), jnp.float32,
                                  -bound, bound)
        params.append((w_ih, w_hh, b_ih + b_hh))
    return tuple(params)


@functools.partial(jax.jit, static_argnums=(2, 3, 4, 5))
def lstm_forward(x, params, hidden_size, num_layers, bidirectional,
                 single_buffer_x=True):
    """Pallas implementation of LSTM.forward (inference).

    Matches nn.LSTM(batch_first=True, zero initial states): input (..., T, E)
    is flattened to (N, T, E); output is (N, T, H * num_directions).
    """
    # TODO(synk): inter-layer dropout is train-only in nn.LSTM; omitted (inference).
    dirs = 2 if bidirectional else 1
    shape = x.shape
    x = x.reshape(-1, shape[-2], shape[-1])        # (N, T, E)  -- .view(-1, S, E)
    x = jnp.transpose(x, (1, 0, 2))                # (T, N, E)  time-major, once
    layer_in = x[None]                             # (1, T, N, E): dirs_in = 1

    for l in range(num_layers):
        w_ih_s, w_hh_s, b_s = params[l]
        # (dirs, T, N, H) layer output feeds the next layer directly: no
        # per-layer transpose/concat relayout in the wrapper.
        layer_in = run_bilstm_layer(layer_in, w_ih_s, w_hh_s, b_s, hidden_size,
                                    single_buffer_x)

    T, N = layer_in.shape[1], layer_in.shape[2]
    # (dirs, T, N, H) -> (N, T, dirs*H): single relayout for the whole stack.
    return jnp.transpose(layer_in, (2, 1, 0, 3)).reshape(N, T, dirs * hidden_size)


# ---------------------------- pure-JAX reference --------------------------- #
def lstm_forward_ref(x, params, hidden_size, num_layers, bidirectional):
    dirs = 2 if bidirectional else 1
    shape = x.shape
    x = x.reshape(-1, shape[-2], shape[-1])
    N = x.shape[0]

    def sig(z):
        return 1.0 / (1.0 + jnp.exp(-z))

    def cell(carry, x_t, w_ih_t, w_hh_t, b):
        h, c = carry
        gates = x_t @ w_ih_t + h @ w_hh_t + b
        i, f, g, o = jnp.split(gates, 4, axis=-1)
        i = sig(i)
        f = sig(f)
        g = jnp.tanh(g)
        o = sig(o)
        c = f * c + i * g
        h = o * jnp.tanh(c)
        return (h, c), h

    layer_in = x
    for l in range(num_layers):
        w_ih_s, w_hh_s, b_s = params[l]
        outs = []
        for d in range(dirs):
            w_ih_t, w_hh_t, b = w_ih_s[d], w_hh_s[d], b_s[d]
            xi = layer_in if d == 0 else layer_in[:, ::-1, :]
            x_tbd = jnp.transpose(xi, (1, 0, 2))
            h0 = jnp.zeros((N, hidden_size), jnp.float32)
            c0 = jnp.zeros((N, hidden_size), jnp.float32)
            _, h_seq = lax.scan(
                lambda carry, xt: cell(carry, xt, w_ih_t, w_hh_t, b), (h0, c0), x_tbd)
            h_bt = jnp.transpose(h_seq, (1, 0, 2))
            if d == 1:
                h_bt = h_bt[:, ::-1, :]
            outs.append(h_bt)
        layer_in = jnp.concatenate(outs, axis=-1) if dirs == 2 else outs[0]
    return layer_in


# ---------------------------------- main ----------------------------------- #
if __name__ == "__main__":
    # "args" of the PyTorch module
    embed_size = 32
    lstm_hidden_size = 32
    lstm_num_layers = 2
    bidirectional = True
    # drop_out_lstm = 0.0 (inference -> no-op)

    key = jax.random.PRNGKey(0)
    k_in, k_par = jax.random.split(key)

    # input (..., seq, embed); forward flattens leading dims: (2, 4, 8, 32)
    x = jax.random.normal(k_in, (2, 4, 8, embed_size), jnp.float32)

    params = init_lstm_params(k_par, embed_size, lstm_hidden_size,
                              lstm_num_layers, bidirectional)

    try:
        out = lstm_forward(x, params, lstm_hidden_size, lstm_num_layers,
                           bidirectional, True)
        out = jax.block_until_ready(out)
    except Exception:
        # Fallback: default double-buffered x BlockSpec in case Buffered(1)
        # is rejected by this jax/libtpu build.
        out = lstm_forward(x, params, lstm_hidden_size, lstm_num_layers,
                           bidirectional, False)
        out = jax.block_until_ready(out)

    ref = lstm_forward_ref(x, params, lstm_hidden_size, lstm_num_layers,
                           bidirectional)

    dirs = 2 if bidirectional else 1
    assert out.shape == (2 * 4, 8, lstm_hidden_size * dirs), out.shape
    max_err = float(jnp.max(jnp.abs(out - ref)))
    # bf16 MXU operands + bf16 xg scratch vs. the all-f32 reference.
    assert max_err < 5e-2, max_err
    print("KERNEL_OK")
</pallas_src>

<mosaic_0001>
module attributes {stable_mosaic.version = 11 : i64} {
  func.func @lstm_dir_kernel(%arg0: i32, %arg1: memref<1x8x8x32xf32, #tpu.memory_space<vmem>>, %arg2: memref<1x32x128xbf16, #tpu.memory_space<vmem>>, %arg3: memref<1x32x128xbf16, #tpu.memory_space<vmem>>, %arg4: memref<1x1x128xf32, #tpu.memory_space<vmem>>, %arg5: memref<1x8x8x32xf32, #tpu.memory_space<vmem>>, %arg6: memref<8x8x128xbf16, #tpu.memory_space<vmem>>) attributes {dimension_semantics = [#tpu.dimension_semantics<parallel>], iteration_bounds = array<i64: 2>, scalar_prefetch = 0 : i64, scratch_operands = 1 : i64, tpu.core_type = #tpu.core_type<tc>, window_params = [{pipeline_mode = #tpu.pipeline_mode<synchronous>, transform_indices = @transform_0, window_bounds = array<i64: 1, 8, 8, 32>}, {transform_indices = @transform_1, window_bounds = array<i64: 1, 32, 128>}, {transform_indices = @transform_2, window_bounds = array<i64: 1, 32, 128>}, {transform_indices = @transform_3, window_bounds = array<i64: 1, 1, 128>}, {transform_indices = @transform_4, window_bounds = array<i64: 1, 8, 8, 32>}]} {
    %c0 = arith.constant 0 : index
    %c0_0 = arith.constant 0 : index
    %c0_1 = arith.constant 0 : index
    %c0_2 = arith.constant 0 : index
    %0 = vector.load %arg1[%c0, %c0_0, %c0_1, %c0_2] : memref<1x8x8x32xf32, #tpu.memory_space<vmem>>, vector<1x8x8x32xf32>
    %1 = vector.shape_cast %0 : vector<1x8x8x32xf32> to vector<8x8x32xf32>
    %2 = vector.shape_cast %1 : vector<8x8x32xf32> to vector<64x32xf32>
    %3 = arith.truncf %2 : vector<64x32xf32> to vector<64x32xbf16>
    %c0_3 = arith.constant 0 : index
    %c0_4 = arith.constant 0 : index
    %c0_5 = arith.constant 0 : index
    %4 = vector.load %arg2[%c0_3, %c0_4, %c0_5] : memref<1x32x128xbf16, #tpu.memory_space<vmem>>, vector<1x32x128xbf16>
    %5 = vector.shape_cast %4 : vector<1x32x128xbf16> to vector<32x128xbf16>
    %cst = arith.constant dense<0.000000e+00> : vector<64x128xf32>
    %6 = tpu.matmul %3, %5, %cst {dimension_numbers = #tpu.dot_dimension_numbers<[1], [0], [0], [1], [0, 0, 1, 1], [], []>} : vector<64x32xbf16>, vector<32x128xbf16>, vector<64x128xf32> -> vector<64x128xf32>
    %c0_6 = arith.constant 0 : index
    %c0_7 = arith.constant 0 : index
    %c0_8 = arith.constant 0 : index
    %7 = vector.load %arg4[%c0_6, %c0_7, %c0_8] : memref<1x1x128xf32, #tpu.memory_space<vmem>>, vector<1x1x128xf32>
    %8 = vector.shape_cast %7 : vector<1x1x128xf32> to vector<1x128xf32>
    %9 = vector.broadcast %8 : vector<1x128xf32> to vector<64x128xf32>
    %10 = arith.addf %6, %9 : vector<64x128xf32>
    %11 = vector.shape_cast %10 : vector<64x128xf32> to vector<8x8x128xf32>
    %12 = arith.truncf %11 : vector<8x8x128xf32> to vector<8x8x128xbf16>
    %c0_9 = arith.constant 0 : index
    %c0_10 = arith.constant 0 : index
    %c0_11 = arith.constant 0 : index
    %13 = vector.load %arg6[%c0_9, %c0_10, %c0_11] : memref<8x8x128xbf16, #tpu.memory_space<vmem>>, vector<8x8x128xbf16>
    tpu.vector_store %arg6[%c0_9, %c0_10, %c0_11], %12 {strides = array<i32>} : memref<8x8x128xbf16, #tpu.memory_space<vmem>>, vector<8x8x128xbf16>,
    %c0_12 = arith.constant 0 : index
    %c0_13 = arith.constant 0 : index
    %c0_14 = arith.constant 0 : index
    %14 = vector.load %arg3[%c0_12, %c0_13, %c0_14] : memref<1x32x128xbf16, #tpu.memory_space<vmem>>, vector<1x32x128xbf16>
    %15 = vector.shape_cast %14 : vector<1x32x128xbf16> to vector<32x128xbf16>
    %16 = tpu.iota {dimensions = array<i32: 1>} : vector<8x128xi32>
    %c64_i32 = arith.constant 64 : i32
    %17 = vector.broadcast %c64_i32 : i32 to vector<8x128xi32>
    %18 = arith.cmpi sge, %16, %17 : vector<8x128xi32>
    %c96_i32 = arith.constant 96 : i32
    %19 = vector.broadcast %c96_i32 : i32 to vector<8x128xi32>
    %20 = arith.cmpi slt, %16, %19 : vector<8x128xi32>
    %21 = arith.andi %18, %20 : vector<8x128xi1>
    %cst_15 = arith.constant 1.000000e+00 : f32
    %cst_16 = arith.constant 5.000000e-01 : f32
    %22 = vector.broadcast %cst_15 : f32 to vector<8x128xf32>
    %23 = vector.broadcast %cst_16 : f32 to vector<8x128xf32>
    %24 = arith.select %21, %22, %23 : vector<8x128xi1>, vector<8x128xf32>
    %cst_17 = arith.constant 0.000000e+00 : f32
    %cst_18 = arith.constant 5.000000e-01 : f32
    %25 = vector.broadcast %cst_17 : f32 to vector<8x128xf32>
    %26 = vector.broadcast %cst_18 : f32 to vector<8x128xf32>
    %27 = arith.select %21, %25, %26 : vector<8x128xi1>, vector<8x128xf32>
    %cst_19 = arith.constant 0.000000e+00 : f32
    %28 = vector.broadcast %cst_19 : f32 to vector<8x32xf32>
    %cst_20 = arith.constant 0.000000e+00 : f32
    %29 = vector.broadcast %cst_20 : f32 to vector<8x32xf32>
    %c0_i32 = arith.constant 0 : i32
    %30 = arith.cmpi eq, %arg0, %c0_i32 : i32
    %31 = arith.extui %30 : i1 to i32
    %c0_i32_21 = arith.constant 0 : i32
    %32 = arith.cmpi ne, %31, %c0_i32_21 : i32
    scf.if %32 {
      %c0_i32_23 = arith.constant 0 : i32
      %36 = arith.index_cast %c0_i32_23 : i32 to index
      %c0_24 = arith.constant 0 : index
      %c0_25 = arith.constant 0 : index
      %37 = vector.load %arg6[%36, %c0_24, %c0_25] : memref<8x8x128xbf16, #tpu.memory_space<vmem>>, vector<1x8x128xbf16>
      %38 = vector.shape_cast %37 : vector<1x8x128xbf16> to vector<8x128xbf16>
      %39 = arith.extf %38 : vector<8x128xbf16> to vector<8x128xf32>
      %40 = arith.truncf %28 : vector<8x32xf32> to vector<8x32xbf16>
      %cst_26 = arith.constant dense<0.000000e+00> : vector<8x128xf32>
      %41 = tpu.matmul %40, %15, %cst_26 {dimension_numbers = #tpu.dot_dimension_numbers<[1], [0], [0], [1], [0, 0, 1, 1], [], []>} : vector<8x32xbf16>, vector<32x128xbf16>, vector<8x128xf32> -> vector<8x128xf32>
      %42 = arith.addf %39, %41 : vector<8x128xf32>
      %43 = arith.mulf %42, %24 : vector<8x128xf32>
      %44 = math.tanh %43 : vector<8x128xf32>
      %45 = arith.mulf %44, %24 : vector<8x128xf32>
      %46 = arith.addf %45, %27 : vector<8x128xf32>
      %47 = vector.extract_strided_slice %46 {offsets = [0, 0], sizes = [8, 32], strides = [1, 1]} : vector<8x128xf32> to vector<8x32xf32>
      %48 = vector.extract_strided_slice %46 {offsets = [0, 32], sizes = [8, 32], strides = [1, 1]} : vector<8x128xf32> to vector<8x32xf32>
      %49 = vector.extract_strided_slice %46 {offsets = [0, 64], sizes = [8, 32], strides = [1, 1]} : vector<8x128xf32> to vector<8x32xf32>
      %50 = vector.extract_strided_slice %46 {offsets = [0, 96], sizes = [8, 32], strides = [1, 1]} : vector<8x128xf32> to vector<8x32xf32>
      %51 = arith.mulf %48, %29 : vector<8x32xf32>
      %52 = arith.mulf %47, %49 : vector<8x32xf32>
      %53 = arith.addf %51, %52 : vector<8x32xf32>
      %54 = math.tanh %53 : vector<8x32xf32>
      %55 = arith.mulf %50, %54 : vector<8x32xf32>
      %c0_27 = arith.constant 0 : index
      %56 = arith.index_cast %c0_i32_23 : i32 to index
      %c0_28 = arith.constant 0 : index
      %c0_29 = arith.constant 0 : index
      %57 = vector.load %arg5[%c0_27, %56, %c0_28, %c0_29] : memref<1x8x8x32xf32, #tpu.memory_space<vmem>>, vector<1x1x8x32xf32>
      %58 = vector.shape_cast %57 : vector<1x1x8x32xf32> to vector<8x32xf32>
      %59 = vector.shape_cast %55 : vector<8x32xf32> to vector<1x1x8x32xf32>
      tpu.vector_store %arg5[%c0_27, %56, %c0_28, %c0_29], %59 {strides = array<i32>} : memref<1x8x8x32xf32, #tpu.memory_space<vmem>>, vector<1x1x8x32xf32>,
      %c1_i32_30 = arith.constant 1 : i32
      %60 = arith.index_cast %c1_i32_30 : i32 to index
      %c0_31 = arith.constant 0 : index
      %c0_32 = arith.constant 0 : index
      %61 = vector.load %arg6[%60, %c0_31, %c0_32] : memref<8x8x128xbf16, #tpu.memory_space<vmem>>, vector<1x8x128xbf16>
      %62 = vector.shape_cast %61 : vector<1x8x128xbf16> to vector<8x128xbf16>
      %63 = arith.extf %62 : vector<8x128xbf16> to vector<8x128xf32>
      %64 = arith.truncf %55 : vector<8x32xf32> to vector<8x32xbf16>
      %cst_33 = arith.constant dense<0.000000e+00> : vector<8x128xf32>
      %65 = tpu.matmul %64, %15, %cst_33 {dimension_numbers = #tpu.dot_dimension_numbers<[1], [0], [0], [1], [0, 0, 1, 1], [], []>} : vector<8x32xbf16>, vector<32x128xbf16>, vector<8x128xf32> -> vector<8x128xf32>
      %66 = arith.addf %63, %65 : vector<8x128xf32>
      %67 = arith.mulf %66, %24 : vector<8x128xf32>
      %68 = math.tanh %67 : vector<8x128xf32>
      %69 = arith.mulf %68, %24 : vector<8x128xf32>
      %70 = arith.addf %69, %27 : vector<8x128xf32>
      %71 = vector.extract_strided_slice %70 {offsets = [0, 0], sizes = [8, 32], strides = [1, 1]} : vector<8x128xf32> to vector<8x32xf32>
      %72 = vector.extract_strided_slice %70 {offsets = [0, 32], sizes = [8, 32], strides = [1, 1]} : vector<8x128xf32> to vector<8x32xf32>
      %73 = vector.extract_strided_slice %70 {offsets = [0, 64], sizes = [8, 32], strides = [1, 1]} : vector<8x128xf32> to vector<8x32xf32>
      %74 = vector.extract_strided_slice %70 {offsets = [0, 96], sizes = [8, 32], strides = [1, 1]} : vector<8x128xf32> to vector<8x32xf32>
      %75 = arith.mulf %72, %53 : vector<8x32xf32>
      %76 = arith.mulf %71, %73 : vector<8x32xf32>
      %77 = arith.addf %75, %76 : vector<8x32xf32>
      %78 = math.tanh %77 : vector<8x32xf32>
      %79 = arith.mulf %74, %78 : vector<8x32xf32>
      %c0_34 = arith.constant 0 : index
      %80 = arith.index_cast %c1_i32_30 : i32 to index
      %c0_35 = arith.constant 0 : index
      %c0_36 = arith.constant 0 : index
      %81 = vector.load %arg5[%c0_34, %80, %c0_35, %c0_36] : memref<1x8x8x32xf32, #tpu.memory_space<vmem>>, vector<1x1x8x32xf32>
      %82 = vector.shape_cast %81 : vector<1x1x8x32xf32> to vector<8x32xf32>
      %83 = vector.shape_cast %79 : vector<8x32xf32> to vector<1x1x8x32xf32>
      tpu.vector_store %arg5[%c0_34, %80, %c0_35, %c0_36], %83 {strides = array<i32>} : memref<1x8x8x32xf32, #tpu.memory_space<vmem>>, vector<1x1x8x32xf32>,
      %c2_i32 = arith.constant 2 : i32
      %84 = arith.index_cast %c2_i32 : i32 to index
      %c0_37 = arith.constant 0 : index
      %c0_38 = arith.constant 0 : index
      %85 = vector.load %arg6[%84, %c0_37, %c0_38] : memref<8x8x128xbf16, #tpu.memory_space<vmem>>, vector<1x8x128xbf16>
      %86 = vector.shape_cast %85 : vector<1x8x128xbf16> to vector<8x128xbf16>
      %87 = arith.extf %86 : vector<8x128xbf16> to vector<8x128xf32>
      %88 = arith.truncf %79 : vector<8x32xf32> to vector<8x32xbf16>
      %cst_39 = arith.constant dense<0.000000e+00> : vector<8x128xf32>
      %89 = tpu.matmul %88, %15, %cst_39 {dimension_numbers = #tpu.dot_dimension_numbers<[1], [0], [0], [1], [0, 0, 1, 1], [], []>} : vector<8x32xbf16>, vector<32x128xbf16>, vector<8x128xf32> -> vector<8x128xf32>
      %90 = arith.addf %87, %89 : vector<8x128xf32>
      %91 = arith.mulf %90, %24 : vector<8x128xf32>
      %92 = math.tanh %91 : vector<8x128xf32>
      %93 = arith.mulf %92, %24 : vector<8x128xf32>
      %94 = arith.addf %93, %27 : vector<8x128xf32>
      %95 = vector.extract_strided_slice %94 {offsets = [0, 0], sizes = [8, 32], strides = [1, 1]} : vector<8x128xf32> to vector<8x32xf32>
      %96 = vector.extract_strided_slice %94 {offsets = [0, 32], sizes = [8, 32], strides = [1, 1]} : vector<8x128xf32> to vector<8x32xf32>
      %97 = vector.extract_strided_slice %94 {offsets = [0, 64], sizes = [8, 32], strides = [1, 1]} : vector<8x128xf32> to vector<8x32xf32>
      %98 = vector.extract_strided_slice %94 {offsets = [0, 96], sizes = [8, 32], strides = [1, 1]} : vector<8x128xf32> to vector<8x32xf32>
      %99 = arith.mulf %96, %77 : vector<8x32xf32>
      %100 = arith.mulf %95, %97 : vector<8x32xf32>
      %101 = arith.addf %99, %100 : vector<8x32xf32>
      %102 = math.tanh %101 : vector<8x32xf32>
      %103 = arith.mulf %98, %102 : vector<8x32xf32>
      %c0_40 = arith.constant 0 : index
      %104 = arith.index_cast %c2_i32 : i32 to index
      %c0_41 = arith.constant 0 : index
      %c0_42 = arith.constant 0 : index
      %105 = vector.load %arg5[%c0_40, %104, %c0_41, %c0_42] : memref<1x8x8x32xf32, #tpu.memory_space<vmem>>, vector<1x1x8x32xf32>
      %106 = vector.shape_cast %105 : vector<1x1x8x32xf32> to vector<8x32xf32>
      %107 = vector.shape_cast %103 : vector<8x32xf32> to vector<1x1x8x32xf32>
      tpu.vector_store %arg5[%c0_40, %104, %c0_41, %c0_42], %107 {strides = array<i32>} : memref<1x8x8x32xf32, #tpu.memory_space<vmem>>, vector<1x1x8x32xf32>,
      %c3_i32 = arith.constant 3 : i32
      %108 = arith.index_cast %c3_i32 : i32 to index
      %c0_43 = arith.constant 0 : index
      %c0_44 = arith.constant 0 : index
      %109 = vector.load %arg6[%108, %c0_43, %c0_44] : memref<8x8x128xbf16, #tpu.memory_space<vmem>>, vector<1x8x128xbf16>
      %110 = vector.shape_cast %109 : vector<1x8x128xbf16> to vector<8x128xbf16>
      %111 = arith.extf %110 : vector<8x128xbf16> to vector<8x128xf32>
      %112 = arith.truncf %103 : vector<8x32xf32> to vector<8x32xbf16>
      %cst_45 = arith.constant dense<0.000000e+00> : vector<8x128xf32>
      %113 = tpu.matmul %112, %15, %cst_45 {dimension_numbers = #tpu.dot_dimension_numbers<[1], [0], [0], [1], [0, 0, 1, 1], [], []>} : vector<8x32xbf16>, vector<32x128xbf16>, vector<8x128xf32> -> vector<8x128xf32>
      %114 = arith.addf %111, %113 : vector<8x128xf32>
      %115 = arith.mulf %114, %24 : vector<8x128xf32>
      %116 = math.tanh %115 : vector<8x128xf32>
      %117 = arith.mulf %116, %24 : vector<8x128xf32>
      %118 = arith.addf %117, %27 : vector<8x128xf32>
      %119 = vector.extract_strided_slice %118 {offsets = [0, 0], sizes = [8, 32], strides = [1, 1]} : vector<8x128xf32> to vector<8x32xf32>
      %120 = vector.extract_strided_slice %118 {offsets = [0, 32], sizes = [8, 32], strides = [1, 1]} : vector<8x128xf32> to vector<8x32xf32>
      %121 = vector.extract_strided_slice %118 {offsets = [0, 64], sizes = [8, 32], strides = [1, 1]} : vector<8x128xf32> to vector<8x32xf32>
      %122 = vector.extract_strided_slice %118 {offsets = [0, 96], sizes = [8, 32], strides = [1, 1]} : vector<8x128xf32> to vector<8x32xf32>
      %123 = arith.mulf %120, %101 : vector<8x32xf32>
      %124 = arith.mulf %119, %121 : vector<8x32xf32>
      %125 = arith.addf %123, %124 : vector<8x32xf32>
      %126 = math.tanh %125 : vector<8x32xf32>
      %127 = arith.mulf %122, %126 : vector<8x32xf32>
      %c0_46 = arith.constant 0 : index
      %128 = arith.index_cast %c3_i32 : i32 to index
      %c0_47 = arith.constant 0 : index
      %c0_48 = arith.constant 0 : index
      %129 = vector.load %arg5[%c0_46, %128, %c0_47, %c0_48] : memref<1x8x8x32xf32, #tpu.memory_space<vmem>>, vector<1x1x8x32xf32>
      %130 = vector.shape_cast %129 : vector<1x1x8x32xf32> to vector<8x32xf32>
      %131 = vector.shape_cast %127 : vector<8x32xf32> to vector<1x1x8x32xf32>
      tpu.vector_store %arg5[%c0_46, %128, %c0_47, %c0_48], %131 {strides = array<i32>} : memref<1x8x8x32xf32, #tpu.memory_space<vmem>>, vector<1x1x8x32xf32>,
      %c4_i32 = arith.constant 4 : i32
      %132 = arith.index_cast %c4_i32 : i32 to index
      %c0_49 = arith.constant 0 : index
      %c0_50 = arith.constant 0 : index
      %133 = vector.load %arg6[%132, %c0_49, %c0_50] : memref<8x8x128xbf16, #tpu.memory_space<vmem>>, vector<1x8x128xbf16>
      %134 = vector.shape_cast %133 : vector<1x8x128xbf16> to vector<8x128xbf16>
      %135 = arith.extf %134 : vector<8x128xbf16> to vector<8x128xf32>
      %136 = arith.truncf %127 : vector<8x32xf32> to vector<8x32xbf16>
      %cst_51 = arith.constant dense<0.000000e+00> : vector<8x128xf32>
      %137 = tpu.matmul %136, %15, %cst_51 {dimension_numbers = #tpu.dot_dimension_numbers<[1], [0], [0], [1], [0, 0, 1, 1], [], []>} : vector<8x32xbf16>, vector<32x128xbf16>, vector<8x128xf32> -> vector<8x128xf32>
      %138 = arith.addf %135, %137 : vector<8x128xf32>
      %139 = arith.mulf %138, %24 : vector<8x128xf32>
      %140 = math.tanh %139 : vector<8x128xf32>
      %141 = arith.mulf %140, %24 : vector<8x128xf32>
      %142 = arith.addf %141, %27 : vector<8x128xf32>
      %143 = vector.extract_strided_slice %142 {offsets = [0, 0], sizes = [8, 32], strides = [1, 1]} : vector<8x128xf32> to vector<8x32xf32>
      %144 = vector.extract_strided_slice %142 {offsets = [0, 32], sizes = [8, 32], strides = [1, 1]} : vector<8x128xf32> to vector<8x32xf32>
      %145 = vector.extract_strided_slice %142 {offsets = [0, 64], sizes = [8, 32], strides = [1, 1]} : vector<8x128xf32> to vector<8x32xf32>
      %146 = vector.extract_strided_slice %142 {offsets = [0, 96], sizes = [8, 32], strides = [1, 1]} : vector<8x128xf32> to vector<8x32xf32>
      %147 = arith.mulf %144, %125 : vector<8x32xf32>
      %148 = arith.mulf %143, %145 : vector<8x32xf32>
      %149 = arith.addf %147, %148 : vector<8x32xf32>
      %150 = math.tanh %149 : vector<8x32xf32>
      %151 = arith.mulf %146, %150 : vector<8x32xf32>
      %c0_52 = arith.constant 0 : index
      %152 = arith.index_cast %c4_i32 : i32 to index
      %c0_53 = arith.constant 0 : index
      %c0_54 = arith.constant 0 : index
      %153 = vector.load %arg5[%c0_52, %152, %c0_53, %c0_54] : memref<1x8x8x32xf32, #tpu.memory_space<vmem>>, vector<1x1x8x32xf32>
      %154 = vector.shape_cast %153 : vector<1x1x8x32xf32> to vector<8x32xf32>
      %155 = vector.shape_cast %151 : vector<8x32xf32> to vector<1x1x8x32xf32>
      tpu.vector_store %arg5[%c0_52, %152, %c0_53, %c0_54], %155 {strides = array<i32>} : memref<1x8x8x32xf32, #tpu.memory_space<vmem>>, vector<1x1x8x32xf32>,
      %c5_i32 = arith.constant 5 : i32
      %156 = arith.index_cast %c5_i32 : i32 to index
      %c0_55 = arith.constant 0 : index
      %c0_56 = arith.constant 0 : index
      %157 = vector.load %arg6[%156, %c0_55, %c0_56] : memref<8x8x128xbf16, #tpu.memory_space<vmem>>, vector<1x8x128xbf16>
      %158 = vector.shape_cast %157 : vector<1x8x128xbf16> to vector<8x128xbf16>
      %159 = arith.extf %158 : vector<8x128xbf16> to vector<8x128xf32>
      %160 = arith.truncf %151 : vector<8x32xf32> to vector<8x32xbf16>
      %cst_57 = arith.constant dense<0.000000e+00> : vector<8x128xf32>
      %161 = tpu.matmul %160, %15, %cst_57 {dimension_numbers = #tpu.dot_dimension_numbers<[1], [0], [0], [1], [0, 0, 1, 1], [], []>} : vector<8x32xbf16>, vector<32x128xbf16>, vector<8x128xf32> -> vector<8x128xf32>
      %162 = arith.addf %159, %161 : vector<8x128xf32>
      %163 = arith.mulf %162, %24 : vector<8x128xf32>
      %164 = math.tanh %163 : vector<8x128xf32>
      %165 = arith.mulf %164, %24 : vector<8x128xf32>
      %166 = arith.addf %165, %27 : vector<8x128xf32>
      %167 = vector.extract_strided_slice %166 {offsets = [0, 0], sizes = [8, 32], strides = [1, 1]} : vector<8x128xf32> to vector<8x32xf32>
      %168 = vector.extract_strided_slice %166 {offsets = [0, 32], sizes = [8, 32], strides = [1, 1]} : vector<8x128xf32> to vector<8x32xf32>
      %169 = vector.extract_strided_slice %166 {offsets = [0, 64], sizes = [8, 32], strides = [1, 1]} : vector<8x128xf32> to vector<8x32xf32>
      %170 = vector.extract_strided_slice %166 {offsets = [0, 96], sizes = [8, 32], strides = [1, 1]} : vector<8x128xf32> to vector<8x32xf32>
      %171 = arith.mulf %168, %149 : vector<8x32xf32>
      %172 = arith.mulf %167, %169 : vector<8x32xf32>
      %173 = arith.addf %171, %172 : vector<8x32xf32>
      %174 = math.tanh %173 : vector<8x32xf32>
      %175 = arith.mulf %170, %174 : vector<8x32xf32>
      %c0_58 = arith.constant 0 : index
      %176 = arith.index_cast %c5_i32 : i32 to index
      %c0_59 = arith.constant 0 : index
      %c0_60 = arith.constant 0 : index
      %177 = vector.load %arg5[%c0_58, %176, %c0_59, %c0_60] : memref<1x8x8x32xf32, #tpu.memory_space<vmem>>, vector<1x1x8x32xf32>
      %178 = vector.shape_cast %177 : vector<1x1x8x32xf32> to vector<8x32xf32>
      %179 = vector.shape_cast %175 : vector<8x32xf32> to vector<1x1x8x32xf32>
      tpu.vector_store %arg5[%c0_58, %176, %c0_59, %c0_60], %179 {strides = array<i32>} : memref<1x8x8x32xf32, #tpu.memory_space<vmem>>, vector<1x1x8x32xf32>,
      %c6_i32 = arith.constant 6 : i32
      %180 = arith.index_cast %c6_i32 : i32 to index
      %c0_61 = arith.constant 0 : index
      %c0_62 = arith.constant 0 : index
      %181 = vector.load %arg6[%180, %c0_61, %c0_62] : memref<8x8x128xbf16, #tpu.memory_space<vmem>>, vector<1x8x128xbf16>
      %182 = vector.shape_cast %181 : vector<1x8x128xbf16> to vector<8x128xbf16>
      %183 = arith.extf %182 : vector<8x128xbf16> to vector<8x128xf32>
      %184 = arith.truncf %175 : vector<8x32xf32> to vector<8x32xbf16>
      %cst_63 = arith.constant dense<0.000000e+00> : vector<8x128xf32>
      %185 = tpu.matmul %184, %15, %cst_63 {dimension_numbers = #tpu.dot_dimension_numbers<[1], [0], [0], [1], [0, 0, 1, 1], [], []>} : vector<8x32xbf16>, vector<32x128xbf16>, vector<8x128xf32> -> vector<8x128xf32>
      %186 = arith.addf %183, %185 : vector<8x128xf32>
      %187 = arith.mulf %186, %24 : vector<8x128xf32>
      %188 = math.tanh %187 : vector<8x128xf32>
      %189 = arith.mulf %188, %24 : vector<8x128xf32>
      %190 = arith.addf %189, %27 : vector<8x128xf32>
      %191 = vector.extract_strided_slice %190 {offsets = [0, 0], sizes = [8, 32], strides = [1, 1]} : vector<8x128xf32> to vector<8x32xf32>
      %192 = vector.extract_strided_slice %190 {offsets = [0, 32], sizes = [8, 32], strides = [1, 1]} : vector<8x128xf32> to vector<8x32xf32>
      %193 = vector.extract_strided_slice %190 {offsets = [0, 64], sizes = [8, 32], strides = [1, 1]} : vector<8x128xf32> to vector<8x32xf32>
      %194 = vector.extract_strided_slice %190 {offsets = [0, 96], sizes = [8, 32], strides = [1, 1]} : vector<8x128xf32> to vector<8x32xf32>
      %195 = arith.mulf %192, %173 : vector<8x32xf32>
      %196 = arith.mulf %191, %193 : vector<8x32xf32>
      %197 = arith.addf %195, %196 : vector<8x32xf32>
      %198 = math.tanh %197 : vector<8x32xf32>
      %199 = arith.mulf %194, %198 : vector<8x32xf32>
      %c0_64 = arith.constant 0 : index
      %200 = arith.index_cast %c6_i32 : i32 to index
      %c0_65 = arith.constant 0 : index
      %c0_66 = arith.constant 0 : index
      %201 = vector.load %arg5[%c0_64, %200, %c0_65, %c0_66] : memref<1x8x8x32xf32, #tpu.memory_space<vmem>>, vector<1x1x8x32xf32>
      %202 = vector.shape_cast %201 : vector<1x1x8x32xf32> to vector<8x32xf32>
      %203 = vector.shape_cast %199 : vector<8x32xf32> to vector<1x1x8x32xf32>
      tpu.vector_store %arg5[%c0_64, %200, %c0_65, %c0_66], %203 {strides = array<i32>} : memref<1x8x8x32xf32, #tpu.memory_space<vmem>>, vector<1x1x8x32xf32>,
      %c7_i32 = arith.constant 7 : i32
      %204 = arith.index_cast %c7_i32 : i32 to index
      %c0_67 = arith.constant 0 : index
      %c0_68 = arith.constant 0 : index
      %205 = vector.load %arg6[%204, %c0_67, %c0_68] : memref<8x8x128xbf16, #tpu.memory_space<vmem>>, vector<1x8x128xbf16>
      %206 = vector.shape_cast %205 : vector<1x8x128xbf16> to vector<8x128xbf16>
      %207 = arith.extf %206 : vector<8x128xbf16> to vector<8x128xf32>
      %208 = arith.truncf %199 : vector<8x32xf32> to vector<8x32xbf16>
      %cst_69 = arith.constant dense<0.000000e+00> : vector<8x128xf32>
      %209 = tpu.matmul %208, %15, %cst_69 {dimension_numbers = #tpu.dot_dimension_numbers<[1], [0], [0], [1], [0, 0, 1, 1], [], []>} : vector<8x32xbf16>, vector<32x128xbf16>, vector<8x128xf32> -> vector<8x128xf32>
      %210 = arith.addf %207, %209 : vector<8x128xf32>
      %211 = arith.mulf %210, %24 : vector<8x128xf32>
      %212 = math.tanh %211 : vector<8x128xf32>
      %213 = arith.mulf %212, %24 : vector<8x128xf32>
      %214 = arith.addf %213, %27 : vector<8x128xf32>
      %215 = vector.extract_strided_slice %214 {offsets = [0, 0], sizes = [8, 32], strides = [1, 1]} : vector<8x128xf32> to vector<8x32xf32>
      %216 = vector.extract_strided_slice %214 {offsets = [0, 32], sizes = [8, 32], strides = [1, 1]} : vector<8x128xf32> to vector<8x32xf32>
      %217 = vector.extract_strided_slice %214 {offsets = [0, 64], sizes = [8, 32], strides = [1, 1]} : vector<8x128xf32> to vector<8x32xf32>
      %218 = vector.extract_strided_slice %214 {offsets = [0, 96], sizes = [8, 32], strides = [1, 1]} : vector<8x128xf32> to vector<8x32xf32>
      %219 = arith.mulf %216, %197 : vector<8x32xf32>
      %220 = arith.mulf %215, %217 : vector<8x32xf32>
      %221 = arith.addf %219, %220 : vector<8x32xf32>
      %222 = math.tanh %221 : vector<8x32xf32>
      %223 = arith.mulf %218, %222 : vector<8x32xf32>
      %c0_70 = arith.constant 0 : index
      %224 = arith.index_cast %c7_i32 : i32 to index
      %c0_71 = arith.constant 0 : index
      %c0_72 = arith.constant 0 : index
      %225 = vector.load %arg5[%c0_70, %224, %c0_71, %c0_72] : memref<1x8x8x32xf32, #tpu.memory_space<vmem>>, vector<1x1x8x32xf32>
      %226 = vector.shape_cast %225 : vector<1x1x8x32xf32> to vector<8x32xf32>
      %227 = vector.shape_cast %223 : vector<8x32xf32> to vector<1x1x8x32xf32>
      tpu.vector_store %arg5[%c0_70, %224, %c0_71, %c0_72], %227 {strides = array<i32>} : memref<1x8x8x32xf32, #tpu.memory_space<vmem>>, vector<1x1x8x32xf32>,
      %c8_i32 = arith.constant 8 : i32
    } else {
    }
    %c1_i32 = arith.constant 1 : i32
    %33 = arith.cmpi eq, %arg0, %c1_i32 : i32
    %34 = arith.extui %33 : i1 to i32
    %c0_i32_22 = arith.constant 0 : i32
    %35 = arith.cmpi ne, %34, %c0_i32_22 : i32
    scf.if %35 {
      %c0_i32_23 = arith.constant 0 : i32
      %c7_i32 = arith.constant 7 : i32
      %36 = arith.subi %c7_i32, %c0_i32_23 : i32
      %37 = arith.index_cast %36 : i32 to index
      %c0_24 = arith.constant 0 : index
      %c0_25 = arith.constant 0 : index
      %38 = vector.load %arg6[%37, %c0_24, %c0_25] : memref<8x8x128xbf16, #tpu.memory_space<vmem>>, vector<1x8x128xbf16>
      %39 = vector.shape_cast %38 : vector<1x8x128xbf16> to vector<8x128xbf16>
      %40 = arith.extf %39 : vector<8x128xbf16> to vector<8x128xf32>
      %41 = arith.truncf %28 : vector<8x32xf32> to vector<8x32xbf16>
      %cst_26 = arith.constant dense<0.000000e+00> : vector<8x128xf32>
      %42 = tpu.matmul %41, %15, %cst_26 {dimension_numbers = #tpu.dot_dimension_numbers<[1], [0], [0], [1], [0, 0, 1, 1], [], []>} : vector<8x32xbf16>, vector<32x128xbf16>, vector<8x128xf32> -> vector<8x128xf32>
      %43 = arith.addf %40, %42 : vector<8x128xf32>
      %44 = arith.mulf %43, %24 : vector<8x128xf32>
      %45 = math.tanh %44 : vector<8x128xf32>
      %46 = arith.mulf %45, %24 : vector<8x128xf32>
      %47 = arith.addf %46, %27 : vector<8x128xf32>
      %48 = vector.extract_strided_slice %47 {offsets = [0, 0], sizes = [8, 32], strides = [1, 1]} : vector<8x128xf32> to vector<8x32xf32>
      %49 = vector.extract_strided_slice %47 {offsets = [0, 32], sizes = [8, 32], strides = [1, 1]} : vector<8x128xf32> to vector<8x32xf32>
      %50 = vector.extract_strided_slice %47 {offsets = [0, 64], sizes = [8, 32], strides = [1, 1]} : vector<8x128xf32> to vector<8x32xf32>
      %51 = vector.extract_strided_slice %47 {offsets = [0, 96], sizes = [8, 32], strides = [1, 1]} : vector<8x128xf32> to vector<8x32xf32>
      %52 = arith.mulf %49, %29 : vector<8x32xf32>
      %53 = arith.mulf %48, %50 : vector<8x32xf32>
      %54 = arith.addf %52, %53 : vector<8x32xf32>
      %55 = math.tanh %54 : vector<8x32xf32>
      %56 = arith.mulf %51, %55 : vector<8x32xf32>
      %c0_27 = arith.constant 0 : index
      %57 = arith.index_cast %36 : i32 to index
      %c0_28 = arith.constant 0 : index
      %c0_29 = arith.constant 0 : index
      %58 = vector.load %arg5[%c0_27, %57, %c0_28, %c0_29] : memref<1x8x8x32xf32, #tpu.memory_space<vmem>>, vector<1x1x8x32xf32>
      %59 = vector.shape_cast %58 : vector<1x1x8x32xf32> to vector<8x32xf32>
      %60 = vector.shape_cast %56 : vector<8x32xf32> to vector<1x1x8x32xf32>
      tpu.vector_store %arg5[%c0_27, %57, %c0_28, %c0_29], %60 {strides = array<i32>} : memref<1x8x8x32xf32, #tpu.memory_space<vmem>>, vector<1x1x8x32xf32>,
      %c1_i32_30 = arith.constant 1 : i32
      %c7_i32_31 = arith.constant 7 : i32
      %61 = arith.subi %c7_i32_31, %c1_i32_30 : i32
      %62 = arith.index_cast %61 : i32 to index
      %c0_32 = arith.constant 0 : index
      %c0_33 = arith.constant 0 : index
      %63 = vector.load %arg6[%62, %c0_32, %c0_33] : memref<8x8x128xbf16, #tpu.memory_space<vmem>>, vector<1x8x128xbf16>
      %64 = vector.shape_cast %63 : vector<1x8x128xbf16> to vector<8x128xbf16>
      %65 = arith.extf %64 : vector<8x128xbf16> to vector<8x128xf32>
      %66 = arith.truncf %56 : vector<8x32xf32> to vector<8x32xbf16>
      %cst_34 = arith.constant dense<0.000000e+00> : vector<8x128xf32>
      %67 = tpu.matmul %66, %15, %cst_34 {dimension_numbers = #tpu.dot_dimension_numbers<[1], [0], [0], [1], [0, 0, 1, 1], [], []>} : vector<8x32xbf16>, vector<32x128xbf16>, vector<8x128xf32> -> vector<8x128xf32>
      %68 = arith.addf %65, %67 : vector<8x128xf32>
      %69 = arith.mulf %68, %24 : vector<8x128xf32>
      %70 = math.tanh %69 : vector<8x128xf32>
      %71 = arith.mulf %70, %24 : vector<8x128xf32>
      %72 = arith.addf %71, %27 : vector<8x128xf32>
      %73 = vector.extract_strided_slice %72 {offsets = [0, 0], sizes = [8, 32], strides = [1, 1]} : vector<8x128xf32> to vector<8x32xf32>
      %74 = vector.extract_strided_slice %72 {offsets = [0, 32], sizes = [8, 32], strides = [1, 1]} : vector<8x128xf32> to vector<8x32xf32>
      %75 = vector.extract_strided_slice %72 {offsets = [0, 64], sizes = [8, 32], strides = [1, 1]} : vector<8x128xf32> to vector<8x32xf32>
      %76 = vector.extract_strided_slice %72 {offsets = [0, 96], sizes = [8, 32], strides = [1, 1]} : vector<8x128xf32> to vector<8x32xf32>
      %77 = arith.mulf %74, %54 : vector<8x32xf32>
      %78 = arith.mulf %73, %75 : vector<8x32xf32>
      %79 = arith.addf %77, %78 : vector<8x32xf32>
      %80 = math.tanh %79 : vector<8x32xf32>
      %81 = arith.mulf %76, %80 : vector<8x32xf32>
      %c0_35 = arith.constant 0 : index
      %82 = arith.index_cast %61 : i32 to index
      %c0_36 = arith.constant 0 : index
      %c0_37 = arith.constant 0 : index
      %83 = vector.load %arg5[%c0_35, %82, %c0_36, %c0_37] : memref<1x8x8x32xf32, #tpu.memory_space<vmem>>, vector<1x1x8x32xf32>
      %84 = vector.shape_cast %83 : vector<1x1x8x32xf32> to vector<8x32xf32>
      %85 = vector.shape_cast %81 : vector<8x32xf32> to vector<1x1x8x32xf32>
      tpu.vector_store %arg5[%c0_35, %82, %c0_36, %c0_37], %85 {strides = array<i32>} : memref<1x8x8x32xf32, #tpu.memory_space<vmem>>, vector<1x1x8x32xf32>,
      %c2_i32 = arith.constant 2 : i32
      %c7_i32_38 = arith.constant 7 : i32
      %86 = arith.subi %c7_i32_38, %c2_i32 : i32
      %87 = arith.index_cast %86 : i32 to index
      %c0_39 = arith.constant 0 : index
      %c0_40 = arith.constant 0 : index
      %88 = vector.load %arg6[%87, %c0_39, %c0_40] : memref<8x8x128xbf16, #tpu.memory_space<vmem>>, vector<1x8x128xbf16>
      %89 = vector.shape_cast %88 : vector<1x8x128xbf16> to vector<8x128xbf16>
      %90 = arith.extf %89 : vector<8x128xbf16> to vector<8x128xf32>
      %91 = arith.truncf %81 : vector<8x32xf32> to vector<8x32xbf16>
      %cst_41 = arith.constant dense<0.000000e+00> : vector<8x128xf32>
      %92 = tpu.matmul %91, %15, %cst_41 {dimension_numbers = #tpu.dot_dimension_numbers<[1], [0], [0], [1], [0, 0, 1, 1], [], []>} : vector<8x32xbf16>, vector<32x128xbf16>, vector<8x128xf32> -> vector<8x128xf32>
      %93 = arith.addf %90, %92 : vector<8x128xf32>
      %94 = arith.mulf %93, %24 : vector<8x128xf32>
      %95 = math.tanh %94 : vector<8x128xf32>
      %96 = arith.mulf %95, %24 : vector<8x128xf32>
      %97 = arith.addf %96, %27 : vector<8x128xf32>
      %98 = vector.extract_strided_slice %97 {offsets = [0, 0], sizes = [8, 32], strides = [1, 1]} : vector<8x128xf32> to vector<8x32xf32>
      %99 = vector.extract_strided_slice %97 {offsets = [0, 32], sizes = [8, 32], strides = [1, 1]} : vector<8x128xf32> to vector<8x32xf32>
      %100 = vector.extract_strided_slice %97 {offsets = [0, 64], sizes = [8, 32], strides = [1, 1]} : vector<8x128xf32> to vector<8x32xf32>
      %101 = vector.extract_strided_slice %97 {offsets = [0, 96], sizes = [8, 32], strides = [1, 1]} : vector<8x128xf32> to vector<8x32xf32>
      %102 = arith.mulf %99, %79 : vector<8x32xf32>
      %103 = arith.mulf %98, %100 : vector<8x32xf32>
      %104 = arith.addf %102, %103 : vector<8x32xf32>
      %105 = math.tanh %104 : vector<8x32xf32>
      %106 = arith.mulf %101, %105 : vector<8x32xf32>
      %c0_42 = arith.constant 0 : index
      %107 = arith.index_cast %86 : i32 to index
      %c0_43 = arith.constant 0 : index
      %c0_44 = arith.constant 0 : index
      %108 = vector.load %arg5[%c0_42, %107, %c0_43, %c0_44] : memref<1x8x8x32xf32, #tpu.memory_space<vmem>>, vector<1x1x8x32xf32>
      %109 = vector.shape_cast %108 : vector<1x1x8x32xf32> to vector<8x32xf32>
      %110 = vector.shape_cast %106 : vector<8x32xf32> to vector<1x1x8x32xf32>
      tpu.vector_store %arg5[%c0_42, %107, %c0_43, %c0_44], %110 {strides = array<i32>} : memref<1x8x8x32xf32, #tpu.memory_space<vmem>>, vector<1x1x8x32xf32>,
      %c3_i32 = arith.constant 3 : i32
      %c7_i32_45 = arith.constant 7 : i32
      %111 = arith.subi %c7_i32_45, %c3_i32 : i32
      %112 = arith.index_cast %111 : i32 to index
      %c0_46 = arith.constant 0 : index
      %c0_47 = arith.constant 0 : index
      %113 = vector.load %arg6[%112, %c0_46, %c0_47] : memref<8x8x128xbf16, #tpu.memory_space<vmem>>, vector<1x8x128xbf16>
      %114 = vector.shape_cast %113 : vector<1x8x128xbf16> to vector<8x128xbf16>
      %115 = arith.extf %114 : vector<8x128xbf16> to vector<8x128xf32>
      %116 = arith.truncf %106 : vector<8x32xf32> to vector<8x32xbf16>
      %cst_48 = arith.constant dense<0.000000e+00> : vector<8x128xf32>
      %117 = tpu.matmul %116, %15, %cst_48 {dimension_numbers = #tpu.dot_dimension_numbers<[1], [0], [0], [1], [0, 0, 1, 1], [], []>} : vector<8x32xbf16>, vector<32x128xbf16>, vector<8x128xf32> -> vector<8x128xf32>
      %118 = arith.addf %115, %117 : vector<8x128xf32>
      %119 = arith.mulf %118, %24 : vector<8x128xf32>
      %120 = math.tanh %119 : vector<8x128xf32>
      %121 = arith.mulf %120, %24 : vector<8x128xf32>
      %122 = arith.addf %121, %27 : vector<8x128xf32>
      %123 = vector.extract_strided_slice %122 {offsets = [0, 0], sizes = [8, 32], strides = [1, 1]} : vector<8x128xf32> to vector<8x32xf32>
      %124 = vector.extract_strided_slice %122 {offsets = [0, 32], sizes = [8, 32], strides = [1, 1]} : vector<8x128xf32> to vector<8x32xf32>
      %125 = vector.extract_strided_slice %122 {offsets = [0, 64], sizes = [8, 32], strides = [1, 1]} : vector<8x128xf32> to vector<8x32xf32>
      %126 = vector.extract_strided_slice %122 {offsets = [0, 96], sizes = [8, 32], strides = [1, 1]} : vector<8x128xf32> to vector<8x32xf32>
      %127 = arith.mulf %124, %104 : vector<8x32xf32>
      %128 = arith.mulf %123, %125 : vector<8x32xf32>
      %129 = arith.addf %127, %128 : vector<8x32xf32>
      %130 = math.tanh %129 : vector<8x32xf32>
      %131 = arith.mulf %126, %130 : vector<8x32xf32>
      %c0_49 = arith.constant 0 : index
      %132 = arith.index_cast %111 : i32 to index
      %c0_50 = arith.constant 0 : index
      %c0_51 = arith.constant 0 : index
      %133 = vector.load %arg5[%c0_49, %132, %c0_50, %c0_51] : memref<1x8x8x32xf32, #tpu.memory_space<vmem>>, vector<1x1x8x32xf32>
      %134 = vector.shape_cast %133 : vector<1x1x8x32xf32> to vector<8x32xf32>
      %135 = vector.shape_cast %131 : vector<8x32xf32> to vector<1x1x8x32xf32>
      tpu.vector_store %arg5[%c0_49, %132, %c0_50, %c0_51], %135 {strides = array<i32>} : memref<1x8x8x32xf32, #tpu.memory_space<vmem>>, vector<1x1x8x32xf32>,
      %c4_i32 = arith.constant 4 : i32
      %c7_i32_52 = arith.constant 7 : i32
      %136 = arith.subi %c7_i32_52, %c4_i32 : i32
      %137 = arith.index_cast %136 : i32 to index
      %c0_53 = arith.constant 0 : index
      %c0_54 = arith.constant 0 : index
      %138 = vector.load %arg6[%137, %c0_53, %c0_54] : memref<8x8x128xbf16, #tpu.memory_space<vmem>>, vector<1x8x128xbf16>
      %139 = vector.shape_cast %138 : vector<1x8x128xbf16> to vector<8x128xbf16>
      %140 = arith.extf %139 : vector<8x128xbf16> to vector<8x128xf32>
      %141 = arith.truncf %131 : vector<8x32xf32> to vector<8x32xbf16>
      %cst_55 = arith.constant dense<0.000000e+00> : vector<8x128xf32>
      %142 = tpu.matmul %141, %15, %cst_55 {dimension_numbers = #tpu.dot_dimension_numbers<[1], [0], [0], [1], [0, 0, 1, 1], [], []>} : vector<8x32xbf16>, vector<32x128xbf16>, vector<8x128xf32> -> vector<8x128xf32>
      %143 = arith.addf %140, %142 : vector<8x128xf32>
      %144 = arith.mulf %143, %24 : vector<8x128xf32>
      %145 = math.tanh %144 : vector<8x128xf32>
      %146 = arith.mulf %145, %24 : vector<8x128xf32>
      %147 = arith.addf %146, %27 : vector<8x128xf32>
      %148 = vector.extract_strided_slice %147 {offsets = [0, 0], sizes = [8, 32], strides = [1, 1]} : vector<8x128xf32> to vector<8x32xf32>
      %149 = vector.extract_strided_slice %147 {offsets = [0, 32], sizes = [8, 32], strides = [1, 1]} : vector<8x128xf32> to vector<8x32xf32>
      %150 = vector.extract_strided_slice %147 {offsets = [0, 64], sizes = [8, 32], strides = [1, 1]} : vector<8x128xf32> to vector<8x32xf32>
      %151 = vector.extract_strided_slice %147 {offsets = [0, 96], sizes = [8, 32], strides = [1, 1]} : vector<8x128xf32> to vector<8x32xf32>
      %152 = arith.mulf %149, %129 : vector<8x32xf32>
      %153 = arith.mulf %148, %150 : vector<8x32xf32>
      %154 = arith.addf %152, %153 : vector<8x32xf32>
      %155 = math.tanh %154 : vector<8x32xf32>
      %156 = arith.mulf %151, %155 : vector<8x32xf32>
      %c0_56 = arith.constant 0 : index
      %157 = arith.index_cast %136 : i32 to index
      %c0_57 = arith.constant 0 : index
      %c0_58 = arith.constant 0 : index
      %158 = vector.load %arg5[%c0_56, %157, %c0_57, %c0_58] : memref<1x8x8x32xf32, #tpu.memory_space<vmem>>, vector<1x1x8x32xf32>
      %159 = vector.shape_cast %158 : vector<1x1x8x32xf32> to vector<8x32xf32>
      %160 = vector.shape_cast %156 : vector<8x32xf32> to vector<1x1x8x32xf32>
      tpu.vector_store %arg5[%c0_56, %157, %c0_57, %c0_58], %160 {strides = array<i32>} : memref<1x8x8x32xf32, #tpu.memory_space<vmem>>, vector<1x1x8x32xf32>,
      %c5_i32 = arith.constant 5 : i32
      %c7_i32_59 = arith.constant 7 : i32
      %161 = arith.subi %c7_i32_59, %c5_i32 : i32
      %162 = arith.index_cast %161 : i32 to index
      %c0_60 = arith.constant 0 : index
      %c0_61 = arith.constant 0 : index
      %163 = vector.load %arg6[%162, %c0_60, %c0_61] : memref<8x8x128xbf16, #tpu.memory_space<vmem>>, vector<1x8x128xbf16>
      %164 = vector.shape_cast %163 : vector<1x8x128xbf16> to vector<8x128xbf16>
      %165 = arith.extf %164 : vector<8x128xbf16> to vector<8x128xf32>
      %166 = arith.truncf %156 : vector<8x32xf32> to vector<8x32xbf16>
      %cst_62 = arith.constant dense<0.000000e+00> : vector<8x128xf32>
      %167 = tpu.matmul %166, %15, %cst_62 {dimension_numbers = #tpu.dot_dimension_numbers<[1], [0], [0], [1], [0, 0, 1, 1], [], []>} : vector<8x32xbf16>, vector<32x128xbf16>, vector<8x128xf32> -> vector<8x128xf32>
      %168 = arith.addf %165, %167 : vector<8x128xf32>
      %169 = arith.mulf %168, %24 : vector<8x128xf32>
      %170 = math.tanh %169 : vector<8x128xf32>
      %171 = arith.mulf %170, %24 : vector<8x128xf32>
      %172 = arith.addf %171, %27 : vector<8x128xf32>
      %173 = vector.extract_strided_slice %172 {offsets = [0, 0], sizes = [8, 32], strides = [1, 1]} : vector<8x128xf32> to vector<8x32xf32>
      %174 = vector.extract_strided_slice %172 {offsets = [0, 32], sizes = [8, 32], strides = [1, 1]} : vector<8x128xf32> to vector<8x32xf32>
      %175 = vector.extract_strided_slice %172 {offsets = [0, 64], sizes = [8, 32], strides = [1, 1]} : vector<8x128xf32> to vector<8x32xf32>
      %176 = vector.extract_strided_slice %172 {offsets = [0, 96], sizes = [8, 32], strides = [1, 1]} : vector<8x128xf32> to vector<8x32xf32>
      %177 = arith.mulf %174, %154 : vector<8x32xf32>
      %178 = arith.mulf %173, %175 : vector<8x32xf32>
      %179 = arith.addf %177, %178 : vector<8x32xf32>
      %180 = math.tanh %179 : vector<8x32xf32>
      %181 = arith.mulf %176, %180 : vector<8x32xf32>
      %c0_63 = arith.constant 0 : index
      %182 = arith.index_cast %161 : i32 to index
      %c0_64 = arith.constant 0 : index
      %c0_65 = arith.constant 0 : index
      %183 = vector.load %arg5[%c0_63, %182, %c0_64, %c0_65] : memref<1x8x8x32xf32, #tpu.memory_space<vmem>>, vector<1x1x8x32xf32>
      %184 = vector.shape_cast %183 : vector<1x1x8x32xf32> to vector<8x32xf32>
      %185 = vector.shape_cast %181 : vector<8x32xf32> to vector<1x1x8x32xf32>
      tpu.vector_store %arg5[%c0_63, %182, %c0_64, %c0_65], %185 {strides = array<i32>} : memref<1x8x8x32xf32, #tpu.memory_space<vmem>>, vector<1x1x8x32xf32>,
      %c6_i32 = arith.constant 6 : i32
      %c7_i32_66 = arith.constant 7 : i32
      %186 = arith.subi %c7_i32_66, %c6_i32 : i32
      %187 = arith.index_cast %186 : i32 to index
      %c0_67 = arith.constant 0 : index
      %c0_68 = arith.constant 0 : index
      %188 = vector.load %arg6[%187, %c0_67, %c0_68] : memref<8x8x128xbf16, #tpu.memory_space<vmem>>, vector<1x8x128xbf16>
      %189 = vector.shape_cast %188 : vector<1x8x128xbf16> to vector<8x128xbf16>
      %190 = arith.extf %189 : vector<8x128xbf16> to vector<8x128xf32>
      %191 = arith.truncf %181 : vector<8x32xf32> to vector<8x32xbf16>
      %cst_69 = arith.constant dense<0.000000e+00> : vector<8x128xf32>
      %192 = tpu.matmul %191, %15, %cst_69 {dimension_numbers = #tpu.dot_dimension_numbers<[1], [0], [0], [1], [0, 0, 1, 1], [], []>} : vector<8x32xbf16>, vector<32x128xbf16>, vector<8x128xf32> -> vector<8x128xf32>
      %193 = arith.addf %190, %192 : vector<8x128xf32>
      %194 = arith.mulf %193, %24 : vector<8x128xf32>
      %195 = math.tanh %194 : vector<8x128xf32>
      %196 = arith.mulf %195, %24 : vector<8x128xf32>
      %197 = arith.addf %196, %27 : vector<8x128xf32>
      %198 = vector.extract_strided_slice %197 {offsets = [0, 0], sizes = [8, 32], strides = [1, 1]} : vector<8x128xf32> to vector<8x32xf32>
      %199 = vector.extract_strided_slice %197 {offsets = [0, 32], sizes = [8, 32], strides = [1, 1]} : vector<8x128xf32> to vector<8x32xf32>
      %200 = vector.extract_strided_slice %197 {offsets = [0, 64], sizes = [8, 32], strides = [1, 1]} : vector<8x128xf32> to vector<8x32xf32>
      %201 = vector.extract_strided_slice %197 {offsets = [0, 96], sizes = [8, 32], strides = [1, 1]} : vector<8x128xf32> to vector<8x32xf32>
      %202 = arith.mulf %199, %179 : vector<8x32xf32>
      %203 = arith.mulf %198, %200 : vector<8x32xf32>
      %204 = arith.addf %202, %203 : vector<8x32xf32>
      %205 = math.tanh %204 : vector<8x32xf32>
      %206 = arith.mulf %201, %205 : vector<8x32xf32>
      %c0_70 = arith.constant 0 : index
      %207 = arith.index_cast %186 : i32 to index
      %c0_71 = arith.constant 0 : index
      %c0_72 = arith.constant 0 : index
      %208 = vector.load %arg5[%c0_70, %207, %c0_71, %c0_72] : memref<1x8x8x32xf32, #tpu.memory_space<vmem>>, vector<1x1x8x32xf32>
      %209 = vector.shape_cast %208 : vector<1x1x8x32xf32> to vector<8x32xf32>
      %210 = vector.shape_cast %206 : vector<8x32xf32> to vector<1x1x8x32xf32>
      tpu.vector_store %arg5[%c0_70, %207, %c0_71, %c0_72], %210 {strides = array<i32>} : memref<1x8x8x32xf32, #tpu.memory_space<vmem>>, vector<1x1x8x32xf32>,
      %c7_i32_73 = arith.constant 7 : i32
      %c7_i32_74 = arith.constant 7 : i32
      %211 = arith.subi %c7_i32_74, %c7_i32_73 : i32
      %212 = arith.index_cast %211 : i32 to index
      %c0_75 = arith.constant 0 : index
      %c0_76 = arith.constant 0 : index
      %213 = vector.load %arg6[%212, %c0_75, %c0_76] : memref<8x8x128xbf16, #tpu.memory_space<vmem>>, vector<1x8x128xbf16>
      %214 = vector.shape_cast %213 : vector<1x8x128xbf16> to vector<8x128xbf16>
      %215 = arith.extf %214 : vector<8x128xbf16> to vector<8x128xf32>
      %216 = arith.truncf %206 : vector<8x32xf32> to vector<8x32xbf16>
      %cst_77 = arith.constant dense<0.000000e+00> : vector<8x128xf32>
      %217 = tpu.matmul %216, %15, %cst_77 {dimension_numbers = #tpu.dot_dimension_numbers<[1], [0], [0], [1], [0, 0, 1, 1], [], []>} : vector<8x32xbf16>, vector<32x128xbf16>, vector<8x128xf32> -> vector<8x128xf32>
      %218 = arith.addf %215, %217 : vector<8x128xf32>
      %219 = arith.mulf %218, %24 : vector<8x128xf32>
      %220 = math.tanh %219 : vector<8x128xf32>
      %221 = arith.mulf %220, %24 : vector<8x128xf32>
      %222 = arith.addf %221, %27 : vector<8x128xf32>
      %223 = vector.extract_strided_slice %222 {offsets = [0, 0], sizes = [8, 32], strides = [1, 1]} : vector<8x128xf32> to vector<8x32xf32>
      %224 = vector.extract_strided_slice %222 {offsets = [0, 32], sizes = [8, 32], strides = [1, 1]} : vector<8x128xf32> to vector<8x32xf32>
      %225 = vector.extract_strided_slice %222 {offsets = [0, 64], sizes = [8, 32], strides = [1, 1]} : vector<8x128xf32> to vector<8x32xf32>
      %226 = vector.extract_strided_slice %222 {offsets = [0, 96], sizes = [8, 32], strides = [1, 1]} : vector<8x128xf32> to vector<8x32xf32>
      %227 = arith.mulf %224, %204 : vector<8x32xf32>
      %228 = arith.mulf %223, %225 : vector<8x32xf32>
      %229 = arith.addf %227, %228 : vector<8x32xf32>
      %230 = math.tanh %229 : vector<8x32xf32>
      %231 = arith.mulf %226, %230 : vector<8x32xf32>
      %c0_78 = arith.constant 0 : index
      %232 = arith.index_cast %211 : i32 to index
      %c0_79 = arith.constant 0 : index
      %c0_80 = arith.constant 0 : index
      %233 = vector.load %arg5[%c0_78, %232, %c0_79, %c0_80] : memref<1x8x8x32xf32, #tpu.memory_space<vmem>>, vector<1x1x8x32xf32>
      %234 = vector.shape_cast %233 : vector<1x1x8x32xf32> to vector<8x32xf32>
      %235 = vector.shape_cast %231 : vector<8x32xf32> to vector<1x1x8x32xf32>
      tpu.vector_store %arg5[%c0_78, %232, %c0_79, %c0_80], %235 {strides = array<i32>} : memref<1x8x8x32xf32, #tpu.memory_space<vmem>>, vector<1x1x8x32xf32>,
      %c8_i32 = arith.constant 8 : i32
    } else {
    }
    return
  }
  func.func @transform_0(%arg0: i32) -> (i32, i32, i32, i32) {
    %c0_i32 = arith.constant 0 : i32
    %c0_i32_0 = arith.constant 0 : i32
    %c0_i32_1 = arith.constant 0 : i32
    %c0_i32_2 = arith.constant 0 : i32
    %c0_i32_3 = arith.constant 0 : i32
    return %c0_i32, %c0_i32_0, %c0_i32_1, %c0_i32_2 : i32, i32, i32, i32
  }
  func.func @transform_1(%arg0: i32) -> (i32, i32, i32) {
    %c0_i32 = arith.constant 0 : i32
    %c0_i32_0 = arith.constant 0 : i32
    %c0_i32_1 = arith.constant 0 : i32
    return %arg0, %c0_i32, %c0_i32_0 : i32, i32, i32
  }
  func.func @transform_2(%arg0: i32) -> (i32, i32, i32) {
    %c0_i32 = arith.constant 0 : i32
    %c0_i32_0 = arith.constant 0 : i32
    %c0_i32_1 = arith.constant 0 : i32
    return %arg0, %c0_i32, %c0_i32_0 : i32, i32, i32
  }
  func.func @transform_3(%arg0: i32) -> (i32, i32, i32) {
    %c0_i32 = arith.constant 0 : i32
    %c0_i32_0 = arith.constant 0 : i32
    %c0_i32_1 = arith.constant 0 : i32
    return %arg0, %c0_i32, %c0_i32_0 : i32, i32, i32
  }
  func.func @transform_4(%arg0: i32) -> (i32, i32, i32, i32) {
    %c0_i32 = arith.constant 0 : i32
    %c0_i32_0 = arith.constant 0 : i32
    %c0_i32_1 = arith.constant 0 : i32
    %c0_i32_2 = arith.constant 0 : i32
    return %arg0, %c0_i32, %c0_i32_0, %c0_i32_1 : i32, i32, i32, i32
  }
}

module attributes {stable_mosaic.version = 11 : i64} {
  func.func @lstm_dir_kernel(%arg0: i32, %arg1: memref<2x8x8x32xf32, #tpu.memory_space<vmem>>, %arg2: memref<1x64x128xbf16, #tpu.memory_space<vmem>>, %arg3: memref<1x32x128xbf16, #tpu.memory_space<vmem>>, %arg4: memref<1x1x128xf32, #tpu.memory_space<vmem>>, %arg5: memref<1x8x8x32xf32, #tpu.memory_space<vmem>>, %arg6: memref<8x8x128xbf16, #tpu.memory_space<vmem>>) attributes {dimension_semantics = [#tpu.dimension_semantics<parallel>], iteration_bounds = array<i64: 2>, scalar_prefetch = 0 : i64, scratch_operands = 1 : i64, tpu.core_type = #tpu.core_type<tc>, window_params = [{pipeline_mode = #tpu.pipeline_mode<synchronous>, transform_indices = @transform_0, window_bounds = array<i64: 2, 8, 8, 32>}, {transform_indices = @transform_1, window_bounds = array<i64: 1, 64, 128>}, {transform_indices = @transform_2, window_bounds = array<i64: 1, 32, 128>}, {transform_indices = @transform_3, window_bounds = array<i64: 1, 1, 128>}, {transform_indices = @transform_4, window_bounds = array<i64: 1, 8, 8, 32>}]} {
    %c0 = arith.constant 0 : index
    %c0_0 = arith.constant 0 : index
    %c0_1 = arith.constant 0 : index
    %c0_2 = arith.constant 0 : index
    %0 = vector.load %arg1[%c0, %c0_0, %c0_1, %c0_2] : memref<2x8x8x32xf32, #tpu.memory_space<vmem>>, vector<1x8x8x32xf32>
    %1 = vector.shape_cast %0 : vector<1x8x8x32xf32> to vector<8x8x32xf32>
    %2 = vector.shape_cast %1 : vector<8x8x32xf32> to vector<64x32xf32>
    %3 = arith.truncf %2 : vector<64x32xf32> to vector<64x32xbf16>
    %c0_3 = arith.constant 0 : index
    %c0_4 = arith.constant 0 : index
    %c0_5 = arith.constant 0 : index
    %4 = vector.load %arg2[%c0_3, %c0_4, %c0_5] : memref<1x64x128xbf16, #tpu.memory_space<vmem>>, vector<1x32x128xbf16>
    %5 = vector.shape_cast %4 : vector<1x32x128xbf16> to vector<32x128xbf16>
    %cst = arith.constant dense<0.000000e+00> : vector<64x128xf32>
    %6 = tpu.matmul %3, %5, %cst {dimension_numbers = #tpu.dot_dimension_numbers<[1], [0], [0], [1], [0, 0, 1, 1], [], []>} : vector<64x32xbf16>, vector<32x128xbf16>, vector<64x128xf32> -> vector<64x128xf32>
    %c1 = arith.constant 1 : index
    %c0_6 = arith.constant 0 : index
    %c0_7 = arith.constant 0 : index
    %c0_8 = arith.constant 0 : index
    %7 = vector.load %arg1[%c1, %c0_6, %c0_7, %c0_8] : memref<2x8x8x32xf32, #tpu.memory_space<vmem>>, vector<1x8x8x32xf32>
    %8 = vector.shape_cast %7 : vector<1x8x8x32xf32> to vector<8x8x32xf32>
    %9 = vector.shape_cast %8 : vector<8x8x32xf32> to vector<64x32xf32>
    %10 = arith.truncf %9 : vector<64x32xf32> to vector<64x32xbf16>
    %c0_9 = arith.constant 0 : index
    %c32 = arith.constant 32 : index
    %c0_10 = arith.constant 0 : index
    %11 = vector.load %arg2[%c0_9, %c32, %c0_10] : memref<1x64x128xbf16, #tpu.memory_space<vmem>>, vector<1x32x128xbf16>
    %12 = vector.shape_cast %11 : vector<1x32x128xbf16> to vector<32x128xbf16>
    %cst_11 = arith.constant dense<0.000000e+00> : vector<64x128xf32>
    %13 = tpu.matmul %10, %12, %cst_11 {dimension_numbers = #tpu.dot_dimension_numbers<[1], [0], [0], [1], [0, 0, 1, 1], [], []>} : vector<64x32xbf16>, vector<32x128xbf16>, vector<64x128xf32> -> vector<64x128xf32>
    %14 = arith.addf %6, %13 : vector<64x128xf32>
    %c0_12 = arith.constant 0 : index
    %c0_13 = arith.constant 0 : index
    %c0_14 = arith.constant 0 : index
    %15 = vector.load %arg4[%c0_12, %c0_13, %c0_14] : memref<1x1x128xf32, #tpu.memory_space<vmem>>, vector<1x1x128xf32>
    %16 = vector.shape_cast %15 : vector<1x1x128xf32> to vector<1x128xf32>
    %17 = vector.broadcast %16 : vector<1x128xf32> to vector<64x128xf32>
    %18 = arith.addf %14, %17 : vector<64x128xf32>
    %19 = vector.shape_cast %18 : vector<64x128xf32> to vector<8x8x128xf32>
    %20 = arith.truncf %19 : vector<8x8x128xf32> to vector<8x8x128xbf16>
    %c0_15 = arith.constant 0 : index
    %c0_16 = arith.constant 0 : index
    %c0_17 = arith.constant 0 : index
    %21 = vector.load %arg6[%c0_15, %c0_16, %c0_17] : memref<8x8x128xbf16, #tpu.memory_space<vmem>>, vector<8x8x128xbf16>
    tpu.vector_store %arg6[%c0_15, %c0_16, %c0_17], %20 {strides = array<i32>} : memref<8x8x128xbf16, #tpu.memory_space<vmem>>, vector<8x8x128xbf16>,
    %c0_18 = arith.constant 0 : index
    %c0_19 = arith.constant 0 : index
    %c0_20 = arith.constant 0 : index
    %22 = vector.load %arg3[%c0_18, %c0_19, %c0_20] : memref<1x32x128xbf16, #tpu.memory_space<vmem>>, vector<1x32x128xbf16>
    %23 = vector.shape_cast %22 : vector<1x32x128xbf16> to vector<32x128xbf16>
    %24 = tpu.iota {dimensions = array<i32: 1>} : vector<8x128xi32>
    %c64_i32 = arith.constant 64 : i32
    %25 = vector.broadcast %c64_i32 : i32 to vector<8x128xi32>
    %26 = arith.cmpi sge, %24, %25 : vector<8x128xi32>
    %c96_i32 = arith.constant 96 : i32
    %27 = vector.broadcast %c96_i32 : i32 to vector<8x128xi32>
    %28 = arith.cmpi slt, %24, %27 : vector<8x128xi32>
    %29 = arith.andi %26, %28 : vector<8x128xi1>
    %cst_21 = arith.constant 1.000000e+00 : f32
    %cst_22 = arith.constant 5.000000e-01 : f32
    %30 = vector.broadcast %cst_21 : f32 to vector<8x128xf32>
    %31 = vector.broadcast %cst_22 : f32 to vector<8x128xf32>
    %32 = arith.select %29, %30, %31 : vector<8x128xi1>, vector<8x128xf32>
    %cst_23 = arith.constant 0.000000e+00 : f32
    %cst_24 = arith.constant 5.000000e-01 : f32
    %33 = vector.broadcast %cst_23 : f32 to vector<8x128xf32>
    %34 = vector.broadcast %cst_24 : f32 to vector<8x128xf32>
    %35 = arith.select %29, %33, %34 : vector<8x128xi1>, vector<8x128xf32>
    %cst_25 = arith.constant 0.000000e+00 : f32
    %36 = vector.broadcast %cst_25 : f32 to vector<8x32xf32>
    %cst_26 = arith.constant 0.000000e+00 : f32
    %37 = vector.broadcast %cst_26 : f32 to vector<8x32xf32>
    %c0_i32 = arith.constant 0 : i32
    %38 = arith.cmpi eq, %arg0, %c0_i32 : i32
    %39 = arith.extui %38 : i1 to i32
    %c0_i32_27 = arith.constant 0 : i32
    %40 = arith.cmpi ne, %39, %c0_i32_27 : i32
    scf.if %40 {
      %c0_i32_29 = arith.constant 0 : i32
      %44 = arith.index_cast %c0_i32_29 : i32 to index
      %c0_30 = arith.constant 0 : index
      %c0_31 = arith.constant 0 : index
      %45 = vector.load %arg6[%44, %c0_30, %c0_31] : memref<8x8x128xbf16, #tpu.memory_space<vmem>>, vector<1x8x128xbf16>
      %46 = vector.shape_cast %45 : vector<1x8x128xbf16> to vector<8x128xbf16>
      %47 = arith.extf %46 : vector<8x128xbf16> to vector<8x128xf32>
      %48 = arith.truncf %36 : vector<8x32xf32> to vector<8x32xbf16>
      %cst_32 = arith.constant dense<0.000000e+00> : vector<8x128xf32>
      %49 = tpu.matmul %48, %23, %cst_32 {dimension_numbers = #tpu.dot_dimension_numbers<[1], [0], [0], [1], [0, 0, 1, 1], [], []>} : vector<8x32xbf16>, vector<32x128xbf16>, vector<8x128xf32> -> vector<8x128xf32>
      %50 = arith.addf %47, %49 : vector<8x128xf32>
      %51 = arith.mulf %50, %32 : vector<8x128xf32>
      %52 = math.tanh %51 : vector<8x128xf32>
      %53 = arith.mulf %52, %32 : vector<8x128xf32>
      %54 = arith.addf %53, %35 : vector<8x128xf32>
      %55 = vector.extract_strided_slice %54 {offsets = [0, 0], sizes = [8, 32], strides = [1, 1]} : vector<8x128xf32> to vector<8x32xf32>
      %56 = vector.extract_strided_slice %54 {offsets = [0, 32], sizes = [8, 32], strides = [1, 1]} : vector<8x128xf32> to vector<8x32xf32>
      %57 = vector.extract_strided_slice %54 {offsets = [0, 64], sizes = [8, 32], strides = [1, 1]} : vector<8x128xf32> to vector<8x32xf32>
      %58 = vector.extract_strided_slice %54 {offsets = [0, 96], sizes = [8, 32], strides = [1, 1]} : vector<8x128xf32> to vector<8x32xf32>
      %59 = arith.mulf %56, %37 : vector<8x32xf32>
      %60 = arith.mulf %55, %57 : vector<8x32xf32>
      %61 = arith.addf %59, %60 : vector<8x32xf32>
      %62 = math.tanh %61 : vector<8x32xf32>
      %63 = arith.mulf %58, %62 : vector<8x32xf32>
      %c0_33 = arith.constant 0 : index
      %64 = arith.index_cast %c0_i32_29 : i32 to index
      %c0_34 = arith.constant 0 : index
      %c0_35 = arith.constant 0 : index
      %65 = vector.load %arg5[%c0_33, %64, %c0_34, %c0_35] : memref<1x8x8x32xf32, #tpu.memory_space<vmem>>, vector<1x1x8x32xf32>
      %66 = vector.shape_cast %65 : vector<1x1x8x32xf32> to vector<8x32xf32>
      %67 = vector.shape_cast %63 : vector<8x32xf32> to vector<1x1x8x32xf32>
      tpu.vector_store %arg5[%c0_33, %64, %c0_34, %c0_35], %67 {strides = array<i32>} : memref<1x8x8x32xf32, #tpu.memory_space<vmem>>, vector<1x1x8x32xf32>,
      %c1_i32_36 = arith.constant 1 : i32
      %68 = arith.index_cast %c1_i32_36 : i32 to index
      %c0_37 = arith.constant 0 : index
      %c0_38 = arith.constant 0 : index
      %69 = vector.load %arg6[%68, %c0_37, %c0_38] : memref<8x8x128xbf16, #tpu.memory_space<vmem>>, vector<1x8x128xbf16>
      %70 = vector.shape_cast %69 : vector<1x8x128xbf16> to vector<8x128xbf16>
      %71 = arith.extf %70 : vector<8x128xbf16> to vector<8x128xf32>
      %72 = arith.truncf %63 : vector<8x32xf32> to vector<8x32xbf16>
      %cst_39 = arith.constant dense<0.000000e+00> : vector<8x128xf32>
      %73 = tpu.matmul %72, %23, %cst_39 {dimension_numbers = #tpu.dot_dimension_numbers<[1], [0], [0], [1], [0, 0, 1, 1], [], []>} : vector<8x32xbf16>, vector<32x128xbf16>, vector<8x128xf32> -> vector<8x128xf32>
      %74 = arith.addf %71, %73 : vector<8x128xf32>
      %75 = arith.mulf %74, %32 : vector<8x128xf32>
      %76 = math.tanh %75 : vector<8x128xf32>
      %77 = arith.mulf %76, %32 : vector<8x128xf32>
      %78 = arith.addf %77, %35 : vector<8x128xf32>
      %79 = vector.extract_strided_slice %78 {offsets = [0, 0], sizes = [8, 32], strides = [1, 1]} : vector<8x128xf32> to vector<8x32xf32>
      %80 = vector.extract_strided_slice %78 {offsets = [0, 32], sizes = [8, 32], strides = [1, 1]} : vector<8x128xf32> to vector<8x32xf32>
      %81 = vector.extract_strided_slice %78 {offsets = [0, 64], sizes = [8, 32], strides = [1, 1]} : vector<8x128xf32> to vector<8x32xf32>
      %82 = vector.extract_strided_slice %78 {offsets = [0, 96], sizes = [8, 32], strides = [1, 1]} : vector<8x128xf32> to vector<8x32xf32>
      %83 = arith.mulf %80, %61 : vector<8x32xf32>
      %84 = arith.mulf %79, %81 : vector<8x32xf32>
      %85 = arith.addf %83, %84 : vector<8x32xf32>
      %86 = math.tanh %85 : vector<8x32xf32>
      %87 = arith.mulf %82, %86 : vector<8x32xf32>
      %c0_40 = arith.constant 0 : index
      %88 = arith.index_cast %c1_i32_36 : i32 to index
      %c0_41 = arith.constant 0 : index
      %c0_42 = arith.constant 0 : index
      %89 = vector.load %arg5[%c0_40, %88, %c0_41, %c0_42] : memref<1x8x8x32xf32, #tpu.memory_space<vmem>>, vector<1x1x8x32xf32>
      %90 = vector.shape_cast %89 : vector<1x1x8x32xf32> to vector<8x32xf32>
      %91 = vector.shape_cast %87 : vector<8x32xf32> to vector<1x1x8x32xf32>
      tpu.vector_store %arg5[%c0_40, %88, %c0_41, %c0_42], %91 {strides = array<i32>} : memref<1x8x8x32xf32, #tpu.memory_space<vmem>>, vector<1x1x8x32xf32>,
      %c2_i32 = arith.constant 2 : i32
      %92 = arith.index_cast %c2_i32 : i32 to index
      %c0_43 = arith.constant 0 : index
      %c0_44 = arith.constant 0 : index
      %93 = vector.load %arg6[%92, %c0_43, %c0_44] : memref<8x8x128xbf16, #tpu.memory_space<vmem>>, vector<1x8x128xbf16>
      %94 = vector.shape_cast %93 : vector<1x8x128xbf16> to vector<8x128xbf16>
      %95 = arith.extf %94 : vector<8x128xbf16> to vector<8x128xf32>
      %96 = arith.truncf %87 : vector<8x32xf32> to vector<8x32xbf16>
      %cst_45 = arith.constant dense<0.000000e+00> : vector<8x128xf32>
      %97 = tpu.matmul %96, %23, %cst_45 {dimension_numbers = #tpu.dot_dimension_numbers<[1], [0], [0], [1], [0, 0, 1, 1], [], []>} : vector<8x32xbf16>, vector<32x128xbf16>, vector<8x128xf32> -> vector<8x128xf32>
      %98 = arith.addf %95, %97 : vector<8x128xf32>
      %99 = arith.mulf %98, %32 : vector<8x128xf32>
      %100 = math.tanh %99 : vector<8x128xf32>
      %101 = arith.mulf %100, %32 : vector<8x128xf32>
      %102 = arith.addf %101, %35 : vector<8x128xf32>
      %103 = vector.extract_strided_slice %102 {offsets = [0, 0], sizes = [8, 32], strides = [1, 1]} : vector<8x128xf32> to vector<8x32xf32>
      %104 = vector.extract_strided_slice %102 {offsets = [0, 32], sizes = [8, 32], strides = [1, 1]} : vector<8x128xf32> to vector<8x32xf32>
      %105 = vector.extract_strided_slice %102 {offsets = [0, 64], sizes = [8, 32], strides = [1, 1]} : vector<8x128xf32> to vector<8x32xf32>
      %106 = vector.extract_strided_slice %102 {offsets = [0, 96], sizes = [8, 32], strides = [1, 1]} : vector<8x128xf32> to vector<8x32xf32>
      %107 = arith.mulf %104, %85 : vector<8x32xf32>
      %108 = arith.mulf %103, %105 : vector<8x32xf32>
      %109 = arith.addf %107, %108 : vector<8x32xf32>
      %110 = math.tanh %109 : vector<8x32xf32>
      %111 = arith.mulf %106, %110 : vector<8x32xf32>
      %c0_46 = arith.constant 0 : index
      %112 = arith.index_cast %c2_i32 : i32 to index
      %c0_47 = arith.constant 0 : index
      %c0_48 = arith.constant 0 : index
      %113 = vector.load %arg5[%c0_46, %112, %c0_47, %c0_48] : memref<1x8x8x32xf32, #tpu.memory_space<vmem>>, vector<1x1x8x32xf32>
      %114 = vector.shape_cast %113 : vector<1x1x8x32xf32> to vector<8x32xf32>
      %115 = vector.shape_cast %111 : vector<8x32xf32> to vector<1x1x8x32xf32>
      tpu.vector_store %arg5[%c0_46, %112, %c0_47, %c0_48], %115 {strides = array<i32>} : memref<1x8x8x32xf32, #tpu.memory_space<vmem>>, vector<1x1x8x32xf32>,
      %c3_i32 = arith.constant 3 : i32
      %116 = arith.index_cast %c3_i32 : i32 to index
      %c0_49 = arith.constant 0 : index
      %c0_50 = arith.constant 0 : index
      %117 = vector.load %arg6[%116, %c0_49, %c0_50] : memref<8x8x128xbf16, #tpu.memory_space<vmem>>, vector<1x8x128xbf16>
      %118 = vector.shape_cast %117 : vector<1x8x128xbf16> to vector<8x128xbf16>
      %119 = arith.extf %118 : vector<8x128xbf16> to vector<8x128xf32>
      %120 = arith.truncf %111 : vector<8x32xf32> to vector<8x32xbf16>
      %cst_51 = arith.constant dense<0.000000e+00> : vector<8x128xf32>
      %121 = tpu.matmul %120, %23, %cst_51 {dimension_numbers = #tpu.dot_dimension_numbers<[1], [0], [0], [1], [0, 0, 1, 1], [], []>} : vector<8x32xbf16>, vector<32x128xbf16>, vector<8x128xf32> -> vector<8x128xf32>
      %122 = arith.addf %119, %121 : vector<8x128xf32>
      %123 = arith.mulf %122, %32 : vector<8x128xf32>
      %124 = math.tanh %123 : vector<8x128xf32>
      %125 = arith.mulf %124, %32 : vector<8x128xf32>
      %126 = arith.addf %125, %35 : vector<8x128xf32>
      %127 = vector.extract_strided_slice %126 {offsets = [0, 0], sizes = [8, 32], strides = [1, 1]} : vector<8x128xf32> to vector<8x32xf32>
      %128 = vector.extract_strided_slice %126 {offsets = [0, 32], sizes = [8, 32], strides = [1, 1]} : vector<8x128xf32> to vector<8x32xf32>
      %129 = vector.extract_strided_slice %126 {offsets = [0, 64], sizes = [8, 32], strides = [1, 1]} : vector<8x128xf32> to vector<8x32xf32>
      %130 = vector.extract_strided_slice %126 {offsets = [0, 96], sizes = [8, 32], strides = [1, 1]} : vector<8x128xf32> to vector<8x32xf32>
      %131 = arith.mulf %128, %109 : vector<8x32xf32>
      %132 = arith.mulf %127, %129 : vector<8x32xf32>
      %133 = arith.addf %131, %132 : vector<8x32xf32>
      %134 = math.tanh %133 : vector<8x32xf32>
      %135 = arith.mulf %130, %134 : vector<8x32xf32>
      %c0_52 = arith.constant 0 : index
      %136 = arith.index_cast %c3_i32 : i32 to index
      %c0_53 = arith.constant 0 : index
      %c0_54 = arith.constant 0 : index
      %137 = vector.load %arg5[%c0_52, %136, %c0_53, %c0_54] : memref<1x8x8x32xf32, #tpu.memory_space<vmem>>, vector<1x1x8x32xf32>
      %138 = vector.shape_cast %137 : vector<1x1x8x32xf32> to vector<8x32xf32>
      %139 = vector.shape_cast %135 : vector<8x32xf32> to vector<1x1x8x32xf32>
      tpu.vector_store %arg5[%c0_52, %136, %c0_53, %c0_54], %139 {strides = array<i32>} : memref<1x8x8x32xf32, #tpu.memory_space<vmem>>, vector<1x1x8x32xf32>,
      %c4_i32 = arith.constant 4 : i32
      %140 = arith.index_cast %c4_i32 : i32 to index
      %c0_55 = arith.constant 0 : index
      %c0_56 = arith.constant 0 : index
      %141 = vector.load %arg6[%140, %c0_55, %c0_56] : memref<8x8x128xbf16, #tpu.memory_space<vmem>>, vector<1x8x128xbf16>
      %142 = vector.shape_cast %141 : vector<1x8x128xbf16> to vector<8x128xbf16>
      %143 = arith.extf %142 : vector<8x128xbf16> to vector<8x128xf32>
      %144 = arith.truncf %135 : vector<8x32xf32> to vector<8x32xbf16>
      %cst_57 = arith.constant dense<0.000000e+00> : vector<8x128xf32>
      %145 = tpu.matmul %144, %23, %cst_57 {dimension_numbers = #tpu.dot_dimension_numbers<[1], [0], [0], [1], [0, 0, 1, 1], [], []>} : vector<8x32xbf16>, vector<32x128xbf16>, vector<8x128xf32> -> vector<8x128xf32>
      %146 = arith.addf %143, %145 : vector<8x128xf32>
      %147 = arith.mulf %146, %32 : vector<8x128xf32>
      %148 = math.tanh %147 : vector<8x128xf32>
      %149 = arith.mulf %148, %32 : vector<8x128xf32>
      %150 = arith.addf %149, %35 : vector<8x128xf32>
      %151 = vector.extract_strided_slice %150 {offsets = [0, 0], sizes = [8, 32], strides = [1, 1]} : vector<8x128xf32> to vector<8x32xf32>
      %152 = vector.extract_strided_slice %150 {offsets = [0, 32], sizes = [8, 32], strides = [1, 1]} : vector<8x128xf32> to vector<8x32xf32>
      %153 = vector.extract_strided_slice %150 {offsets = [0, 64], sizes = [8, 32], strides = [1, 1]} : vector<8x128xf32> to vector<8x32xf32>
      %154 = vector.extract_strided_slice %150 {offsets = [0, 96], sizes = [8, 32], strides = [1, 1]} : vector<8x128xf32> to vector<8x32xf32>
      %155 = arith.mulf %152, %133 : vector<8x32xf32>
      %156 = arith.mulf %151, %153 : vector<8x32xf32>
      %157 = arith.addf %155, %156 : vector<8x32xf32>
      %158 = math.tanh %157 : vector<8x32xf32>
      %159 = arith.mulf %154, %158 : vector<8x32xf32>
      %c0_58 = arith.constant 0 : index
      %160 = arith.index_cast %c4_i32 : i32 to index
      %c0_59 = arith.constant 0 : index
      %c0_60 = arith.constant 0 : index
      %161 = vector.load %arg5[%c0_58, %160, %c0_59, %c0_60] : memref<1x8x8x32xf32, #tpu.memory_space<vmem>>, vector<1x1x8x32xf32>
      %162 = vector.shape_cast %161 : vector<1x1x8x32xf32> to vector<8x32xf32>
      %163 = vector.shape_cast %159 : vector<8x32xf32> to vector<1x1x8x32xf32>
      tpu.vector_store %arg5[%c0_58, %160, %c0_59, %c0_60], %163 {strides = array<i32>} : memref<1x8x8x32xf32, #tpu.memory_space<vmem>>, vector<1x1x8x32xf32>,
      %c5_i32 = arith.constant 5 : i32
      %164 = arith.index_cast %c5_i32 : i32 to index
      %c0_61 = arith.constant 0 : index
      %c0_62 = arith.constant 0 : index
      %165 = vector.load %arg6[%164, %c0_61, %c0_62] : memref<8x8x128xbf16, #tpu.memory_space<vmem>>, vector<1x8x128xbf16>
      %166 = vector.shape_cast %165 : vector<1x8x128xbf16> to vector<8x128xbf16>
      %167 = arith.extf %166 : vector<8x128xbf16> to vector<8x128xf32>
      %168 = arith.truncf %159 : vector<8x32xf32> to vector<8x32xbf16>
      %cst_63 = arith.constant dense<0.000000e+00> : vector<8x128xf32>
      %169 = tpu.matmul %168, %23, %cst_63 {dimension_numbers = #tpu.dot_dimension_numbers<[1], [0], [0], [1], [0, 0, 1, 1], [], []>} : vector<8x32xbf16>, vector<32x128xbf16>, vector<8x128xf32> -> vector<8x128xf32>
      %170 = arith.addf %167, %169 : vector<8x128xf32>
      %171 = arith.mulf %170, %32 : vector<8x128xf32>
      %172 = math.tanh %171 : vector<8x128xf32>
      %173 = arith.mulf %172, %32 : vector<8x128xf32>
      %174 = arith.addf %173, %35 : vector<8x128xf32>
      %175 = vector.extract_strided_slice %174 {offsets = [0, 0], sizes = [8, 32], strides = [1, 1]} : vector<8x128xf32> to vector<8x32xf32>
      %176 = vector.extract_strided_slice %174 {offsets = [0, 32], sizes = [8, 32], strides = [1, 1]} : vector<8x128xf32> to vector<8x32xf32>
      %177 = vector.extract_strided_slice %174 {offsets = [0, 64], sizes = [8, 32], strides = [1, 1]} : vector<8x128xf32> to vector<8x32xf32>
      %178 = vector.extract_strided_slice %174 {offsets = [0, 96], sizes = [8, 32], strides = [1, 1]} : vector<8x128xf32> to vector<8x32xf32>
      %179 = arith.mulf %176, %157 : vector<8x32xf32>
      %180 = arith.mulf %175, %177 : vector<8x32xf32>
      %181 = arith.addf %179, %180 : vector<8x32xf32>
      %182 = math.tanh %181 : vector<8x32xf32>
      %183 = arith.mulf %178, %182 : vector<8x32xf32>
      %c0_64 = arith.constant 0 : index
      %184 = arith.index_cast %c5_i32 : i32 to index
      %c0_65 = arith.constant 0 : index
      %c0_66 = arith.constant 0 : index
      %185 = vector.load %arg5[%c0_64, %184, %c0_65, %c0_66] : memref<1x8x8x32xf32, #tpu.memory_space<vmem>>, vector<1x1x8x32xf32>
      %186 = vector.shape_cast %185 : vector<1x1x8x32xf32> to vector<8x32xf32>
      %187 = vector.shape_cast %183 : vector<8x32xf32> to vector<1x1x8x32xf32>
      tpu.vector_store %arg5[%c0_64, %184, %c0_65, %c0_66], %187 {strides = array<i32>} : memref<1x8x8x32xf32, #tpu.memory_space<vmem>>, vector<1x1x8x32xf32>,
      %c6_i32 = arith.constant 6 : i32
      %188 = arith.index_cast %c6_i32 : i32 to index
      %c0_67 = arith.constant 0 : index
      %c0_68 = arith.constant 0 : index
      %189 = vector.load %arg6[%188, %c0_67, %c0_68] : memref<8x8x128xbf16, #tpu.memory_space<vmem>>, vector<1x8x128xbf16>
      %190 = vector.shape_cast %189 : vector<1x8x128xbf16> to vector<8x128xbf16>
      %191 = arith.extf %190 : vector<8x128xbf16> to vector<8x128xf32>
      %192 = arith.truncf %183 : vector<8x32xf32> to vector<8x32xbf16>
      %cst_69 = arith.constant dense<0.000000e+00> : vector<8x128xf32>
      %193 = tpu.matmul %192, %23, %cst_69 {dimension_numbers = #tpu.dot_dimension_numbers<[1], [0], [0], [1], [0, 0, 1, 1], [], []>} : vector<8x32xbf16>, vector<32x128xbf16>, vector<8x128xf32> -> vector<8x128xf32>
      %194 = arith.addf %191, %193 : vector<8x128xf32>
      %195 = arith.mulf %194, %32 : vector<8x128xf32>
      %196 = math.tanh %195 : vector<8x128xf32>
      %197 = arith.mulf %196, %32 : vector<8x128xf32>
      %198 = arith.addf %197, %35 : vector<8x128xf32>
      %199 = vector.extract_strided_slice %198 {offsets = [0, 0], sizes = [8, 32], strides = [1, 1]} : vector<8x128xf32> to vector<8x32xf32>
      %200 = vector.extract_strided_slice %198 {offsets = [0, 32], sizes = [8, 32], strides = [1, 1]} : vector<8x128xf32> to vector<8x32xf32>
      %201 = vector.extract_strided_slice %198 {offsets = [0, 64], sizes = [8, 32], strides = [1, 1]} : vector<8x128xf32> to vector<8x32xf32>
      %202 = vector.extract_strided_slice %198 {offsets = [0, 96], sizes = [8, 32], strides = [1, 1]} : vector<8x128xf32> to vector<8x32xf32>
      %203 = arith.mulf %200, %181 : vector<8x32xf32>
      %204 = arith.mulf %199, %201 : vector<8x32xf32>
      %205 = arith.addf %203, %204 : vector<8x32xf32>
      %206 = math.tanh %205 : vector<8x32xf32>
      %207 = arith.mulf %202, %206 : vector<8x32xf32>
      %c0_70 = arith.constant 0 : index
      %208 = arith.index_cast %c6_i32 : i32 to index
      %c0_71 = arith.constant 0 : index
      %c0_72 = arith.constant 0 : index
      %209 = vector.load %arg5[%c0_70, %208, %c0_71, %c0_72] : memref<1x8x8x32xf32, #tpu.memory_space<vmem>>, vector<1x1x8x32xf32>
      %210 = vector.shape_cast %209 : vector<1x1x8x32xf32> to vector<8x32xf32>
      %211 = vector.shape_cast %207 : vector<8x32xf32> to vector<1x1x8x32xf32>
      tpu.vector_store %arg5[%c0_70, %208, %c0_71, %c0_72], %211 {strides = array<i32>} : memref<1x8x8x32xf32, #tpu.memory_space<vmem>>, vector<1x1x8x32xf32>,
      %c7_i32 = arith.constant 7 : i32
      %212 = arith.index_cast %c7_i32 : i32 to index
      %c0_73 = arith.constant 0 : index
      %c0_74 = arith.constant 0 : index
      %213 = vector.load %arg6[%212, %c0_73, %c0_74] : memref<8x8x128xbf16, #tpu.memory_space<vmem>>, vector<1x8x128xbf16>
      %214 = vector.shape_cast %213 : vector<1x8x128xbf16> to vector<8x128xbf16>
      %215 = arith.extf %214 : vector<8x128xbf16> to vector<8x128xf32>
      %216 = arith.truncf %207 : vector<8x32xf32> to vector<8x32xbf16>
      %cst_75 = arith.constant dense<0.000000e+00> : vector<8x128xf32>
      %217 = tpu.matmul %216, %23, %cst_75 {dimension_numbers = #tpu.dot_dimension_numbers<[1], [0], [0], [1], [0, 0, 1, 1], [], []>} : vector<8x32xbf16>, vector<32x128xbf16>, vector<8x128xf32> -> vector<8x128xf32>
      %218 = arith.addf %215, %217 : vector<8x128xf32>
      %219 = arith.mulf %218, %32 : vector<8x128xf32>
      %220 = math.tanh %219 : vector<8x128xf32>
      %221 = arith.mulf %220, %32 : vector<8x128xf32>
      %222 = arith.addf %221, %35 : vector<8x128xf32>
      %223 = vector.extract_strided_slice %222 {offsets = [0, 0], sizes = [8, 32], strides = [1, 1]} : vector<8x128xf32> to vector<8x32xf32>
      %224 = vector.extract_strided_slice %222 {offsets = [0, 32], sizes = [8, 32], strides = [1, 1]} : vector<8x128xf32> to vector<8x32xf32>
      %225 = vector.extract_strided_slice %222 {offsets = [0, 64], sizes = [8, 32], strides = [1, 1]} : vector<8x128xf32> to vector<8x32xf32>
      %226 = vector.extract_strided_slice %222 {offsets = [0, 96], sizes = [8, 32], strides = [1, 1]} : vector<8x128xf32> to vector<8x32xf32>
      %227 = arith.mulf %224, %205 : vector<8x32xf32>
      %228 = arith.mulf %223, %225 : vector<8x32xf32>
      %229 = arith.addf %227, %228 : vector<8x32xf32>
      %230 = math.tanh %229 : vector<8x32xf32>
      %231 = arith.mulf %226, %230 : vector<8x32xf32>
      %c0_76 = arith.constant 0 : index
      %232 = arith.index_cast %c7_i32 : i32 to index
      %c0_77 = arith.constant 0 : index
      %c0_78 = arith.constant 0 : index
      %233 = vector.load %arg5[%c0_76, %232, %c0_77, %c0_78] : memref<1x8x8x32xf32, #tpu.memory_space<vmem>>, vector<1x1x8x32xf32>
      %234 = vector.shape_cast %233 : vector<1x1x8x32xf32> to vector<8x32xf32>
      %235 = vector.shape_cast %231 : vector<8x32xf32> to vector<1x1x8x32xf32>
      tpu.vector_store %arg5[%c0_76, %232, %c0_77, %c0_78], %235 {strides = array<i32>} : memref<1x8x8x32xf32, #tpu.memory_space<vmem>>, vector<1x1x8x32xf32>,
      %c8_i32 = arith.constant 8 : i32
    } else {
    }
    %c1_i32 = arith.constant 1 : i32
    %41 = arith.cmpi eq, %arg0, %c1_i32 : i32
    %42 = arith.extui %41 : i1 to i32
    %c0_i32_28 = arith.constant 0 : i32
    %43 = arith.cmpi ne, %42, %c0_i32_28 : i32
    scf.if %43 {
      %c0_i32_29 = arith.constant 0 : i32
      %c7_i32 = arith.constant 7 : i32
      %44 = arith.subi %c7_i32, %c0_i32_29 : i32
      %45 = arith.index_cast %44 : i32 to index
      %c0_30 = arith.constant 0 : index
      %c0_31 = arith.constant 0 : index
      %46 = vector.load %arg6[%45, %c0_30, %c0_31] : memref<8x8x128xbf16, #tpu.memory_space<vmem>>, vector<1x8x128xbf16>
      %47 = vector.shape_cast %46 : vector<1x8x128xbf16> to vector<8x128xbf16>
      %48 = arith.extf %47 : vector<8x128xbf16> to vector<8x128xf32>
      %49 = arith.truncf %36 : vector<8x32xf32> to vector<8x32xbf16>
      %cst_32 = arith.constant dense<0.000000e+00> : vector<8x128xf32>
      %50 = tpu.matmul %49, %23, %cst_32 {dimension_numbers = #tpu.dot_dimension_numbers<[1], [0], [0], [1], [0, 0, 1, 1], [], []>} : vector<8x32xbf16>, vector<32x128xbf16>, vector<8x128xf32> -> vector<8x128xf32>
      %51 = arith.addf %48, %50 : vector<8x128xf32>
      %52 = arith.mulf %51, %32 : vector<8x128xf32>
      %53 = math.tanh %52 : vector<8x128xf32>
      %54 = arith.mulf %53, %32 : vector<8x128xf32>
      %55 = arith.addf %54, %35 : vector<8x128xf32>
      %56 = vector.extract_strided_slice %55 {offsets = [0, 0], sizes = [8, 32], strides = [1, 1]} : vector<8x128xf32> to vector<8x32xf32>
      %57 = vector.extract_strided_slice %55 {offsets = [0, 32], sizes = [8, 32], strides = [1, 1]} : vector<8x128xf32> to vector<8x32xf32>
      %58 = vector.extract_strided_slice %55 {offsets = [0, 64], sizes = [8, 32], strides = [1, 1]} : vector<8x128xf32> to vector<8x32xf32>
      %59 = vector.extract_strided_slice %55 {offsets = [0, 96], sizes = [8, 32], strides = [1, 1]} : vector<8x128xf32> to vector<8x32xf32>
      %60 = arith.mulf %57, %37 : vector<8x32xf32>
      %61 = arith.mulf %56, %58 : vector<8x32xf32>
      %62 = arith.addf %60, %61 : vector<8x32xf32>
      %63 = math.tanh %62 : vector<8x32xf32>
      %64 = arith.mulf %59, %63 : vector<8x32xf32>
      %c0_33 = arith.constant 0 : index
      %65 = arith.index_cast %44 : i32 to index
      %c0_34 = arith.constant 0 : index
      %c0_35 = arith.constant 0 : index
      %66 = vector.load %arg5[%c0_33, %65, %c0_34, %c0_35] : memref<1x8x8x32xf32, #tpu.memory_space<vmem>>, vector<1x1x8x32xf32>
      %67 = vector.shape_cast %66 : vector<1x1x8x32xf32> to vector<8x32xf32>
      %68 = vector.shape_cast %64 : vector<8x32xf32> to vector<1x1x8x32xf32>
      tpu.vector_store %arg5[%c0_33, %65, %c0_34, %c0_35], %68 {strides = array<i32>} : memref<1x8x8x32xf32, #tpu.memory_space<vmem>>, vector<1x1x8x32xf32>,
      %c1_i32_36 = arith.constant 1 : i32
      %c7_i32_37 = arith.constant 7 : i32
      %69 = arith.subi %c7_i32_37, %c1_i32_36 : i32
      %70 = arith.index_cast %69 : i32 to index
      %c0_38 = arith.constant 0 : index
      %c0_39 = arith.constant 0 : index
      %71 = vector.load %arg6[%70, %c0_38, %c0_39] : memref<8x8x128xbf16, #tpu.memory_space<vmem>>, vector<1x8x128xbf16>
      %72 = vector.shape_cast %71 : vector<1x8x128xbf16> to vector<8x128xbf16>
      %73 = arith.extf %72 : vector<8x128xbf16> to vector<8x128xf32>
      %74 = arith.truncf %64 : vector<8x32xf32> to vector<8x32xbf16>
      %cst_40 = arith.constant dense<0.000000e+00> : vector<8x128xf32>
      %75 = tpu.matmul %74, %23, %cst_40 {dimension_numbers = #tpu.dot_dimension_numbers<[1], [0], [0], [1], [0, 0, 1, 1], [], []>} : vector<8x32xbf16>, vector<32x128xbf16>, vector<8x128xf32> -> vector<8x128xf32>
      %76 = arith.addf %73, %75 : vector<8x128xf32>
      %77 = arith.mulf %76, %32 : vector<8x128xf32>
      %78 = math.tanh %77 : vector<8x128xf32>
      %79 = arith.mulf %78, %32 : vector<8x128xf32>
      %80 = arith.addf %79, %35 : vector<8x128xf32>
      %81 = vector.extract_strided_slice %80 {offsets = [0, 0], sizes = [8, 32], strides = [1, 1]} : vector<8x128xf32> to vector<8x32xf32>
      %82 = vector.extract_strided_slice %80 {offsets = [0, 32], sizes = [8, 32], strides = [1, 1]} : vector<8x128xf32> to vector<8x32xf32>
      %83 = vector.extract_strided_slice %80 {offsets = [0, 64], sizes = [8, 32], strides = [1, 1]} : vector<8x128xf32> to vector<8x32xf32>
      %84 = vector.extract_strided_slice %80 {offsets = [0, 96], sizes = [8, 32], strides = [1, 1]} : vector<8x128xf32> to vector<8x32xf32>
      %85 = arith.mulf %82, %62 : vector<8x32xf32>
      %86 = arith.mulf %81, %83 : vector<8x32xf32>
      %87 = arith.addf %85, %86 : vector<8x32xf32>
      %88 = math.tanh %87 : vector<8x32xf32>
      %89 = arith.mulf %84, %88 : vector<8x32xf32>
      %c0_41 = arith.constant 0 : index
      %90 = arith.index_cast %69 : i32 to index
      %c0_42 = arith.constant 0 : index
      %c0_43 = arith.constant 0 : index
      %91 = vector.load %arg5[%c0_41, %90, %c0_42, %c0_43] : memref<1x8x8x32xf32, #tpu.memory_space<vmem>>, vector<1x1x8x32xf32>
      %92 = vector.shape_cast %91 : vector<1x1x8x32xf32> to vector<8x32xf32>
      %93 = vector.shape_cast %89 : vector<8x32xf32> to vector<1x1x8x32xf32>
      tpu.vector_store %arg5[%c0_41, %90, %c0_42, %c0_43], %93 {strides = array<i32>} : memref<1x8x8x32xf32, #tpu.memory_space<vmem>>, vector<1x1x8x32xf32>,
      %c2_i32 = arith.constant 2 : i32
      %c7_i32_44 = arith.constant 7 : i32
      %94 = arith.subi %c7_i32_44, %c2_i32 : i32
      %95 = arith.index_cast %94 : i32 to index
      %c0_45 = arith.constant 0 : index
      %c0_46 = arith.constant 0 : index
      %96 = vector.load %arg6[%95, %c0_45, %c0_46] : memref<8x8x128xbf16, #tpu.memory_space<vmem>>, vector<1x8x128xbf16>
      %97 = vector.shape_cast %96 : vector<1x8x128xbf16> to vector<8x128xbf16>
      %98 = arith.extf %97 : vector<8x128xbf16> to vector<8x128xf32>
      %99 = arith.truncf %89 : vector<8x32xf32> to vector<8x32xbf16>
      %cst_47 = arith.constant dense<0.000000e+00> : vector<8x128xf32>
      %100 = tpu.matmul %99, %23, %cst_47 {dimension_numbers = #tpu.dot_dimension_numbers<[1], [0], [0], [1], [0, 0, 1, 1], [], []>} : vector<8x32xbf16>, vector<32x128xbf16>, vector<8x128xf32> -> vector<8x128xf32>
      %101 = arith.addf %98, %100 : vector<8x128xf32>
      %102 = arith.mulf %101, %32 : vector<8x128xf32>
      %103 = math.tanh %102 : vector<8x128xf32>
      %104 = arith.mulf %103, %32 : vector<8x128xf32>
      %105 = arith.addf %104, %35 : vector<8x128xf32>
      %106 = vector.extract_strided_slice %105 {offsets = [0, 0], sizes = [8, 32], strides = [1, 1]} : vector<8x128xf32> to vector<8x32xf32>
      %107 = vector.extract_strided_slice %105 {offsets = [0, 32], sizes = [8, 32], strides = [1, 1]} : vector<8x128xf32> to vector<8x32xf32>
      %108 = vector.extract_strided_slice %105 {offsets = [0, 64], sizes = [8, 32], strides = [1, 1]} : vector<8x128xf32> to vector<8x32xf32>
      %109 = vector.extract_strided_slice %105 {offsets = [0, 96], sizes = [8, 32], strides = [1, 1]} : vector<8x128xf32> to vector<8x32xf32>
      %110 = arith.mulf %107, %87 : vector<8x32xf32>
      %111 = arith.mulf %106, %108 : vector<8x32xf32>
      %112 = arith.addf %110, %111 : vector<8x32xf32>
      %113 = math.tanh %112 : vector<8x32xf32>
      %114 = arith.mulf %109, %113 : vector<8x32xf32>
      %c0_48 = arith.constant 0 : index
      %115 = arith.index_cast %94 : i32 to index
      %c0_49 = arith.constant 0 : index
      %c0_50 = arith.constant 0 : index
      %116 = vector.load %arg5[%c0_48, %115, %c0_49, %c0_50] : memref<1x8x8x32xf32, #tpu.memory_space<vmem>>, vector<1x1x8x32xf32>
      %117 = vector.shape_cast %116 : vector<1x1x8x32xf32> to vector<8x32xf32>
      %118 = vector.shape_cast %114 : vector<8x32xf32> to vector<1x1x8x32xf32>
      tpu.vector_store %arg5[%c0_48, %115, %c0_49, %c0_50], %118 {strides = array<i32>} : memref<1x8x8x32xf32, #tpu.memory_space<vmem>>, vector<1x1x8x32xf32>,
      %c3_i32 = arith.constant 3 : i32
      %c7_i32_51 = arith.constant 7 : i32
      %119 = arith.subi %c7_i32_51, %c3_i32 : i32
      %120 = arith.index_cast %119 : i32 to index
      %c0_52 = arith.constant 0 : index
      %c0_53 = arith.constant 0 : index
      %121 = vector.load %arg6[%120, %c0_52, %c0_53] : memref<8x8x128xbf16, #tpu.memory_space<vmem>>, vector<1x8x128xbf16>
      %122 = vector.shape_cast %121 : vector<1x8x128xbf16> to vector<8x128xbf16>
      %123 = arith.extf %122 : vector<8x128xbf16> to vector<8x128xf32>
      %124 = arith.truncf %114 : vector<8x32xf32> to vector<8x32xbf16>
      %cst_54 = arith.constant dense<0.000000e+00> : vector<8x128xf32>
      %125 = tpu.matmul %124, %23, %cst_54 {dimension_numbers = #tpu.dot_dimension_numbers<[1], [0], [0], [1], [0, 0, 1, 1], [], []>} : vector<8x32xbf16>, vector<32x128xbf16>, vector<8x128xf32> -> vector<8x128xf32>
      %126 = arith.addf %123, %125 : vector<8x128xf32>
      %127 = arith.mulf %126, %32 : vector<8x128xf32>
      %128 = math.tanh %127 : vector<8x128xf32>
      %129 = arith.mulf %128, %32 : vector<8x128xf32>
      %130 = arith.addf %129, %35 : vector<8x128xf32>
      %131 = vector.extract_strided_slice %130 {offsets = [0, 0], sizes = [8, 32], strides = [1, 1]} : vector<8x128xf32> to vector<8x32xf32>
      %132 = vector.extract_strided_slice %130 {offsets = [0, 32], sizes = [8, 32], strides = [1, 1]} : vector<8x128xf32> to vector<8x32xf32>
      %133 = vector.extract_strided_slice %130 {offsets = [0, 64], sizes = [8, 32], strides = [1, 1]} : vector<8x128xf32> to vector<8x32xf32>
      %134 = vector.extract_strided_slice %130 {offsets = [0, 96], sizes = [8, 32], strides = [1, 1]} : vector<8x128xf32> to vector<8x32xf32>
      %135 = arith.mulf %132, %112 : vector<8x32xf32>
      %136 = arith.mulf %131, %133 : vector<8x32xf32>
      %137 = arith.addf %135, %136 : vector<8x32xf32>
      %138 = math.tanh %137 : vector<8x32xf32>
      %139 = arith.mulf %134, %138 : vector<8x32xf32>
      %c0_55 = arith.constant 0 : index
      %140 = arith.index_cast %119 : i32 to index
      %c0_56 = arith.constant 0 : index
      %c0_57 = arith.constant 0 : index
      %141 = vector.load %arg5[%c0_55, %140, %c0_56, %c0_57] : memref<1x8x8x32xf32, #tpu.memory_space<vmem>>, vector<1x1x8x32xf32>
      %142 = vector.shape_cast %141 : vector<1x1x8x32xf32> to vector<8x32xf32>
      %143 = vector.shape_cast %139 : vector<8x32xf32> to vector<1x1x8x32xf32>
      tpu.vector_store %arg5[%c0_55, %140, %c0_56, %c0_57], %143 {strides = array<i32>} : memref<1x8x8x32xf32, #tpu.memory_space<vmem>>, vector<1x1x8x32xf32>,
      %c4_i32 = arith.constant 4 : i32
      %c7_i32_58 = arith.constant 7 : i32
      %144 = arith.subi %c7_i32_58, %c4_i32 : i32
      %145 = arith.index_cast %144 : i32 to index
      %c0_59 = arith.constant 0 : index
      %c0_60 = arith.constant 0 : index
      %146 = vector.load %arg6[%145, %c0_59, %c0_60] : memref<8x8x128xbf16, #tpu.memory_space<vmem>>, vector<1x8x128xbf16>
      %147 = vector.shape_cast %146 : vector<1x8x128xbf16> to vector<8x128xbf16>
      %148 = arith.extf %147 : vector<8x128xbf16> to vector<8x128xf32>
      %149 = arith.truncf %139 : vector<8x32xf32> to vector<8x32xbf16>
      %cst_61 = arith.constant dense<0.000000e+00> : vector<8x128xf32>
      %150 = tpu.matmul %149, %23, %cst_61 {dimension_numbers = #tpu.dot_dimension_numbers<[1], [0], [0], [1], [0, 0, 1, 1], [], []>} : vector<8x32xbf16>, vector<32x128xbf16>, vector<8x128xf32> -> vector<8x128xf32>
      %151 = arith.addf %148, %150 : vector<8x128xf32>
      %152 = arith.mulf %151, %32 : vector<8x128xf32>
      %153 = math.tanh %152 : vector<8x128xf32>
      %154 = arith.mulf %153, %32 : vector<8x128xf32>
      %155 = arith.addf %154, %35 : vector<8x128xf32>
      %156 = vector.extract_strided_slice %155 {offsets = [0, 0], sizes = [8, 32], strides = [1, 1]} : vector<8x128xf32> to vector<8x32xf32>
      %157 = vector.extract_strided_slice %155 {offsets = [0, 32], sizes = [8, 32], strides = [1, 1]} : vector<8x128xf32> to vector<8x32xf32>
      %158 = vector.extract_strided_slice %155 {offsets = [0, 64], sizes = [8, 32], strides = [1, 1]} : vector<8x128xf32> to vector<8x32xf32>
      %159 = vector.extract_strided_slice %155 {offsets = [0, 96], sizes = [8, 32], strides = [1, 1]} : vector<8x128xf32> to vector<8x32xf32>
      %160 = arith.mulf %157, %137 : vector<8x32xf32>
      %161 = arith.mulf %156, %158 : vector<8x32xf32>
      %162 = arith.addf %160, %161 : vector<8x32xf32>
      %163 = math.tanh %162 : vector<8x32xf32>
      %164 = arith.mulf %159, %163 : vector<8x32xf32>
      %c0_62 = arith.constant 0 : index
      %165 = arith.index_cast %144 : i32 to index
      %c0_63 = arith.constant 0 : index
      %c0_64 = arith.constant 0 : index
      %166 = vector.load %arg5[%c0_62, %165, %c0_63, %c0_64] : memref<1x8x8x32xf32, #tpu.memory_space<vmem>>, vector<1x1x8x32xf32>
      %167 = vector.shape_cast %166 : vector<1x1x8x32xf32> to vector<8x32xf32>
      %168 = vector.shape_cast %164 : vector<8x32xf32> to vector<1x1x8x32xf32>
      tpu.vector_store %arg5[%c0_62, %165, %c0_63, %c0_64], %168 {strides = array<i32>} : memref<1x8x8x32xf32, #tpu.memory_space<vmem>>, vector<1x1x8x32xf32>,
      %c5_i32 = arith.constant 5 : i32
      %c7_i32_65 = arith.constant 7 : i32
      %169 = arith.subi %c7_i32_65, %c5_i32 : i32
      %170 = arith.index_cast %169 : i32 to index
      %c0_66 = arith.constant 0 : index
      %c0_67 = arith.constant 0 : index
      %171 = vector.load %arg6[%170, %c0_66, %c0_67] : memref<8x8x128xbf16, #tpu.memory_space<vmem>>, vector<1x8x128xbf16>
      %172 = vector.shape_cast %171 : vector<1x8x128xbf16> to vector<8x128xbf16>
      %173 = arith.extf %172 : vector<8x128xbf16> to vector<8x128xf32>
      %174 = arith.truncf %164 : vector<8x32xf32> to vector<8x32xbf16>
      %cst_68 = arith.constant dense<0.000000e+00> : vector<8x128xf32>
      %175 = tpu.matmul %174, %23, %cst_68 {dimension_numbers = #tpu.dot_dimension_numbers<[1], [0], [0], [1], [0, 0, 1, 1], [], []>} : vector<8x32xbf16>, vector<32x128xbf16>, vector<8x128xf32> -> vector<8x128xf32>
      %176 = arith.addf %173, %175 : vector<8x128xf32>
      %177 = arith.mulf %176, %32 : vector<8x128xf32>
      %178 = math.tanh %177 : vector<8x128xf32>
      %179 = arith.mulf %178, %32 : vector<8x128xf32>
      %180 = arith.addf %179, %35 : vector<8x128xf32>
      %181 = vector.extract_strided_slice %180 {offsets = [0, 0], sizes = [8, 32], strides = [1, 1]} : vector<8x128xf32> to vector<8x32xf32>
      %182 = vector.extract_strided_slice %180 {offsets = [0, 32], sizes = [8, 32], strides = [1, 1]} : vector<8x128xf32> to vector<8x32xf32>
      %183 = vector.extract_strided_slice %180 {offsets = [0, 64], sizes = [8, 32], strides = [1, 1]} : vector<8x128xf32> to vector<8x32xf32>
      %184 = vector.extract_strided_slice %180 {offsets = [0, 96], sizes = [8, 32], strides = [1, 1]} : vector<8x128xf32> to vector<8x32xf32>
      %185 = arith.mulf %182, %162 : vector<8x32xf32>
      %186 = arith.mulf %181, %183 : vector<8x32xf32>
      %187 = arith.addf %185, %186 : vector<8x32xf32>
      %188 = math.tanh %187 : vector<8x32xf32>
      %189 = arith.mulf %184, %188 : vector<8x32xf32>
      %c0_69 = arith.constant 0 : index
      %190 = arith.index_cast %169 : i32 to index
      %c0_70 = arith.constant 0 : index
      %c0_71 = arith.constant 0 : index
      %191 = vector.load %arg5[%c0_69, %190, %c0_70, %c0_71] : memref<1x8x8x32xf32, #tpu.memory_space<vmem>>, vector<1x1x8x32xf32>
      %192 = vector.shape_cast %191 : vector<1x1x8x32xf32> to vector<8x32xf32>
      %193 = vector.shape_cast %189 : vector<8x32xf32> to vector<1x1x8x32xf32>
      tpu.vector_store %arg5[%c0_69, %190, %c0_70, %c0_71], %193 {strides = array<i32>} : memref<1x8x8x32xf32, #tpu.memory_space<vmem>>, vector<1x1x8x32xf32>,
      %c6_i32 = arith.constant 6 : i32
      %c7_i32_72 = arith.constant 7 : i32
      %194 = arith.subi %c7_i32_72, %c6_i32 : i32
      %195 = arith.index_cast %194 : i32 to index
      %c0_73 = arith.constant 0 : index
      %c0_74 = arith.constant 0 : index
      %196 = vector.load %arg6[%195, %c0_73, %c0_74] : memref<8x8x128xbf16, #tpu.memory_space<vmem>>, vector<1x8x128xbf16>
      %197 = vector.shape_cast %196 : vector<1x8x128xbf16> to vector<8x128xbf16>
      %198 = arith.extf %197 : vector<8x128xbf16> to vector<8x128xf32>
      %199 = arith.truncf %189 : vector<8x32xf32> to vector<8x32xbf16>
      %cst_75 = arith.constant dense<0.000000e+00> : vector<8x128xf32>
      %200 = tpu.matmul %199, %23, %cst_75 {dimension_numbers = #tpu.dot_dimension_numbers<[1], [0], [0], [1], [0, 0, 1, 1], [], []>} : vector<8x32xbf16>, vector<32x128xbf16>, vector<8x128xf32> -> vector<8x128xf32>
      %201 = arith.addf %198, %200 : vector<8x128xf32>
      %202 = arith.mulf %201, %32 : vector<8x128xf32>
      %203 = math.tanh %202 : vector<8x128xf32>
      %204 = arith.mulf %203, %32 : vector<8x128xf32>
      %205 = arith.addf %204, %35 : vector<8x128xf32>
      %206 = vector.extract_strided_slice %205 {offsets = [0, 0], sizes = [8, 32], strides = [1, 1]} : vector<8x128xf32> to vector<8x32xf32>
      %207 = vector.extract_strided_slice %205 {offsets = [0, 32], sizes = [8, 32], strides = [1, 1]} : vector<8x128xf32> to vector<8x32xf32>
      %208 = vector.extract_strided_slice %205 {offsets = [0, 64], sizes = [8, 32], strides = [1, 1]} : vector<8x128xf32> to vector<8x32xf32>
      %209 = vector.extract_strided_slice %205 {offsets = [0, 96], sizes = [8, 32], strides = [1, 1]} : vector<8x128xf32> to vector<8x32xf32>
      %210 = arith.mulf %207, %187 : vector<8x32xf32>
      %211 = arith.mulf %206, %208 : vector<8x32xf32>
      %212 = arith.addf %210, %211 : vector<8x32xf32>
      %213 = math.tanh %212 : vector<8x32xf32>
      %214 = arith.mulf %209, %213 : vector<8x32xf32>
      %c0_76 = arith.constant 0 : index
      %215 = arith.index_cast %194 : i32 to index
      %c0_77 = arith.constant 0 : index
      %c0_78 = arith.constant 0 : index
      %216 = vector.load %arg5[%c0_76, %215, %c0_77, %c0_78] : memref<1x8x8x32xf32, #tpu.memory_space<vmem>>, vector<1x1x8x32xf32>
      %217 = vector.shape_cast %216 : vector<1x1x8x32xf32> to vector<8x32xf32>
      %218 = vector.shape_cast %214 : vector<8x32xf32> to vector<1x1x8x32xf32>
      tpu.vector_store %arg5[%c0_76, %215, %c0_77, %c0_78], %218 {strides = array<i32>} : memref<1x8x8x32xf32, #tpu.memory_space<vmem>>, vector<1x1x8x32xf32>,
      %c7_i32_79 = arith.constant 7 : i32
      %c7_i32_80 = arith.constant 7 : i32
      %219 = arith.subi %c7_i32_80, %c7_i32_79 : i32
      %220 = arith.index_cast %219 : i32 to index
      %c0_81 = arith.constant 0 : index
      %c0_82 = arith.constant 0 : index
      %221 = vector.load %arg6[%220, %c0_81, %c0_82] : memref<8x8x128xbf16, #tpu.memory_space<vmem>>, vector<1x8x128xbf16>
      %222 = vector.shape_cast %221 : vector<1x8x128xbf16> to vector<8x128xbf16>
      %223 = arith.extf %222 : vector<8x128xbf16> to vector<8x128xf32>
      %224 = arith.truncf %214 : vector<8x32xf32> to vector<8x32xbf16>
      %cst_83 = arith.constant dense<0.000000e+00> : vector<8x128xf32>
      %225 = tpu.matmul %224, %23, %cst_83 {dimension_numbers = #tpu.dot_dimension_numbers<[1], [0], [0], [1], [0, 0, 1, 1], [], []>} : vector<8x32xbf16>, vector<32x128xbf16>, vector<8x128xf32> -> vector<8x128xf32>
      %226 = arith.addf %223, %225 : vector<8x128xf32>
      %227 = arith.mulf %226, %32 : vector<8x128xf32>
      %228 = math.tanh %227 : vector<8x128xf32>
      %229 = arith.mulf %228, %32 : vector<8x128xf32>
      %230 = arith.addf %229, %35 : vector<8x128xf32>
      %231 = vector.extract_strided_slice %230 {offsets = [0, 0], sizes = [8, 32], strides = [1, 1]} : vector<8x128xf32> to vector<8x32xf32>
      %232 = vector.extract_strided_slice %230 {offsets = [0, 32], sizes = [8, 32], strides = [1, 1]} : vector<8x128xf32> to vector<8x32xf32>
      %233 = vector.extract_strided_slice %230 {offsets = [0, 64], sizes = [8, 32], strides = [1, 1]} : vector<8x128xf32> to vector<8x32xf32>
      %234 = vector.extract_strided_slice %230 {offsets = [0, 96], sizes = [8, 32], strides = [1, 1]} : vector<8x128xf32> to vector<8x32xf32>
      %235 = arith.mulf %232, %212 : vector<8x32xf32>
      %236 = arith.mulf %231, %233 : vector<8x32xf32>
      %237 = arith.addf %235, %236 : vector<8x32xf32>
      %238 = math.tanh %237 : vector<8x32xf32>
      %239 = arith.mulf %234, %238 : vector<8x32xf32>
      %c0_84 = arith.constant 0 : index
      %240 = arith.index_cast %219 : i32 to index
      %c0_85 = arith.constant 0 : index
      %c0_86 = arith.constant 0 : index
      %241 = vector.load %arg5[%c0_84, %240, %c0_85, %c0_86] : memref<1x8x8x32xf32, #tpu.memory_space<vmem>>, vector<1x1x8x32xf32>
      %242 = vector.shape_cast %241 : vector<1x1x8x32xf32> to vector<8x32xf32>
      %243 = vector.shape_cast %239 : vector<8x32xf32> to vector<1x1x8x32xf32>
      tpu.vector_store %arg5[%c0_84, %240, %c0_85, %c0_86], %243 {strides = array<i32>} : memref<1x8x8x32xf32, #tpu.memory_space<vmem>>, vector<1x1x8x32xf32>,
      %c8_i32 = arith.constant 8 : i32
    } else {
    }
    return
  }
  func.func @transform_0(%arg0: i32) -> (i32, i32, i32, i32) {
    %c0_i32 = arith.constant 0 : i32
    %c0_i32_0 = arith.constant 0 : i32
    %c0_i32_1 = arith.constant 0 : i32
    %c0_i32_2 = arith.constant 0 : i32
    %c0_i32_3 = arith.constant 0 : i32
    return %c0_i32, %c0_i32_0, %c0_i32_1, %c0_i32_2 : i32, i32, i32, i32
  }
  func.func @transform_1(%arg0: i32) -> (i32, i32, i32) {
    %c0_i32 = arith.constant 0 : i32
    %c0_i32_0 = arith.constant 0 : i32
    %c0_i32_1 = arith.constant 0 : i32
    return %arg0, %c0_i32, %c0_i32_0 : i32, i32, i32
  }
  func.func @transform_2(%arg0: i32) -> (i32, i32, i32) {
    %c0_i32 = arith.constant 0 : i32
    %c0_i32_0 = arith.constant 0 : i32
    %c0_i32_1 = arith.constant 0 : i32
    return %arg0, %c0_i32, %c0_i32_0 : i32, i32, i32
  }
  func.func @transform_3(%arg0: i32) -> (i32, i32, i32) {
    %c0_i32 = arith.constant 0 : i32
    %c0_i32_0 = arith.constant 0 : i32
    %c0_i32_1 = arith.constant 0 : i32
    return %arg0, %c0_i32, %c0_i32_0 : i32, i32, i32
  }
  func.func @transform_4(%arg0: i32) -> (i32, i32, i32, i32) {
    %c0_i32 = arith.constant 0 : i32
    %c0_i32_0 = arith.constant 0 : i32
    %c0_i32_1 = arith.constant 0 : i32
    %c0_i32_2 = arith.constant 0 : i32
    return %arg0, %c0_i32, %c0_i32_0, %c0_i32_1 : i32, i32, i32, i32
  }
}

module attributes {stable_mosaic.version = 11 : i64} {
  func.func @lstm_dir_kernel(%arg0: i32, %arg1: memref<2x8x8x32xf32, #tpu.memory_space<vmem>>, %arg2: memref<1x64x128xbf16, #tpu.memory_space<vmem>>, %arg3: memref<1x32x128xbf16, #tpu.memory_space<vmem>>, %arg4: memref<1x1x128xf32, #tpu.memory_space<vmem>>, %arg5: memref<1x8x8x32xf32, #tpu.memory_space<vmem>>, %arg6: memref<8x8x128xbf16, #tpu.memory_space<vmem>>) attributes {dimension_semantics = [#tpu.dimension_semantics<parallel>], iteration_bounds = array<i64: 2>, scalar_prefetch = 0 : i64, scratch_operands = 1 : i64, tpu.core_type = #tpu.core_type<tc>, window_params = [{pipeline_mode = #tpu.pipeline_mode<synchronous>, transform_indices = @transform_0, window_bounds = array<i64: 2, 8, 8, 32>}, {transform_indices = @transform_1, window_bounds = array<i64: 1, 64, 128>}, {transform_indices = @transform_2, window_bounds = array<i64: 1, 32, 128>}, {transform_indices = @transform_3, window_bounds = array<i64: 1, 1, 128>}, {transform_indices = @transform_4, window_bounds = array<i64: 1, 8, 8, 32>}]} {
    %c0 = arith.constant 0 : index
    %c0_0 = arith.constant 0 : index
    %c0_1 = arith.constant 0 : index
    %c0_2 = arith.constant 0 : index
    %0 = vector.load %arg1[%c0, %c0_0, %c0_1, %c0_2] : memref<2x8x8x32xf32, #tpu.memory_space<vmem>>, vector<1x8x8x32xf32>
    %1 = vector.shape_cast %0 : vector<1x8x8x32xf32> to vector<8x8x32xf32>
    %2 = vector.shape_cast %1 : vector<8x8x32xf32> to vector<64x32xf32>
    %3 = arith.truncf %2 : vector<64x32xf32> to vector<64x32xbf16>
    %c0_3 = arith.constant 0 : index
    %c0_4 = arith.constant 0 : index
    %c0_5 = arith.constant 0 : index
    %4 = vector.load %arg2[%c0_3, %c0_4, %c0_5] : memref<1x64x128xbf16, #tpu.memory_space<vmem>>, vector<1x32x128xbf16>
    %5 = vector.shape_cast %4 : vector<1x32x128xbf16> to vector<32x128xbf16>
    %cst = arith.constant dense<0.000000e+00> : vector<64x128xf32>
    %6 = tpu.matmul %3, %5, %cst {dimension_numbers = #tpu.dot_dimension_numbers<[1], [0], [0], [1], [0, 0, 1, 1], [], []>} : vector<64x32xbf16>, vector<32x128xbf16>, vector<64x128xf32> -> vector<64x128xf32>
    %c1 = arith.constant 1 : index
    %c0_6 = arith.constant 0 : index
    %c0_7 = arith.constant 0 : index
    %c0_8 = arith.constant 0 : index
    %7 = vector.load %arg1[%c1, %c0_6, %c0_7, %c0_8] : memref<2x8x8x32xf32, #tpu.memory_space<vmem>>, vector<1x8x8x32xf32>
    %8 = vector.shape_cast %7 : vector<1x8x8x32xf32> to vector<8x8x32xf32>
    %9 = vector.shape_cast %8 : vector<8x8x32xf32> to vector<64x32xf32>
    %10 = arith.truncf %9 : vector<64x32xf32> to vector<64x32xbf16>
    %c0_9 = arith.constant 0 : index
    %c32 = arith.constant 32 : index
    %c0_10 = arith.constant 0 : index
    %11 = vector.load %arg2[%c0_9, %c32, %c0_10] : memref<1x64x128xbf16, #tpu.memory_space<vmem>>, vector<1x32x128xbf16>
    %12 = vector.shape_cast %11 : vector<1x32x128xbf16> to vector<32x128xbf16>
    %cst_11 = arith.constant dense<0.000000e+00> : vector<64x128xf32>
    %13 = tpu.matmul %10, %12, %cst_11 {dimension_numbers = #tpu.dot_dimension_numbers<[1], [0], [0], [1], [0, 0, 1, 1], [], []>} : vector<64x32xbf16>, vector<32x128xbf16>, vector<64x128xf32> -> vector<64x128xf32>
    %14 = arith.addf %6, %13 : vector<64x128xf32>
    %c0_12 = arith.constant 0 : index
    %c0_13 = arith.constant 0 : index
    %c0_14 = arith.constant 0 : index
    %15 = vector.load %arg4[%c0_12, %c0_13, %c0_14] : memref<1x1x128xf32, #tpu.memory_space<vmem>>, vector<1x1x128xf32>
    %16 = vector.shape_cast %15 : vector<1x1x128xf32> to vector<1x128xf32>
    %17 = vector.broadcast %16 : vector<1x128xf32> to vector<64x128xf32>
    %18 = arith.addf %14, %17 : vector<64x128xf32>
    %19 = vector.shape_cast %18 : vector<64x128xf32> to vector<8x8x128xf32>
    %20 = arith.truncf %19 : vector<8x8x128xf32> to vector<8x8x128xbf16>
    %c0_15 = arith.constant 0 : index
    %c0_16 = arith.constant 0 : index
    %c0_17 = arith.constant 0 : index
    %21 = vector.load %arg6[%c0_15, %c0_16, %c0_17] : memref<8x8x128xbf16, #tpu.memory_space<vmem>>, vector<8x8x128xbf16>
    tpu.vector_store %arg6[%c0_15, %c0_16, %c0_17], %20 {strides = array<i32>} : memref<8x8x128xbf16, #tpu.memory_space<vmem>>, vector<8x8x128xbf16>,
    %c0_18 = arith.constant 0 : index
    %c0_19 = arith.constant 0 : index
    %c0_20 = arith.constant 0 : index
    %22 = vector.load %arg3[%c0_18, %c0_19, %c0_20] : memref<1x32x128xbf16, #tpu.memory_space<vmem>>, vector<1x32x128xbf16>
    %23 = vector.shape_cast %22 : vector<1x32x128xbf16> to vector<32x128xbf16>
    %24 = tpu.iota {dimensions = array<i32: 1>} : vector<8x128xi32>
    %c64_i32 = arith.constant 64 : i32
    %25 = vector.broadcast %c64_i32 : i32 to vector<8x128xi32>
    %26 = arith.cmpi sge, %24, %25 : vector<8x128xi32>
    %c96_i32 = arith.constant 96 : i32
    %27 = vector.broadcast %c96_i32 : i32 to vector<8x128xi32>
    %28 = arith.cmpi slt, %24, %27 : vector<8x128xi32>
    %29 = arith.andi %26, %28 : vector<8x128xi1>
    %cst_21 = arith.constant 1.000000e+00 : f32
    %cst_22 = arith.constant 5.000000e-01 : f32
    %30 = vector.broadcast %cst_21 : f32 to vector<8x128xf32>
    %31 = vector.broadcast %cst_22 : f32 to vector<8x128xf32>
    %32 = arith.select %29, %30, %31 : vector<8x128xi1>, vector<8x128xf32>
    %cst_23 = arith.constant 0.000000e+00 : f32
    %cst_24 = arith.constant 5.000000e-01 : f32
    %33 = vector.broadcast %cst_23 : f32 to vector<8x128xf32>
    %34 = vector.broadcast %cst_24 : f32 to vector<8x128xf32>
    %35 = arith.select %29, %33, %34 : vector<8x128xi1>, vector<8x128xf32>
    %cst_25 = arith.constant 0.000000e+00 : f32
    %36 = vector.broadcast %cst_25 : f32 to vector<8x32xf32>
    %cst_26 = arith.constant 0.000000e+00 : f32
    %37 = vector.broadcast %cst_26 : f32 to vector<8x32xf32>
    %c0_i32 = arith.constant 0 : i32
    %38 = arith.cmpi eq, %arg0, %c0_i32 : i32
    %39 = arith.extui %38 : i1 to i32
    %c0_i32_27 = arith.constant 0 : i32
    %40 = arith.cmpi ne, %39, %c0_i32_27 : i32
    scf.if %40 {
      %c0_i32_29 = arith.constant 0 : i32
      %44 = arith.index_cast %c0_i32_29 : i32 to index
      %c0_30 = arith.constant 0 : index
      %c0_31 = arith.constant 0 : index
      %45 = vector.load %arg6[%44, %c0_30, %c0_31] : memref<8x8x128xbf16, #tpu.memory_space<vmem>>, vector<1x8x128xbf16>
      %46 = vector.shape_cast %45 : vector<1x8x128xbf16> to vector<8x128xbf16>
      %47 = arith.extf %46 : vector<8x128xbf16> to vector<8x128xf32>
      %48 = arith.truncf %36 : vector<8x32xf32> to vector<8x32xbf16>
      %cst_32 = arith.constant dense<0.000000e+00> : vector<8x128xf32>
      %49 = tpu.matmul %48, %23, %cst_32 {dimension_numbers = #tpu.dot_dimension_numbers<[1], [0], [0], [1], [0, 0, 1, 1], [], []>} : vector<8x32xbf16>, vector<32x128xbf16>, vector<8x128xf32> -> vector<8x128xf32>
      %50 = arith.addf %47, %49 : vector<8x128xf32>
      %51 = arith.mulf %50, %32 : vector<8x128xf32>
      %52 = math.tanh %51 : vector<8x128xf32>
      %53 = arith.mulf %52, %32 : vector<8x128xf32>
      %54 = arith.addf %53, %35 : vector<8x128xf32>
      %55 = vector.extract_strided_slice %54 {offsets = [0, 0], sizes = [8, 32], strides = [1, 1]} : vector<8x128xf32> to vector<8x32xf32>
      %56 = vector.extract_strided_slice %54 {offsets = [0, 32], sizes = [8, 32], strides = [1, 1]} : vector<8x128xf32> to vector<8x32xf32>
      %57 = vector.extract_strided_slice %54 {offsets = [0, 64], sizes = [8, 32], strides = [1, 1]} : vector<8x128xf32> to vector<8x32xf32>
      %58 = vector.extract_strided_slice %54 {offsets = [0, 96], sizes = [8, 32], strides = [1, 1]} : vector<8x128xf32> to vector<8x32xf32>
      %59 = arith.mulf %56, %37 : vector<8x32xf32>
      %60 = arith.mulf %55, %57 : vector<8x32xf32>
      %61 = arith.addf %59, %60 : vector<8x32xf32>
      %62 = math.tanh %61 : vector<8x32xf32>
      %63 = arith.mulf %58, %62 : vector<8x32xf32>
      %c0_33 = arith.constant 0 : index
      %64 = arith.index_cast %c0_i32_29 : i32 to index
      %c0_34 = arith.constant 0 : index
      %c0_35 = arith.constant 0 : index
      %65 = vector.load %arg5[%c0_33, %64, %c0_34, %c0_35] : memref<1x8x8x32xf32, #tpu.memory_space<vmem>>, vector<1x1x8x32xf32>
      %66 = vector.shape_cast %65 : vector<1x1x8x32xf32> to vector<8x32xf32>
      %67 = vector.shape_cast %63 : vector<8x32xf32> to vector<1x1x8x32xf32>
      tpu.vector_store %arg5[%c0_33, %64, %c0_34, %c0_35], %67 {strides = array<i32>} : memref<1x8x8x32xf32, #tpu.memory_space<vmem>>, vector<1x1x8x32xf32>,
      %c1_i32_36 = arith.constant 1 : i32
      %68 = arith.index_cast %c1_i32_36 : i32 to index
      %c0_37 = arith.constant 0 : index
      %c0_38 = arith.constant 0 : index
      %69 = vector.load %arg6[%68, %c0_37, %c0_38] : memref<8x8x128xbf16, #tpu.memory_space<vmem>>, vector<1x8x128xbf16>
      %70 = vector.shape_cast %69 : vector<1x8x128xbf16> to vector<8x128xbf16>
      %71 = arith.extf %70 : vector<8x128xbf16> to vector<8x128xf32>
      %72 = arith.truncf %63 : vector<8x32xf32> to vector<8x32xbf16>
      %cst_39 = arith.constant dense<0.000000e+00> : vector<8x128xf32>
      %73 = tpu.matmul %72, %23, %cst_39 {dimension_numbers = #tpu.dot_dimension_numbers<[1], [0], [0], [1], [0, 0, 1, 1], [], []>} : vector<8x32xbf16>, vector<32x128xbf16>, vector<8x128xf32> -> vector<8x128xf32>
      %74 = arith.addf %71, %73 : vector<8x128xf32>
      %75 = arith.mulf %74, %32 : vector<8x128xf32>
      %76 = math.tanh %75 : vector<8x128xf32>
      %77 = arith.mulf %76, %32 : vector<8x128xf32>
      %78 = arith.addf %77, %35 : vector<8x128xf32>
      %79 = vector.extract_strided_slice %78 {offsets = [0, 0], sizes = [8, 32], strides = [1, 1]} : vector<8x128xf32> to vector<8x32xf32>
      %80 = vector.extract_strided_slice %78 {offsets = [0, 32], sizes = [8, 32], strides = [1, 1]} : vector<8x128xf32> to vector<8x32xf32>
      %81 = vector.extract_strided_slice %78 {offsets = [0, 64], sizes = [8, 32], strides = [1, 1]} : vector<8x128xf32> to vector<8x32xf32>
      %82 = vector.extract_strided_slice %78 {offsets = [0, 96], sizes = [8, 32], strides = [1, 1]} : vector<8x128xf32> to vector<8x32xf32>
      %83 = arith.mulf %80, %61 : vector<8x32xf32>
      %84 = arith.mulf %79, %81 : vector<8x32xf32>
      %85 = arith.addf %83, %84 : vector<8x32xf32>
      %86 = math.tanh %85 : vector<8x32xf32>
      %87 = arith.mulf %82, %86 : vector<8x32xf32>
      %c0_40 = arith.constant 0 : index
      %88 = arith.index_cast %c1_i32_36 : i32 to index
      %c0_41 = arith.constant 0 : index
      %c0_42 = arith.constant 0 : index
      %89 = vector.load %arg5[%c0_40, %88, %c0_41, %c0_42] : memref<1x8x8x32xf32, #tpu.memory_space<vmem>>, vector<1x1x8x32xf32>
      %90 = vector.shape_cast %89 : vector<1x1x8x32xf32> to vector<8x32xf32>
      %91 = vector.shape_cast %87 : vector<8x32xf32> to vector<1x1x8x32xf32>
      tpu.vector_store %arg5[%c0_40, %88, %c0_41, %c0_42], %91 {strides = array<i32>} : memref<1x8x8x32xf32, #tpu.memory_space<vmem>>, vector<1x1x8x32xf32>,
      %c2_i32 = arith.constant 2 : i32
      %92 = arith.index_cast %c2_i32 : i32 to index
      %c0_43 = arith.constant 0 : index
      %c0_44 = arith.constant 0 : index
      %93 = vector.load %arg6[%92, %c0_43, %c0_44] : memref<8x8x128xbf16, #tpu.memory_space<vmem>>, vector<1x8x128xbf16>
      %94 = vector.shape_cast %93 : vector<1x8x128xbf16> to vector<8x128xbf16>
      %95 = arith.extf %94 : vector<8x128xbf16> to vector<8x128xf32>
      %96 = arith.truncf %87 : vector<8x32xf32> to vector<8x32xbf16>
      %cst_45 = arith.constant dense<0.000000e+00> : vector<8x128xf32>
      %97 = tpu.matmul %96, %23, %cst_45 {dimension_numbers = #tpu.dot_dimension_numbers<[1], [0], [0], [1], [0, 0, 1, 1], [], []>} : vector<8x32xbf16>, vector<32x128xbf16>, vector<8x128xf32> -> vector<8x128xf32>
      %98 = arith.addf %95, %97 : vector<8x128xf32>
      %99 = arith.mulf %98, %32 : vector<8x128xf32>
      %100 = math.tanh %99 : vector<8x128xf32>
      %101 = arith.mulf %100, %32 : vector<8x128xf32>
      %102 = arith.addf %101, %35 : vector<8x128xf32>
      %103 = vector.extract_strided_slice %102 {offsets = [0, 0], sizes = [8, 32], strides = [1, 1]} : vector<8x128xf32> to vector<8x32xf32>
      %104 = vector.extract_strided_slice %102 {offsets = [0, 32], sizes = [8, 32], strides = [1, 1]} : vector<8x128xf32> to vector<8x32xf32>
      %105 = vector.extract_strided_slice %102 {offsets = [0, 64], sizes = [8, 32], strides = [1, 1]} : vector<8x128xf32> to vector<8x32xf32>
      %106 = vector.extract_strided_slice %102 {offsets = [0, 96], sizes = [8, 32], strides = [1, 1]} : vector<8x128xf32> to vector<8x32xf32>
      %107 = arith.mulf %104, %85 : vector<8x32xf32>
      %108 = arith.mulf %103, %105 : vector<8x32xf32>
      %109 = arith.addf %107, %108 : vector<8x32xf32>
      %110 = math.tanh %109 : vector<8x32xf32>
      %111 = arith.mulf %106, %110 : vector<8x32xf32>
      %c0_46 = arith.constant 0 : index
      %112 = arith.index_cast %c2_i32 : i32 to index
      %c0_47 = arith.constant 0 : index
      %c0_48 = arith.constant 0 : index
      %113 = vector.load %arg5[%c0_46, %112, %c0_47, %c0_48] : memref<1x8x8x32xf32, #tpu.memory_space<vmem>>, vector<1x1x8x32xf32>
      %114 = vector.shape_cast %113 : vector<1x1x8x32xf32> to vector<8x32xf32>
      %115 = vector.shape_cast %111 : vector<8x32xf32> to vector<1x1x8x32xf32>
      tpu.vector_store %arg5[%c0_46, %112, %c0_47, %c0_48], %115 {strides = array<i32>} : memref<1x8x8x32xf32, #tpu.memory_space<vmem>>, vector<1x1x8x32xf32>,
      %c3_i32 = arith.constant 3 : i32
      %116 = arith.index_cast %c3_i32 : i32 to index
      %c0_49 = arith.constant 0 : index
      %c0_50 = arith.constant 0 : index
      %117 = vector.load %arg6[%116, %c0_49, %c0_50] : memref<8x8x128xbf16, #tpu.memory_space<vmem>>, vector<1x8x128xbf16>
      %118 = vector.shape_cast %117 : vector<1x8x128xbf16> to vector<8x128xbf16>
      %119 = arith.extf %118 : vector<8x128xbf16> to vector<8x128xf32>
      %120 = arith.truncf %111 : vector<8x32xf32> to vector<8x32xbf16>
      %cst_51 = arith.constant dense<0.000000e+00> : vector<8x128xf32>
      %121 = tpu.matmul %120, %23, %cst_51 {dimension_numbers = #tpu.dot_dimension_numbers<[1], [0], [0], [1], [0, 0, 1, 1], [], []>} : vector<8x32xbf16>, vector<32x128xbf16>, vector<8x128xf32> -> vector<8x128xf32>
      %122 = arith.addf %119, %121 : vector<8x128xf32>
      %123 = arith.mulf %122, %32 : vector<8x128xf32>
      %124 = math.tanh %123 : vector<8x128xf32>
      %125 = arith.mulf %124, %32 : vector<8x128xf32>
      %126 = arith.addf %125, %35 : vector<8x128xf32>
      %127 = vector.extract_strided_slice %126 {offsets = [0, 0], sizes = [8, 32], strides = [1, 1]} : vector<8x128xf32> to vector<8x32xf32>
      %128 = vector.extract_strided_slice %126 {offsets = [0, 32], sizes = [8, 32], strides = [1, 1]} : vector<8x128xf32> to vector<8x32xf32>
      %129 = vector.extract_strided_slice %126 {offsets = [0, 64], sizes = [8, 32], strides = [1, 1]} : vector<8x128xf32> to vector<8x32xf32>
      %130 = vector.extract_strided_slice %126 {offsets = [0, 96], sizes = [8, 32], strides = [1, 1]} : vector<8x128xf32> to vector<8x32xf32>
      %131 = arith.mulf %128, %109 : vector<8x32xf32>
      %132 = arith.mulf %127, %129 : vector<8x32xf32>
      %133 = arith.addf %131, %132 : vector<8x32xf32>
      %134 = math.tanh %133 : vector<8x32xf32>
      %135 = arith.mulf %130, %134 : vector<8x32xf32>
      %c0_52 = arith.constant 0 : index
      %136 = arith.index_cast %c3_i32 : i32 to index
      %c0_53 = arith.constant 0 : index
      %c0_54 = arith.constant 0 : index
      %137 = vector.load %arg5[%c0_52, %136, %c0_53, %c0_54] : memref<1x8x8x32xf32, #tpu.memory_space<vmem>>, vector<1x1x8x32xf32>
      %138 = vector.shape_cast %137 : vector<1x1x8x32xf32> to vector<8x32xf32>
      %139 = vector.shape_cast %135 : vector<8x32xf32> to vector<1x1x8x32xf32>
      tpu.vector_store %arg5[%c0_52, %136, %c0_53, %c0_54], %139 {strides = array<i32>} : memref<1x8x8x32xf32, #tpu.memory_space<vmem>>, vector<1x1x8x32xf32>,
      %c4_i32 = arith.constant 4 : i32
      %140 = arith.index_cast %c4_i32 : i32 to index
      %c0_55 = arith.constant 0 : index
      %c0_56 = arith.constant 0 : index
      %141 = vector.load %arg6[%140, %c0_55, %c0_56] : memref<8x8x128xbf16, #tpu.memory_space<vmem>>, vector<1x8x128xbf16>
      %142 = vector.shape_cast %141 : vector<1x8x128xbf16> to vector<8x128xbf16>
      %143 = arith.extf %142 : vector<8x128xbf16> to vector<8x128xf32>
      %144 = arith.truncf %135 : vector<8x32xf32> to vector<8x32xbf16>
      %cst_57 = arith.constant dense<0.000000e+00> : vector<8x128xf32>
      %145 = tpu.matmul %144, %23, %cst_57 {dimension_numbers = #tpu.dot_dimension_numbers<[1], [0], [0], [1], [0, 0, 1, 1], [], []>} : vector<8x32xbf16>, vector<32x128xbf16>, vector<8x128xf32> -> vector<8x128xf32>
      %146 = arith.addf %143, %145 : vector<8x128xf32>
      %147 = arith.mulf %146, %32 : vector<8x128xf32>
      %148 = math.tanh %147 : vector<8x128xf32>
      %149 = arith.mulf %148, %32 : vector<8x128xf32>
      %150 = arith.addf %149, %35 : vector<8x128xf32>
      %151 = vector.extract_strided_slice %150 {offsets = [0, 0], sizes = [8, 32], strides = [1, 1]} : vector<8x128xf32> to vector<8x32xf32>
      %152 = vector.extract_strided_slice %150 {offsets = [0, 32], sizes = [8, 32], strides = [1, 1]} : vector<8x128xf32> to vector<8x32xf32>
      %153 = vector.extract_strided_slice %150 {offsets = [0, 64], sizes = [8, 32], strides = [1, 1]} : vector<8x128xf32> to vector<8x32xf32>
      %154 = vector.extract_strided_slice %150 {offsets = [0, 96], sizes = [8, 32], strides = [1, 1]} : vector<8x128xf32> to vector<8x32xf32>
      %155 = arith.mulf %152, %133 : vector<8x32xf32>
      %156 = arith.mulf %151, %153 : vector<8x32xf32>
      %157 = arith.addf %155, %156 : vector<8x32xf32>
      %158 = math.tanh %157 : vector<8x32xf32>
      %159 = arith.mulf %154, %158 : vector<8x32xf32>
      %c0_58 = arith.constant 0 : index
      %160 = arith.index_cast %c4_i32 : i32 to index
      %c0_59 = arith.constant 0 : index
      %c0_60 = arith.constant 0 : index
      %161 = vector.load %arg5[%c0_58, %160, %c0_59, %c0_60] : memref<1x8x8x32xf32, #tpu.memory_space<vmem>>, vector<1x1x8x32xf32>
      %162 = vector.shape_cast %161 : vector<1x1x8x32xf32> to vector<8x32xf32>
      %163 = vector.shape_cast %159 : vector<8x32xf32> to vector<1x1x8x32xf32>
      tpu.vector_store %arg5[%c0_58, %160, %c0_59, %c0_60], %163 {strides = array<i32>} : memref<1x8x8x32xf32, #tpu.memory_space<vmem>>, vector<1x1x8x32xf32>,
      %c5_i32 = arith.constant 5 : i32
      %164 = arith.index_cast %c5_i32 : i32 to index
      %c0_61 = arith.constant 0 : index
      %c0_62 = arith.constant 0 : index
      %165 = vector.load %arg6[%164, %c0_61, %c0_62] : memref<8x8x128xbf16, #tpu.memory_space<vmem>>, vector<1x8x128xbf16>
      %166 = vector.shape_cast %165 : vector<1x8x128xbf16> to vector<8x128xbf16>
      %167 = arith.extf %166 : vector<8x128xbf16> to vector<8x128xf32>
      %168 = arith.truncf %159 : vector<8x32xf32> to vector<8x32xbf16>
      %cst_63 = arith.constant dense<0.000000e+00> : vector<8x128xf32>
      %169 = tpu.matmul %168, %23, %cst_63 {dimension_numbers = #tpu.dot_dimension_numbers<[1], [0], [0], [1], [0, 0, 1, 1], [], []>} : vector<8x32xbf16>, vector<32x128xbf16>, vector<8x128xf32> -> vector<8x128xf32>
      %170 = arith.addf %167, %169 : vector<8x128xf32>
      %171 = arith.mulf %170, %32 : vector<8x128xf32>
      %172 = math.tanh %171 : vector<8x128xf32>
      %173 = arith.mulf %172, %32 : vector<8x128xf32>
      %174 = arith.addf %173, %35 : vector<8x128xf32>
      %175 = vector.extract_strided_slice %174 {offsets = [0, 0], sizes = [8, 32], strides = [1, 1]} : vector<8x128xf32> to vector<8x32xf32>
      %176 = vector.extract_strided_slice %174 {offsets = [0, 32], sizes = [8, 32], strides = [1, 1]} : vector<8x128xf32> to vector<8x32xf32>
      %177 = vector.extract_strided_slice %174 {offsets = [0, 64], sizes = [8, 32], strides = [1, 1]} : vector<8x128xf32> to vector<8x32xf32>
      %178 = vector.extract_strided_slice %174 {offsets = [0, 96], sizes = [8, 32], strides = [1, 1]} : vector<8x128xf32> to vector<8x32xf32>
      %179 = arith.mulf %176, %157 : vector<8x32xf32>
      %180 = arith.mulf %175, %177 : vector<8x32xf32>
      %181 = arith.addf %179, %180 : vector<8x32xf32>
      %182 = math.tanh %181 : vector<8x32xf32>
      %183 = arith.mulf %178, %182 : vector<8x32xf32>
      %c0_64 = arith.constant 0 : index
      %184 = arith.index_cast %c5_i32 : i32 to index
      %c0_65 = arith.constant 0 : index
      %c0_66 = arith.constant 0 : index
      %185 = vector.load %arg5[%c0_64, %184, %c0_65, %c0_66] : memref<1x8x8x32xf32, #tpu.memory_space<vmem>>, vector<1x1x8x32xf32>
      %186 = vector.shape_cast %185 : vector<1x1x8x32xf32> to vector<8x32xf32>
      %187 = vector.shape_cast %183 : vector<8x32xf32> to vector<1x1x8x32xf32>
      tpu.vector_store %arg5[%c0_64, %184, %c0_65, %c0_66], %187 {strides = array<i32>} : memref<1x8x8x32xf32, #tpu.memory_space<vmem>>, vector<1x1x8x32xf32>,
      %c6_i32 = arith.constant 6 : i32
      %188 = arith.index_cast %c6_i32 : i32 to index
      %c0_67 = arith.constant 0 : index
      %c0_68 = arith.constant 0 : index
      %189 = vector.load %arg6[%188, %c0_67, %c0_68] : memref<8x8x128xbf16, #tpu.memory_space<vmem>>, vector<1x8x128xbf16>
      %190 = vector.shape_cast %189 : vector<1x8x128xbf16> to vector<8x128xbf16>
      %191 = arith.extf %190 : vector<8x128xbf16> to vector<8x128xf32>
      %192 = arith.truncf %183 : vector<8x32xf32> to vector<8x32xbf16>
      %cst_69 = arith.constant dense<0.000000e+00> : vector<8x128xf32>
      %193 = tpu.matmul %192, %23, %cst_69 {dimension_numbers = #tpu.dot_dimension_numbers<[1], [0], [0], [1], [0, 0, 1, 1], [], []>} : vector<8x32xbf16>, vector<32x128xbf16>, vector<8x128xf32> -> vector<8x128xf32>
      %194 = arith.addf %191, %193 : vector<8x128xf32>
      %195 = arith.mulf %194, %32 : vector<8x128xf32>
      %196 = math.tanh %195 : vector<8x128xf32>
      %197 = arith.mulf %196, %32 : vector<8x128xf32>
      %198 = arith.addf %197, %35 : vector<8x128xf32>
      %199 = vector.extract_strided_slice %198 {offsets = [0, 0], sizes = [8, 32], strides = [1, 1]} : vector<8x128xf32> to vector<8x32xf32>
      %200 = vector.extract_strided_slice %198 {offsets = [0, 32], sizes = [8, 32], strides = [1, 1]} : vector<8x128xf32> to vector<8x32xf32>
      %201 = vector.extract_strided_slice %198 {offsets = [0, 64], sizes = [8, 32], strides = [1, 1]} : vector<8x128xf32> to vector<8x32xf32>
      %202 = vector.extract_strided_slice %198 {offsets = [0, 96], sizes = [8, 32], strides = [1, 1]} : vector<8x128xf32> to vector<8x32xf32>
      %203 = arith.mulf %200, %181 : vector<8x32xf32>
      %204 = arith.mulf %199, %201 : vector<8x32xf32>
      %205 = arith.addf %203, %204 : vector<8x32xf32>
      %206 = math.tanh %205 : vector<8x32xf32>
      %207 = arith.mulf %202, %206 : vector<8x32xf32>
      %c0_70 = arith.constant 0 : index
      %208 = arith.index_cast %c6_i32 : i32 to index
      %c0_71 = arith.constant 0 : index
      %c0_72 = arith.constant 0 : index
      %209 = vector.load %arg5[%c0_70, %208, %c0_71, %c0_72] : memref<1x8x8x32xf32, #tpu.memory_space<vmem>>, vector<1x1x8x32xf32>
      %210 = vector.shape_cast %209 : vector<1x1x8x32xf32> to vector<8x32xf32>
      %211 = vector.shape_cast %207 : vector<8x32xf32> to vector<1x1x8x32xf32>
      tpu.vector_store %arg5[%c0_70, %208, %c0_71, %c0_72], %211 {strides = array<i32>} : memref<1x8x8x32xf32, #tpu.memory_space<vmem>>, vector<1x1x8x32xf32>,
      %c7_i32 = arith.constant 7 : i32
      %212 = arith.index_cast %c7_i32 : i32 to index
      %c0_73 = arith.constant 0 : index
      %c0_74 = arith.constant 0 : index
      %213 = vector.load %arg6[%212, %c0_73, %c0_74] : memref<8x8x128xbf16, #tpu.memory_space<vmem>>, vector<1x8x128xbf16>
      %214 = vector.shape_cast %213 : vector<1x8x128xbf16> to vector<8x128xbf16>
      %215 = arith.extf %214 : vector<8x128xbf16> to vector<8x128xf32>
      %216 = arith.truncf %207 : vector<8x32xf32> to vector<8x32xbf16>
      %cst_75 = arith.constant dense<0.000000e+00> : vector<8x128xf32>
      %217 = tpu.matmul %216, %23, %cst_75 {dimension_numbers = #tpu.dot_dimension_numbers<[1], [0], [0], [1], [0, 0, 1, 1], [], []>} : vector<8x32xbf16>, vector<32x128xbf16>, vector<8x128xf32> -> vector<8x128xf32>
      %218 = arith.addf %215, %217 : vector<8x128xf32>
      %219 = arith.mulf %218, %32 : vector<8x128xf32>
      %220 = math.tanh %219 : vector<8x128xf32>
      %221 = arith.mulf %220, %32 : vector<8x128xf32>
      %222 = arith.addf %221, %35 : vector<8x128xf32>
      %223 = vector.extract_strided_slice %222 {offsets = [0, 0], sizes = [8, 32], strides = [1, 1]} : vector<8x128xf32> to vector<8x32xf32>
      %224 = vector.extract_strided_slice %222 {offsets = [0, 32], sizes = [8, 32], strides = [1, 1]} : vector<8x128xf32> to vector<8x32xf32>
      %225 = vector.extract_strided_slice %222 {offsets = [0, 64], sizes = [8, 32], strides = [1, 1]} : vector<8x128xf32> to vector<8x32xf32>
      %226 = vector.extract_strided_slice %222 {offsets = [0, 96], sizes = [8, 32], strides = [1, 1]} : vector<8x128xf32> to vector<8x32xf32>
      %227 = arith.mulf %224, %205 : vector<8x32xf32>
      %228 = arith.mulf %223, %225 : vector<8x32xf32>
      %229 = arith.addf %227, %228 : vector<8x32xf32>
      %230 = math.tanh %229 : vector<8x32xf32>
      %231 = arith.mulf %226, %230 : vector<8x32xf32>
      %c0_76 = arith.constant 0 : index
      %232 = arith.index_cast %c7_i32 : i32 to index
      %c0_77 = arith.constant 0 : index
      %c0_78 = arith.constant 0 : index
      %233 = vector.load %arg5[%c0_76, %232, %c0_77, %c0_78] : memref<1x8x8x32xf32, #tpu.memory_space<vmem>>, vector<1x1x8x32xf32>
      %234 = vector.shape_cast %233 : vector<1x1x8x32xf32> to vector<8x32xf32>
      %235 = vector.shape_cast %231 : vector<8x32xf32> to vector<1x1x8x32xf32>
      tpu.vector_store %arg5[%c0_76, %232, %c0_77, %c0_78], %235 {strides = array<i32>} : memref<1x8x8x32xf32, #tpu.memory_space<vmem>>, vector<1x1x8x32xf32>,
      %c8_i32 = arith.constant 8 : i32
    } else {
    }
    %c1_i32 = arith.constant 1 : i32
    %41 = arith.cmpi eq, %arg0, %c1_i32 : i32
    %42 = arith.extui %41 : i1 to i32
    %c0_i32_28 = arith.constant 0 : i32
    %43 = arith.cmpi ne, %42, %c0_i32_28 : i32
    scf.if %43 {
      %c0_i32_29 = arith.constant 0 : i32
      %c7_i32 = arith.constant 7 : i32
      %44 = arith.subi %c7_i32, %c0_i32_29 : i32
      %45 = arith.index_cast %44 : i32 to index
      %c0_30 = arith.constant 0 : index
      %c0_31 = arith.constant 0 : index
      %46 = vector.load %arg6[%45, %c0_30, %c0_31] : memref<8x8x128xbf16, #tpu.memory_space<vmem>>, vector<1x8x128xbf16>
      %47 = vector.shape_cast %46 : vector<1x8x128xbf16> to vector<8x128xbf16>
      %48 = arith.extf %47 : vector<8x128xbf16> to vector<8x128xf32>
      %49 = arith.truncf %36 : vector<8x32xf32> to vector<8x32xbf16>
      %cst_32 = arith.constant dense<0.000000e+00> : vector<8x128xf32>
      %50 = tpu.matmul %49, %23, %cst_32 {dimension_numbers = #tpu.dot_dimension_numbers<[1], [0], [0], [1], [0, 0, 1, 1], [], []>} : vector<8x32xbf16>, vector<32x128xbf16>, vector<8x128xf32> -> vector<8x128xf32>
      %51 = arith.addf %48, %50 : vector<8x128xf32>
      %52 = arith.mulf %51, %32 : vector<8x128xf32>
      %53 = math.tanh %52 : vector<8x128xf32>
      %54 = arith.mulf %53, %32 : vector<8x128xf32>
      %55 = arith.addf %54, %35 : vector<8x128xf32>
      %56 = vector.extract_strided_slice %55 {offsets = [0, 0], sizes = [8, 32], strides = [1, 1]} : vector<8x128xf32> to vector<8x32xf32>
      %57 = vector.extract_strided_slice %55 {offsets = [0, 32], sizes = [8, 32], strides = [1, 1]} : vector<8x128xf32> to vector<8x32xf32>
      %58 = vector.extract_strided_slice %55 {offsets = [0, 64], sizes = [8, 32], strides = [1, 1]} : vector<8x128xf32> to vector<8x32xf32>
      %59 = vector.extract_strided_slice %55 {offsets = [0, 96], sizes = [8, 32], strides = [1, 1]} : vector<8x128xf32> to vector<8x32xf32>
      %60 = arith.mulf %57, %37 : vector<8x32xf32>
      %61 = arith.mulf %56, %58 : vector<8x32xf32>
      %62 = arith.addf %60, %61 : vector<8x32xf32>
      %63 = math.tanh %62 : vector<8x32xf32>
      %64 = arith.mulf %59, %63 : vector<8x32xf32>
      %c0_33 = arith.constant 0 : index
      %65 = arith.index_cast %44 : i32 to index
      %c0_34 = arith.constant 0 : index
      %c0_35 = arith.constant 0 : index
      %66 = vector.load %arg5[%c0_33, %65, %c0_34, %c0_35] : memref<1x8x8x32xf32, #tpu.memory_space<vmem>>, vector<1x1x8x32xf32>
      %67 = vector.shape_cast %66 : vector<1x1x8x32xf32> to vector<8x32xf32>
      %68 = vector.shape_cast %64 : vector<8x32xf32> to vector<1x1x8x32xf32>
      tpu.vector_store %arg5[%c0_33, %65, %c0_34, %c0_35], %68 {strides = array<i32>} : memref<1x8x8x32xf32, #tpu.memory_space<vmem>>, vector<1x1x8x32xf32>,
      %c1_i32_36 = arith.constant 1 : i32
      %c7_i32_37 = arith.constant 7 : i32
      %69 = arith.subi %c7_i32_37, %c1_i32_36 : i32
      %70 = arith.index_cast %69 : i32 to index
      %c0_38 = arith.constant 0 : index
      %c0_39 = arith.constant 0 : index
      %71 = vector.load %arg6[%70, %c0_38, %c0_39] : memref<8x8x128xbf16, #tpu.memory_space<vmem>>, vector<1x8x128xbf16>
      %72 = vector.shape_cast %71 : vector<1x8x128xbf16> to vector<8x128xbf16>
      %73 = arith.extf %72 : vector<8x128xbf16> to vector<8x128xf32>
      %74 = arith.truncf %64 : vector<8x32xf32> to vector<8x32xbf16>
      %cst_40 = arith.constant dense<0.000000e+00> : vector<8x128xf32>
      %75 = tpu.matmul %74, %23, %cst_40 {dimension_numbers = #tpu.dot_dimension_numbers<[1], [0], [0], [1], [0, 0, 1, 1], [], []>} : vector<8x32xbf16>, vector<32x128xbf16>, vector<8x128xf32> -> vector<8x128xf32>
      %76 = arith.addf %73, %75 : vector<8x128xf32>
      %77 = arith.mulf %76, %32 : vector<8x128xf32>
      %78 = math.tanh %77 : vector<8x128xf32>
      %79 = arith.mulf %78, %32 : vector<8x128xf32>
      %80 = arith.addf %79, %35 : vector<8x128xf32>
      %81 = vector.extract_strided_slice %80 {offsets = [0, 0], sizes = [8, 32], strides = [1, 1]} : vector<8x128xf32> to vector<8x32xf32>
      %82 = vector.extract_strided_slice %80 {offsets = [0, 32], sizes = [8, 32], strides = [1, 1]} : vector<8x128xf32> to vector<8x32xf32>
      %83 = vector.extract_strided_slice %80 {offsets = [0, 64], sizes = [8, 32], strides = [1, 1]} : vector<8x128xf32> to vector<8x32xf32>
      %84 = vector.extract_strided_slice %80 {offsets = [0, 96], sizes = [8, 32], strides = [1, 1]} : vector<8x128xf32> to vector<8x32xf32>
      %85 = arith.mulf %82, %62 : vector<8x32xf32>
      %86 = arith.mulf %81, %83 : vector<8x32xf32>
      %87 = arith.addf %85, %86 : vector<8x32xf32>
      %88 = math.tanh %87 : vector<8x32xf32>
      %89 = arith.mulf %84, %88 : vector<8x32xf32>
      %c0_41 = arith.constant 0 : index
      %90 = arith.index_cast %69 : i32 to index
      %c0_42 = arith.constant 0 : index
      %c0_43 = arith.constant 0 : index
      %91 = vector.load %arg5[%c0_41, %90, %c0_42, %c0_43] : memref<1x8x8x32xf32, #tpu.memory_space<vmem>>, vector<1x1x8x32xf32>
      %92 = vector.shape_cast %91 : vector<1x1x8x32xf32> to vector<8x32xf32>
      %93 = vector.shape_cast %89 : vector<8x32xf32> to vector<1x1x8x32xf32>
      tpu.vector_store %arg5[%c0_41, %90, %c0_42, %c0_43], %93 {strides = array<i32>} : memref<1x8x8x32xf32, #tpu.memory_space<vmem>>, vector<1x1x8x32xf32>,
      %c2_i32 = arith.constant 2 : i32
      %c7_i32_44 = arith.constant 7 : i32
      %94 = arith.subi %c7_i32_44, %c2_i32 : i32
      %95 = arith.index_cast %94 : i32 to index
      %c0_45 = arith.constant 0 : index
      %c0_46 = arith.constant 0 : index
      %96 = vector.load %arg6[%95, %c0_45, %c0_46] : memref<8x8x128xbf16, #tpu.memory_space<vmem>>, vector<1x8x128xbf16>
      %97 = vector.shape_cast %96 : vector<1x8x128xbf16> to vector<8x128xbf16>
      %98 = arith.extf %97 : vector<8x128xbf16> to vector<8x128xf32>
      %99 = arith.truncf %89 : vector<8x32xf32> to vector<8x32xbf16>
      %cst_47 = arith.constant dense<0.000000e+00> : vector<8x128xf32>
      %100 = tpu.matmul %99, %23, %cst_47 {dimension_numbers = #tpu.dot_dimension_numbers<[1], [0], [0], [1], [0, 0, 1, 1], [], []>} : vector<8x32xbf16>, vector<32x128xbf16>, vector<8x128xf32> -> vector<8x128xf32>
      %101 = arith.addf %98, %100 : vector<8x128xf32>
      %102 = arith.mulf %101, %32 : vector<8x128xf32>
      %103 = math.tanh %102 : vector<8x128xf32>
      %104 = arith.mulf %103, %32 : vector<8x128xf32>
      %105 = arith.addf %104, %35 : vector<8x128xf32>
      %106 = vector.extract_strided_slice %105 {offsets = [0, 0], sizes = [8, 32], strides = [1, 1]} : vector<8x128xf32> to vector<8x32xf32>
      %107 = vector.extract_strided_slice %105 {offsets = [0, 32], sizes = [8, 32], strides = [1, 1]} : vector<8x128xf32> to vector<8x32xf32>
      %108 = vector.extract_strided_slice %105 {offsets = [0, 64], sizes = [8, 32], strides = [1, 1]} : vector<8x128xf32> to vector<8x32xf32>
      %109 = vector.extract_strided_slice %105 {offsets = [0, 96], sizes = [8, 32], strides = [1, 1]} : vector<8x128xf32> to vector<8x32xf32>
      %110 = arith.mulf %107, %87 : vector<8x32xf32>
      %111 = arith.mulf %106, %108 : vector<8x32xf32>
      %112 = arith.addf %110, %111 : vector<8x32xf32>
      %113 = math.tanh %112 : vector<8x32xf32>
      %114 = arith.mulf %109, %113 : vector<8x32xf32>
      %c0_48 = arith.constant 0 : index
      %115 = arith.index_cast %94 : i32 to index
      %c0_49 = arith.constant 0 : index
      %c0_50 = arith.constant 0 : index
      %116 = vector.load %arg5[%c0_48, %115, %c0_49, %c0_50] : memref<1x8x8x32xf32, #tpu.memory_space<vmem>>, vector<1x1x8x32xf32>
      %117 = vector.shape_cast %116 : vector<1x1x8x32xf32> to vector<8x32xf32>
      %118 = vector.shape_cast %114 : vector<8x32xf32> to vector<1x1x8x32xf32>
      tpu.vector_store %arg5[%c0_48, %115, %c0_49, %c0_50], %118 {strides = array<i32>} : memref<1x8x8x32xf32, #tpu.memory_space<vmem>>, vector<1x1x8x32xf32>,
      %c3_i32 = arith.constant 3 : i32
      %c7_i32_51 = arith.constant 7 : i32
      %119 = arith.subi %c7_i32_51, %c3_i32 : i32
      %120 = arith.index_cast %119 : i32 to index
      %c0_52 = arith.constant 0 : index
      %c0_53 = arith.constant 0 : index
      %121 = vector.load %arg6[%120, %c0_52, %c0_53] : memref<8x8x128xbf16, #tpu.memory_space<vmem>>, vector<1x8x128xbf16>
      %122 = vector.shape_cast %121 : vector<1x8x128xbf16> to vector<8x128xbf16>
      %123 = arith.extf %122 : vector<8x128xbf16> to vector<8x128xf32>
      %124 = arith.truncf %114 : vector<8x32xf32> to vector<8x32xbf16>
      %cst_54 = arith.constant dense<0.000000e+00> : vector<8x128xf32>
      %125 = tpu.matmul %124, %23, %cst_54 {dimension_numbers = #tpu.dot_dimension_numbers<[1], [0], [0], [1], [0, 0, 1, 1], [], []>} : vector<8x32xbf16>, vector<32x128xbf16>, vector<8x128xf32> -> vector<8x128xf32>
      %126 = arith.addf %123, %125 : vector<8x128xf32>
      %127 = arith.mulf %126, %32 : vector<8x128xf32>
      %128 = math.tanh %127 : vector<8x128xf32>
      %129 = arith.mulf %128, %32 : vector<8x128xf32>
      %130 = arith.addf %129, %35 : vector<8x128xf32>
      %131 = vector.extract_strided_slice %130 {offsets = [0, 0], sizes = [8, 32], strides = [1, 1]} : vector<8x128xf32> to vector<8x32xf32>
      %132 = vector.extract_strided_slice %130 {offsets = [0, 32], sizes = [8, 32], strides = [1, 1]} : vector<8x128xf32> to vector<8x32xf32>
      %133 = vector.extract_strided_slice %130 {offsets = [0, 64], sizes = [8, 32], strides = [1, 1]} : vector<8x128xf32> to vector<8x32xf32>
      %134 = vector.extract_strided_slice %130 {offsets = [0, 96], sizes = [8, 32], strides = [1, 1]} : vector<8x128xf32> to vector<8x32xf32>
      %135 = arith.mulf %132, %112 : vector<8x32xf32>
      %136 = arith.mulf %131, %133 : vector<8x32xf32>
      %137 = arith.addf %135, %136 : vector<8x32xf32>
      %138 = math.tanh %137 : vector<8x32xf32>
      %139 = arith.mulf %134, %138 : vector<8x32xf32>
      %c0_55 = arith.constant 0 : index
      %140 = arith.index_cast %119 : i32 to index
      %c0_56 = arith.constant 0 : index
      %c0_57 = arith.constant 0 : index
      %141 = vector.load %arg5[%c0_55, %140, %c0_56, %c0_57] : memref<1x8x8x32xf32, #tpu.memory_space<vmem>>, vector<1x1x8x32xf32>
      %142 = vector.shape_cast %141 : vector<1x1x8x32xf32> to vector<8x32xf32>
      %143 = vector.shape_cast %139 : vector<8x32xf32> to vector<1x1x8x32xf32>
      tpu.vector_store %arg5[%c0_55, %140, %c0_56, %c0_57], %143 {strides = array<i32>} : memref<1x8x8x32xf32, #tpu.memory_space<vmem>>, vector<1x1x8x32xf32>,
      %c4_i32 = arith.constant 4 : i32
      %c7_i32_58 = arith.constant 7 : i32
      %144 = arith.subi %c7_i32_58, %c4_i32 : i32
      %145 = arith.index_cast %144 : i32 to index
      %c0_59 = arith.constant 0 : index
      %c0_60 = arith.constant 0 : index
      %146 = vector.load %arg6[%145, %c0_59, %c0_60] : memref<8x8x128xbf16, #tpu.memory_space<vmem>>, vector<1x8x128xbf16>
      %147 = vector.shape_cast %146 : vector<1x8x128xbf16> to vector<8x128xbf16>
      %148 = arith.extf %147 : vector<8x128xbf16> to vector<8x128xf32>
      %149 = arith.truncf %139 : vector<8x32xf32> to vector<8x32xbf16>
      %cst_61 = arith.constant dense<0.000000e+00> : vector<8x128xf32>
      %150 = tpu.matmul %149, %23, %cst_61 {dimension_numbers = #tpu.dot_dimension_numbers<[1], [0], [0], [1], [0, 0, 1, 1], [], []>} : vector<8x32xbf16>, vector<32x128xbf16>, vector<8x128xf32> -> vector<8x128xf32>
      %151 = arith.addf %148, %150 : vector<8x128xf32>
      %152 = arith.mulf %151, %32 : vector<8x128xf32>
      %153 = math.tanh %152 : vector<8x128xf32>
      %154 = arith.mulf %153, %32 : vector<8x128xf32>
      %155 = arith.addf %154, %35 : vector<8x128xf32>
      %156 = vector.extract_strided_slice %155 {offsets = [0, 0], sizes = [8, 32], strides = [1, 1]} : vector<8x128xf32> to vector<8x32xf32>
      %157 = vector.extract_strided_slice %155 {offsets = [0, 32], sizes = [8, 32], strides = [1, 1]} : vector<8x128xf32> to vector<8x32xf32>
      %158 = vector.extract_strided_slice %155 {offsets = [0, 64], sizes = [8, 32], strides = [1, 1]} : vector<8x128xf32> to vector<8x32xf32>
      %159 = vector.extract_strided_slice %155 {offsets = [0, 96], sizes = [8, 32], strides = [1, 1]} : vector<8x128xf32> to vector<8x32xf32>
      %160 = arith.mulf %157, %137 : vector<8x32xf32>
      %161 = arith.mulf %156, %158 : vector<8x32xf32>
      %162 = arith.addf %160, %161 : vector<8x32xf32>
      %163 = math.tanh %162 : vector<8x32xf32>
      %164 = arith.mulf %159, %163 : vector<8x32xf32>
      %c0_62 = arith.constant 0 : index
      %165 = arith.index_cast %144 : i32 to index
      %c0_63 = arith.constant 0 : index
      %c0_64 = arith.constant 0 : index
      %166 = vector.load %arg5[%c0_62, %165, %c0_63, %c0_64] : memref<1x8x8x32xf32, #tpu.memory_space<vmem>>, vector<1x1x8x32xf32>
      %167 = vector.shape_cast %166 : vector<1x1x8x32xf32> to vector<8x32xf32>
      %168 = vector.shape_cast %164 : vector<8x32xf32> to vector<1x1x8x32xf32>
      tpu.vector_store %arg5[%c0_62, %165, %c0_63, %c0_64], %168 {strides = array<i32>} : memref<1x8x8x32xf32, #tpu.memory_space<vmem>>, vector<1x1x8x32xf32>,
      %c5_i32 = arith.constant 5 : i32
      %c7_i32_65 = arith.constant 7 : i32
      %169 = arith.subi %c7_i32_65, %c5_i32 : i32
      %170 = arith.index_cast %169 : i32 to index
      %c0_66 = arith.constant 0 : index
      %c0_67 = arith.constant 0 : index
      %171 = vector.load %arg6[%170, %c0_66, %c0_67] : memref<8x8x128xbf16, #tpu.memory_space<vmem>>, vector<1x8x128xbf16>
      %172 = vector.shape_cast %171 : vector<1x8x128xbf16> to vector<8x128xbf16>
      %173 = arith.extf %172 : vector<8x128xbf16> to vector<8x128xf32>
      %174 = arith.truncf %164 : vector<8x32xf32> to vector<8x32xbf16>
      %cst_68 = arith.constant dense<0.000000e+00> : vector<8x128xf32>
      %175 = tpu.matmul %174, %23, %cst_68 {dimension_numbers = #tpu.dot_dimension_numbers<[1], [0], [0], [1], [0, 0, 1, 1], [], []>} : vector<8x32xbf16>, vector<32x128xbf16>, vector<8x128xf32> -> vector<8x128xf32>
      %176 = arith.addf %173, %175 : vector<8x128xf32>
      %177 = arith.mulf %176, %32 : vector<8x128xf32>
      %178 = math.tanh %177 : vector<8x128xf32>
      %179 = arith.mulf %178, %32 : vector<8x128xf32>
      %180 = arith.addf %179, %35 : vector<8x128xf32>
      %181 = vector.extract_strided_slice %180 {offsets = [0, 0], sizes = [8, 32], strides = [1, 1]} : vector<8x128xf32> to vector<8x32xf32>
      %182 = vector.extract_strided_slice %180 {offsets = [0, 32], sizes = [8, 32], strides = [1, 1]} : vector<8x128xf32> to vector<8x32xf32>
      %183 = vector.extract_strided_slice %180 {offsets = [0, 64], sizes = [8, 32], strides = [1, 1]} : vector<8x128xf32> to vector<8x32xf32>
      %184 = vector.extract_strided_slice %180 {offsets = [0, 96], sizes = [8, 32], strides = [1, 1]} : vector<8x128xf32> to vector<8x32xf32>
      %185 = arith.mulf %182, %162 : vector<8x32xf32>
      %186 = arith.mulf %181, %183 : vector<8x32xf32>
      %187 = arith.addf %185, %186 : vector<8x32xf32>
      %188 = math.tanh %187 : vector<8x32xf32>
      %189 = arith.mulf %184, %188 : vector<8x32xf32>
      %c0_69 = arith.constant 0 : index
      %190 = arith.index_cast %169 : i32 to index
      %c0_70 = arith.constant 0 : index
      %c0_71 = arith.constant 0 : index
      %191 = vector.load %arg5[%c0_69, %190, %c0_70, %c0_71] : memref<1x8x8x32xf32, #tpu.memory_space<vmem>>, vector<1x1x8x32xf32>
      %192 = vector.shape_cast %191 : vector<1x1x8x32xf32> to vector<8x32xf32>
      %193 = vector.shape_cast %189 : vector<8x32xf32> to vector<1x1x8x32xf32>
      tpu.vector_store %arg5[%c0_69, %190, %c0_70, %c0_71], %193 {strides = array<i32>} : memref<1x8x8x32xf32, #tpu.memory_space<vmem>>, vector<1x1x8x32xf32>,
      %c6_i32 = arith.constant 6 : i32
      %c7_i32_72 = arith.constant 7 : i32
      %194 = arith.subi %c7_i32_72, %c6_i32 : i32
      %195 = arith.index_cast %194 : i32 to index
      %c0_73 = arith.constant 0 : index
      %c0_74 = arith.constant 0 : index
      %196 = vector.load %arg6[%195, %c0_73, %c0_74] : memref<8x8x128xbf16, #tpu.memory_space<vmem>>, vector<1x8x128xbf16>
      %197 = vector.shape_cast %196 : vector<1x8x128xbf16> to vector<8x128xbf16>
      %198 = arith.extf %197 : vector<8x128xbf16> to vector<8x128xf32>
      %199 = arith.truncf %189 : vector<8x32xf32> to vector<8x32xbf16>
      %cst_75 = arith.constant dense<0.000000e+00> : vector<8x128xf32>
      %200 = tpu.matmul %199, %23, %cst_75 {dimension_numbers = #tpu.dot_dimension_numbers<[1], [0], [0], [1], [0, 0, 1, 1], [], []>} : vector<8x32xbf16>, vector<32x128xbf16>, vector<8x128xf32> -> vector<8x128xf32>
      %201 = arith.addf %198, %200 : vector<8x128xf32>
      %202 = arith.mulf %201, %32 : vector<8x128xf32>
      %203 = math.tanh %202 : vector<8x128xf32>
      %204 = arith.mulf %203, %32 : vector<8x128xf32>
      %205 = arith.addf %204, %35 : vector<8x128xf32>
      %206 = vector.extract_strided_slice %205 {offsets = [0, 0], sizes = [8, 32], strides = [1, 1]} : vector<8x128xf32> to vector<8x32xf32>
      %207 = vector.extract_strided_slice %205 {offsets = [0, 32], sizes = [8, 32], strides = [1, 1]} : vector<8x128xf32> to vector<8x32xf32>
      %208 = vector.extract_strided_slice %205 {offsets = [0, 64], sizes = [8, 32], strides = [1, 1]} : vector<8x128xf32> to vector<8x32xf32>
      %209 = vector.extract_strided_slice %205 {offsets = [0, 96], sizes = [8, 32], strides = [1, 1]} : vector<8x128xf32> to vector<8x32xf32>
      %210 = arith.mulf %207, %187 : vector<8x32xf32>
      %211 = arith.mulf %206, %208 : vector<8x32xf32>
      %212 = arith.addf %210, %211 : vector<8x32xf32>
      %213 = math.tanh %212 : vector<8x32xf32>
      %214 = arith.mulf %209, %213 : vector<8x32xf32>
      %c0_76 = arith.constant 0 : index
      %215 = arith.index_cast %194 : i32 to index
      %c0_77 = arith.constant 0 : index
      %c0_78 = arith.constant 0 : index
      %216 = vector.load %arg5[%c0_76, %215, %c0_77, %c0_78] : memref<1x8x8x32xf32, #tpu.memory_space<vmem>>, vector<1x1x8x32xf32>
      %217 = vector.shape_cast %216 : vector<1x1x8x32xf32> to vector<8x32xf32>
      %218 = vector.shape_cast %214 : vector<8x32xf32> to vector<1x1x8x32xf32>
      tpu.vector_store %arg5[%c0_76, %215, %c0_77, %c0_78], %218 {strides = array<i32>} : memref<1x8x8x32xf32, #tpu.memory_space<vmem>>, vector<1x1x8x32xf32>,
      %c7_i32_79 = arith.constant 7 : i32
      %c7_i32_80 = arith.constant 7 : i32
      %219 = arith.subi %c7_i32_80, %c7_i32_79 : i32
      %220 = arith.index_cast %219 : i32 to index
      %c0_81 = arith.constant 0 : index
      %c0_82 = arith.constant 0 : index
      %221 = vector.load %arg6[%220, %c0_81, %c0_82] : memref<8x8x128xbf16, #tpu.memory_space<vmem>>, vector<1x8x128xbf16>
      %222 = vector.shape_cast %221 : vector<1x8x128xbf16> to vector<8x128xbf16>
      %223 = arith.extf %222 : vector<8x128xbf16> to vector<8x128xf32>
      %224 = arith.truncf %214 : vector<8x32xf32> to vector<8x32xbf16>
      %cst_83 = arith.constant dense<0.000000e+00> : vector<8x128xf32>
      %225 = tpu.matmul %224, %23, %cst_83 {dimension_numbers = #tpu.dot_dimension_numbers<[1], [0], [0], [1], [0, 0, 1, 1], [], []>} : vector<8x32xbf16>, vector<32x128xbf16>, vector<8x128xf32> -> vector<8x128xf32>
      %226 = arith.addf %223, %225 : vector<8x128xf32>
      %227 = arith.mulf %226, %32 : vector<8x128xf32>
      %228 = math.tanh %227 : vector<8x128xf32>
      %229 = arith.mulf %228, %32 : vector<8x128xf32>
      %230 = arith.addf %229, %35 : vector<8x128xf32>
      %231 = vector.extract_strided_slice %230 {offsets = [0, 0], sizes = [8, 32], strides = [1, 1]} : vector<8x128xf32> to vector<8x32xf32>
      %232 = vector.extract_strided_slice %230 {offsets = [0, 32], sizes = [8, 32], strides = [1, 1]} : vector<8x128xf32> to vector<8x32xf32>
      %233 = vector.extract_strided_slice %230 {offsets = [0, 64], sizes = [8, 32], strides = [1, 1]} : vector<8x128xf32> to vector<8x32xf32>
      %234 = vector.extract_strided_slice %230 {offsets = [0, 96], sizes = [8, 32], strides = [1, 1]} : vector<8x128xf32> to vector<8x32xf32>
      %235 = arith.mulf %232, %212 : vector<8x32xf32>
      %236 = arith.mulf %231, %233 : vector<8x32xf32>
      %237 = arith.addf %235, %236 : vector<8x32xf32>
      %238 = math.tanh %237 : vector<8x32xf32>
      %239 = arith.mulf %234, %238 : vector<8x32xf32>
      %c0_84 = arith.constant 0 : index
      %240 = arith.index_cast %219 : i32 to index
      %c0_85 = arith.constant 0 : index
      %c0_86 = arith.constant 0 : index
      %241 = vector.load %arg5[%c0_84, %240, %c0_85, %c0_86] : memref<1x8x8x32xf32, #tpu.memory_space<vmem>>, vector<1x1x8x32xf32>
      %242 = vector.shape_cast %241 : vector<1x1x8x32xf32> to vector<8x32xf32>
      %243 = vector.shape_cast %239 : vector<8x32xf32> to vector<1x1x8x32xf32>
      tpu.vector_store %arg5[%c0_84, %240, %c0_85, %c0_86], %243 {strides = array<i32>} : memref<1x8x8x32xf32, #tpu.memory_space<vmem>>, vector<1x1x8x32xf32>,
      %c8_i32 = arith.constant 8 : i32
    } else {
    }
    return
  }
  func.func @transform_0(%arg0: i32) -> (i32, i32, i32, i32) {
    %c0_i32 = arith.constant 0 : i32
    %c0_i32_0 = arith.constant 0 : i32
    %c0_i32_1 = arith.constant 0 : i32
    %c0_i32_2 = arith.constant 0 : i32
    %c0_i32_3 = arith.constant 0 : i32
    return %c0_i32, %c0_i32_0, %c0_i32_1, %c0_i32_2 : i32, i32, i32, i32
  }
  func.func @transform_1(%arg0: i32) -> (i32, i32, i32) {
    %c0_i32 = arith.constant 0 : i32
    %c0_i32_0 = arith.constant 0 : i32
    %c0_i32_1 = arith.constant 0 : i32
    return %arg0, %c0_i32, %c0_i32_0 : i32, i32, i32
  }
  func.func @transform_2(%arg0: i32) -> (i32, i32, i32) {
    %c0_i32 = arith.constant 0 : i32
    %c0_i32_0 = arith.constant 0 : i32
    %c0_i32_1 = arith.constant 0 : i32
    return %arg0, %c0_i32, %c0_i32_0 : i32, i32, i32
  }
  func.func @transform_3(%arg0: i32) -> (i32, i32, i32) {
    %c0_i32 = arith.constant 0 : i32
    %c0_i32_0 = arith.constant 0 : i32
    %c0_i32_1 = arith.constant 0 : i32
    return %arg0, %c0_i32, %c0_i32_0 : i32, i32, i32
  }
  func.func @transform_4(%arg0: i32) -> (i32, i32, i32, i32) {
    %c0_i32 = arith.constant 0 : i32
    %c0_i32_0 = arith.constant 0 : i32
    %c0_i32_1 = arith.constant 0 : i32
    %c0_i32_2 = arith.constant 0 : i32
    return %arg0, %c0_i32, %c0_i32_0, %c0_i32_1 : i32, i32, i32, i32
  }
}

module attributes {stable_mosaic.version = 11 : i64} {
  func.func @lstm_dir_kernel(%arg0: i32, %arg1: memref<1x8x8x32xf32, #tpu.memory_space<vmem>>, %arg2: memref<1x32x128xbf16, #tpu.memory_space<vmem>>, %arg3: memref<1x32x128xbf16, #tpu.memory_space<vmem>>, %arg4: memref<1x1x128xf32, #tpu.memory_space<vmem>>, %arg5: memref<1x8x8x32xf32, #tpu.memory_space<vmem>>, %arg6: memref<8x8x128xbf16, #tpu.memory_space<vmem>>) attributes {dimension_semantics = [#tpu.dimension_semantics<parallel>], iteration_bounds = array<i64: 2>, scalar_prefetch = 0 : i64, scratch_operands = 1 : i64, tpu.core_type = #tpu.core_type<tc>, window_params = [{pipeline_mode = #tpu.pipeline_mode<synchronous>, transform_indices = @transform_0, window_bounds = array<i64: 1, 8, 8, 32>}, {transform_indices = @transform_1, window_bounds = array<i64: 1, 32, 128>}, {transform_indices = @transform_2, window_bounds = array<i64: 1, 32, 128>}, {transform_indices = @transform_3, window_bounds = array<i64: 1, 1, 128>}, {transform_indices = @transform_4, window_bounds = array<i64: 1, 8, 8, 32>}]} {
    %c0 = arith.constant 0 : index
    %c0_0 = arith.constant 0 : index
    %c0_1 = arith.constant 0 : index
    %c0_2 = arith.constant 0 : index
    %0 = vector.load %arg1[%c0, %c0_0, %c0_1, %c0_2] : memref<1x8x8x32xf32, #tpu.memory_space<vmem>>, vector<1x8x8x32xf32>
    %1 = vector.shape_cast %0 : vector<1x8x8x32xf32> to vector<8x8x32xf32>
    %2 = vector.shape_cast %1 : vector<8x8x32xf32> to vector<64x32xf32>
    %3 = arith.truncf %2 : vector<64x32xf32> to vector<64x32xbf16>
    %c0_3 = arith.constant 0 : index
    %c0_4 = arith.constant 0 : index
    %c0_5 = arith.constant 0 : index
    %4 = vector.load %arg2[%c0_3, %c0_4, %c0_5] : memref<1x32x128xbf16, #tpu.memory_space<vmem>>, vector<1x32x128xbf16>
    %5 = vector.shape_cast %4 : vector<1x32x128xbf16> to vector<32x128xbf16>
    %cst = arith.constant dense<0.000000e+00> : vector<64x128xf32>
    %6 = tpu.matmul %3, %5, %cst {dimension_numbers = #tpu.dot_dimension_numbers<[1], [0], [0], [1], [0, 0, 1, 1], [], []>} : vector<64x32xbf16>, vector<32x128xbf16>, vector<64x128xf32> -> vector<64x128xf32>
    %c0_6 = arith.constant 0 : index
    %c0_7 = arith.constant 0 : index
    %c0_8 = arith.constant 0 : index
    %7 = vector.load %arg4[%c0_6, %c0_7, %c0_8] : memref<1x1x128xf32, #tpu.memory_space<vmem>>, vector<1x1x128xf32>
    %8 = vector.shape_cast %7 : vector<1x1x128xf32> to vector<1x128xf32>
    %9 = vector.broadcast %8 : vector<1x128xf32> to vector<64x128xf32>
    %10 = arith.addf %6, %9 : vector<64x128xf32>
    %11 = vector.shape_cast %10 : vector<64x128xf32> to vector<8x8x128xf32>
    %12 = arith.truncf %11 : vector<8x8x128xf32> to vector<8x8x128xbf16>
    %c0_9 = arith.constant 0 : index
    %c0_10 = arith.constant 0 : index
    %c0_11 = arith.constant 0 : index
    %13 = vector.load %arg6[%c0_9, %c0_10, %c0_11] : memref<8x8x128xbf16, #tpu.memory_space<vmem>>, vector<8x8x128xbf16>
    tpu.vector_store %arg6[%c0_9, %c0_10, %c0_11], %12 {strides = array<i32>} : memref<8x8x128xbf16, #tpu.memory_space<vmem>>, vector<8x8x128xbf16>,
    %c0_12 = arith.constant 0 : index
    %c0_13 = arith.constant 0 : index
    %c0_14 = arith.constant 0 : index
    %14 = vector.load %arg3[%c0_12, %c0_13, %c0_14] : memref<1x32x128xbf16, #tpu.memory_space<vmem>>, vector<1x32x128xbf16>
    %15 = vector.shape_cast %14 : vector<1x32x128xbf16> to vector<32x128xbf16>
    %16 = tpu.iota {dimensions = array<i32: 1>} : vector<8x128xi32>
    %c64_i32 = arith.constant 64 : i32
    %17 = vector.broadcast %c64_i32 : i32 to vector<8x128xi32>
    %18 = arith.cmpi sge, %16, %17 : vector<8x128xi32>
    %c96_i32 = arith.constant 96 : i32
    %19 = vector.broadcast %c96_i32 : i32 to vector<8x128xi32>
    %20 = arith.cmpi slt, %16, %19 : vector<8x128xi32>
    %21 = arith.andi %18, %20 : vector<8x128xi1>
    %cst_15 = arith.constant 1.000000e+00 : f32
    %cst_16 = arith.constant 5.000000e-01 : f32
    %22 = vector.broadcast %cst_15 : f32 to vector<8x128xf32>
    %23 = vector.broadcast %cst_16 : f32 to vector<8x128xf32>
    %24 = arith.select %21, %22, %23 : vector<8x128xi1>, vector<8x128xf32>
    %cst_17 = arith.constant 0.000000e+00 : f32
    %cst_18 = arith.constant 5.000000e-01 : f32
    %25 = vector.broadcast %cst_17 : f32 to vector<8x128xf32>
    %26 = vector.broadcast %cst_18 : f32 to vector<8x128xf32>
    %27 = arith.select %21, %25, %26 : vector<8x128xi1>, vector<8x128xf32>
    %cst_19 = arith.constant 0.000000e+00 : f32
    %28 = vector.broadcast %cst_19 : f32 to vector<8x32xf32>
    %cst_20 = arith.constant 0.000000e+00 : f32
    %29 = vector.broadcast %cst_20 : f32 to vector<8x32xf32>
    %c0_i32 = arith.constant 0 : i32
    %30 = arith.cmpi eq, %arg0, %c0_i32 : i32
    %31 = arith.extui %30 : i1 to i32
    %c0_i32_21 = arith.constant 0 : i32
    %32 = arith.cmpi ne, %31, %c0_i32_21 : i32
    scf.if %32 {
      %c0_i32_23 = arith.constant 0 : i32
      %36 = arith.index_cast %c0_i32_23 : i32 to index
      %c0_24 = arith.constant 0 : index
      %c0_25 = arith.constant 0 : index
      %37 = vector.load %arg6[%36, %c0_24, %c0_25] : memref<8x8x128xbf16, #tpu.memory_space<vmem>>, vector<1x8x128xbf16>
      %38 = vector.shape_cast %37 : vector<1x8x128xbf16> to vector<8x128xbf16>
      %39 = arith.extf %38 : vector<8x128xbf16> to vector<8x128xf32>
      %40 = arith.truncf %28 : vector<8x32xf32> to vector<8x32xbf16>
      %cst_26 = arith.constant dense<0.000000e+00> : vector<8x128xf32>
      %41 = tpu.matmul %40, %15, %cst_26 {dimension_numbers = #tpu.dot_dimension_numbers<[1], [0], [0], [1], [0, 0, 1, 1], [], []>} : vector<8x32xbf16>, vector<32x128xbf16>, vector<8x128xf32> -> vector<8x128xf32>
      %42 = arith.addf %39, %41 : vector<8x128xf32>
      %43 = arith.mulf %42, %24 : vector<8x128xf32>
      %44 = math.tanh %43 : vector<8x128xf32>
      %45 = arith.mulf %44, %24 : vector<8x128xf32>
      %46 = arith.addf %45, %27 : vector<8x128xf32>
      %47 = vector.extract_strided_slice %46 {offsets = [0, 0], sizes = [8, 32], strides = [1, 1]} : vector<8x128xf32> to vector<8x32xf32>
      %48 = vector.extract_strided_slice %46 {offsets = [0, 32], sizes = [8, 32], strides = [1, 1]} : vector<8x128xf32> to vector<8x32xf32>
      %49 = vector.extract_strided_slice %46 {offsets = [0, 64], sizes = [8, 32], strides = [1, 1]} : vector<8x128xf32> to vector<8x32xf32>
      %50 = vector.extract_strided_slice %46 {offsets = [0, 96], sizes = [8, 32], strides = [1, 1]} : vector<8x128xf32> to vector<8x32xf32>
      %51 = arith.mulf %48, %29 : vector<8x32xf32>
      %52 = arith.mulf %47, %49 : vector<8x32xf32>
      %53 = arith.addf %51, %52 : vector<8x32xf32>
      %54 = math.tanh %53 : vector<8x32xf32>
      %55 = arith.mulf %50, %54 : vector<8x32xf32>
      %c0_27 = arith.constant 0 : index
      %56 = arith.index_cast %c0_i32_23 : i32 to index
      %c0_28 = arith.constant 0 : index
      %c0_29 = arith.constant 0 : index
      %57 = vector.load %arg5[%c0_27, %56, %c0_28, %c0_29] : memref<1x8x8x32xf32, #tpu.memory_space<vmem>>, vector<1x1x8x32xf32>
      %58 = vector.shape_cast %57 : vector<1x1x8x32xf32> to vector<8x32xf32>
      %59 = vector.shape_cast %55 : vector<8x32xf32> to vector<1x1x8x32xf32>
      tpu.vector_store %arg5[%c0_27, %56, %c0_28, %c0_29], %59 {strides = array<i32>} : memref<1x8x8x32xf32, #tpu.memory_space<vmem>>, vector<1x1x8x32xf32>,
      %c1_i32_30 = arith.constant 1 : i32
      %60 = arith.index_cast %c1_i32_30 : i32 to index
      %c0_31 = arith.constant 0 : index
      %c0_32 = arith.constant 0 : index
      %61 = vector.load %arg6[%60, %c0_31, %c0_32] : memref<8x8x128xbf16, #tpu.memory_space<vmem>>, vector<1x8x128xbf16>
      %62 = vector.shape_cast %61 : vector<1x8x128xbf16> to vector<8x128xbf16>
      %63 = arith.extf %62 : vector<8x128xbf16> to vector<8x128xf32>
      %64 = arith.truncf %55 : vector<8x32xf32> to vector<8x32xbf16>
      %cst_33 = arith.constant dense<0.000000e+00> : vector<8x128xf32>
      %65 = tpu.matmul %64, %15, %cst_33 {dimension_numbers = #tpu.dot_dimension_numbers<[1], [0], [0], [1], [0, 0, 1, 1], [], []>} : vector<8x32xbf16>, vector<32x128xbf16>, vector<8x128xf32> -> vector<8x128xf32>
      %66 = arith.addf %63, %65 : vector<8x128xf32>
      %67 = arith.mulf %66, %24 : vector<8x128xf32>
      %68 = math.tanh %67 : vector<8x128xf32>
      %69 = arith.mulf %68, %24 : vector<8x128xf32>
      %70 = arith.addf %69, %27 : vector<8x128xf32>
      %71 = vector.extract_strided_slice %70 {offsets = [0, 0], sizes = [8, 32], strides = [1, 1]} : vector<8x128xf32> to vector<8x32xf32>
      %72 = vector.extract_strided_slice %70 {offsets = [0, 32], sizes = [8, 32], strides = [1, 1]} : vector<8x128xf32> to vector<8x32xf32>
      %73 = vector.extract_strided_slice %70 {offsets = [0, 64], sizes = [8, 32], strides = [1, 1]} : vector<8x128xf32> to vector<8x32xf32>
      %74 = vector.extract_strided_slice %70 {offsets = [0, 96], sizes = [8, 32], strides = [1, 1]} : vector<8x128xf32> to vector<8x32xf32>
      %75 = arith.mulf %72, %53 : vector<8x32xf32>
      %76 = arith.mulf %71, %73 : vector<8x32xf32>
      %77 = arith.addf %75, %76 : vector<8x32xf32>
      %78 = math.tanh %77 : vector<8x32xf32>
      %79 = arith.mulf %74, %78 : vector<8x32xf32>
      %c0_34 = arith.constant 0 : index
      %80 = arith.index_cast %c1_i32_30 : i32 to index
      %c0_35 = arith.constant 0 : index
      %c0_36 = arith.constant 0 : index
      %81 = vector.load %arg5[%c0_34, %80, %c0_35, %c0_36] : memref<1x8x8x32xf32, #tpu.memory_space<vmem>>, vector<1x1x8x32xf32>
      %82 = vector.shape_cast %81 : vector<1x1x8x32xf32> to vector<8x32xf32>
      %83 = vector.shape_cast %79 : vector<8x32xf32> to vector<1x1x8x32xf32>
      tpu.vector_store %arg5[%c0_34, %80, %c0_35, %c0_36], %83 {strides = array<i32>} : memref<1x8x8x32xf32, #tpu.memory_space<vmem>>, vector<1x1x8x32xf32>,
      %c2_i32 = arith.constant 2 : i32
      %84 = arith.index_cast %c2_i32 : i32 to index
      %c0_37 = arith.constant 0 : index
      %c0_38 = arith.constant 0 : index
      %85 = vector.load %arg6[%84, %c0_37, %c0_38] : memref<8x8x128xbf16, #tpu.memory_space<vmem>>, vector<1x8x128xbf16>
      %86 = vector.shape_cast %85 : vector<1x8x128xbf16> to vector<8x128xbf16>
      %87 = arith.extf %86 : vector<8x128xbf16> to vector<8x128xf32>
      %88 = arith.truncf %79 : vector<8x32xf32> to vector<8x32xbf16>
      %cst_39 = arith.constant dense<0.000000e+00> : vector<8x128xf32>
      %89 = tpu.matmul %88, %15, %cst_39 {dimension_numbers = #tpu.dot_dimension_numbers<[1], [0], [0], [1], [0, 0, 1, 1], [], []>} : vector<8x32xbf16>, vector<32x128xbf16>, vector<8x128xf32> -> vector<8x128xf32>
      %90 = arith.addf %87, %89 : vector<8x128xf32>
      %91 = arith.mulf %90, %24 : vector<8x128xf32>
      %92 = math.tanh %91 : vector<8x128xf32>
      %93 = arith.mulf %92, %24 : vector<8x128xf32>
      %94 = arith.addf %93, %27 : vector<8x128xf32>
      %95 = vector.extract_strided_slice %94 {offsets = [0, 0], sizes = [8, 32], strides = [1, 1]} : vector<8x128xf32> to vector<8x32xf32>
      %96 = vector.extract_strided_slice %94 {offsets = [0, 32], sizes = [8, 32], strides = [1, 1]} : vector<8x128xf32> to vector<8x32xf32>
      %97 = vector.extract_strided_slice %94 {offsets = [0, 64], sizes = [8, 32], strides = [1, 1]} : vector<8x128xf32> to vector<8x32xf32>
      %98 = vector.extract_strided_slice %94 {offsets = [0, 96], sizes = [8, 32], strides = [1, 1]} : vector<8x128xf32> to vector<8x32xf32>
      %99 = arith.mulf %96, %77 : vector<8x32xf32>
      %100 = arith.mulf %95, %97 : vector<8x32xf32>
      %101 = arith.addf %99, %100 : vector<8x32xf32>
      %102 = math.tanh %101 : vector<8x32xf32>
      %103 = arith.mulf %98, %102 : vector<8x32xf32>
      %c0_40 = arith.constant 0 : index
      %104 = arith.index_cast %c2_i32 : i32 to index
      %c0_41 = arith.constant 0 : index
      %c0_42 = arith.constant 0 : index
      %105 = vector.load %arg5[%c0_40, %104, %c0_41, %c0_42] : memref<1x8x8x32xf32, #tpu.memory_space<vmem>>, vector<1x1x8x32xf32>
      %106 = vector.shape_cast %105 : vector<1x1x8x32xf32> to vector<8x32xf32>
      %107 = vector.shape_cast %103 : vector<8x32xf32> to vector<1x1x8x32xf32>
      tpu.vector_store %arg5[%c0_40, %104, %c0_41, %c0_42], %107 {strides = array<i32>} : memref<1x8x8x32xf32, #tpu.memory_space<vmem>>, vector<1x1x8x32xf32>,
      %c3_i32 = arith.constant 3 : i32
      %108 = arith.index_cast %c3_i32 : i32 to index
      %c0_43 = arith.constant 0 : index
      %c0_44 = arith.constant 0 : index
      %109 = vector.load %arg6[%108, %c0_43, %c0_44] : memref<8x8x128xbf16, #tpu.memory_space<vmem>>, vector<1x8x128xbf16>
      %110 = vector.shape_cast %109 : vector<1x8x128xbf16> to vector<8x128xbf16>
      %111 = arith.extf %110 : vector<8x128xbf16> to vector<8x128xf32>
      %112 = arith.truncf %103 : vector<8x32xf32> to vector<8x32xbf16>
      %cst_45 = arith.constant dense<0.000000e+00> : vector<8x128xf32>
      %113 = tpu.matmul %112, %15, %cst_45 {dimension_numbers = #tpu.dot_dimension_numbers<[1], [0], [0], [1], [0, 0, 1, 1], [], []>} : vector<8x32xbf16>, vector<32x128xbf16>, vector<8x128xf32> -> vector<8x128xf32>
      %114 = arith.addf %111, %113 : vector<8x128xf32>
      %115 = arith.mulf %114, %24 : vector<8x128xf32>
      %116 = math.tanh %115 : vector<8x128xf32>
      %117 = arith.mulf %116, %24 : vector<8x128xf32>
      %118 = arith.addf %117, %27 : vector<8x128xf32>
      %119 = vector.extract_strided_slice %118 {offsets = [0, 0], sizes = [8, 32], strides = [1, 1]} : vector<8x128xf32> to vector<8x32xf32>
      %120 = vector.extract_strided_slice %118 {offsets = [0, 32], sizes = [8, 32], strides = [1, 1]} : vector<8x128xf32> to vector<8x32xf32>
      %121 = vector.extract_strided_slice %118 {offsets = [0, 64], sizes = [8, 32], strides = [1, 1]} : vector<8x128xf32> to vector<8x32xf32>
      %122 = vector.extract_strided_slice %118 {offsets = [0, 96], sizes = [8, 32], strides = [1, 1]} : vector<8x128xf32> to vector<8x32xf32>
      %123 = arith.mulf %120, %101 : vector<8x32xf32>
      %124 = arith.mulf %119, %121 : vector<8x32xf32>
      %125 = arith.addf %123, %124 : vector<8x32xf32>
      %126 = math.tanh %125 : vector<8x32xf32>
      %127 = arith.mulf %122, %126 : vector<8x32xf32>
      %c0_46 = arith.constant 0 : index
      %128 = arith.index_cast %c3_i32 : i32 to index
      %c0_47 = arith.constant 0 : index
      %c0_48 = arith.constant 0 : index
      %129 = vector.load %arg5[%c0_46, %128, %c0_47, %c0_48] : memref<1x8x8x32xf32, #tpu.memory_space<vmem>>, vector<1x1x8x32xf32>
      %130 = vector.shape_cast %129 : vector<1x1x8x32xf32> to vector<8x32xf32>
      %131 = vector.shape_cast %127 : vector<8x32xf32> to vector<1x1x8x32xf32>
      tpu.vector_store %arg5[%c0_46, %128, %c0_47, %c0_48], %131 {strides = array<i32>} : memref<1x8x8x32xf32, #tpu.memory_space<vmem>>, vector<1x1x8x32xf32>,
      %c4_i32 = arith.constant 4 : i32
      %132 = arith.index_cast %c4_i32 : i32 to index
      %c0_49 = arith.constant 0 : index
      %c0_50 = arith.constant 0 : index
      %133 = vector.load %arg6[%132, %c0_49, %c0_50] : memref<8x8x128xbf16, #tpu.memory_space<vmem>>, vector<1x8x128xbf16>
      %134 = vector.shape_cast %133 : vector<1x8x128xbf16> to vector<8x128xbf16>
      %135 = arith.extf %134 : vector<8x128xbf16> to vector<8x128xf32>
      %136 = arith.truncf %127 : vector<8x32xf32> to vector<8x32xbf16>
      %cst_51 = arith.constant dense<0.000000e+00> : vector<8x128xf32>
      %137 = tpu.matmul %136, %15, %cst_51 {dimension_numbers = #tpu.dot_dimension_numbers<[1], [0], [0], [1], [0, 0, 1, 1], [], []>} : vector<8x32xbf16>, vector<32x128xbf16>, vector<8x128xf32> -> vector<8x128xf32>
      %138 = arith.addf %135, %137 : vector<8x128xf32>
      %139 = arith.mulf %138, %24 : vector<8x128xf32>
      %140 = math.tanh %139 : vector<8x128xf32>
      %141 = arith.mulf %140, %24 : vector<8x128xf32>
      %142 = arith.addf %141, %27 : vector<8x128xf32>
      %143 = vector.extract_strided_slice %142 {offsets = [0, 0], sizes = [8, 32], strides = [1, 1]} : vector<8x128xf32> to vector<8x32xf32>
      %144 = vector.extract_strided_slice %142 {offsets = [0, 32], sizes = [8, 32], strides = [1, 1]} : vector<8x128xf32> to vector<8x32xf32>
      %145 = vector.extract_strided_slice %142 {offsets = [0, 64], sizes = [8, 32], strides = [1, 1]} : vector<8x128xf32> to vector<8x32xf32>
      %146 = vector.extract_strided_slice %142 {offsets = [0, 96], sizes = [8, 32], strides = [1, 1]} : vector<8x128xf32> to vector<8x32xf32>
      %147 = arith.mulf %144, %125 : vector<8x32xf32>
      %148 = arith.mulf %143, %145 : vector<8x32xf32>
      %149 = arith.addf %147, %148 : vector<8x32xf32>
      %150 = math.tanh %149 : vector<8x32xf32>
      %151 = arith.mulf %146, %150 : vector<8x32xf32>
      %c0_52 = arith.constant 0 : index
      %152 = arith.index_cast %c4_i32 : i32 to index
      %c0_53 = arith.constant 0 : index
      %c0_54 = arith.constant 0 : index
      %153 = vector.load %arg5[%c0_52, %152, %c0_53, %c0_54] : memref<1x8x8x32xf32, #tpu.memory_space<vmem>>, vector<1x1x8x32xf32>
      %154 = vector.shape_cast %153 : vector<1x1x8x32xf32> to vector<8x32xf32>
      %155 = vector.shape_cast %151 : vector<8x32xf32> to vector<1x1x8x32xf32>
      tpu.vector_store %arg5[%c0_52, %152, %c0_53, %c0_54], %155 {strides = array<i32>} : memref<1x8x8x32xf32, #tpu.memory_space<vmem>>, vector<1x1x8x32xf32>,
      %c5_i32 = arith.constant 5 : i32
      %156 = arith.index_cast %c5_i32 : i32 to index
      %c0_55 = arith.constant 0 : index
      %c0_56 = arith.constant 0 : index
      %157 = vector.load %arg6[%156, %c0_55, %c0_56] : memref<8x8x128xbf16, #tpu.memory_space<vmem>>, vector<1x8x128xbf16>
      %158 = vector.shape_cast %157 : vector<1x8x128xbf16> to vector<8x128xbf16>
      %159 = arith.extf %158 : vector<8x128xbf16> to vector<8x128xf32>
      %160 = arith.truncf %151 : vector<8x32xf32> to vector<8x32xbf16>
      %cst_57 = arith.constant dense<0.000000e+00> : vector<8x128xf32>
      %161 = tpu.matmul %160, %15, %cst_57 {dimension_numbers = #tpu.dot_dimension_numbers<[1], [0], [0], [1], [0, 0, 1, 1], [], []>} : vector<8x32xbf16>, vector<32x128xbf16>, vector<8x128xf32> -> vector<8x128xf32>
      %162 = arith.addf %159, %161 : vector<8x128xf32>
      %163 = arith.mulf %162, %24 : vector<8x128xf32>
      %164 = math.tanh %163 : vector<8x128xf32>
      %165 = arith.mulf %164, %24 : vector<8x128xf32>
      %166 = arith.addf %165, %27 : vector<8x128xf32>
      %167 = vector.extract_strided_slice %166 {offsets = [0, 0], sizes = [8, 32], strides = [1, 1]} : vector<8x128xf32> to vector<8x32xf32>
      %168 = vector.extract_strided_slice %166 {offsets = [0, 32], sizes = [8, 32], strides = [1, 1]} : vector<8x128xf32> to vector<8x32xf32>
      %169 = vector.extract_strided_slice %166 {offsets = [0, 64], sizes = [8, 32], strides = [1, 1]} : vector<8x128xf32> to vector<8x32xf32>
      %170 = vector.extract_strided_slice %166 {offsets = [0, 96], sizes = [8, 32], strides = [1, 1]} : vector<8x128xf32> to vector<8x32xf32>
      %171 = arith.mulf %168, %149 : vector<8x32xf32>
      %172 = arith.mulf %167, %169 : vector<8x32xf32>
      %173 = arith.addf %171, %172 : vector<8x32xf32>
      %174 = math.tanh %173 : vector<8x32xf32>
      %175 = arith.mulf %170, %174 : vector<8x32xf32>
      %c0_58 = arith.constant 0 : index
      %176 = arith.index_cast %c5_i32 : i32 to index
      %c0_59 = arith.constant 0 : index
      %c0_60 = arith.constant 0 : index
      %177 = vector.load %arg5[%c0_58, %176, %c0_59, %c0_60] : memref<1x8x8x32xf32, #tpu.memory_space<vmem>>, vector<1x1x8x32xf32>
      %178 = vector.shape_cast %177 : vector<1x1x8x32xf32> to vector<8x32xf32>
      %179 = vector.shape_cast %175 : vector<8x32xf32> to vector<1x1x8x32xf32>
      tpu.vector_store %arg5[%c0_58, %176, %c0_59, %c0_60], %179 {strides = array<i32>} : memref<1x8x8x32xf32, #tpu.memory_space<vmem>>, vector<1x1x8x32xf32>,
      %c6_i32 = arith.constant 6 : i32
      %180 = arith.index_cast %c6_i32 : i32 to index
      %c0_61 = arith.constant 0 : index
      %c0_62 = arith.constant 0 : index
      %181 = vector.load %arg6[%180, %c0_61, %c0_62] : memref<8x8x128xbf16, #tpu.memory_space<vmem>>, vector<1x8x128xbf16>
      %182 = vector.shape_cast %181 : vector<1x8x128xbf16> to vector<8x128xbf16>
      %183 = arith.extf %182 : vector<8x128xbf16> to vector<8x128xf32>
      %184 = arith.truncf %175 : vector<8x32xf32> to vector<8x32xbf16>
      %cst_63 = arith.constant dense<0.000000e+00> : vector<8x128xf32>
      %185 = tpu.matmul %184, %15, %cst_63 {dimension_numbers = #tpu.dot_dimension_numbers<[1], [0], [0], [1], [0, 0, 1, 1], [], []>} : vector<8x32xbf16>, vector<32x128xbf16>, vector<8x128xf32> -> vector<8x128xf32>
      %186 = arith.addf %183, %185 : vector<8x128xf32>
      %187 = arith.mulf %186, %24 : vector<8x128xf32>
      %188 = math.tanh %187 : vector<8x128xf32>
      %189 = arith.mulf %188, %24 : vector<8x128xf32>
      %190 = arith.addf %189, %27 : vector<8x128xf32>
      %191 = vector.extract_strided_slice %190 {offsets = [0, 0], sizes = [8, 32], strides = [1, 1]} : vector<8x128xf32> to vector<8x32xf32>
      %192 = vector.extract_strided_slice %190 {offsets = [0, 32], sizes = [8, 32], strides = [1, 1]} : vector<8x128xf32> to vector<8x32xf32>
      %193 = vector.extract_strided_slice %190 {offsets = [0, 64], sizes = [8, 32], strides = [1, 1]} : vector<8x128xf32> to vector<8x32xf32>
      %194 = vector.extract_strided_slice %190 {offsets = [0, 96], sizes = [8, 32], strides = [1, 1]} : vector<8x128xf32> to vector<8x32xf32>
      %195 = arith.mulf %192, %173 : vector<8x32xf32>
      %196 = arith.mulf %191, %193 : vector<8x32xf32>
      %197 = arith.addf %195, %196 : vector<8x32xf32>
      %198 = math.tanh %197 : vector<8x32xf32>
      %199 = arith.mulf %194, %198 : vector<8x32xf32>
      %c0_64 = arith.constant 0 : index
      %200 = arith.index_cast %c6_i32 : i32 to index
      %c0_65 = arith.constant 0 : index
      %c0_66 = arith.constant 0 : index
      %201 = vector.load %arg5[%c0_64, %200, %c0_65, %c0_66] : memref<1x8x8x32xf32, #tpu.memory_space<vmem>>, vector<1x1x8x32xf32>
      %202 = vector.shape_cast %201 : vector<1x1x8x32xf32> to vector<8x32xf32>
      %203 = vector.shape_cast %199 : vector<8x32xf32> to vector<1x1x8x32xf32>
      tpu.vector_store %arg5[%c0_64, %200, %c0_65, %c0_66], %203 {strides = array<i32>} : memref<1x8x8x32xf32, #tpu.memory_space<vmem>>, vector<1x1x8x32xf32>,
      %c7_i32 = arith.constant 7 : i32
      %204 = arith.index_cast %c7_i32 : i32 to index
      %c0_67 = arith.constant 0 : index
      %c0_68 = arith.constant 0 : index
      %205 = vector.load %arg6[%204, %c0_67, %c0_68] : memref<8x8x128xbf16, #tpu.memory_space<vmem>>, vector<1x8x128xbf16>
      %206 = vector.shape_cast %205 : vector<1x8x128xbf16> to vector<8x128xbf16>
      %207 = arith.extf %206 : vector<8x128xbf16> to vector<8x128xf32>
      %208 = arith.truncf %199 : vector<8x32xf32> to vector<8x32xbf16>
      %cst_69 = arith.constant dense<0.000000e+00> : vector<8x128xf32>
      %209 = tpu.matmul %208, %15, %cst_69 {dimension_numbers = #tpu.dot_dimension_numbers<[1], [0], [0], [1], [0, 0, 1, 1], [], []>} : vector<8x32xbf16>, vector<32x128xbf16>, vector<8x128xf32> -> vector<8x128xf32>
      %210 = arith.addf %207, %209 : vector<8x128xf32>
      %211 = arith.mulf %210, %24 : vector<8x128xf32>
      %212 = math.tanh %211 : vector<8x128xf32>
      %213 = arith.mulf %212, %24 : vector<8x128xf32>
      %214 = arith.addf %213, %27 : vector<8x128xf32>
      %215 = vector.extract_strided_slice %214 {offsets = [0, 0], sizes = [8, 32], strides = [1, 1]} : vector<8x128xf32> to vector<8x32xf32>
      %216 = vector.extract_strided_slice %214 {offsets = [0, 32], sizes = [8, 32], strides = [1, 1]} : vector<8x128xf32> to vector<8x32xf32>
      %217 = vector.extract_strided_slice %214 {offsets = [0, 64], sizes = [8, 32], strides = [1, 1]} : vector<8x128xf32> to vector<8x32xf32>
      %218 = vector.extract_strided_slice %214 {offsets = [0, 96], sizes = [8, 32], strides = [1, 1]} : vector<8x128xf32> to vector<8x32xf32>
      %219 = arith.mulf %216, %197 : vector<8x32xf32>
      %220 = arith.mulf %215, %217 : vector<8x32xf32>
      %221 = arith.addf %219, %220 : vector<8x32xf32>
      %222 = math.tanh %221 : vector<8x32xf32>
      %223 = arith.mulf %218, %222 : vector<8x32xf32>
      %c0_70 = arith.constant 0 : index
      %224 = arith.index_cast %c7_i32 : i32 to index
      %c0_71 = arith.constant 0 : index
      %c0_72 = arith.constant 0 : index
      %225 = vector.load %arg5[%c0_70, %224, %c0_71, %c0_72] : memref<1x8x8x32xf32, #tpu.memory_space<vmem>>, vector<1x1x8x32xf32>
      %226 = vector.shape_cast %225 : vector<1x1x8x32xf32> to vector<8x32xf32>
      %227 = vector.shape_cast %223 : vector<8x32xf32> to vector<1x1x8x32xf32>
      tpu.vector_store %arg5[%c0_70, %224, %c0_71, %c0_72], %227 {strides = array<i32>} : memref<1x8x8x32xf32, #tpu.memory_space<vmem>>, vector<1x1x8x32xf32>,
      %c8_i32 = arith.constant 8 : i32
    } else {
    }
    %c1_i32 = arith.constant 1 : i32
    %33 = arith.cmpi eq, %arg0, %c1_i32 : i32
    %34 = arith.extui %33 : i1 to i32
    %c0_i32_22 = arith.constant 0 : i32
    %35 = arith.cmpi ne, %34, %c0_i32_22 : i32
    scf.if %35 {
      %c0_i32_23 = arith.constant 0 : i32
      %c7_i32 = arith.constant 7 : i32
      %36 = arith.subi %c7_i32, %c0_i32_23 : i32
      %37 = arith.index_cast %36 : i32 to index
      %c0_24 = arith.constant 0 : index
      %c0_25 = arith.constant 0 : index
      %38 = vector.load %arg6[%37, %c0_24, %c0_25] : memref<8x8x128xbf16, #tpu.memory_space<vmem>>, vector<1x8x128xbf16>
      %39 = vector.shape_cast %38 : vector<1x8x128xbf16> to vector<8x128xbf16>
      %40 = arith.extf %39 : vector<8x128xbf16> to vector<8x128xf32>
      %41 = arith.truncf %28 : vector<8x32xf32> to vector<8x32xbf16>
      %cst_26 = arith.constant dense<0.000000e+00> : vector<8x128xf32>
      %42 = tpu.matmul %41, %15, %cst_26 {dimension_numbers = #tpu.dot_dimension_numbers<[1], [0], [0], [1], [0, 0, 1, 1], [], []>} : vector<8x32xbf16>, vector<32x128xbf16>, vector<8x128xf32> -> vector<8x128xf32>
      %43 = arith.addf %40, %42 : vector<8x128xf32>
      %44 = arith.mulf %43, %24 : vector<8x128xf32>
      %45 = math.tanh %44 : vector<8x128xf32>
      %46 = arith.mulf %45, %24 : vector<8x128xf32>
      %47 = arith.addf %46, %27 : vector<8x128xf32>
      %48 = vector.extract_strided_slice %47 {offsets = [0, 0], sizes = [8, 32], strides = [1, 1]} : vector<8x128xf32> to vector<8x32xf32>
      %49 = vector.extract_strided_slice %47 {offsets = [0, 32], sizes = [8, 32], strides = [1, 1]} : vector<8x128xf32> to vector<8x32xf32>
      %50 = vector.extract_strided_slice %47 {offsets = [0, 64], sizes = [8, 32], strides = [1, 1]} : vector<8x128xf32> to vector<8x32xf32>
      %51 = vector.extract_strided_slice %47 {offsets = [0, 96], sizes = [8, 32], strides = [1, 1]} : vector<8x128xf32> to vector<8x32xf32>
      %52 = arith.mulf %49, %29 : vector<8x32xf32>
      %53 = arith.mulf %48, %50 : vector<8x32xf32>
      %54 = arith.addf %52, %53 : vector<8x32xf32>
      %55 = math.tanh %54 : vector<8x32xf32>
      %56 = arith.mulf %51, %55 : vector<8x32xf32>
      %c0_27 = arith.constant 0 : index
      %57 = arith.index_cast %36 : i32 to index
      %c0_28 = arith.constant 0 : index
      %c0_29 = arith.constant 0 : index
      %58 = vector.load %arg5[%c0_27, %57, %c0_28, %c0_29] : memref<1x8x8x32xf32, #tpu.memory_space<vmem>>, vector<1x1x8x32xf32>
      %59 = vector.shape_cast %58 : vector<1x1x8x32xf32> to vector<8x32xf32>
      %60 = vector.shape_cast %56 : vector<8x32xf32> to vector<1x1x8x32xf32>
      tpu.vector_store %arg5[%c0_27, %57, %c0_28, %c0_29], %60 {strides = array<i32>} : memref<1x8x8x32xf32, #tpu.memory_space<vmem>>, vector<1x1x8x32xf32>,
      %c1_i32_30 = arith.constant 1 : i32
      %c7_i32_31 = arith.constant 7 : i32
      %61 = arith.subi %c7_i32_31, %c1_i32_30 : i32
      %62 = arith.index_cast %61 : i32 to index
      %c0_32 = arith.constant 0 : index
      %c0_33 = arith.constant 0 : index
      %63 = vector.load %arg6[%62, %c0_32, %c0_33] : memref<8x8x128xbf16, #tpu.memory_space<vmem>>, vector<1x8x128xbf16>
      %64 = vector.shape_cast %63 : vector<1x8x128xbf16> to vector<8x128xbf16>
      %65 = arith.extf %64 : vector<8x128xbf16> to vector<8x128xf32>
      %66 = arith.truncf %56 : vector<8x32xf32> to vector<8x32xbf16>
      %cst_34 = arith.constant dense<0.000000e+00> : vector<8x128xf32>
      %67 = tpu.matmul %66, %15, %cst_34 {dimension_numbers = #tpu.dot_dimension_numbers<[1], [0], [0], [1], [0, 0, 1, 1], [], []>} : vector<8x32xbf16>, vector<32x128xbf16>, vector<8x128xf32> -> vector<8x128xf32>
      %68 = arith.addf %65, %67 : vector<8x128xf32>
      %69 = arith.mulf %68, %24 : vector<8x128xf32>
      %70 = math.tanh %69 : vector<8x128xf32>
      %71 = arith.mulf %70, %24 : vector<8x128xf32>
      %72 = arith.addf %71, %27 : vector<8x128xf32>
      %73 = vector.extract_strided_slice %72 {offsets = [0, 0], sizes = [8, 32], strides = [1, 1]} : vector<8x128xf32> to vector<8x32xf32>
      %74 = vector.extract_strided_slice %72 {offsets = [0, 32], sizes = [8, 32], strides = [1, 1]} : vector<8x128xf32> to vector<8x32xf32>
      %75 = vector.extract_strided_slice %72 {offsets = [0, 64], sizes = [8, 32], strides = [1, 1]} : vector<8x128xf32> to vector<8x32xf32>
      %76 = vector.extract_strided_slice %72 {offsets = [0, 96], sizes = [8, 32], strides = [1, 1]} : vector<8x128xf32> to vector<8x32xf32>
      %77 = arith.mulf %74, %54 : vector<8x32xf32>
      %78 = arith.mulf %73, %75 : vector<8x32xf32>
      %79 = arith.addf %77, %78 : vector<8x32xf32>
      %80 = math.tanh %79 : vector<8x32xf32>
      %81 = arith.mulf %76, %80 : vector<8x32xf32>
      %c0_35 = arith.constant 0 : index
      %82 = arith.index_cast %61 : i32 to index
      %c0_36 = arith.constant 0 : index
      %c0_37 = arith.constant 0 : index
      %83 = vector.load %arg5[%c0_35, %82, %c0_36, %c0_37] : memref<1x8x8x32xf32, #tpu.memory_space<vmem>>, vector<1x1x8x32xf32>
      %84 = vector.shape_cast %83 : vector<1x1x8x32xf32> to vector<8x32xf32>
      %85 = vector.shape_cast %81 : vector<8x32xf32> to vector<1x1x8x32xf32>
      tpu.vector_store %arg5[%c0_35, %82, %c0_36, %c0_37], %85 {strides = array<i32>} : memref<1x8x8x32xf32, #tpu.memory_space<vmem>>, vector<1x1x8x32xf32>,
      %c2_i32 = arith.constant 2 : i32
      %c7_i32_38 = arith.constant 7 : i32
      %86 = arith.subi %c7_i32_38, %c2_i32 : i32
      %87 = arith.index_cast %86 : i32 to index
      %c0_39 = arith.constant 0 : index
      %c0_40 = arith.constant 0 : index
      %88 = vector.load %arg6[%87, %c0_39, %c0_40] : memref<8x8x128xbf16, #tpu.memory_space<vmem>>, vector<1x8x128xbf16>
      %89 = vector.shape_cast %88 : vector<1x8x128xbf16> to vector<8x128xbf16>
      %90 = arith.extf %89 : vector<8x128xbf16> to vector<8x128xf32>
      %91 = arith.truncf %81 : vector<8x32xf32> to vector<8x32xbf16>
      %cst_41 = arith.constant dense<0.000000e+00> : vector<8x128xf32>
      %92 = tpu.matmul %91, %15, %cst_41 {dimension_numbers = #tpu.dot_dimension_numbers<[1], [0], [0], [1], [0, 0, 1, 1], [], []>} : vector<8x32xbf16>, vector<32x128xbf16>, vector<8x128xf32> -> vector<8x128xf32>
      %93 = arith.addf %90, %92 : vector<8x128xf32>
      %94 = arith.mulf %93, %24 : vector<8x128xf32>
      %95 = math.tanh %94 : vector<8x128xf32>
      %96 = arith.mulf %95, %24 : vector<8x128xf32>
      %97 = arith.addf %96, %27 : vector<8x128xf32>
      %98 = vector.extract_strided_slice %97 {offsets = [0, 0], sizes = [8, 32], strides = [1, 1]} : vector<8x128xf32> to vector<8x32xf32>
      %99 = vector.extract_strided_slice %97 {offsets = [0, 32], sizes = [8, 32], strides = [1, 1]} : vector<8x128xf32> to vector<8x32xf32>
      %100 = vector.extract_strided_slice %97 {offsets = [0, 64], sizes = [8, 32], strides = [1, 1]} : vector<8x128xf32> to vector<8x32xf32>
      %101 = vector.extract_strided_slice %97 {offsets = [0, 96], sizes = [8, 32], strides = [1, 1]} : vector<8x128xf32> to vector<8x32xf32>
      %102 = arith.mulf %99, %79 : vector<8x32xf32>
      %103 = arith.mulf %98, %100 : vector<8x32xf32>
      %104 = arith.addf %102, %103 : vector<8x32xf32>
      %105 = math.tanh %104 : vector<8x32xf32>
      %106 = arith.mulf %101, %105 : vector<8x32xf32>
      %c0_42 = arith.constant 0 : index
      %107 = arith.index_cast %86 : i32 to index
      %c0_43 = arith.constant 0 : index
      %c0_44 = arith.constant 0 : index
      %108 = vector.load %arg5[%c0_42, %107, %c0_43, %c0_44] : memref<1x8x8x32xf32, #tpu.memory_space<vmem>>, vector<1x1x8x32xf32>
      %109 = vector.shape_cast %108 : vector<1x1x8x32xf32> to vector<8x32xf32>
      %110 = vector.shape_cast %106 : vector<8x32xf32> to vector<1x1x8x32xf32>
      tpu.vector_store %arg5[%c0_42, %107, %c0_43, %c0_44], %110 {strides = array<i32>} : memref<1x8x8x32xf32, #tpu.memory_space<vmem>>, vector<1x1x8x32xf32>,
      %c3_i32 = arith.constant 3 : i32
      %c7_i32_45 = arith.constant 7 : i32
      %111 = arith.subi %c7_i32_45, %c3_i32 : i32
      %112 = arith.index_cast %111 : i32 to index
      %c0_46 = arith.constant 0 : index
      %c0_47 = arith.constant 0 : index
      %113 = vector.load %arg6[%112, %c0_46, %c0_47] : memref<8x8x128xbf16, #tpu.memory_space<vmem>>, vector<1x8x128xbf16>
      %114 = vector.shape_cast %113 : vector<1x8x128xbf16> to vector<8x128xbf16>
      %115 = arith.extf %114 : vector<8x128xbf16> to vector<8x128xf32>
      %116 = arith.truncf %106 : vector<8x32xf32> to vector<8x32xbf16>
      %cst_48 = arith.constant dense<0.000000e+00> : vector<8x128xf32>
      %117 = tpu.matmul %116, %15, %cst_48 {dimension_numbers = #tpu.dot_dimension_numbers<[1], [0], [0], [1], [0, 0, 1, 1], [], []>} : vector<8x32xbf16>, vector<32x128xbf16>, vector<8x128xf32> -> vector<8x128xf32>
      %118 = arith.addf %115, %117 : vector<8x128xf32>
      %119 = arith.mulf %118, %24 : vector<8x128xf32>
      %120 = math.tanh %119 : vector<8x128xf32>
      %121 = arith.mulf %120, %24 : vector<8x128xf32>
      %122 = arith.addf %121, %27 : vector<8x128xf32>
      %123 = vector.extract_strided_slice %122 {offsets = [0, 0], sizes = [8, 32], strides = [1, 1]} : vector<8x128xf32> to vector<8x32xf32>
      %124 = vector.extract_strided_slice %122 {offsets = [0, 32], sizes = [8, 32], strides = [1, 1]} : vector<8x128xf32> to vector<8x32xf32>
      %125 = vector.extract_strided_slice %122 {offsets = [0, 64], sizes = [8, 32], strides = [1, 1]} : vector<8x128xf32> to vector<8x32xf32>
      %126 = vector.extract_strided_slice %122 {offsets = [0, 96], sizes = [8, 32], strides = [1, 1]} : vector<8x128xf32> to vector<8x32xf32>
      %127 = arith.mulf %124, %104 : vector<8x32xf32>
      %128 = arith.mulf %123, %125 : vector<8x32xf32>
      %129 = arith.addf %127, %128 : vector<8x32xf32>
      %130 = math.tanh %129 : vector<8x32xf32>
      %131 = arith.mulf %126, %130 : vector<8x32xf32>
      %c0_49 = arith.constant 0 : index
      %132 = arith.index_cast %111 : i32 to index
      %c0_50 = arith.constant 0 : index
      %c0_51 = arith.constant 0 : index
      %133 = vector.load %arg5[%c0_49, %132, %c0_50, %c0_51] : memref<1x8x8x32xf32, #tpu.memory_space<vmem>>, vector<1x1x8x32xf32>
      %134 = vector.shape_cast %133 : vector<1x1x8x32xf32> to vector<8x32xf32>
      %135 = vector.shape_cast %131 : vector<8x32xf32> to vector<1x1x8x32xf32>
      tpu.vector_store %arg5[%c0_49, %132, %c0_50, %c0_51], %135 {strides = array<i32>} : memref<1x8x8x32xf32, #tpu.memory_space<vmem>>, vector<1x1x8x32xf32>,
      %c4_i32 = arith.constant 4 : i32
      %c7_i32_52 = arith.constant 7 : i32
      %136 = arith.subi %c7_i32_52, %c4_i32 : i32
      %137 = arith.index_cast %136 : i32 to index
      %c0_53 = arith.constant 0 : index
      %c0_54 = arith.constant 0 : index
      %138 = vector.load %arg6[%137, %c0_53, %c0_54] : memref<8x8x128xbf16, #tpu.memory_space<vmem>>, vector<1x8x128xbf16>
      %139 = vector.shape_cast %138 : vector<1x8x128xbf16> to vector<8x128xbf16>
      %140 = arith.extf %139 : vector<8x128xbf16> to vector<8x128xf32>
      %141 = arith.truncf %131 : vector<8x32xf32> to vector<8x32xbf16>
      %cst_55 = arith.constant dense<0.000000e+00> : vector<8x128xf32>
      %142 = tpu.matmul %141, %15, %cst_55 {dimension_numbers = #tpu.dot_dimension_numbers<[1], [0], [0], [1], [0, 0, 1, 1], [], []>} : vector<8x32xbf16>, vector<32x128xbf16>, vector<8x128xf32> -> vector<8x128xf32>
      %143 = arith.addf %140, %142 : vector<8x128xf32>
      %144 = arith.mulf %143, %24 : vector<8x128xf32>
      %145 = math.tanh %144 : vector<8x128xf32>
      %146 = arith.mulf %145, %24 : vector<8x128xf32>
      %147 = arith.addf %146, %27 : vector<8x128xf32>
      %148 = vector.extract_strided_slice %147 {offsets = [0, 0], sizes = [8, 32], strides = [1, 1]} : vector<8x128xf32> to vector<8x32xf32>
      %149 = vector.extract_strided_slice %147 {offsets = [0, 32], sizes = [8, 32], strides = [1, 1]} : vector<8x128xf32> to vector<8x32xf32>
      %150 = vector.extract_strided_slice %147 {offsets = [0, 64], sizes = [8, 32], strides = [1, 1]} : vector<8x128xf32> to vector<8x32xf32>
      %151 = vector.extract_strided_slice %147 {offsets = [0, 96], sizes = [8, 32], strides = [1, 1]} : vector<8x128xf32> to vector<8x32xf32>
      %152 = arith.mulf %149, %129 : vector<8x32xf32>
      %153 = arith.mulf %148, %150 : vector<8x32xf32>
      %154 = arith.addf %152, %153 : vector<8x32xf32>
      %155 = math.tanh %154 : vector<8x32xf32>
      %156 = arith.mulf %151, %155 : vector<8x32xf32>
      %c0_56 = arith.constant 0 : index
      %157 = arith.index_cast %136 : i32 to index
      %c0_57 = arith.constant 0 : index
      %c0_58 = arith.constant 0 : index
      %158 = vector.load %arg5[%c0_56, %157, %c0_57, %c0_58] : memref<1x8x8x32xf32, #tpu.memory_space<vmem>>, vector<1x1x8x32xf32>
      %159 = vector.shape_cast %158 : vector<1x1x8x32xf32> to vector<8x32xf32>
      %160 = vector.shape_cast %156 : vector<8x32xf32> to vector<1x1x8x32xf32>
      tpu.vector_store %arg5[%c0_56, %157, %c0_57, %c0_58], %160 {strides = array<i32>} : memref<1x8x8x32xf32, #tpu.memory_space<vmem>>, vector<1x1x8x32xf32>,
      %c5_i32 = arith.constant 5 : i32
      %c7_i32_59 = arith.constant 7 : i32
      %161 = arith.subi %c7_i32_59, %c5_i32 : i32
      %162 = arith.index_cast %161 : i32 to index
      %c0_60 = arith.constant 0 : index
      %c0_61 = arith.constant 0 : index
      %163 = vector.load %arg6[%162, %c0_60, %c0_61] : memref<8x8x128xbf16, #tpu.memory_space<vmem>>, vector<1x8x128xbf16>
      %164 = vector.shape_cast %163 : vector<1x8x128xbf16> to vector<8x128xbf16>
      %165 = arith.extf %164 : vector<8x128xbf16> to vector<8x128xf32>
      %166 = arith.truncf %156 : vector<8x32xf32> to vector<8x32xbf16>
      %cst_62 = arith.constant dense<0.000000e+00> : vector<8x128xf32>
      %167 = tpu.matmul %166, %15, %cst_62 {dimension_numbers = #tpu.dot_dimension_numbers<[1], [0], [0], [1], [0, 0, 1, 1], [], []>} : vector<8x32xbf16>, vector<32x128xbf16>, vector<8x128xf32> -> vector<8x128xf32>
      %168 = arith.addf %165, %167 : vector<8x128xf32>
      %169 = arith.mulf %168, %24 : vector<8x128xf32>
      %170 = math.tanh %169 : vector<8x128xf32>
      %171 = arith.mulf %170, %24 : vector<8x128xf32>
      %172 = arith.addf %171, %27 : vector<8x128xf32>
      %173 = vector.extract_strided_slice %172 {offsets = [0, 0], sizes = [8, 32], strides = [1, 1]} : vector<8x128xf32> to vector<8x32xf32>
      %174 = vector.extract_strided_slice %172 {offsets = [0, 32], sizes = [8, 32], strides = [1, 1]} : vector<8x128xf32> to vector<8x32xf32>
      %175 = vector.extract_strided_slice %172 {offsets = [0, 64], sizes = [8, 32], strides = [1, 1]} : vector<8x128xf32> to vector<8x32xf32>
      %176 = vector.extract_strided_slice %172 {offsets = [0, 96], sizes = [8, 32], strides = [1, 1]} : vector<8x128xf32> to vector<8x32xf32>
      %177 = arith.mulf %174, %154 : vector<8x32xf32>
      %178 = arith.mulf %173, %175 : vector<8x32xf32>
      %179 = arith.addf %177, %178 : vector<8x32xf32>
      %180 = math.tanh %179 : vector<8x32xf32>
      %181 = arith.mulf %176, %180 : vector<8x32xf32>
      %c0_63 = arith.constant 0 : index
      %182 = arith.index_cast %161 : i32 to index
      %c0_64 = arith.constant 0 : index
      %c0_65 = arith.constant 0 : index
      %183 = vector.load %arg5[%c0_63, %182, %c0_64, %c0_65] : memref<1x8x8x32xf32, #tpu.memory_space<vmem>>, vector<1x1x8x32xf32>
      %184 = vector.shape_cast %183 : vector<1x1x8x32xf32> to vector<8x32xf32>
      %185 = vector.shape_cast %181 : vector<8x32xf32> to vector<1x1x8x32xf32>
      tpu.vector_store %arg5[%c0_63, %182, %c0_64, %c0_65], %185 {strides = array<i32>} : memref<1x8x8x32xf32, #tpu.memory_space<vmem>>, vector<1x1x8x32xf32>,
      %c6_i32 = arith.constant 6 : i32
      %c7_i32_66 = arith.constant 7 : i32
      %186 = arith.subi %c7_i32_66, %c6_i32 : i32
      %187 = arith.index_cast %186 : i32 to index
      %c0_67 = arith.constant 0 : index
      %c0_68 = arith.constant 0 : index
      %188 = vector.load %arg6[%187, %c0_67, %c0_68] : memref<8x8x128xbf16, #tpu.memory_space<vmem>>, vector<1x8x128xbf16>
      %189 = vector.shape_cast %188 : vector<1x8x128xbf16> to vector<8x128xbf16>
      %190 = arith.extf %189 : vector<8x128xbf16> to vector<8x128xf32>
      %191 = arith.truncf %181 : vector<8x32xf32> to vector<8x32xbf16>
      %cst_69 = arith.constant dense<0.000000e+00> : vector<8x128xf32>
      %192 = tpu.matmul %191, %15, %cst_69 {dimension_numbers = #tpu.dot_dimension_numbers<[1], [0], [0], [1], [0, 0, 1, 1], [], []>} : vector<8x32xbf16>, vector<32x128xbf16>, vector<8x128xf32> -> vector<8x128xf32>
      %193 = arith.addf %190, %192 : vector<8x128xf32>
      %194 = arith.mulf %193, %24 : vector<8x128xf32>
      %195 = math.tanh %194 : vector<8x128xf32>
      %196 = arith.mulf %195, %24 : vector<8x128xf32>
      %197 = arith.addf %196, %27 : vector<8x128xf32>
      %198 = vector.extract_strided_slice %197 {offsets = [0, 0], sizes = [8, 32], strides = [1, 1]} : vector<8x128xf32> to vector<8x32xf32>
      %199 = vector.extract_strided_slice %197 {offsets = [0, 32], sizes = [8, 32], strides = [1, 1]} : vector<8x128xf32> to vector<8x32xf32>
      %200 = vector.extract_strided_slice %197 {offsets = [0, 64], sizes = [8, 32], strides = [1, 1]} : vector<8x128xf32> to vector<8x32xf32>
      %201 = vector.extract_strided_slice %197 {offsets = [0, 96], sizes = [8, 32], strides = [1, 1]} : vector<8x128xf32> to vector<8x32xf32>
      %202 = arith.mulf %199, %179 : vector<8x32xf32>
      %203 = arith.mulf %198, %200 : vector<8x32xf32>
      %204 = arith.addf %202, %203 : vector<8x32xf32>
      %205 = math.tanh %204 : vector<8x32xf32>
      %206 = arith.mulf %201, %205 : vector<8x32xf32>
      %c0_70 = arith.constant 0 : index
      %207 = arith.index_cast %186 : i32 to index
      %c0_71 = arith.constant 0 : index
      %c0_72 = arith.constant 0 : index
      %208 = vector.load %arg5[%c0_70, %207, %c0_71, %c0_72] : memref<1x8x8x32xf32, #tpu.memory_space<vmem>>, vector<1x1x8x32xf32>
      %209 = vector.shape_cast %208 : vector<1x1x8x32xf32> to vector<8x32xf32>
      %210 = vector.shape_cast %206 : vector<8x32xf32> to vector<1x1x8x32xf32>
      tpu.vector_store %arg5[%c0_70, %207, %c0_71, %c0_72], %210 {strides = array<i32>} : memref<1x8x8x32xf32, #tpu.memory_space<vmem>>, vector<1x1x8x32xf32>,
      %c7_i32_73 = arith.constant 7 : i32
      %c7_i32_74 = arith.constant 7 : i32
      %211 = arith.subi %c7_i32_74, %c7_i32_73 : i32
      %212 = arith.index_cast %211 : i32 to index
      %c0_75 = arith.constant 0 : index
      %c0_76 = arith.constant 0 : index
      %213 = vector.load %arg6[%212, %c0_75, %c0_76] : memref<8x8x128xbf16, #tpu.memory_space<vmem>>, vector<1x8x128xbf16>
      %214 = vector.shape_cast %213 : vector<1x8x128xbf16> to vector<8x128xbf16>
      %215 = arith.extf %214 : vector<8x128xbf16> to vector<8x128xf32>
      %216 = arith.truncf %206 : vector<8x32xf32> to vector<8x32xbf16>
      %cst_77 = arith.constant dense<0.000000e+00> : vector<8x128xf32>
      %217 = tpu.matmul %216, %15, %cst_77 {dimension_numbers = #tpu.dot_dimension_numbers<[1], [0], [0], [1], [0, 0, 1, 1], [], []>} : vector<8x32xbf16>, vector<32x128xbf16>, vector<8x128xf32> -> vector<8x128xf32>
      %218 = arith.addf %215, %217 : vector<8x128xf32>
      %219 = arith.mulf %218, %24 : vector<8x128xf32>
      %220 = math.tanh %219 : vector<8x128xf32>
      %221 = arith.mulf %220, %24 : vector<8x128xf32>
      %222 = arith.addf %221, %27 : vector<8x128xf32>
      %223 = vector.extract_strided_slice %222 {offsets = [0, 0], sizes = [8, 32], strides = [1, 1]} : vector<8x128xf32> to vector<8x32xf32>
      %224 = vector.extract_strided_slice %222 {offsets = [0, 32], sizes = [8, 32], strides = [1, 1]} : vector<8x128xf32> to vector<8x32xf32>
      %225 = vector.extract_strided_slice %222 {offsets = [0, 64], sizes = [8, 32], strides = [1, 1]} : vector<8x128xf32> to vector<8x32xf32>
      %226 = vector.extract_strided_slice %222 {offsets = [0, 96], sizes = [8, 32], strides = [1, 1]} : vector<8x128xf32> to vector<8x32xf32>
      %227 = arith.mulf %224, %204 : vector<8x32xf32>
      %228 = arith.mulf %223, %225 : vector<8x32xf32>
      %229 = arith.addf %227, %228 : vector<8x32xf32>
      %230 = math.tanh %229 : vector<8x32xf32>
      %231 = arith.mulf %226, %230 : vector<8x32xf32>
      %c0_78 = arith.constant 0 : index
      %232 = arith.index_cast %211 : i32 to index
      %c0_79 = arith.constant 0 : index
      %c0_80 = arith.constant 0 : index
      %233 = vector.load %arg5[%c0_78, %232, %c0_79, %c0_80] : memref<1x8x8x32xf32, #tpu.memory_space<vmem>>, vector<1x1x8x32xf32>
      %234 = vector.shape_cast %233 : vector<1x1x8x32xf32> to vector<8x32xf32>
      %235 = vector.shape_cast %231 : vector<8x32xf32> to vector<1x1x8x32xf32>
      tpu.vector_store %arg5[%c0_78, %232, %c0_79, %c0_80], %235 {strides = array<i32>} : memref<1x8x8x32xf32, #tpu.memory_space<vmem>>, vector<1x1x8x32xf32>,
      %c8_i32 = arith.constant 8 : i32
    } else {
    }
    return
  }
  func.func @transform_0(%arg0: i32) -> (i32, i32, i32, i32) {
    %c0_i32 = arith.constant 0 : i32
    %c0_i32_0 = arith.constant 0 : i32
    %c0_i32_1 = arith.constant 0 : i32
    %c0_i32_2 = arith.constant 0 : i32
    %c0_i32_3 = arith.constant 0 : i32
    return %c0_i32, %c0_i32_0, %c0_i32_1, %c0_i32_2 : i32, i32, i32, i32
  }
  func.func @transform_1(%arg0: i32) -> (i32, i32, i32) {
    %c0_i32 = arith.constant 0 : i32
    %c0_i32_0 = arith.constant 0 : i32
    %c0_i32_1 = arith.constant 0 : i32
    return %arg0, %c0_i32, %c0_i32_0 : i32, i32, i32
  }
  func.func @transform_2(%arg0: i32) -> (i32, i32, i32) {
    %c0_i32 = arith.constant 0 : i32
    %c0_i32_0 = arith.constant 0 : i32
    %c0_i32_1 = arith.constant 0 : i32
    return %arg0, %c0_i32, %c0_i32_0 : i32, i32, i32
  }
  func.func @transform_3(%arg0: i32) -> (i32, i32, i32) {
    %c0_i32 = arith.constant 0 : i32
    %c0_i32_0 = arith.constant 0 : i32
    %c0_i32_1 = arith.constant 0 : i32
    return %arg0, %c0_i32, %c0_i32_0 : i32, i32, i32
  }
  func.func @transform_4(%arg0: i32) -> (i32, i32, i32, i32) {
    %c0_i32 = arith.constant 0 : i32
    %c0_i32_0 = arith.constant 0 : i32
    %c0_i32_1 = arith.constant 0 : i32
    %c0_i32_2 = arith.constant 0 : i32
    return %arg0, %c0_i32, %c0_i32_0, %c0_i32_1 : i32, i32, i32, i32
  }
}

</mosaic_0001>

<llo_original>
// kernel: lstm_forward.2
$region0: #{lstm_forward.2}
  #allocation0 [shape = 'u32[]', space=smem, size = 0x4, offset = 0x4, fixed_abs, tag = 'smem constant byte address 0x4 - core index']
  #allocation1 [shape = 'u32[144,128]{1,0:T(1,128)}', space=vmem, size = 0x12000, scoped, tag = 'internal scratch']
  #allocation2 [shape = 'bf16[8,8,128]{2,1,0:T(8,128)(2,1)}', space=vmem, size = 0x4000, scoped, tag = 'scratch operand']
  %s0 = inlined_call_operand.vmem [shape: f32[1,8,8,32], index: 0, kind: input, shape index: {}]
  %s1 = inlined_call_operand.vmem [shape: bf16[2,32,128], index: 1, kind: input, shape index: {}]
  %s2 = inlined_call_operand.vmem [shape: bf16[2,32,128], index: 2, kind: input, shape index: {}]
  %s3 = inlined_call_operand.vmem [shape: f32[2,1,128], index: 3, kind: input, shape index: {}]
  %s4 = inlined_call_operand.vmem [shape: f32[2,8,8,32], index: 4, kind: output, shape index: {}]
  %s5 = sld [smem:[#allocation0]]
  $region57: #{lstm_forward.2} parent=0
    _
  %s7 = ssub.s32 1, %s5
  %s8 = scalar_select 0, %s7, %s5
  loop: start=0, step=1, limit=4
  $region2: #{lstm_forward.2} parent=0 // loop_pre_header
    _
  $region3: #{lstm_forward.2} parent=0 // loop_header
    %s10 = sphi 0, %s14
    %p11 = scmp.ge.s32.totalorder %s10, 4
    %s18 = sphi 0, %s18
    %s20 = sphi 0, %s18
    %s21 = sphi 0, %s20
    %s35 = sphi 0, %s21
    %s41 = sphi 0, %s43
    %s44 = sphi 0, %s41
    %s45 = sphi 0, %s44
    %s61 = sphi 0, %s45
    %s67 = sphi 0, %s69
    %s70 = sphi 0, %s67
    %s71 = sphi 0, %s70
    %s87 = sphi 0, %s71
    %s93 = sphi 0, %s95
    %s96 = sphi 0, %s93
    %s97 = sphi 0, %s96
    %s113 = sphi 0, %s97
    %s119 = sphi 0, %s121
    %s122 = sphi 0, %s119
    %s123 = sphi 0, %s122
    %s139 = sphi 0, %s123
  $region4: #{lstm_forward.2} parent=0 // loop_header_branch
    %13 = sbr.rel (%p11) target = $region8
  $region5: #{lstm_forward.2} parent=0 // loop_body
    %s15 = ssub.s32 %s10, 1
    %s16 = ssub.s32 %s10, 2
    %s17 = sadd.s32 %s10, 1
    %s19 = sadd.s32 %s18, 1
    %p22 = scmp.eq.s32.totalorder %s10, 1
    %p23 = scmp.ne.s32.totalorder %s18, %s20
    %p24 = scmp.eq.s32.totalorder %s10, 0
    %p25 = por %p23, %p24
    %p26 = scmp.ne.s32.totalorder %s18, %s20
    %p27 = scmp.eq.s32.totalorder %s15, 1
    %p28 = por %p26, %p27
    %p29 = scmp.ne.s32.totalorder %s20, %s21
    %p30 = scmp.eq.s32.totalorder %s15, 0
    %p31 = por %p29, %p30
    %p32 = scmp.ne.s32.totalorder %s20, %s21
    %p33 = scmp.eq.s32.totalorder %s16, 1
    %p34 = por %p32, %p33
    %p36 = scmp.ne.s32.totalorder %s21, %s35
    %p37 = scmp.eq.s32.totalorder %s16, 0
    %p38 = por %p36, %p37
    %s39 = ssub.s32 %s10, %s17
    %p40 = scmp.eq.s32.totalorder %s39, 0
    %s42 = sadd.s32 %s41, 1
    %s43 = scalar_select %p40, %s41, %s42
    %p46 = pneg %p40
    %p47 = scmp.eq.s32.totalorder %s10, 1
    %p48 = por %p46, %p47
    %p49 = scmp.ne.s32.totalorder %s41, %s44
    %p50 = scmp.eq.s32.totalorder %s10, 0
    %p51 = por %p49, %p50
    %p52 = scmp.ne.s32.totalorder %s41, %s44
    %p53 = scmp.eq.s32.totalorder %s15, 1
    %p54 = por %p52, %p53
    %p55 = scmp.ne.s32.totalorder %s44, %s45
    %p56 = scmp.eq.s32.totalorder %s15, 0
    %p57 = por %p55, %p56
    %p58 = scmp.ne.s32.totalorder %s44, %s45
    %p59 = scmp.eq.s32.totalorder %s16, 1
    %p60 = por %p58, %p59
    %p62 = scmp.ne.s32.totalorder %s45, %s61
    %p63 = scmp.eq.s32.totalorder %s16, 0
    %p64 = por %p62, %p63
    %s65 = ssub.s32 %s10, %s17
    %p66 = scmp.eq.s32.totalorder %s65, 0
    %s68 = sadd.s32 %s67, 1
    %s69 = scalar_select %p66, %s67, %s68
    %p72 = pneg %p66
    %p73 = scmp.eq.s32.totalorder %s10, 1
    %p74 = por %p72, %p73
    %p75 = scmp.ne.s32.totalorder %s67, %s70
    %p76 = scmp.eq.s32.totalorder %s10, 0
    %p77 = por %p75, %p76
    %p78 = scmp.ne.s32.totalorder %s67, %s70
    %p79 = scmp.eq.s32.totalorder %s15, 1
    %p80 = por %p78, %p79
    %p81 = scmp.ne.s32.totalorder %s70, %s71
    %p82 = scmp.eq.s32.totalorder %s15, 0
    %p83 = por %p81, %p82
    %p84 = scmp.ne.s32.totalorder %s70, %s71
    %p85 = scmp.eq.s32.totalorder %s16, 1
    %p86 = por %p84, %p85
    %p88 = scmp.ne.s32.totalorder %s71, %s87
    %p89 = scmp.eq.s32.totalorder %s16, 0
    %p90 = por %p88, %p89
    %s91 = ssub.s32 %s10, %s17
    %p92 = scmp.eq.s32.totalorder %s91, 0
    %s94 = sadd.s32 %s93, 1
    %s95 = scalar_select %p92, %s93, %s94
    %p98 = pneg %p92
    %p99 = scmp.eq.s32.totalorder %s10, 1
    %p100 = por %p98, %p99
    %p101 = scmp.ne.s32.totalorder %s93, %s96
    %p102 = scmp.eq.s32.totalorder %s10, 0
    %p103 = por %p101, %p102
    %p104 = scmp.ne.s32.totalorder %s93, %s96
    %p105 = scmp.eq.s32.totalorder %s15, 1
    %p106 = por %p104, %p105
    %p107 = scmp.ne.s32.totalorder %s96, %s97
    %p108 = scmp.eq.s32.totalorder %s15, 0
    %p109 = por %p107, %p108
    %p110 = scmp.ne.s32.totalorder %s96, %s97
    %p111 = scmp.eq.s32.totalorder %s16, 1
    %p112 = por %p110, %p111
    %p114 = scmp.ne.s32.totalorder %s97, %s113
    %p115 = scmp.eq.s32.totalorder %s16, 0
    %p116 = por %p114, %p115
    %s117 = ssub.s32 %s10, %s17
    %p118 = scmp.eq.s32.totalorder %s117, 0
    %s120 = sadd.s32 %s119, 1
    %s121 = scalar_select %p118, %s119, %s120
    %p124 = pneg %p118
    %p125 = scmp.eq.s32.totalorder %s10, 1
    %p126 = por %p124, %p125
    %p127 = scmp.ne.s32.totalorder %s119, %s122
    %p128 = scmp.eq.s32.totalorder %s10, 0
    %p129 = por %p127, %p128
    %p130 = scmp.ne.s32.totalorder %s119, %s122
    %p131 = scmp.eq.s32.totalorder %s15, 1
    %p132 = por %p130, %p131
    %p133 = scmp.ne.s32.totalorder %s122, %s123
    %p134 = scmp.eq.s32.totalorder %s15, 0
    %p135 = por %p133, %p134
    %p136 = scmp.ne.s32.totalorder %s122, %s123
    %p137 = scmp.eq.s32.totalorder %s16, 1
    %p138 = por %p136, %p137
    %p140 = scmp.ne.s32.totalorder %s123, %s139
    %p141 = scmp.eq.s32.totalorder %s16, 0
    %p142 = por %p140, %p141
    %p143 = scmp.le.s32.totalorder 1, %s10
    %p144 = scmp.lt.s32.totalorder %s10, 3
    %p145 = pnand %p143, %p144
    %p146 = pneg %p145
    // Predicated region
    $region9: #{lstm_forward.2} parent=5 // pred_check
      _
    $region10: #{lstm_forward.2} parent=5 // pred_check_branch
      %148 = sbr.rel (%p145) target = $region12
    $region11: #{lstm_forward.2} parent=5 // pred_region
      %s149 = ssub.s32 %s10, 1
      // Predicated region
      $region13: #{lstm_forward.2} parent=11 // pred_check
        %p150 = pneg %p31
      $region14: #{lstm_forward.2} parent=11 // pred_check_branch
        %152 = sbr.rel (%p150) target = $region16
      $region15: #{lstm_forward.2} parent=11 // pred_region
        _
      $region16: #{lstm_forward.2} parent=11 // pred_fallthru
        _
    $region12: #{lstm_forward.2} parent=5 // pred_fallthru
      _
    %p153 = scmp.lt.s32.totalorder %s10, 2
    // Predicated region
    $region17: #{lstm_forward.2} parent=5 // pred_check
      %p154 = pneg %p153
    $region18: #{lstm_forward.2} parent=5 // pred_check_branch
      %156 = sbr.rel (%p154) target = $region20
    $region19: #{lstm_forward.2} parent=5 // pred_region
      // Predicated region
      $region21: #{lstm_forward.2} parent=19 // pred_check
        %p157 = pneg %p51
      $region22: #{lstm_forward.2} parent=19 // pred_check_branch
        %159 = sbr.rel (%p157) target = $region24
      $region23: #{lstm_forward.2} parent=19 // pred_region
        %p160 = scmp.lt.s32.totalorder %s10, 1
        %s161 = scalar_select %p160, %s10, 1
        %s162 = smul.addr %s161, 4
        %s163 = smul.addr %s162, 4
        %s164 = scalar_lea.vmem %s1, %s163
      $region24: #{lstm_forward.2} parent=19 // pred_fallthru
        _
      // Predicated region
      $region25: #{lstm_forward.2} parent=19 // pred_check
        %p165 = pneg %p77
      $region26: #{lstm_forward.2} parent=19 // pred_check_branch
        %167 = sbr.rel (%p165) target = $region28
      $region27: #{lstm_forward.2} parent=19 // pred_region
        %p168 = scmp.lt.s32.totalorder %s10, 1
        %s169 = scalar_select %p168, %s10, 1
        %s170 = smul.addr %s169, 4
        %s171 = smul.addr %s170, 4
        %s172 = scalar_lea.vmem %s2, %s171
      $region28: #{lstm_forward.2} parent=19 // pred_fallthru
        _
      // Predicated region
      $region29: #{lstm_forward.2} parent=19 // pred_check
        %p173 = pneg %p103
      $region30: #{lstm_forward.2} parent=19 // pred_check_branch
        %175 = sbr.rel (%p173) target = $region32
      $region31: #{lstm_forward.2} parent=19 // pred_region
        %p176 = scmp.lt.s32.totalorder %s10, 1
        %s177 = scalar_select %p176, %s10, 1
        %s178 = scalar_lea.vmem %s3, %s177
      $region32: #{lstm_forward.2} parent=19 // pred_fallthru
        _
    $region20: #{lstm_forward.2} parent=5 // pred_fallthru
      _
    %p179 = scmp.le.s32.totalorder 1, %s10
    %p180 = scmp.lt.s32.totalorder %s10, 3
    %p181 = pnand %p179, %p180
    %p182 = pneg %p181
    // Predicated region
    $region33: #{lstm_forward.2} parent=5 // pred_check
      _
    $region34: #{lstm_forward.2} parent=5 // pred_check_branch
      %184 = sbr.rel (%p181) target = $region36
    $region35: #{lstm_forward.2} parent=5 // pred_region
      %s185 = ssub.s32 %s10, 1
      %p186 = pneg %p31
      %p187 = pneg %p28
      %p188 = scmp.lt.s32.totalorder %s15, 1
      %s189 = scalar_select %p188, %s15, 1
      %s190 = smul.addr %s189, 4
      %s191 = smul.addr %s190, 4
      %s192 = scalar_lea.vmem %s1, %s191
      %p193 = pneg %p57
      %p194 = pneg %p54
      %p195 = scmp.lt.s32.totalorder %s15, 1
      %s196 = scalar_select %p195, %s15, 1
      %s197 = smul.addr %s196, 4
      %s198 = smul.addr %s197, 4
      %s199 = scalar_lea.vmem %s2, %s198
      %p200 = pneg %p83
      %p201 = pneg %p80
      %p202 = scmp.lt.s32.totalorder %s15, 1
      %s203 = scalar_select %p202, %s15, 1
      %s204 = scalar_lea.vmem %s3, %s203
      %p205 = pneg %p109
      %p206 = pneg %p106
      %p207 = pneg %p135
      %p208 = pneg %p132
      %p209 = scmp.lt.s32.totalorder %s15, 1
      %s210 = scalar_select %p209, %s15, 1
      %s211 = smul.addr %s210, 8
      %s212 = smul.addr %s211, 8
      %s213 = scalar_lea.vmem %s4, %s212
      %p214 = scmp.lt.s32.totalorder %s15, 1
      %s215 = scalar_select %p214, %s15, 1
      %s216 = smul.addr %s215, 4
      %s217 = smul.addr %s216, 4
      %s218 = scalar_lea.vmem %s1, %s217
      %p219 = scmp.lt.s32.totalorder %s15, 1
      %s220 = scalar_select %p219, %s15, 1
      %s221 = smul.addr %s220, 4
      %s222 = smul.addr %s221, 4
      %s223 = scalar_lea.vmem %s2, %s222
      %p224 = scmp.lt.s32.totalorder %s15, 1
      %s225 = scalar_select %p224, %s15, 1
      %s226 = scalar_lea.vmem %s3, %s225
      %p227 = scmp.lt.s32.totalorder %s15, 1
      %s228 = scalar_select %p227, %s15, 1
      %s229 = smul.addr %s228, 8
      %s230 = smul.addr %s229, 8
      %s231 = scalar_lea.vmem %s4, %s230
      %v233 = vld [vmem:[%s0] sm:$0xff]
      %v234 = vld [vmem:[%s0 + $0x8] sm:$0xff]
      %v235 = vld [vmem:[%s0 + $0x10] sm:$0xff]
      %v236 = vld [vmem:[%s0 + $0x18] sm:$0xff]
      %v237 = vld [vmem:[%s0 + $0x20] sm:$0xff]
      %v238 = vld [vmem:[%s0 + $0x28] sm:$0xff]
      %v239 = vld [vmem:[%s0 + $0x30] sm:$0xff]
      %v240 = vld [vmem:[%s0 + $0x38] sm:$0xff]
      %v241 = vpack.c.bf16 %v234, %v233
      %v242 = vpack.c.bf16 %v236, %v235
      %v243 = vpack.c.bf16 %v238, %v237
      %v244 = vpack.c.bf16 %v240, %v239
      %v245 = vld [vmem:[%s218] sm:$0xf]
      %v246 = vld [vmem:[%s218 + $0x4] sm:$0xf]
      %v247 = vld [vmem:[%s218 + $0x8] sm:$0xf]
      %v248 = vld [vmem:[%s218 + $0xc] sm:$0xf]
      %v249 = vld [vmem:[%s226] sm:$0x1]
      %v251 = vlaneseq
      %v252 = vshrl.u32 %v251, 7
      %v253 = vsub.s32 0, %v252
      %v254 = vrot.slane %v249, %v253
      %v260 = vunpack.c.l.b16 %v245
      %v261 = vunpack.c.l.b16 %v246
      %v262 = vunpack.c.l.b16 %v247
      %v263 = vunpack.c.l.b16 %v248
      %v264 = vpack.c.b16 %v261, %v260
      %v265 = vpack.c.b16 %v263, %v262
      %vm268 = vcmask 261120
      %v270 = vsel %vm268, %v241, 0
      %v273 = vsel %vm268, %v242, 0
      %v276 = vsel %vm268, %v243, 0
      %v279 = vsel %vm268, %v244, 0
      %281 = vmatprep.subr.bf16.mxu0 0
      %282 = vmatpush1.bf16.msra.mxu0 0
      %283 = vmatprep.subr.bf16.mxu0 0
      %284 = vmatpush1.bf16.msra.mxu0 0
      %285 = vmatprep.subr.bf16.mxu0 0
      %286 = vmatpush1.bf16.msra.mxu0 0
      %287 = vmatprep.subr.bf16.mxu0 0
      %288 = vmatpush1.bf16.msra.mxu0 0
      %289 = vmatprep.subr.bf16.mxu0 0
      %290 = vmatpush1.bf16.msra.mxu0 0
      %291 = vmatprep.subr.bf16.mxu0 0
      %292 = vmatpush1.bf16.msra.mxu0 0
      %293 = vmatprep.subr.bf16.mxu0 0
      %294 = vmatpush1.bf16.msra.mxu0 %v265
      %295 = vmatprep.subr.bf16.mxu0 0
      %296 = vmatpush1.bf16.msra.mxu0 %v264
      %297 = vmatprep.subr.bf16.mxu0 0
      %298 = vmatpush2.bf16.msra.mxu0 0
      %299 = vmatprep.subr.bf16.mxu0 0
      %300 = vmatpush2.bf16.msra.mxu0 0
      %301 = vmatprep.subr.bf16.mxu0 0
      %302 = vmatpush2.bf16.msra.mxu0 0
      %303 = vmatprep.subr.bf16.mxu0 0
      %304 = vmatpush2.bf16.msra.mxu0 0
      %305 = vmatprep.subr.bf16.mxu0 0
      %306 = vmatpush2.bf16.msra.mxu0 0
      %307 = vmatprep.subr.bf16.mxu0 0
      %308 = vmatpush2.bf16.msra.mxu0 0
      %309 = vmatprep.subr.bf16.mxu0 0
      %310 = vmatpush2.bf16.msra.mxu0 0
      %311 = vmatprep.subr.bf16.mxu0 0
      %312 = vmatpush2.bf16.msra.mxu0 0
      %313 = vmatprep.mubr.bf16.mxu0 0
      %314 = vmatmul.mubr.bf16.gmra.mxu0 %v270
      %v315 = vpop.f32.mrf.mxu0
      %v316 = vadd.f32 %v254, %v315
      %v317 = vpop.f32.mrf.mxu0
      %v318 = vpop.f32.mrf.mxu0
      %v319 = vadd.f32 %v254, %v318
      %v320 = vpop.f32.mrf.mxu0
      %321 = vmatprep.mubr.bf16.mxu0 0
      %322 = vmatmul.mubr.bf16.gmra.mxu0 %v273
      %v323 = vpop.f32.mrf.mxu0
      %v324 = vadd.f32 %v254, %v323
      %v325 = vpop.f32.mrf.mxu0
      %v326 = vpop.f32.mrf.mxu0
      %v327 = vadd.f32 %v254, %v326
      %v328 = vpop.f32.mrf.mxu0
      %329 = vmatprep.mubr.bf16.mxu0 0
      %330 = vmatmul.mubr.bf16.gmra.mxu0 %v276
      %v331 = vpop.f32.mrf.mxu0
      %v332 = vadd.f32 %v254, %v331
      %v333 = vpop.f32.mrf.mxu0
      %v334 = vpop.f32.mrf.mxu0
      %v335 = vadd.f32 %v254, %v334
      %v336 = vpop.f32.mrf.mxu0
      %337 = vmatprep.mubr.bf16.mxu0 0
      %338 = vmatmul.mubr.bf16.gmra.mxu0 %v279
      %v339 = vpop.f32.mrf.mxu0
      %v340 = vadd.f32 %v254, %v339
      %v341 = vpop.f32.mrf.mxu0
      %v342 = vpop.f32.mrf.mxu0
      %v343 = vadd.f32 %v254, %v342
      %v344 = vpop.f32.mrf.mxu0
      %345 = vdwg.mxu0
      %v346 = vpack.c.bf16 %v316, %v316
      %v347 = vpack.c.bf16 %v319, %v319
      %v348 = vpack.c.bf16 %v324, %v324
      %v349 = vpack.c.bf16 %v327, %v327
      %v350 = vpack.c.bf16 %v332, %v332
      %v351 = vpack.c.bf16 %v335, %v335
      %v352 = vpack.c.bf16 %v340, %v340
      %v353 = vpack.c.bf16 %v343, %v343
      %354 = vst [vmem:[#allocation2] sm:$0xf] %v346
      %355 = vst [vmem:[#allocation2 + $0x4] sm:$0xf] %v347
      %356 = vst [vmem:[#allocation2 + $0x8] sm:$0xf] %v348
      %357 = vst [vmem:[#allocation2 + $0xc] sm:$0xf] %v349
      %358 = vst [vmem:[#allocation2 + $0x10] sm:$0xf] %v350
      %359 = vst [vmem:[#allocation2 + $0x14] sm:$0xf] %v351
      %360 = vst [vmem:[#allocation2 + $0x18] sm:$0xf] %v352
      %361 = vst [vmem:[#allocation2 + $0x1c] sm:$0xf] %v353
      %v362 = vld [vmem:[%s223] sm:$0xf]
      %v363 = vld [vmem:[%s223 + $0x4] sm:$0xf]
      %v364 = vld [vmem:[%s223 + $0x8] sm:$0xf]
      %v365 = vld [vmem:[%s223 + $0xc] sm:$0xf]
      %v366 = vlaneseq
      %v367 = vand.u32 %v366, 127
      %vm368 = vcmp.ge.s32.totalorder %v367, 64
      %vm369 = vcmp.lt.s32.totalorder %v367, 96
      %vm370 = vmand %vm368, %vm369
      %v371 = vsel %vm370, 1.0, 0.5
      %v372 = vsel %vm370, 0.0, 0.5
      %p373 = scmp.eq.s32.totalorder %s15, 0
      // Predicated region
      $region37: #{lstm_forward.2} parent=35 // pred_check
        %p374 = pneg %p373
      $region38: #{lstm_forward.2} parent=35 // pred_check_branch
        %376 = sbr.rel (%p374) target = $region40
      $region39: #{lstm_forward.2} parent=35 // pred_region
        %v377 = vld [vmem:[#allocation2] sm:$0xf]
        %v378 = vunpack.c.l.bf16 %v377
        %v383 = vunpack.c.l.b16 %v362
        %v384 = vunpack.c.l.b16 %v363
        %v385 = vunpack.c.l.b16 %v364
        %v386 = vunpack.c.l.b16 %v365
        %v387 = vpack.c.b16 %v384, %v383
        %v388 = vpack.c.b16 %v386, %v385
        %v392 = vsel %vm268, 0, 0
        %394 = vmatprep.subr.bf16.mxu0 0
        %395 = vmatpush1.bf16.msra.mxu0 0
        %396 = vmatprep.subr.bf16.mxu0 0
        %397 = vmatpush1.bf16.msra.mxu0 0
        %398 = vmatprep.subr.bf16.mxu0 0
        %399 = vmatpush1.bf16.msra.mxu0 0
        %400 = vmatprep.subr.bf16.mxu0 0
        %401 = vmatpush1.bf16.msra.mxu0 0
        %402 = vmatprep.subr.bf16.mxu0 0
        %403 = vmatpush1.bf16.msra.mxu0 0
        %404 = vmatprep.subr.bf16.mxu0 0
        %405 = vmatpush1.bf16.msra.mxu0 0
        %406 = vmatprep.subr.bf16.mxu0 0
        %407 = vmatpush1.bf16.msra.mxu0 %v388
        %408 = vmatprep.subr.bf16.mxu0 0
        %409 = vmatpush1.bf16.msra.mxu0 %v387
        %410 = vmatprep.subr.bf16.mxu0 0
        %411 = vmatpush2.bf16.msra.mxu0 0
        %412 = vmatprep.subr.bf16.mxu0 0
        %413 = vmatpush2.bf16.msra.mxu0 0
        %414 = vmatprep.subr.bf16.mxu0 0
        %415 = vmatpush2.bf16.msra.mxu0 0
        %416 = vmatprep.subr.bf16.mxu0 0
        %417 = vmatpush2.bf16.msra.mxu0 0
        %418 = vmatprep.subr.bf16.mxu0 0
        %419 = vmatpush2.bf16.msra.mxu0 0
        %420 = vmatprep.subr.bf16.mxu0 0
        %421 = vmatpush2.bf16.msra.mxu0 0
        %422 = vmatprep.subr.bf16.mxu0 0
        %423 = vmatpush2.bf16.msra.mxu0 0
        %424 = vmatprep.subr.bf16.mxu0 0
        %425 = vmatpush2.bf16.msra.mxu0 0
        %426 = vmatprep.mubr.bf16.mxu0 0
        %427 = vmatmul.mubr.bf16.gmra.mxu0 %v392
        %v428 = vpop.f32.mrf.mxu0
        %v429 = vadd.f32 0.0, %v428
        %v430 = vpop.f32.mrf.mxu0
        %v431 = vpop.f32.mrf.mxu0
        %v432 = vpop.f32.mrf.mxu0
        %433 = vdwg.mxu0
        %v434 = vadd.f32 %v378, %v429
        %v435 = vmul.f32 %v434, %v371
        %v436 = vtanh.pop %v435
        %v437 = vmul.f32 %v436, %v371
        %v438 = vadd.f32 %v437, %v372
        %v439 = vmul.f32 %v438, 0.0
        %441 = vrot.lane.b32.xlu0 %v438, 64
        %v442 = vpop.permute.xlu0 %441
        %v444 = vmul.f32 %v438, %v442
        %446 = vrot.lane.b32.xlu0 %v444, 32
        %v447 = vpop.permute.xlu0 %446
        %v449 = vadd.f32 %v439, %v447
        %v450 = vtanh.pop %v449
        %452 = vrot.lane.b32.xlu0 %v450, 64
        %v453 = vpop.permute.xlu0 %452
        %v455 = vmul.f32 %v438, %v453
        %457 = vrot.lane.b32.xlu0 %v455, 32
        %v458 = vpop.permute.xlu0 %457
        %460 = vst.msk [vmem:[%s231] sm:$0xff] %vm268, %v458
        %s461 = scalar_lea.vmem [#allocation2], 4
        %v462 = vld [vmem:[%s461] sm:$0xf]
        %v463 = vunpack.c.l.bf16 %v462
        %v464 = vpack.c.bf16 %v455, %v455
        %466 = vrot.lane.b32.xlu0 %v464, 32
        %v467 = vpop.permute.xlu0 %466
        %v469 = vsel %vm268, %v467, 0
        %471 = vmatprep.subr.bf16.mxu0 0
        %472 = vmatpush1.bf16.msra.mxu0 0
        %473 = vmatprep.subr.bf16.mxu0 0
        %474 = vmatpush1.bf16.msra.mxu0 0
        %475 = vmatprep.subr.bf16.mxu0 0
        %476 = vmatpush1.bf16.msra.mxu0 0
        %477 = vmatprep.subr.bf16.mxu0 0
        %478 = vmatpush1.bf16.msra.mxu0 0
        %479 = vmatprep.subr.bf16.mxu0 0
        %480 = vmatpush1.bf16.msra.mxu0 0
        %481 = vmatprep.subr.bf16.mxu0 0
        %482 = vmatpush1.bf16.msra.mxu0 0
        %483 = vmatprep.subr.bf16.mxu0 0
        %484 = vmatpush1.bf16.msra.mxu0 %v388
        %485 = vmatprep.subr.bf16.mxu0 0
        %486 = vmatpush1.bf16.msra.mxu0 %v387
        %487 = vmatprep.subr.bf16.mxu0 0
        %488 = vmatpush2.bf16.msra.mxu0 0
        %489 = vmatprep.subr.bf16.mxu0 0
        %490 = vmatpush2.bf16.msra.mxu0 0
        %491 = vmatprep.subr.bf16.mxu0 0
        %492 = vmatpush2.bf16.msra.mxu0 0
        %493 = vmatprep.subr.bf16.mxu0 0
        %494 = vmatpush2.bf16.msra.mxu0 0
        %495 = vmatprep.subr.bf16.mxu0 0
        %496 = vmatpush2.bf16.msra.mxu0 0
        %497 = vmatprep.subr.bf16.mxu0 0
        %498 = vmatpush2.bf16.msra.mxu0 0
        %499 = vmatprep.subr.bf16.mxu0 0
        %500 = vmatpush2.bf16.msra.mxu0 0
        %501 = vmatprep.subr.bf16.mxu0 0
        %502 = vmatpush2.bf16.msra.mxu0 0
        %503 = vmatprep.mubr.bf16.mxu0 0
        %504 = vmatmul.mubr.bf16.gmra.mxu0 %v469
        %v505 = vpop.f32.mrf.mxu0
        %v506 = vadd.f32 0.0, %v505
        %v507 = vpop.f32.mrf.mxu0
        %v508 = vpop.f32.mrf.mxu0
        %v509 = vpop.f32.mrf.mxu0
        %510 = vdwg.mxu0
        %v511 = vadd.f32 %v463, %v506
        %v512 = vmul.f32 %v511, %v371
        %v513 = vtanh.pop %v512
        %v514 = vmul.f32 %v513, %v371
        %v515 = vadd.f32 %v514, %v372
        %v516 = vmul.f32 %v515, %v449
        %518 = vrot.lane.b32.xlu0 %v515, 64
        %v519 = vpop.permute.xlu0 %518
        %v521 = vmul.f32 %v515, %v519
        %523 = vrot.lane.b32.xlu0 %v521, 32
        %v524 = vpop.permute.xlu0 %523
        %v526 = vadd.f32 %v516, %v524
        %v527 = vtanh.pop %v526
        %529 = vrot.lane.b32.xlu0 %v527, 64
        %v530 = vpop.permute.xlu0 %529
        %v532 = vmul.f32 %v515, %v530
        %534 = vrot.lane.b32.xlu0 %v532, 32
        %v535 = vpop.permute.xlu0 %534
        %s537 = scalar_lea.vmem %s231, 8
        %538 = vst.msk [vmem:[%s537] sm:$0xff] %vm268, %v535
        %s539 = scalar_lea.vmem [#allocation2], 8
        %v540 = vld [vmem:[%s539] sm:$0xf]
        %v541 = vunpack.c.l.bf16 %v540
        %v542 = vpack.c.bf16 %v532, %v532
        %544 = vrot.lane.b32.xlu0 %v542, 32
        %v545 = vpop.permute.xlu0 %544
        %v547 = vsel %vm268, %v545, 0
        %549 = vmatprep.subr.bf16.mxu0 0
        %550 = vmatpush1.bf16.msra.mxu0 0
        %551 = vmatprep.subr.bf16.mxu0 0
        %552 = vmatpush1.bf16.msra.mxu0 0
        %553 = vmatprep.subr.bf16.mxu0 0
        %554 = vmatpush1.bf16.msra.mxu0 0
        %555 = vmatprep.subr.bf16.mxu0 0
        %556 = vmatpush1.bf16.msra.mxu0 0
        %557 = vmatprep.subr.bf16.mxu0 0
        %558 = vmatpush1.bf16.msra.mxu0 0
        %559 = vmatprep.subr.bf16.mxu0 0
        %560 = vmatpush1.bf16.msra.mxu0 0
        %561 = vmatprep.subr.bf16.mxu0 0
        %562 = vmatpush1.bf16.msra.mxu0 %v388
        %563 = vmatprep.subr.bf16.mxu0 0
        %564 = vmatpush1.bf16.msra.mxu0 %v387
        %565 = vmatprep.subr.bf16.mxu0 0
        %566 = vmatpush2.bf16.msra.mxu0 0
        %567 = vmatprep.subr.bf16.mxu0 0
        %568 = vmatpush2.bf16.msra.mxu0 0
        %569 = vmatprep.subr.bf16.mxu0 0
        %570 = vmatpush2.bf16.msra.mxu0 0
        %571 = vmatprep.subr.bf16.mxu0 0
        %572 = vmatpush2.bf16.msra.mxu0 0
        %573 = vmatprep.subr.bf16.mxu0 0
        %574 = vmatpush2.bf16.msra.mxu0 0
        %575 = vmatprep.subr.bf16.mxu0 0
        %576 = vmatpush2.bf16.msra.mxu0 0
        %577 = vmatprep.subr.bf16.mxu0 0
        %578 = vmatpush2.bf16.msra.mxu0 0
        %579 = vmatprep.subr.bf16.mxu0 0
        %580 = vmatpush2.bf16.msra.mxu0 0
        %581 = vmatprep.mubr.bf16.mxu0 0
        %582 = vmatmul.mubr.bf16.gmra.mxu0 %v547
        %v583 = vpop.f32.mrf.mxu0
        %v584 = vadd.f32 0.0, %v583
        %v585 = vpop.f32.mrf.mxu0
        %v586 = vpop.f32.mrf.mxu0
        %v587 = vpop.f32.mrf.mxu0
        %588 = vdwg.mxu0
        %v589 = vadd.f32 %v541, %v584
        %v590 = vmul.f32 %v589, %v371
        %v591 = vtanh.pop %v590
        %v592 = vmul.f32 %v591, %v371
        %v593 = vadd.f32 %v592, %v372
        %v594 = vmul.f32 %v593, %v526
        %596 = vrot.lane.b32.xlu0 %v593, 64
        %v597 = vpop.permute.xlu0 %596
        %v599 = vmul.f32 %v593, %v597
        %601 = vrot.lane.b32.xlu0 %v599, 32
        %v602 = vpop.permute.xlu0 %601
        %v604 = vadd.f32 %v594, %v602
        %v605 = vtanh.pop %v604
        %607 = vrot.lane.b32.xlu0 %v605, 64
        %v608 = vpop.permute.xlu0 %607
        %v610 = vmul.f32 %v593, %v608
        %612 = vrot.lane.b32.xlu0 %v610, 32
        %v613 = vpop.permute.xlu0 %612
        %s615 = scalar_lea.vmem %s231, 16
        %616 = vst.msk [vmem:[%s615] sm:$0xff] %vm268, %v613
        %s617 = scalar_lea.vmem [#allocation2], 12
        %v618 = vld [vmem:[%s617] sm:$0xf]
        %v619 = vunpack.c.l.bf16 %v618
        %v620 = vpack.c.bf16 %v610, %v610
        %622 = vrot.lane.b32.xlu0 %v620, 32
        %v623 = vpop.permute.xlu0 %622
        %v625 = vsel %vm268, %v623, 0
        %627 = vmatprep.subr.bf16.mxu0 0
        %628 = vmatpush1.bf16.msra.mxu0 0
        %629 = vmatprep.subr.bf16.mxu0 0
        %630 = vmatpush1.bf16.msra.mxu0 0
        %631 = vmatprep.subr.bf16.mxu0 0
        %632 = vmatpush1.bf16.msra.mxu0 0
        %633 = vmatprep.subr.bf16.mxu0 0
        %634 = vmatpush1.bf16.msra.mxu0 0
        %635 = vmatprep.subr.bf16.mxu0 0
        %636 = vmatpush1.bf16.msra.mxu0 0
        %637 = vmatprep.subr.bf16.mxu0 0
        %638 = vmatpush1.bf16.msra.mxu0 0
        %639 = vmatprep.subr.bf16.mxu0 0
        %640 = vmatpush1.bf16.msra.mxu0 %v388
        %641 = vmatprep.subr.bf16.mxu0 0
        %642 = vmatpush1.bf16.msra.mxu0 %v387
        %643 = vmatprep.subr.bf16.mxu0 0
        %644 = vmatpush2.bf16.msra.mxu0 0
        %645 = vmatprep.subr.bf16.mxu0 0
        %646 = vmatpush2.bf16.msra.mxu0 0
        %647 = vmatprep.subr.bf16.mxu0 0
        %648 = vmatpush2.bf16.msra.mxu0 0
        %649 = vmatprep.subr.bf16.mxu0 0
        %650 = vmatpush2.bf16.msra.mxu0 0
        %651 = vmatprep.subr.bf16.mxu0 0
        %652 = vmatpush2.bf16.msra.mxu0 0
        %653 = vmatprep.subr.bf16.mxu0 0
        %654 = vmatpush2.bf16.msra.mxu0 0
        %655 = vmatprep.subr.bf16.mxu0 0
        %656 = vmatpush2.bf16.msra.mxu0 0
        %657 = vmatprep.subr.bf16.mxu0 0
        %658 = vmatpush2.bf16.msra.mxu0 0
        %659 = vmatprep.mubr.bf16.mxu0 0
        %660 = vmatmul.mubr.bf16.gmra.mxu0 %v625
        %v661 = vpop.f32.mrf.mxu0
        %v662 = vadd.f32 0.0, %v661
        %v663 = vpop.f32.mrf.mxu0
        %v664 = vpop.f32.mrf.mxu0
        %v665 = vpop.f32.mrf.mxu0
        %666 = vdwg.mxu0
        %v667 = vadd.f32 %v619, %v662
        %v668 = vmul.f32 %v667, %v371
        %v669 = vtanh.pop %v668
        %v670 = vmul.f32 %v669, %v371
        %v671 = vadd.f32 %v670, %v372
        %v672 = vmul.f32 %v671, %v604
        %674 = vrot.lane.b32.xlu0 %v671, 64
        %v675 = vpop.permute.xlu0 %674
        %v677 = vmul.f32 %v671, %v675
        %679 = vrot.lane.b32.xlu0 %v677, 32
        %v680 = vpop.permute.xlu0 %679
        %v682 = vadd.f32 %v672, %v680
        %v683 = vtanh.pop %v682
        %685 = vrot.lane.b32.xlu0 %v683, 64
        %v686 = vpop.permute.xlu0 %685
        %v688 = vmul.f32 %v671, %v686
        %690 = vrot.lane.b32.xlu0 %v688, 32
        %v691 = vpop.permute.xlu0 %690
        %s693 = scalar_lea.vmem %s231, 24
        %694 = vst.msk [vmem:[%s693] sm:$0xff] %vm268, %v691
        %s695 = scalar_lea.vmem [#allocation2], 16
        %v696 = vld [vmem:[%s695] sm:$0xf]
        %v697 = vunpack.c.l.bf16 %v696
        %v698 = vpack.c.bf16 %v688, %v688
        %700 = vrot.lane.b32.xlu0 %v698, 32
        %v701 = vpop.permute.xlu0 %700
        %v703 = vsel %vm268, %v701, 0
        %705 = vmatprep.subr.bf16.mxu0 0
        %706 = vmatpush1.bf16.msra.mxu0 0
        %707 = vmatprep.subr.bf16.mxu0 0
        %708 = vmatpush1.bf16.msra.mxu0 0
        %709 = vmatprep.subr.bf16.mxu0 0
        %710 = vmatpush1.bf16.msra.mxu0 0
        %711 = vmatprep.subr.bf16.mxu0 0
        %712 = vmatpush1.bf16.msra.mxu0 0
        %713 = vmatprep.subr.bf16.mxu0 0
        %714 = vmatpush1.bf16.msra.mxu0 0
        %715 = vmatprep.subr.bf16.mxu0 0
        %716 = vmatpush1.bf16.msra.mxu0 0
        %717 = vmatprep.subr.bf16.mxu0 0
        %718 = vmatpush1.bf16.msra.mxu0 %v388
        %719 = vmatprep.subr.bf16.mxu0 0
        %720 = vmatpush1.bf16.msra.mxu0 %v387
        %721 = vmatprep.subr.bf16.mxu0 0
        %722 = vmatpush2.bf16.msra.mxu0 0
        %723 = vmatprep.subr.bf16.mxu0 0
        %724 = vmatpush2.bf16.msra.mxu0 0
        %725 = vmatprep.subr.bf16.mxu0 0
        %726 = vmatpush2.bf16.msra.mxu0 0
        %727 = vmatprep.subr.bf16.mxu0 0
        %728 = vmatpush2.bf16.msra.mxu0 0
        %729 = vmatprep.subr.bf16.mxu0 0
        %730 = vmatpush2.bf16.msra.mxu0 0
        %731 = vmatprep.subr.bf16.mxu0 0
        %732 = vmatpush2.bf16.msra.mxu0 0
        %733 = vmatprep.subr.bf16.mxu0 0
        %734 = vmatpush2.bf16.msra.mxu0 0
        %735 = vmatprep.subr.bf16.mxu0 0
        %736 = vmatpush2.bf16.msra.mxu0 0
        %737 = vmatprep.mubr.bf16.mxu0 0
        %738 = vmatmul.mubr.bf16.gmra.mxu0 %v703
        %v739 = vpop.f32.mrf.mxu0
        %v740 = vadd.f32 0.0, %v739
        %v741 = vpop.f32.mrf.mxu0
        %v742 = vpop.f32.mrf.mxu0
        %v743 = vpop.f32.mrf.mxu0
        %744 = vdwg.mxu0
        %v745 = vadd.f32 %v697, %v740
        %v746 = vmul.f32 %v745, %v371
        %v747 = vtanh.pop %v746
        %v748 = vmul.f32 %v747, %v371
        %v749 = vadd.f32 %v748, %v372
        %v750 = vmul.f32 %v749, %v682
        %752 = vrot.lane.b32.xlu0 %v749, 64
        %v753 = vpop.permute.xlu0 %752
        %v755 = vmul.f32 %v749, %v753
        %757 = vrot.lane.b32.xlu0 %v755, 32
        %v758 = vpop.permute.xlu0 %757
        %v760 = vadd.f32 %v750, %v758
        %v761 = vtanh.pop %v760
        %763 = vrot.lane.b32.xlu0 %v761, 64
        %v764 = vpop.permute.xlu0 %763
        %v766 = vmul.f32 %v749, %v764
        %768 = vrot.lane.b32.xlu0 %v766, 32
        %v769 = vpop.permute.xlu0 %768
        %s771 = scalar_lea.vmem %s231, 32
        %772 = vst.msk [vmem:[%s771] sm:$0xff] %vm268, %v769
        %s773 = scalar_lea.vmem [#allocation2], 20
        %v774 = vld [vmem:[%s773] sm:$0xf]
        %v775 = vunpack.c.l.bf16 %v774
        %v776 = vpack.c.bf16 %v766, %v766
        %778 = vrot.lane.b32.xlu0 %v776, 32
        %v779 = vpop.permute.xlu0 %778
        %v781 = vsel %vm268, %v779, 0
        %783 = vmatprep.subr.bf16.mxu0 0
        %784 = vmatpush1.bf16.msra.mxu0 0
        %785 = vmatprep.subr.bf16.mxu0 0
        %786 = vmatpush1.bf16.msra.mxu0 0
        %787 = vmatprep.subr.bf16.mxu0 0
        %788 = vmatpush1.bf16.msra.mxu0 0
        %789 = vmatprep.subr.bf16.mxu0 0
        %790 = vmatpush1.bf16.msra.mxu0 0
        %791 = vmatprep.subr.bf16.mxu0 0
        %792 = vmatpush1.bf16.msra.mxu0 0
        %793 = vmatprep.subr.bf16.mxu0 0
        %794 = vmatpush1.bf16.msra.mxu0 0
        %795 = vmatprep.subr.bf16.mxu0 0
        %796 = vmatpush1.bf16.msra.mxu0 %v388
        %797 = vmatprep.subr.bf16.mxu0 0
        %798 = vmatpush1.bf16.msra.mxu0 %v387
        %799 = vmatprep.subr.bf16.mxu0 0
        %800 = vmatpush2.bf16.msra.mxu0 0
        %801 = vmatprep.subr.bf16.mxu0 0
        %802 = vmatpush2.bf16.msra.mxu0 0
        %803 = vmatprep.subr.bf16.mxu0 0
        %804 = vmatpush2.bf16.msra.mxu0 0
        %805 = vmatprep.subr.bf16.mxu0 0
        %806 = vmatpush2.bf16.msra.mxu0 0
        %807 = vmatprep.subr.bf16.mxu0 0
        %808 = vmatpush2.bf16.msra.mxu0 0
        %809 = vmatprep.subr.bf16.mxu0 0
        %810 = vmatpush2.bf16.msra.mxu0 0
        %811 = vmatprep.subr.bf16.mxu0 0
        %812 = vmatpush2.bf16.msra.mxu0 0
        %813 = vmatprep.subr.bf16.mxu0 0
        %814 = vmatpush2.bf16.msra.mxu0 0
        %815 = vmatprep.mubr.bf16.mxu0 0
        %816 = vmatmul.mubr.bf16.gmra.mxu0 %v781
        %v817 = vpop.f32.mrf.mxu0
        %v818 = vadd.f32 0.0, %v817
        %v819 = vpop.f32.mrf.mxu0
        %v820 = vpop.f32.mrf.mxu0
        %v821 = vpop.f32.mrf.mxu0
        %822 = vdwg.mxu0
        %v823 = vadd.f32 %v775, %v818
        %v824 = vmul.f32 %v823, %v371
        %v825 = vtanh.pop %v824
        %v826 = vmul.f32 %v825, %v371
        %v827 = vadd.f32 %v826, %v372
        %v828 = vmul.f32 %v827, %v760
        %830 = vrot.lane.b32.xlu0 %v827, 64
        %v831 = vpop.permute.xlu0 %830
        %v833 = vmul.f32 %v827, %v831
        %835 = vrot.lane.b32.xlu0 %v833, 32
        %v836 = vpop.permute.xlu0 %835
        %v838 = vadd.f32 %v828, %v836
        %v839 = vtanh.pop %v838
        %841 = vrot.lane.b32.xlu0 %v839, 64
        %v842 = vpop.permute.xlu0 %841
        %v844 = vmul.f32 %v827, %v842
        %846 = vrot.lane.b32.xlu0 %v844, 32
        %v847 = vpop.permute.xlu0 %846
        %s849 = scalar_lea.vmem %s231, 40
        %850 = vst.msk [vmem:[%s849] sm:$0xff] %vm268, %v847
        %s851 = scalar_lea.vmem [#allocation2], 24
        %v852 = vld [vmem:[%s851] sm:$0xf]
        %v853 = vunpack.c.l.bf16 %v852
        %v854 = vpack.c.bf16 %v844, %v844
        %856 = vrot.lane.b32.xlu0 %v854, 32
        %v857 = vpop.permute.xlu0 %856
        %v859 = vsel %vm268, %v857, 0
        %861 = vmatprep.subr.bf16.mxu0 0
        %862 = vmatpush1.bf16.msra.mxu0 0
        %863 = vmatprep.subr.bf16.mxu0 0
        %864 = vmatpush1.bf16.msra.mxu0 0
        %865 = vmatprep.subr.bf16.mxu0 0
        %866 = vmatpush1.bf16.msra.mxu0 0
        %867 = vmatprep.subr.bf16.mxu0 0
        %868 = vmatpush1.bf16.msra.mxu0 0
        %869 = vmatprep.subr.bf16.mxu0 0
        %870 = vmatpush1.bf16.msra.mxu0 0
        %871 = vmatprep.subr.bf16.mxu0 0
        %872 = vmatpush1.bf16.msra.mxu0 0
        %873 = vmatprep.subr.bf16.mxu0 0
        %874 = vmatpush1.bf16.msra.mxu0 %v388
        %875 = vmatprep.subr.bf16.mxu0 0
        %876 = vmatpush1.bf16.msra.mxu0 %v387
        %877 = vmatprep.subr.bf16.mxu0 0
        %878 = vmatpush2.bf16.msra.mxu0 0
        %879 = vmatprep.subr.bf16.mxu0 0
        %880 = vmatpush2.bf16.msra.mxu0 0
        %881 = vmatprep.subr.bf16.mxu0 0
        %882 = vmatpush2.bf16.msra.mxu0 0
        %883 = vmatprep.subr.bf16.mxu0 0
        %884 = vmatpush2.bf16.msra.mxu0 0
        %885 = vmatprep.subr.bf16.mxu0 0
        %886 = vmatpush2.bf16.msra.mxu0 0
        %887 = vmatprep.subr.bf16.mxu0 0
        %888 = vmatpush2.bf16.msra.mxu0 0
        %889 = vmatprep.subr.bf16.mxu0 0
        %890 = vmatpush2.bf16.msra.mxu0 0
        %891 = vmatprep.subr.bf16.mxu0 0
        %892 = vmatpush2.bf16.msra.mxu0 0
        %893 = vmatprep.mubr.bf16.mxu0 0
        %894 = vmatmul.mubr.bf16.gmra.mxu0 %v859
        %v895 = vpop.f32.mrf.mxu0
        %v896 = vadd.f32 0.0, %v895
        %v897 = vpop.f32.mrf.mxu0
        %v898 = vpop.f32.mrf.mxu0
        %v899 = vpop.f32.mrf.mxu0
        %900 = vdwg.mxu0
        %v901 = vadd.f32 %v853, %v896
        %v902 = vmul.f32 %v901, %v371
        %v903 = vtanh.pop %v902
        %v904 = vmul.f32 %v903, %v371
        %v905 = vadd.f32 %v904, %v372
        %v906 = vmul.f32 %v905, %v838
        %908 = vrot.lane.b32.xlu0 %v905, 64
        %v909 = vpop.permute.xlu0 %908
        %v911 = vmul.f32 %v905, %v909
        %913 = vrot.lane.b32.xlu0 %v911, 32
        %v914 = vpop.permute.xlu0 %913
        %v916 = vadd.f32 %v906, %v914
        %v917 = vtanh.pop %v916
        %919 = vrot.lane.b32.xlu0 %v917, 64
        %v920 = vpop.permute.xlu0 %919
        %v922 = vmul.f32 %v905, %v920
        %924 = vrot.lane.b32.xlu0 %v922, 32
        %v925 = vpop.permute.xlu0 %924
        %s927 = scalar_lea.vmem %s231, 48
        %928 = vst.msk [vmem:[%s927] sm:$0xff] %vm268, %v925
        %s929 = scalar_lea.vmem [#allocation2], 28
        %v930 = vld [vmem:[%s929] sm:$0xf]
        %v931 = vunpack.c.l.bf16 %v930
        %v932 = vpack.c.bf16 %v922, %v922
        %934 = vrot.lane.b32.xlu0 %v932, 32
        %v935 = vpop.permute.xlu0 %934
        %v937 = vsel %vm268, %v935, 0
        %939 = vmatprep.subr.bf16.mxu0 0
        %940 = vmatpush1.bf16.msra.mxu0 0
        %941 = vmatprep.subr.bf16.mxu0 0
        %942 = vmatpush1.bf16.msra.mxu0 0
        %943 = vmatprep.subr.bf16.mxu0 0
        %944 = vmatpush1.bf16.msra.mxu0 0
        %945 = vmatprep.subr.bf16.mxu0 0
        %946 = vmatpush1.bf16.msra.mxu0 0
        %947 = vmatprep.subr.bf16.mxu0 0
        %948 = vmatpush1.bf16.msra.mxu0 0
        %949 = vmatprep.subr.bf16.mxu0 0
        %950 = vmatpush1.bf16.msra.mxu0 0
        %951 = vmatprep.subr.bf16.mxu0 0
        %952 = vmatpush1.bf16.msra.mxu0 %v388
        %953 = vmatprep.subr.bf16.mxu0 0
        %954 = vmatpush1.bf16.msra.mxu0 %v387
        %955 = vmatprep.subr.bf16.mxu0 0
        %956 = vmatpush2.bf16.msra.mxu0 0
        %957 = vmatprep.subr.bf16.mxu0 0
        %958 = vmatpush2.bf16.msra.mxu0 0
        %959 = vmatprep.subr.bf16.mxu0 0
        %960 = vmatpush2.bf16.msra.mxu0 0
        %961 = vmatprep.subr.bf16.mxu0 0
        %962 = vmatpush2.bf16.msra.mxu0 0
        %963 = vmatprep.subr.bf16.mxu0 0
        %964 = vmatpush2.bf16.msra.mxu0 0
        %965 = vmatprep.subr.bf16.mxu0 0
        %966 = vmatpush2.bf16.msra.mxu0 0
        %967 = vmatprep.subr.bf16.mxu0 0
        %968 = vmatpush2.bf16.msra.mxu0 0
        %969 = vmatprep.subr.bf16.mxu0 0
        %970 = vmatpush2.bf16.msra.mxu0 0
        %971 = vmatprep.mubr.bf16.mxu0 0
        %972 = vmatmul.mubr.bf16.gmra.mxu0 %v937
        %v973 = vpop.f32.mrf.mxu0
        %v974 = vadd.f32 0.0, %v973
        %v975 = vpop.f32.mrf.mxu0
        %v976 = vpop.f32.mrf.mxu0
        %v977 = vpop.f32.mrf.mxu0
        %978 = vdwg.mxu0
        %v979 = vadd.f32 %v931, %v974
        %v980 = vmul.f32 %v979, %v371
        %v981 = vtanh.pop %v980
        %v982 = vmul.f32 %v981, %v371
        %v983 = vadd.f32 %v982, %v372
        %v984 = vmul.f32 %v983, %v916
        %986 = vrot.lane.b32.xlu0 %v983, 64
        %v987 = vpop.permute.xlu0 %986
        %v989 = vmul.f32 %v983, %v987
        %991 = vrot.lane.b32.xlu0 %v989, 32
        %v992 = vpop.permute.xlu0 %991
        %v994 = vadd.f32 %v984, %v992
        %v995 = vtanh.pop %v994
        %997 = vrot.lane.b32.xlu0 %v995, 64
        %v998 = vpop.permute.xlu0 %997
        %v1000 = vmul.f32 %v983, %v998
        %1002 = vrot.lane.b32.xlu0 %v1000, 32
        %v1003 = vpop.permute.xlu0 %1002
        %s1005 = scalar_lea.vmem %s231, 56
        %1006 = vst.msk [vmem:[%s1005] sm:$0xff] %vm268, %v1003
      $region40: #{lstm_forward.2} parent=35 // pred_fallthru
        _
      %p1007 = scmp.eq.s32.totalorder %s15, 1
      // Predicated region
      $region41: #{lstm_forward.2} parent=35 // pred_check
        %p1008 = pneg %p1007
      $region42: #{lstm_forward.2} parent=35 // pred_check_branch
        %1010 = sbr.rel (%p1008) target = $region44
      $region43: #{lstm_forward.2} parent=35 // pred_region
        %s1011 = scalar_lea.vmem [#allocation2], 28
        %v1012 = vld [vmem:[%s1011] sm:$0xf]
        %v1013 = vunpack.c.l.bf16 %v1012
        %v1018 = vunpack.c.l.b16 %v362
        %v1019 = vunpack.c.l.b16 %v363
        %v1020 = vunpack.c.l.b16 %v364
        %v1021 = vunpack.c.l.b16 %v365
        %v1022 = vpack.c.b16 %v1019, %v1018
        %v1023 = vpack.c.b16 %v1021, %v1020
        %v1027 = vsel %vm268, 0, 0
        %1029 = vmatprep.subr.bf16.mxu0 0
        %1030 = vmatpush1.bf16.msra.mxu0 0
        %1031 = vmatprep.subr.bf16.mxu0 0
        %1032 = vmatpush1.bf16.msra.mxu0 0
        %1033 = vmatprep.subr.bf16.mxu0 0
        %1034 = vmatpush1.bf16.msra.mxu0 0
        %1035 = vmatprep.subr.bf16.mxu0 0
        %1036 = vmatpush1.bf16.msra.mxu0 0
        %1037 = vmatprep.subr.bf16.mxu0 0
        %1038 = vmatpush1.bf16.msra.mxu0 0
        %1039 = vmatprep.subr.bf16.mxu0 0
        %1040 = vmatpush1.bf16.msra.mxu0 0
        %1041 = vmatprep.subr.bf16.mxu0 0
        %1042 = vmatpush1.bf16.msra.mxu0 %v1023
        %1043 = vmatprep.subr.bf16.mxu0 0
        %1044 = vmatpush1.bf16.msra.mxu0 %v1022
        %1045 = vmatprep.subr.bf16.mxu0 0
        %1046 = vmatpush2.bf16.msra.mxu0 0
        %1047 = vmatprep.subr.bf16.mxu0 0
        %1048 = vmatpush2.bf16.msra.mxu0 0
        %1049 = vmatprep.subr.bf16.mxu0 0
        %1050 = vmatpush2.bf16.msra.mxu0 0
        %1051 = vmatprep.subr.bf16.mxu0 0
        %1052 = vmatpush2.bf16.msra.mxu0 0
        %1053 = vmatprep.subr.bf16.mxu0 0
        %1054 = vmatpush2.bf16.msra.mxu0 0
        %1055 = vmatprep.subr.bf16.mxu0 0
        %1056 = vmatpush2.bf16.msra.mxu0 0
        %1057 = vmatprep.subr.bf16.mxu0 0
        %1058 = vmatpush2.bf16.msra.mxu0 0
        %1059 = vmatprep.subr.bf16.mxu0 0
        %1060 = vmatpush2.bf16.msra.mxu0 0
        %1061 = vmatprep.mubr.bf16.mxu0 0
        %1062 = vmatmul.mubr.bf16.gmra.mxu0 %v1027
        %v1063 = vpop.f32.mrf.mxu0
        %v1064 = vadd.f32 0.0, %v1063
        %v1065 = vpop.f32.mrf.mxu0
        %v1066 = vpop.f32.mrf.mxu0
        %v1067 = vpop.f32.mrf.mxu0
        %1068 = vdwg.mxu0
        %v1069 = vadd.f32 %v1013, %v1064
        %v1070 = vmul.f32 %v1069, %v371
        %v1071 = vtanh.pop %v1070
        %v1072 = vmul.f32 %v1071, %v371
        %v1073 = vadd.f32 %v1072, %v372
        %v1074 = vmul.f32 %v1073, 0.0
        %1076 = vrot.lane.b32.xlu0 %v1073, 64
        %v1077 = vpop.permute.xlu0 %1076
        %v1079 = vmul.f32 %v1073, %v1077
        %1081 = vrot.lane.b32.xlu0 %v1079, 32
        %v1082 = vpop.permute.xlu0 %1081
        %v1084 = vadd.f32 %v1074, %v1082
        %v1085 = vtanh.pop %v1084
        %1087 = vrot.lane.b32.xlu0 %v1085, 64
        %v1088 = vpop.permute.xlu0 %1087
        %v1090 = vmul.f32 %v1073, %v1088
        %1092 = vrot.lane.b32.xlu0 %v1090, 32
        %v1093 = vpop.permute.xlu0 %1092
        %s1095 = scalar_lea.vmem %s231, 56
        %1096 = vst.msk [vmem:[%s1095] sm:$0xff] %vm268, %v1093
        %s1097 = scalar_lea.vmem [#allocation2], 24
        %v1098 = vld [vmem:[%s1097] sm:$0xf]
        %v1099 = vunpack.c.l.bf16 %v1098
        %v1100 = vpack.c.bf16 %v1090, %v1090
        %1102 = vrot.lane.b32.xlu0 %v1100, 32
        %v1103 = vpop.permute.xlu0 %1102
        %v1105 = vsel %vm268, %v1103, 0
        %1107 = vmatprep.subr.bf16.mxu0 0
        %1108 = vmatpush1.bf16.msra.mxu0 0
        %1109 = vmatprep.subr.bf16.mxu0 0
        %1110 = vmatpush1.bf16.msra.mxu0 0
        %1111 = vmatprep.subr.bf16.mxu0 0
        %1112 = vmatpush1.bf16.msra.mxu0 0
        %1113 = vmatprep.subr.bf16.mxu0 0
        %1114 = vmatpush1.bf16.msra.mxu0 0
        %1115 = vmatprep.subr.bf16.mxu0 0
        %1116 = vmatpush1.bf16.msra.mxu0 0
        %1117 = vmatprep.subr.bf16.mxu0 0
        %1118 = vmatpush1.bf16.msra.mxu0 0
        %1119 = vmatprep.subr.bf16.mxu0 0
        %1120 = vmatpush1.bf16.msra.mxu0 %v1023
        %1121 = vmatprep.subr.bf16.mxu0 0
        %1122 = vmatpush1.bf16.msra.mxu0 %v1022
        %1123 = vmatprep.subr.bf16.mxu0 0
        %1124 = vmatpush2.bf16.msra.mxu0 0
        %1125 = vmatprep.subr.bf16.mxu0 0
        %1126 = vmatpush2.bf16.msra.mxu0 0
        %1127 = vmatprep.subr.bf16.mxu0 0
        %1128 = vmatpush2.bf16.msra.mxu0 0
        %1129 = vmatprep.subr.bf16.mxu0 0
        %1130 = vmatpush2.bf16.msra.mxu0 0
        %1131 = vmatprep.subr.bf16.mxu0 0
        %1132 = vmatpush2.bf16.msra.mxu0 0
        %1133 = vmatprep.subr.bf16.mxu0 0
        %1134 = vmatpush2.bf16.msra.mxu0 0
        %1135 = vmatprep.subr.bf16.mxu0 0
        %1136 = vmatpush2.bf16.msra.mxu0 0
        %1137 = vmatprep.subr.bf16.mxu0 0
        %1138 = vmatpush2.bf16.msra.mxu0 0
        %1139 = vmatprep.mubr.bf16.mxu0 0
        %1140 = vmatmul.mubr.bf16.gmra.mxu0 %v1105
        %v1141 = vpop.f32.mrf.mxu0
        %v1142 = vadd.f32 0.0, %v1141
        %v1143 = vpop.f32.mrf.mxu0
        %v1144 = vpop.f32.mrf.mxu0
        %v1145 = vpop.f32.mrf.mxu0
        %1146 = vdwg.mxu0
        %v1147 = vadd.f32 %v1099, %v1142
        %v1148 = vmul.f32 %v1147, %v371
        %v1149 = vtanh.pop %v1148
        %v1150 = vmul.f32 %v1149, %v371
        %v1151 = vadd.f32 %v1150, %v372
        %v1152 = vmul.f32 %v1151, %v1084
        %1154 = vrot.lane.b32.xlu0 %v1151, 64
        %v1155 = vpop.permute.xlu0 %1154
        %v1157 = vmul.f32 %v1151, %v1155
        %1159 = vrot.lane.b32.xlu0 %v1157, 32
        %v1160 = vpop.permute.xlu0 %1159
        %v1162 = vadd.f32 %v1152, %v1160
        %v1163 = vtanh.pop %v1162
        %1165 = vrot.lane.b32.xlu0 %v1163, 64
        %v1166 = vpop.permute.xlu0 %1165
        %v1168 = vmul.f32 %v1151, %v1166
        %1170 = vrot.lane.b32.xlu0 %v1168, 32
        %v1171 = vpop.permute.xlu0 %1170
        %s1173 = scalar_lea.vmem %s231, 48
        %1174 = vst.msk [vmem:[%s1173] sm:$0xff] %vm268, %v1171
        %s1175 = scalar_lea.vmem [#allocation2], 20
        %v1176 = vld [vmem:[%s1175] sm:$0xf]
        %v1177 = vunpack.c.l.bf16 %v1176
        %v1178 = vpack.c.bf16 %v1168, %v1168
        %1180 = vrot.lane.b32.xlu0 %v1178, 32
        %v1181 = vpop.permute.xlu0 %1180
        %v1183 = vsel %vm268, %v1181, 0
        %1185 = vmatprep.subr.bf16.mxu0 0
        %1186 = vmatpush1.bf16.msra.mxu0 0
        %1187 = vmatprep.subr.bf16.mxu0 0
        %1188 = vmatpush1.bf16.msra.mxu0 0
        %1189 = vmatprep.subr.bf16.mxu0 0
        %1190 = vmatpush1.bf16.msra.mxu0 0
        %1191 = vmatprep.subr.bf16.mxu0 0
        %1192 = vmatpush1.bf16.msra.mxu0 0
        %1193 = vmatprep.subr.bf16.mxu0 0
        %1194 = vmatpush1.bf16.msra.mxu0 0
        %1195 = vmatprep.subr.bf16.mxu0 0
        %1196 = vmatpush1.bf16.msra.mxu0 0
        %1197 = vmatprep.subr.bf16.mxu0 0
        %1198 = vmatpush1.bf16.msra.mxu0 %v1023
        %1199 = vmatprep.subr.bf16.mxu0 0
        %1200 = vmatpush1.bf16.msra.mxu0 %v1022
        %1201 = vmatprep.subr.bf16.mxu0 0
        %1202 = vmatpush2.bf16.msra.mxu0 0
        %1203 = vmatprep.subr.bf16.mxu0 0
        %1204 = vmatpush2.bf16.msra.mxu0 0
        %1205 = vmatprep.subr.bf16.mxu0 0
        %1206 = vmatpush2.bf16.msra.mxu0 0
        %1207 = vmatprep.subr.bf16.mxu0 0
        %1208 = vmatpush2.bf16.msra.mxu0 0
        %1209 = vmatprep.subr.bf16.mxu0 0
        %1210 = vmatpush2.bf16.msra.mxu0 0
        %1211 = vmatprep.subr.bf16.mxu0 0
        %1212 = vmatpush2.bf16.msra.mxu0 0
        %1213 = vmatprep.subr.bf16.mxu0 0
        %1214 = vmatpush2.bf16.msra.mxu0 0
        %1215 = vmatprep.subr.bf16.mxu0 0
        %1216 = vmatpush2.bf16.msra.mxu0 0
        %1217 = vmatprep.mubr.bf16.mxu0 0
        %1218 = vmatmul.mubr.bf16.gmra.mxu0 %v1183
        %v1219 = vpop.f32.mrf.mxu0
        %v1220 = vadd.f32 0.0, %v1219
        %v1221 = vpop.f32.mrf.mxu0
        %v1222 = vpop.f32.mrf.mxu0
        %v1223 = vpop.f32.mrf.mxu0
        %1224 = vdwg.mxu0
        %v1225 = vadd.f32 %v1177, %v1220
        %v1226 = vmul.f32 %v1225, %v371
        %v1227 = vtanh.pop %v1226
        %v1228 = vmul.f32 %v1227, %v371
        %v1229 = vadd.f32 %v1228, %v372
        %v1230 = vmul.f32 %v1229, %v1162
        %1232 = vrot.lane.b32.xlu0 %v1229, 64
        %v1233 = vpop.permute.xlu0 %1232
        %v1235 = vmul.f32 %v1229, %v1233
        %1237 = vrot.lane.b32.xlu0 %v1235, 32
        %v1238 = vpop.permute.xlu0 %1237
        %v1240 = vadd.f32 %v1230, %v1238
        %v1241 = vtanh.pop %v1240
        %1243 = vrot.lane.b32.xlu0 %v1241, 64
        %v1244 = vpop.permute.xlu0 %1243
        %v1246 = vmul.f32 %v1229, %v1244
        %1248 = vrot.lane.b32.xlu0 %v1246, 32
        %v1249 = vpop.permute.xlu0 %1248
        %s1251 = scalar_lea.vmem %s231, 40
        %1252 = vst.msk [vmem:[%s1251] sm:$0xff] %vm268, %v1249
        %s1253 = scalar_lea.vmem [#allocation2], 16
        %v1254 = vld [vmem:[%s1253] sm:$0xf]
        %v1255 = vunpack.c.l.bf16 %v1254
        %v1256 = vpack.c.bf16 %v1246, %v1246
        %1258 = vrot.lane.b32.xlu0 %v1256, 32
        %v1259 = vpop.permute.xlu0 %1258
        %v1261 = vsel %vm268, %v1259, 0
        %1263 = vmatprep.subr.bf16.mxu0 0
        %1264 = vmatpush1.bf16.msra.mxu0 0
        %1265 = vmatprep.subr.bf16.mxu0 0
        %1266 = vmatpush1.bf16.msra.mxu0 0
        %1267 = vmatprep.subr.bf16.mxu0 0
        %1268 = vmatpush1.bf16.msra.mxu0 0
        %1269 = vmatprep.subr.bf16.mxu0 0
        %1270 = vmatpush1.bf16.msra.mxu0 0
        %1271 = vmatprep.subr.bf16.mxu0 0
        %1272 = vmatpush1.bf16.msra.mxu0 0
        %1273 = vmatprep.subr.bf16.mxu0 0
        %1274 = vmatpush1.bf16.msra.mxu0 0
        %1275 = vmatprep.subr.bf16.mxu0 0
        %1276 = vmatpush1.bf16.msra.mxu0 %v1023
        %1277 = vmatprep.subr.bf16.mxu0 0
        %1278 = vmatpush1.bf16.msra.mxu0 %v1022
        %1279 = vmatprep.subr.bf16.mxu0 0
        %1280 = vmatpush2.bf16.msra.mxu0 0
        %1281 = vmatprep.subr.bf16.mxu0 0
        %1282 = vmatpush2.bf16.msra.mxu0 0
        %1283 = vmatprep.subr.bf16.mxu0 0
        %1284 = vmatpush2.bf16.msra.mxu0 0
        %1285 = vmatprep.subr.bf16.mxu0 0
        %1286 = vmatpush2.bf16.msra.mxu0 0
        %1287 = vmatprep.subr.bf16.mxu0 0
        %1288 = vmatpush2.bf16.msra.mxu0 0
        %1289 = vmatprep.subr.bf16.mxu0 0
        %1290 = vmatpush2.bf16.msra.mxu0 0
        %1291 = vmatprep.subr.bf16.mxu0 0
        %1292 = vmatpush2.bf16.msra.mxu0 0
        %1293 = vmatprep.subr.bf16.mxu0 0
        %1294 = vmatpush2.bf16.msra.mxu0 0
        %1295 = vmatprep.mubr.bf16.mxu0 0
        %1296 = vmatmul.mubr.bf16.gmra.mxu0 %v1261
        %v1297 = vpop.f32.mrf.mxu0
        %v1298 = vadd.f32 0.0, %v1297
        %v1299 = vpop.f32.mrf.mxu0
        %v1300 = vpop.f32.mrf.mxu0
        %v1301 = vpop.f32.mrf.mxu0
        %1302 = vdwg.mxu0
        %v1303 = vadd.f32 %v1255, %v1298
        %v1304 = vmul.f32 %v1303, %v371
        %v1305 = vtanh.pop %v1304
        %v1306 = vmul.f32 %v1305, %v371
        %v1307 = vadd.f32 %v1306, %v372
        %v1308 = vmul.f32 %v1307, %v1240
        %1310 = vrot.lane.b32.xlu0 %v1307, 64
        %v1311 = vpop.permute.xlu0 %1310
        %v1313 = vmul.f32 %v1307, %v1311
        %1315 = vrot.lane.b32.xlu0 %v1313, 32
        %v1316 = vpop.permute.xlu0 %1315
        %v1318 = vadd.f32 %v1308, %v1316
        %v1319 = vtanh.pop %v1318
        %1321 = vrot.lane.b32.xlu0 %v1319, 64
        %v1322 = vpop.permute.xlu0 %1321
        %v1324 = vmul.f32 %v1307, %v1322
        %1326 = vrot.lane.b32.xlu0 %v1324, 32
        %v1327 = vpop.permute.xlu0 %1326
        %s1329 = scalar_lea.vmem %s231, 32
        %1330 = vst.msk [vmem:[%s1329] sm:$0xff] %vm268, %v1327
        %s1331 = scalar_lea.vmem [#allocation2], 12
        %v1332 = vld [vmem:[%s1331] sm:$0xf]
        %v1333 = vunpack.c.l.bf16 %v1332
        %v1334 = vpack.c.bf16 %v1324, %v1324
        %1336 = vrot.lane.b32.xlu0 %v1334, 32
        %v1337 = vpop.permute.xlu0 %1336
        %v1339 = vsel %vm268, %v1337, 0
        %1341 = vmatprep.subr.bf16.mxu0 0
        %1342 = vmatpush1.bf16.msra.mxu0 0
        %1343 = vmatprep.subr.bf16.mxu0 0
        %1344 = vmatpush1.bf16.msra.mxu0 0
        %1345 = vmatprep.subr.bf16.mxu0 0
        %1346 = vmatpush1.bf16.msra.mxu0 0
        %1347 = vmatprep.subr.bf16.mxu0 0
        %1348 = vmatpush1.bf16.msra.mxu0 0
        %1349 = vmatprep.subr.bf16.mxu0 0
        %1350 = vmatpush1.bf16.msra.mxu0 0
        %1351 = vmatprep.subr.bf16.mxu0 0
        %1352 = vmatpush1.bf16.msra.mxu0 0
        %1353 = vmatprep.subr.bf16.mxu0 0
        %1354 = vmatpush1.bf16.msra.mxu0 %v1023
        %1355 = vmatprep.subr.bf16.mxu0 0
        %1356 = vmatpush1.bf16.msra.mxu0 %v1022
        %1357 = vmatprep.subr.bf16.mxu0 0
        %1358 = vmatpush2.bf16.msra.mxu0 0
        %1359 = vmatprep.subr.bf16.mxu0 0
        %1360 = vmatpush2.bf16.msra.mxu0 0
        %1361 = vmatprep.subr.bf16.mxu0 0
        %1362 = vmatpush2.bf16.msra.mxu0 0
        %1363 = vmatprep.subr.bf16.mxu0 0
        %1364 = vmatpush2.bf16.msra.mxu0 0
        %1365 = vmatprep.subr.bf16.mxu0 0
        %1366 = vmatpush2.bf16.msra.mxu0 0
        %1367 = vmatprep.subr.bf16.mxu0 0
        %1368 = vmatpush2.bf16.msra.mxu0 0
        %1369 = vmatprep.subr.bf16.mxu0 0
        %1370 = vmatpush2.bf16.msra.mxu0 0
        %1371 = vmatprep.subr.bf16.mxu0 0
        %1372 = vmatpush2.bf16.msra.mxu0 0
        %1373 = vmatprep.mubr.bf16.mxu0 0
        %1374 = vmatmul.mubr.bf16.gmra.mxu0 %v1339
        %v1375 = vpop.f32.mrf.mxu0
        %v1376 = vadd.f32 0.0, %v1375
        %v1377 = vpop.f32.mrf.mxu0
        %v1378 = vpop.f32.mrf.mxu0
        %v1379 = vpop.f32.mrf.mxu0
        %1380 = vdwg.mxu0
        %v1381 = vadd.f32 %v1333, %v1376
        %v1382 = vmul.f32 %v1381, %v371
        %v1383 = vtanh.pop %v1382
        %v1384 = vmul.f32 %v1383, %v371
        %v1385 = vadd.f32 %v1384, %v372
        %v1386 = vmul.f32 %v1385, %v1318
        %1388 = vrot.lane.b32.xlu0 %v1385, 64
        %v1389 = vpop.permute.xlu0 %1388
        %v1391 = vmul.f32 %v1385, %v1389
        %1393 = vrot.lane.b32.xlu0 %v1391, 32
        %v1394 = vpop.permute.xlu0 %1393
        %v1396 = vadd.f32 %v1386, %v1394
        %v1397 = vtanh.pop %v1396
        %1399 = vrot.lane.b32.xlu0 %v1397, 64
        %v1400 = vpop.permute.xlu0 %1399
        %v1402 = vmul.f32 %v1385, %v1400
        %1404 = vrot.lane.b32.xlu0 %v1402, 32
        %v1405 = vpop.permute.xlu0 %1404
        %s1407 = scalar_lea.vmem %s231, 24
        %1408 = vst.msk [vmem:[%s1407] sm:$0xff] %vm268, %v1405
        %s1409 = scalar_lea.vmem [#allocation2], 8
        %v1410 = vld [vmem:[%s1409] sm:$0xf]
        %v1411 = vunpack.c.l.bf16 %v1410
        %v1412 = vpack.c.bf16 %v1402, %v1402
        %1414 = vrot.lane.b32.xlu0 %v1412, 32
        %v1415 = vpop.permute.xlu0 %1414
        %v1417 = vsel %vm268, %v1415, 0
        %1419 = vmatprep.subr.bf16.mxu0 0
        %1420 = vmatpush1.bf16.msra.mxu0 0
        %1421 = vmatprep.subr.bf16.mxu0 0
        %1422 = vmatpush1.bf16.msra.mxu0 0
        %1423 = vmatprep.subr.bf16.mxu0 0
        %1424 = vmatpush1.bf16.msra.mxu0 0
        %1425 = vmatprep.subr.bf16.mxu0 0
        %1426 = vmatpush1.bf16.msra.mxu0 0
        %1427 = vmatprep.subr.bf16.mxu0 0
        %1428 = vmatpush1.bf16.msra.mxu0 0
        %1429 = vmatprep.subr.bf16.mxu0 0
        %1430 = vmatpush1.bf16.msra.mxu0 0
        %1431 = vmatprep.subr.bf16.mxu0 0
        %1432 = vmatpush1.bf16.msra.mxu0 %v1023
        %1433 = vmatprep.subr.bf16.mxu0 0
        %1434 = vmatpush1.bf16.msra.mxu0 %v1022
        %1435 = vmatprep.subr.bf16.mxu0 0
        %1436 = vmatpush2.bf16.msra.mxu0 0
        %1437 = vmatprep.subr.bf16.mxu0 0
        %1438 = vmatpush2.bf16.msra.mxu0 0
        %1439 = vmatprep.subr.bf16.mxu0 0
        %1440 = vmatpush2.bf16.msra.mxu0 0
        %1441 = vmatprep.subr.bf16.mxu0 0
        %1442 = vmatpush2.bf16.msra.mxu0 0
        %1443 = vmatprep.subr.bf16.mxu0 0
        %1444 = vmatpush2.bf16.msra.mxu0 0
        %1445 = vmatprep.subr.bf16.mxu0 0
        %1446 = vmatpush2.bf16.msra.mxu0 0
        %1447 = vmatprep.subr.bf16.mxu0 0
        %1448 = vmatpush2.bf16.msra.mxu0 0
        %1449 = vmatprep.subr.bf16.mxu0 0
        %1450 = vmatpush2.bf16.msra.mxu0 0
        %1451 = vmatprep.mubr.bf16.mxu0 0
        %1452 = vmatmul.mubr.bf16.gmra.mxu0 %v1417
        %v1453 = vpop.f32.mrf.mxu0
        %v1454 = vadd.f32 0.0, %v1453
        %v1455 = vpop.f32.mrf.mxu0
        %v1456 = vpop.f32.mrf.mxu0
        %v1457 = vpop.f32.mrf.mxu0
        %1458 = vdwg.mxu0
        %v1459 = vadd.f32 %v1411, %v1454
        %v1460 = vmul.f32 %v1459, %v371
        %v1461 = vtanh.pop %v1460
        %v1462 = vmul.f32 %v1461, %v371
        %v1463 = vadd.f32 %v1462, %v372
        %v1464 = vmul.f32 %v1463, %v1396
        %1466 = vrot.lane.b32.xlu0 %v1463, 64
        %v1467 = vpop.permute.xlu0 %1466
        %v1469 = vmul.f32 %v1463, %v1467
        %1471 = vrot.lane.b32.xlu0 %v1469, 32
        %v1472 = vpop.permute.xlu0 %1471
        %v1474 = vadd.f32 %v1464, %v1472
        %v1475 = vtanh.pop %v1474
        %1477 = vrot.lane.b32.xlu0 %v1475, 64
        %v1478 = vpop.permute.xlu0 %1477
        %v1480 = vmul.f32 %v1463, %v1478
        %1482 = vrot.lane.b32.xlu0 %v1480, 32
        %v1483 = vpop.permute.xlu0 %1482
        %s1485 = scalar_lea.vmem %s231, 16
        %1486 = vst.msk [vmem:[%s1485] sm:$0xff] %vm268, %v1483
        %s1487 = scalar_lea.vmem [#allocation2], 4
        %v1488 = vld [vmem:[%s1487] sm:$0xf]
        %v1489 = vunpack.c.l.bf16 %v1488
        %v1490 = vpack.c.bf16 %v1480, %v1480
        %1492 = vrot.lane.b32.xlu0 %v1490, 32
        %v1493 = vpop.permute.xlu0 %1492
        %v1495 = vsel %vm268, %v1493, 0
        %1497 = vmatprep.subr.bf16.mxu0 0
        %1498 = vmatpush1.bf16.msra.mxu0 0
        %1499 = vmatprep.subr.bf16.mxu0 0
        %1500 = vmatpush1.bf16.msra.mxu0 0
        %1501 = vmatprep.subr.bf16.mxu0 0
        %1502 = vmatpush1.bf16.msra.mxu0 0
        %1503 = vmatprep.subr.bf16.mxu0 0
        %1504 = vmatpush1.bf16.msra.mxu0 0
        %1505 = vmatprep.subr.bf16.mxu0 0
        %1506 = vmatpush1.bf16.msra.mxu0 0
        %1507 = vmatprep.subr.bf16.mxu0 0
        %1508 = vmatpush1.bf16.msra.mxu0 0
        %1509 = vmatprep.subr.bf16.mxu0 0
        %1510 = vmatpush1.bf16.msra.mxu0 %v1023
        %1511 = vmatprep.subr.bf16.mxu0 0
        %1512 = vmatpush1.bf16.msra.mxu0 %v1022
        %1513 = vmatprep.subr.bf16.mxu0 0
        %1514 = vmatpush2.bf16.msra.mxu0 0
        %1515 = vmatprep.subr.bf16.mxu0 0
        %1516 = vmatpush2.bf16.msra.mxu0 0
        %1517 = vmatprep.subr.bf16.mxu0 0
        %1518 = vmatpush2.bf16.msra.mxu0 0
        %1519 = vmatprep.subr.bf16.mxu0 0
        %1520 = vmatpush2.bf16.msra.mxu0 0
        %1521 = vmatprep.subr.bf16.mxu0 0
        %1522 = vmatpush2.bf16.msra.mxu0 0
        %1523 = vmatprep.subr.bf16.mxu0 0
        %1524 = vmatpush2.bf16.msra.mxu0 0
        %1525 = vmatprep.subr.bf16.mxu0 0
        %1526 = vmatpush2.bf16.msra.mxu0 0
        %1527 = vmatprep.subr.bf16.mxu0 0
        %1528 = vmatpush2.bf16.msra.mxu0 0
        %1529 = vmatprep.mubr.bf16.mxu0 0
        %1530 = vmatmul.mubr.bf16.gmra.mxu0 %v1495
        %v1531 = vpop.f32.mrf.mxu0
        %v1532 = vadd.f32 0.0, %v1531
        %v1533 = vpop.f32.mrf.mxu0
        %v1534 = vpop.f32.mrf.mxu0
        %v1535 = vpop.f32.mrf.mxu0
        %1536 = vdwg.mxu0
        %v1537 = vadd.f32 %v1489, %v1532
        %v1538 = vmul.f32 %v1537, %v371
        %v1539 = vtanh.pop %v1538
        %v1540 = vmul.f32 %v1539, %v371
        %v1541 = vadd.f32 %v1540, %v372
        %v1542 = vmul.f32 %v1541, %v1474
        %1544 = vrot.lane.b32.xlu0 %v1541, 64
        %v1545 = vpop.permute.xlu0 %1544
        %v1547 = vmul.f32 %v1541, %v1545
        %1549 = vrot.lane.b32.xlu0 %v1547, 32
        %v1550 = vpop.permute.xlu0 %1549
        %v1552 = vadd.f32 %v1542, %v1550
        %v1553 = vtanh.pop %v1552
        %1555 = vrot.lane.b32.xlu0 %v1553, 64
        %v1556 = vpop.permute.xlu0 %1555
        %v1558 = vmul.f32 %v1541, %v1556
        %1560 = vrot.lane.b32.xlu0 %v1558, 32
        %v1561 = vpop.permute.xlu0 %1560
        %s1563 = scalar_lea.vmem %s231, 8
        %1564 = vst.msk [vmem:[%s1563] sm:$0xff] %vm268, %v1561
        %v1565 = vld [vmem:[#allocation2] sm:$0xf]
        %v1566 = vunpack.c.l.bf16 %v1565
        %v1567 = vpack.c.bf16 %v1558, %v1558
        %1569 = vrot.lane.b32.xlu0 %v1567, 32
        %v1570 = vpop.permute.xlu0 %1569
        %v1572 = vsel %vm268, %v1570, 0
        %1574 = vmatprep.subr.bf16.mxu0 0
        %1575 = vmatpush1.bf16.msra.mxu0 0
        %1576 = vmatprep.subr.bf16.mxu0 0
        %1577 = vmatpush1.bf16.msra.mxu0 0
        %1578 = vmatprep.subr.bf16.mxu0 0
        %1579 = vmatpush1.bf16.msra.mxu0 0
        %1580 = vmatprep.subr.bf16.mxu0 0
        %1581 = vmatpush1.bf16.msra.mxu0 0
        %1582 = vmatprep.subr.bf16.mxu0 0
        %1583 = vmatpush1.bf16.msra.mxu0 0
        %1584 = vmatprep.subr.bf16.mxu0 0
        %1585 = vmatpush1.bf16.msra.mxu0 0
        %1586 = vmatprep.subr.bf16.mxu0 0
        %1587 = vmatpush1.bf16.msra.mxu0 %v1023
        %1588 = vmatprep.subr.bf16.mxu0 0
        %1589 = vmatpush1.bf16.msra.mxu0 %v1022
        %1590 = vmatprep.subr.bf16.mxu0 0
        %1591 = vmatpush2.bf16.msra.mxu0 0
        %1592 = vmatprep.subr.bf16.mxu0 0
        %1593 = vmatpush2.bf16.msra.mxu0 0
        %1594 = vmatprep.subr.bf16.mxu0 0
        %1595 = vmatpush2.bf16.msra.mxu0 0
        %1596 = vmatprep.subr.bf16.mxu0 0
        %1597 = vmatpush2.bf16.msra.mxu0 0
        %1598 = vmatprep.subr.bf16.mxu0 0
        %1599 = vmatpush2.bf16.msra.mxu0 0
        %1600 = vmatprep.subr.bf16.mxu0 0
        %1601 = vmatpush2.bf16.msra.mxu0 0
        %1602 = vmatprep.subr.bf16.mxu0 0
        %1603 = vmatpush2.bf16.msra.mxu0 0
        %1604 = vmatprep.subr.bf16.mxu0 0
        %1605 = vmatpush2.bf16.msra.mxu0 0
        %1606 = vmatprep.mubr.bf16.mxu0 0
        %1607 = vmatmul.mubr.bf16.gmra.mxu0 %v1572
        %v1608 = vpop.f32.mrf.mxu0
        %v1609 = vadd.f32 0.0, %v1608
        %v1610 = vpop.f32.mrf.mxu0
        %v1611 = vpop.f32.mrf.mxu0
        %v1612 = vpop.f32.mrf.mxu0
        %1613 = vdwg.mxu0
        %v1614 = vadd.f32 %v1566, %v1609
        %v1615 = vmul.f32 %v1614, %v371
        %v1616 = vtanh.pop %v1615
        %v1617 = vmul.f32 %v1616, %v371
        %v1618 = vadd.f32 %v1617, %v372
        %v1619 = vmul.f32 %v1618, %v1552
        %1621 = vrot.lane.b32.xlu0 %v1618, 64
        %v1622 = vpop.permute.xlu0 %1621
        %v1624 = vmul.f32 %v1618, %v1622
        %1626 = vrot.lane.b32.xlu0 %v1624, 32
        %v1627 = vpop.permute.xlu0 %1626
        %v1629 = vadd.f32 %v1619, %v1627
        %v1630 = vtanh.pop %v1629
        %1632 = vrot.lane.b32.xlu0 %v1630, 64
        %v1633 = vpop.permute.xlu0 %1632
        %v1635 = vmul.f32 %v1618, %v1633
        %1637 = vrot.lane.b32.xlu0 %v1635, 32
        %v1638 = vpop.permute.xlu0 %1637
        %1640 = vst.msk [vmem:[%s231] sm:$0xff] %vm268, %v1638
      $region44: #{lstm_forward.2} parent=35 // pred_fallthru
        _
      %p1641 = scmp.lt.s32.totalorder %s15, 1
      %s1642 = scalar_select %p1641, %s15, 1
      %s1643 = smul.addr %s1642, 8
      %s1644 = smul.addr %s1643, 8
      %s1645 = scalar_lea.vmem %s4, %s1644
      // Predicated region
      $region45: #{lstm_forward.2} parent=35 // pred_check
        %p1646 = pneg %p132
      $region46: #{lstm_forward.2} parent=35 // pred_check_branch
        %1648 = sbr.rel (%p1646) target = $region48
      $region47: #{lstm_forward.2} parent=35 // pred_region
        _
      $region48: #{lstm_forward.2} parent=35 // pred_fallthru
        _
    $region36: #{lstm_forward.2} parent=5 // pred_fallthru
      _
    %p1649 = scmp.le.s32.totalorder 2, %s10
    // Predicated region
    $region49: #{lstm_forward.2} parent=5 // pred_check
      %p1650 = pneg %p1649
    $region50: #{lstm_forward.2} parent=5 // pred_check_branch
      %1652 = sbr.rel (%p1650) target = $region52
    $region51: #{lstm_forward.2} parent=5 // pred_region
      %s1653 = ssub.s32 %s10, 2
      // Predicated region
      $region53: #{lstm_forward.2} parent=51 // pred_check
        %p1654 = pneg %p138
      $region54: #{lstm_forward.2} parent=51 // pred_check_branch
        %1656 = sbr.rel (%p1654) target = $region56
      $region55: #{lstm_forward.2} parent=51 // pred_region
        %p1657 = scmp.lt.s32.totalorder %s16, 1
        %s1658 = scalar_select %p1657, %s16, 1
        %s1659 = smul.addr %s1658, 8
        %s1660 = smul.addr %s1659, 8
        %s1661 = scalar_lea.vmem %s4, %s1660
      $region56: #{lstm_forward.2} parent=51 // pred_fallthru
        _
    $region52: #{lstm_forward.2} parent=5 // pred_fallthru
      _
  $region6: #{lstm_forward.2} parent=0 // loop_footer
    %s14 = sadd.s32 1, %s10
  $region7: #{lstm_forward.2} parent=0 // loop_footer_branch
    %9 = sbr.rel target = $region3
  $region8: #{lstm_forward.2} parent=0 // loop_exit
    _

// kernel: lstm_forward.3
$region0: #{lstm_forward.3}
  #allocation0 [shape = 'u32[]', space=smem, size = 0x4, offset = 0x4, fixed_abs, tag = 'smem constant byte address 0x4 - core index']
  #allocation1 [shape = 'u32[144,128]{1,0:T(1,128)}', space=vmem, size = 0x12000, scoped, tag = 'internal scratch']
  #allocation2 [shape = 'bf16[8,8,128]{2,1,0:T(8,128)(2,1)}', space=vmem, size = 0x4000, scoped, tag = 'scratch operand']
  %s0 = inlined_call_operand.vmem [shape: f32[2,8,8,32], index: 0, kind: input, shape index: {}]
  %s1 = inlined_call_operand.vmem [shape: bf16[2,64,128], index: 1, kind: input, shape index: {}]
  %s2 = inlined_call_operand.vmem [shape: bf16[2,32,128], index: 2, kind: input, shape index: {}]
  %s3 = inlined_call_operand.vmem [shape: f32[2,1,128], index: 3, kind: input, shape index: {}]
  %s4 = inlined_call_operand.vmem [shape: f32[2,8,8,32], index: 4, kind: output, shape index: {}]
  %s5 = sld [smem:[#allocation0]]
  $region57: #{lstm_forward.3} parent=0
    _
  %s7 = ssub.s32 1, %s5
  %s8 = scalar_select 0, %s7, %s5
  loop: start=0, step=1, limit=4
  $region2: #{lstm_forward.3} parent=0 // loop_pre_header
    _
  $region3: #{lstm_forward.3} parent=0 // loop_header
    %s10 = sphi 0, %s14
    %p11 = scmp.ge.s32.totalorder %s10, 4
    %s18 = sphi 0, %s18
    %s20 = sphi 0, %s18
    %s21 = sphi 0, %s20
    %s35 = sphi 0, %s21
    %s41 = sphi 0, %s43
    %s44 = sphi 0, %s41
    %s45 = sphi 0, %s44
    %s61 = sphi 0, %s45
    %s67 = sphi 0, %s69
    %s70 = sphi 0, %s67
    %s71 = sphi 0, %s70
    %s87 = sphi 0, %s71
    %s93 = sphi 0, %s95
    %s96 = sphi 0, %s93
    %s97 = sphi 0, %s96
    %s113 = sphi 0, %s97
    %s119 = sphi 0, %s121
    %s122 = sphi 0, %s119
    %s123 = sphi 0, %s122
    %s139 = sphi 0, %s123
  $region4: #{lstm_forward.3} parent=0 // loop_header_branch
    %13 = sbr.rel (%p11) target = $region8
  $region5: #{lstm_forward.3} parent=0 // loop_body
    %s15 = ssub.s32 %s10, 1
    %s16 = ssub.s32 %s10, 2
    %s17 = sadd.s32 %s10, 1
    %s19 = sadd.s32 %s18, 1
    %p22 = scmp.eq.s32.totalorder %s10, 1
    %p23 = scmp.ne.s32.totalorder %s18, %s20
    %p24 = scmp.eq.s32.totalorder %s10, 0
    %p25 = por %p23, %p24
    %p26 = scmp.ne.s32.totalorder %s18, %s20
    %p27 = scmp.eq.s32.totalorder %s15, 1
    %p28 = por %p26, %p27
    %p29 = scmp.ne.s32.totalorder %s20, %s21
    %p30 = scmp.eq.s32.totalorder %s15, 0
    %p31 = por %p29, %p30
    %p32 = scmp.ne.s32.totalorder %s20, %s21
    %p33 = scmp.eq.s32.totalorder %s16, 1
    %p34 = por %p32, %p33
    %p36 = scmp.ne.s32.totalorder %s21, %s35
    %p37 = scmp.eq.s32.totalorder %s16, 0
    %p38 = por %p36, %p37
    %s39 = ssub.s32 %s10, %s17
    %p40 = scmp.eq.s32.totalorder %s39, 0
    %s42 = sadd.s32 %s41, 1
    %s43 = scalar_select %p40, %s41, %s42
    %p46 = pneg %p40
    %p47 = scmp.eq.s32.totalorder %s10, 1
    %p48 = por %p46, %p47
    %p49 = scmp.ne.s32.totalorder %s41, %s44
    %p50 = scmp.eq.s32.totalorder %s10, 0
    %p51 = por %p49, %p50
    %p52 = scmp.ne.s32.totalorder %s41, %s44
    %p53 = scmp.eq.s32.totalorder %s15, 1
    %p54 = por %p52, %p53
    %p55 = scmp.ne.s32.totalorder %s44, %s45
    %p56 = scmp.eq.s32.totalorder %s15, 0
    %p57 = por %p55, %p56
    %p58 = scmp.ne.s32.totalorder %s44, %s45
    %p59 = scmp.eq.s32.totalorder %s16, 1
    %p60 = por %p58, %p59
    %p62 = scmp.ne.s32.totalorder %s45, %s61
    %p63 = scmp.eq.s32.totalorder %s16, 0
    %p64 = por %p62, %p63
    %s65 = ssub.s32 %s10, %s17
    %p66 = scmp.eq.s32.totalorder %s65, 0
    %s68 = sadd.s32 %s67, 1
    %s69 = scalar_select %p66, %s67, %s68
    %p72 = pneg %p66
    %p73 = scmp.eq.s32.totalorder %s10, 1
    %p74 = por %p72, %p73
    %p75 = scmp.ne.s32.totalorder %s67, %s70
    %p76 = scmp.eq.s32.totalorder %s10, 0
    %p77 = por %p75, %p76
    %p78 = scmp.ne.s32.totalorder %s67, %s70
    %p79 = scmp.eq.s32.totalorder %s15, 1
    %p80 = por %p78, %p79
    %p81 = scmp.ne.s32.totalorder %s70, %s71
    %p82 = scmp.eq.s32.totalorder %s15, 0
    %p83 = por %p81, %p82
    %p84 = scmp.ne.s32.totalorder %s70, %s71
    %p85 = scmp.eq.s32.totalorder %s16, 1
    %p86 = por %p84, %p85
    %p88 = scmp.ne.s32.totalorder %s71, %s87
    %p89 = scmp.eq.s32.totalorder %s16, 0
    %p90 = por %p88, %p89
    %s91 = ssub.s32 %s10, %s17
    %p92 = scmp.eq.s32.totalorder %s91, 0
    %s94 = sadd.s32 %s93, 1
    %s95 = scalar_select %p92, %s93, %s94
    %p98 = pneg %p92
    %p99 = scmp.eq.s32.totalorder %s10, 1
    %p100 = por %p98, %p99
    %p101 = scmp.ne.s32.totalorder %s93, %s96
    %p102 = scmp.eq.s32.totalorder %s10, 0
    %p103 = por %p101, %p102
    %p104 = scmp.ne.s32.totalorder %s93, %s96
    %p105 = scmp.eq.s32.totalorder %s15, 1
    %p106 = por %p104, %p105
    %p107 = scmp.ne.s32.totalorder %s96, %s97
    %p108 = scmp.eq.s32.totalorder %s15, 0
    %p109 = por %p107, %p108
    %p110 = scmp.ne.s32.totalorder %s96, %s97
    %p111 = scmp.eq.s32.totalorder %s16, 1
    %p112 = por %p110, %p111
    %p114 = scmp.ne.s32.totalorder %s97, %s113
    %p115 = scmp.eq.s32.totalorder %s16, 0
    %p116 = por %p114, %p115
    %s117 = ssub.s32 %s10, %s17
    %p118 = scmp.eq.s32.totalorder %s117, 0
    %s120 = sadd.s32 %s119, 1
    %s121 = scalar_select %p118, %s119, %s120
    %p124 = pneg %p118
    %p125 = scmp.eq.s32.totalorder %s10, 1
    %p126 = por %p124, %p125
    %p127 = scmp.ne.s32.totalorder %s119, %s122
    %p128 = scmp.eq.s32.totalorder %s10, 0
    %p129 = por %p127, %p128
    %p130 = scmp.ne.s32.totalorder %s119, %s122
    %p131 = scmp.eq.s32.totalorder %s15, 1
    %p132 = por %p130, %p131
    %p133 = scmp.ne.s32.totalorder %s122, %s123
    %p134 = scmp.eq.s32.totalorder %s15, 0
    %p135 = por %p133, %p134
    %p136 = scmp.ne.s32.totalorder %s122, %s123
    %p137 = scmp.eq.s32.totalorder %s16, 1
    %p138 = por %p136, %p137
    %p140 = scmp.ne.s32.totalorder %s123, %s139
    %p141 = scmp.eq.s32.totalorder %s16, 0
    %p142 = por %p140, %p141
    %p143 = scmp.le.s32.totalorder 1, %s10
    %p144 = scmp.lt.s32.totalorder %s10, 3
    %p145 = pnand %p143, %p144
    %p146 = pneg %p145
    // Predicated region
    $region9: #{lstm_forward.3} parent=5 // pred_check
      _
    $region10: #{lstm_forward.3} parent=5 // pred_check_branch
      %148 = sbr.rel (%p145) target = $region12
    $region11: #{lstm_forward.3} parent=5 // pred_region
      %s149 = ssub.s32 %s10, 1
      // Predicated region
      $region13: #{lstm_forward.3} parent=11 // pred_check
        %p150 = pneg %p31
      $region14: #{lstm_forward.3} parent=11 // pred_check_branch
        %152 = sbr.rel (%p150) target = $region16
      $region15: #{lstm_forward.3} parent=11 // pred_region
        _
      $region16: #{lstm_forward.3} parent=11 // pred_fallthru
        _
    $region12: #{lstm_forward.3} parent=5 // pred_fallthru
      _
    %p153 = scmp.lt.s32.totalorder %s10, 2
    // Predicated region
    $region17: #{lstm_forward.3} parent=5 // pred_check
      %p154 = pneg %p153
    $region18: #{lstm_forward.3} parent=5 // pred_check_branch
      %156 = sbr.rel (%p154) target = $region20
    $region19: #{lstm_forward.3} parent=5 // pred_region
      // Predicated region
      $region21: #{lstm_forward.3} parent=19 // pred_check
        %p157 = pneg %p51
      $region22: #{lstm_forward.3} parent=19 // pred_check_branch
        %159 = sbr.rel (%p157) target = $region24
      $region23: #{lstm_forward.3} parent=19 // pred_region
        %p160 = scmp.lt.s32.totalorder %s10, 1
        %s161 = scalar_select %p160, %s10, 1
        %s162 = smul.addr %s161, 8
        %s163 = smul.addr %s162, 4
        %s164 = scalar_lea.vmem %s1, %s163
      $region24: #{lstm_forward.3} parent=19 // pred_fallthru
        _
      // Predicated region
      $region25: #{lstm_forward.3} parent=19 // pred_check
        %p165 = pneg %p77
      $region26: #{lstm_forward.3} parent=19 // pred_check_branch
        %167 = sbr.rel (%p165) target = $region28
      $region27: #{lstm_forward.3} parent=19 // pred_region
        %p168 = scmp.lt.s32.totalorder %s10, 1
        %s169 = scalar_select %p168, %s10, 1
        %s170 = smul.addr %s169, 4
        %s171 = smul.addr %s170, 4
        %s172 = scalar_lea.vmem %s2, %s171
      $region28: #{lstm_forward.3} parent=19 // pred_fallthru
        _
      // Predicated region
      $region29: #{lstm_forward.3} parent=19 // pred_check
        %p173 = pneg %p103
      $region30: #{lstm_forward.3} parent=19 // pred_check_branch
        %175 = sbr.rel (%p173) target = $region32
      $region31: #{lstm_forward.3} parent=19 // pred_region
        %p176 = scmp.lt.s32.totalorder %s10, 1
        %s177 = scalar_select %p176, %s10, 1
        %s178 = scalar_lea.vmem %s3, %s177
      $region32: #{lstm_forward.3} parent=19 // pred_fallthru
        _
    $region20: #{lstm_forward.3} parent=5 // pred_fallthru
      _
    %p179 = scmp.le.s32.totalorder 1, %s10
    %p180 = scmp.lt.s32.totalorder %s10, 3
    %p181 = pnand %p179, %p180
    %p182 = pneg %p181
    // Predicated region
    $region33: #{lstm_forward.3} parent=5 // pred_check
      _
    $region34: #{lstm_forward.3} parent=5 // pred_check_branch
      %184 = sbr.rel (%p181) target = $region36
    $region35: #{lstm_forward.3} parent=5 // pred_region
      %s185 = ssub.s32 %s10, 1
      %p186 = pneg %p31
      %p187 = pneg %p28
      %p188 = scmp.lt.s32.totalorder %s15, 1
      %s189 = scalar_select %p188, %s15, 1
      %s190 = smul.addr %s189, 8
      %s191 = smul.addr %s190, 4
      %s192 = scalar_lea.vmem %s1, %s191
      %p193 = pneg %p57
      %p194 = pneg %p54
      %p195 = scmp.lt.s32.totalorder %s15, 1
      %s196 = scalar_select %p195, %s15, 1
      %s197 = smul.addr %s196, 4
      %s198 = smul.addr %s197, 4
      %s199 = scalar_lea.vmem %s2, %s198
      %p200 = pneg %p83
      %p201 = pneg %p80
      %p202 = scmp.lt.s32.totalorder %s15, 1
      %s203 = scalar_select %p202, %s15, 1
      %s204 = scalar_lea.vmem %s3, %s203
      %p205 = pneg %p109
      %p206 = pneg %p106
      %p207 = pneg %p135
      %p208 = pneg %p132
      %p209 = scmp.lt.s32.totalorder %s15, 1
      %s210 = scalar_select %p209, %s15, 1
      %s211 = smul.addr %s210, 8
      %s212 = smul.addr %s211, 8
      %s213 = scalar_lea.vmem %s4, %s212
      %p214 = scmp.lt.s32.totalorder %s15, 1
      %s215 = scalar_select %p214, %s15, 1
      %s216 = smul.addr %s215, 8
      %s217 = smul.addr %s216, 4
      %s218 = scalar_lea.vmem %s1, %s217
      %p219 = scmp.lt.s32.totalorder %s15, 1
      %s220 = scalar_select %p219, %s15, 1
      %s221 = smul.addr %s220, 4
      %s222 = smul.addr %s221, 4
      %s223 = scalar_lea.vmem %s2, %s222
      %p224 = scmp.lt.s32.totalorder %s15, 1
      %s225 = scalar_select %p224, %s15, 1
      %s226 = scalar_lea.vmem %s3, %s225
      %p227 = scmp.lt.s32.totalorder %s15, 1
      %s228 = scalar_select %p227, %s15, 1
      %s229 = smul.addr %s228, 8
      %s230 = smul.addr %s229, 8
      %s231 = scalar_lea.vmem %s4, %s230
      %v233 = vld [vmem:[%s0] sm:$0xff]
      %v234 = vld [vmem:[%s0 + $0x8] sm:$0xff]
      %v235 = vld [vmem:[%s0 + $0x10] sm:$0xff]
      %v236 = vld [vmem:[%s0 + $0x18] sm:$0xff]
      %v237 = vld [vmem:[%s0 + $0x20] sm:$0xff]
      %v238 = vld [vmem:[%s0 + $0x28] sm:$0xff]
      %v239 = vld [vmem:[%s0 + $0x30] sm:$0xff]
      %v240 = vld [vmem:[%s0 + $0x38] sm:$0xff]
      %v241 = vpack.c.bf16 %v234, %v233
      %v242 = vpack.c.bf16 %v236, %v235
      %v243 = vpack.c.bf16 %v238, %v237
      %v244 = vpack.c.bf16 %v240, %v239
      %v245 = vld [vmem:[%s218] sm:$0xf]
      %v246 = vld [vmem:[%s218 + $0x4] sm:$0xf]
      %v247 = vld [vmem:[%s218 + $0x8] sm:$0xf]
      %v248 = vld [vmem:[%s218 + $0xc] sm:$0xf]
      %s249 = scalar_lea.vmem %s0, 64
      %v250 = vld [vmem:[%s249] sm:$0xff]
      %v251 = vld [vmem:[%s249 + $0x8] sm:$0xff]
      %v252 = vld [vmem:[%s249 + $0x10] sm:$0xff]
      %v253 = vld [vmem:[%s249 + $0x18] sm:$0xff]
      %v254 = vld [vmem:[%s249 + $0x20] sm:$0xff]
      %v255 = vld [vmem:[%s249 + $0x28] sm:$0xff]
      %v256 = vld [vmem:[%s249 + $0x30] sm:$0xff]
      %v257 = vld [vmem:[%s249 + $0x38] sm:$0xff]
      %v258 = vpack.c.bf16 %v251, %v250
      %v259 = vpack.c.bf16 %v253, %v252
      %v260 = vpack.c.bf16 %v255, %v254
      %v261 = vpack.c.bf16 %v257, %v256
      %v262 = vld [vmem:[%s218 + $0x10] sm:$0xf]
      %v263 = vld [vmem:[%s218 + $0x14] sm:$0xf]
      %v264 = vld [vmem:[%s218 + $0x18] sm:$0xf]
      %v265 = vld [vmem:[%s218 + $0x1c] sm:$0xf]
      %v270 = vunpack.c.l.b16 %v262
      %v271 = vunpack.c.l.b16 %v263
      %v272 = vunpack.c.l.b16 %v264
      %v273 = vunpack.c.l.b16 %v265
      %v274 = vpack.c.b16 %v271, %v270
      %v275 = vpack.c.b16 %v273, %v272
      %vm278 = vcmask 261120
      %v280 = vsel %vm278, %v258, 0
      %v283 = vsel %vm278, %v259, 0
      %v286 = vsel %vm278, %v260, 0
      %v289 = vsel %vm278, %v261, 0
      %291 = vmatprep.subr.bf16.mxu0 0
      %292 = vmatpush1.bf16.msra.mxu0 0
      %293 = vmatprep.subr.bf16.mxu0 0
      %294 = vmatpush1.bf16.msra.mxu0 0
      %295 = vmatprep.subr.bf16.mxu0 0
      %296 = vmatpush1.bf16.msra.mxu0 0
      %297 = vmatprep.subr.bf16.mxu0 0
      %298 = vmatpush1.bf16.msra.mxu0 0
      %299 = vmatprep.subr.bf16.mxu0 0
      %300 = vmatpush1.bf16.msra.mxu0 0
      %301 = vmatprep.subr.bf16.mxu0 0
      %302 = vmatpush1.bf16.msra.mxu0 0
      %303 = vmatprep.subr.bf16.mxu0 0
      %304 = vmatpush1.bf16.msra.mxu0 %v275
      %305 = vmatprep.subr.bf16.mxu0 0
      %306 = vmatpush1.bf16.msra.mxu0 %v274
      %307 = vmatprep.subr.bf16.mxu0 0
      %308 = vmatpush2.bf16.msra.mxu0 0
      %309 = vmatprep.subr.bf16.mxu0 0
      %310 = vmatpush2.bf16.msra.mxu0 0
      %311 = vmatprep.subr.bf16.mxu0 0
      %312 = vmatpush2.bf16.msra.mxu0 0
      %313 = vmatprep.subr.bf16.mxu0 0
      %314 = vmatpush2.bf16.msra.mxu0 0
      %315 = vmatprep.subr.bf16.mxu0 0
      %316 = vmatpush2.bf16.msra.mxu0 0
      %317 = vmatprep.subr.bf16.mxu0 0
      %318 = vmatpush2.bf16.msra.mxu0 0
      %319 = vmatprep.subr.bf16.mxu0 0
      %320 = vmatpush2.bf16.msra.mxu0 0
      %321 = vmatprep.subr.bf16.mxu0 0
      %322 = vmatpush2.bf16.msra.mxu0 0
      %323 = vmatprep.mubr.bf16.mxu0 0
      %324 = vmatmul.mubr.bf16.gmra.mxu0 %v280
      %v325 = vpop.f32.mrf.mxu0
      %v326 = vadd.f32 0.0, %v325
      %v327 = vpop.f32.mrf.mxu0
      %v328 = vpop.f32.mrf.mxu0
      %v329 = vadd.f32 0.0, %v328
      %v330 = vpop.f32.mrf.mxu0
      %331 = vmatprep.mubr.bf16.mxu0 0
      %332 = vmatmul.mubr.bf16.gmra.mxu0 %v283
      %v333 = vpop.f32.mrf.mxu0
      %v334 = vadd.f32 0.0, %v333
      %v335 = vpop.f32.mrf.mxu0
      %v336 = vpop.f32.mrf.mxu0
      %v337 = vadd.f32 0.0, %v336
      %v338 = vpop.f32.mrf.mxu0
      %339 = vmatprep.mubr.bf16.mxu0 0
      %340 = vmatmul.mubr.bf16.gmra.mxu0 %v286
      %v341 = vpop.f32.mrf.mxu0
      %v342 = vadd.f32 0.0, %v341
      %v343 = vpop.f32.mrf.mxu0
      %v344 = vpop.f32.mrf.mxu0
      %v345 = vadd.f32 0.0, %v344
      %v346 = vpop.f32.mrf.mxu0
      %347 = vmatprep.mubr.bf16.mxu0 0
      %348 = vmatmul.mubr.bf16.gmra.mxu0 %v289
      %v349 = vpop.f32.mrf.mxu0
      %v350 = vadd.f32 0.0, %v349
      %v351 = vpop.f32.mrf.mxu0
      %v352 = vpop.f32.mrf.mxu0
      %v353 = vadd.f32 0.0, %v352
      %v354 = vpop.f32.mrf.mxu0
      %355 = vdwg.mxu0
      %v360 = vunpack.c.l.b16 %v245
      %v361 = vunpack.c.l.b16 %v246
      %v362 = vunpack.c.l.b16 %v247
      %v363 = vunpack.c.l.b16 %v248
      %v364 = vpack.c.b16 %v361, %v360
      %v365 = vpack.c.b16 %v363, %v362
      %v369 = vsel %vm278, %v241, 0
      %v372 = vsel %vm278, %v242, 0
      %v375 = vsel %vm278, %v243, 0
      %v378 = vsel %vm278, %v244, 0
      %380 = vmatprep.subr.bf16.mxu0 0
      %381 = vmatpush1.bf16.msra.mxu0 0
      %382 = vmatprep.subr.bf16.mxu0 0
      %383 = vmatpush1.bf16.msra.mxu0 0
      %384 = vmatprep.subr.bf16.mxu0 0
      %385 = vmatpush1.bf16.msra.mxu0 0
      %386 = vmatprep.subr.bf16.mxu0 0
      %387 = vmatpush1.bf16.msra.mxu0 0
      %388 = vmatprep.subr.bf16.mxu0 0
      %389 = vmatpush1.bf16.msra.mxu0 0
      %390 = vmatprep.subr.bf16.mxu0 0
      %391 = vmatpush1.bf16.msra.mxu0 0
      %392 = vmatprep.subr.bf16.mxu0 0
      %393 = vmatpush1.bf16.msra.mxu0 %v365
      %394 = vmatprep.subr.bf16.mxu0 0
      %395 = vmatpush1.bf16.msra.mxu0 %v364
      %396 = vmatprep.subr.bf16.mxu0 0
      %397 = vmatpush2.bf16.msra.mxu0 0
      %398 = vmatprep.subr.bf16.mxu0 0
      %399 = vmatpush2.bf16.msra.mxu0 0
      %400 = vmatprep.subr.bf16.mxu0 0
      %401 = vmatpush2.bf16.msra.mxu0 0
      %402 = vmatprep.subr.bf16.mxu0 0
      %403 = vmatpush2.bf16.msra.mxu0 0
      %404 = vmatprep.subr.bf16.mxu0 0
      %405 = vmatpush2.bf16.msra.mxu0 0
      %406 = vmatprep.subr.bf16.mxu0 0
      %407 = vmatpush2.bf16.msra.mxu0 0
      %408 = vmatprep.subr.bf16.mxu0 0
      %409 = vmatpush2.bf16.msra.mxu0 0
      %410 = vmatprep.subr.bf16.mxu0 0
      %411 = vmatpush2.bf16.msra.mxu0 0
      %412 = vmatprep.mubr.bf16.mxu0 0
      %413 = vmatmul.mubr.bf16.gmra.mxu0 %v369
      %v414 = vpop.f32.mrf.mxu0
      %v415 = vadd.f32 %v326, %v414
      %v416 = vpop.f32.mrf.mxu0
      %v417 = vpop.f32.mrf.mxu0
      %v418 = vadd.f32 %v329, %v417
      %v419 = vpop.f32.mrf.mxu0
      %420 = vmatprep.mubr.bf16.mxu0 0
      %421 = vmatmul.mubr.bf16.gmra.mxu0 %v372
      %v422 = vpop.f32.mrf.mxu0
      %v423 = vadd.f32 %v334, %v422
      %v424 = vpop.f32.mrf.mxu0
      %v425 = vpop.f32.mrf.mxu0
      %v426 = vadd.f32 %v337, %v425
      %v427 = vpop.f32.mrf.mxu0
      %428 = vmatprep.mubr.bf16.mxu0 0
      %429 = vmatmul.mubr.bf16.gmra.mxu0 %v375
      %v430 = vpop.f32.mrf.mxu0
      %v431 = vadd.f32 %v342, %v430
      %v432 = vpop.f32.mrf.mxu0
      %v433 = vpop.f32.mrf.mxu0
      %v434 = vadd.f32 %v345, %v433
      %v435 = vpop.f32.mrf.mxu0
      %436 = vmatprep.mubr.bf16.mxu0 0
      %437 = vmatmul.mubr.bf16.gmra.mxu0 %v378
      %v438 = vpop.f32.mrf.mxu0
      %v439 = vadd.f32 %v350, %v438
      %v440 = vpop.f32.mrf.mxu0
      %v441 = vpop.f32.mrf.mxu0
      %v442 = vadd.f32 %v353, %v441
      %v443 = vpop.f32.mrf.mxu0
      %444 = vdwg.mxu0
      %v445 = vld [vmem:[%s226] sm:$0x1]
      %v447 = vlaneseq
      %v448 = vshrl.u32 %v447, 7
      %v449 = vsub.s32 0, %v448
      %v450 = vrot.slane %v445, %v449
      %v452 = vadd.f32 %v415, %v450
      %v453 = vadd.f32 %v418, %v450
      %v454 = vadd.f32 %v423, %v450
      %v455 = vadd.f32 %v426, %v450
      %v456 = vadd.f32 %v431, %v450
      %v457 = vadd.f32 %v434, %v450
      %v458 = vadd.f32 %v439, %v450
      %v459 = vadd.f32 %v442, %v450
      %v460 = vpack.c.bf16 %v452, %v452
      %v461 = vpack.c.bf16 %v453, %v453
      %v462 = vpack.c.bf16 %v454, %v454
      %v463 = vpack.c.bf16 %v455, %v455
      %v464 = vpack.c.bf16 %v456, %v456
      %v465 = vpack.c.bf16 %v457, %v457
      %v466 = vpack.c.bf16 %v458, %v458
      %v467 = vpack.c.bf16 %v459, %v459
      %468 = vst [vmem:[#allocation2] sm:$0xf] %v460
      %469 = vst [vmem:[#allocation2 + $0x4] sm:$0xf] %v461
      %470 = vst [vmem:[#allocation2 + $0x8] sm:$0xf] %v462
      %471 = vst [vmem:[#allocation2 + $0xc] sm:$0xf] %v463
      %472 = vst [vmem:[#allocation2 + $0x10] sm:$0xf] %v464
      %473 = vst [vmem:[#allocation2 + $0x14] sm:$0xf] %v465
      %474 = vst [vmem:[#allocation2 + $0x18] sm:$0xf] %v466
      %475 = vst [vmem:[#allocation2 + $0x1c] sm:$0xf] %v467
      %v476 = vld [vmem:[%s223] sm:$0xf]
      %v477 = vld [vmem:[%s223 + $0x4] sm:$0xf]
      %v478 = vld [vmem:[%s223 + $0x8] sm:$0xf]
      %v479 = vld [vmem:[%s223 + $0xc] sm:$0xf]
      %v480 = vlaneseq
      %v481 = vand.u32 %v480, 127
      %vm482 = vcmp.ge.s32.totalorder %v481, 64
      %vm483 = vcmp.lt.s32.totalorder %v481, 96
      %vm484 = vmand %vm482, %vm483
      %v485 = vsel %vm484, 1.0, 0.5
      %v486 = vsel %vm484, 0.0, 0.5
      %p487 = scmp.eq.s32.totalorder %s15, 0
      // Predicated region
      $region37: #{lstm_forward.3} parent=35 // pred_check
        %p488 = pneg %p487
      $region38: #{lstm_forward.3} parent=35 // pred_check_branch
        %490 = sbr.rel (%p488) target = $region40
      $region39: #{lstm_forward.3} parent=35 // pred_region
        %v491 = vld [vmem:[#allocation2] sm:$0xf]
        %v492 = vunpack.c.l.bf16 %v491
        %v497 = vunpack.c.l.b16 %v476
        %v498 = vunpack.c.l.b16 %v477
        %v499 = vunpack.c.l.b16 %v478
        %v500 = vunpack.c.l.b16 %v479
        %v501 = vpack.c.b16 %v498, %v497
        %v502 = vpack.c.b16 %v500, %v499
        %v506 = vsel %vm278, 0, 0
        %508 = vmatprep.subr.bf16.mxu0 0
        %509 = vmatpush1.bf16.msra.mxu0 0
        %510 = vmatprep.subr.bf16.mxu0 0
        %511 = vmatpush1.bf16.msra.mxu0 0
        %512 = vmatprep.subr.bf16.mxu0 0
        %513 = vmatpush1.bf16.msra.mxu0 0
        %514 = vmatprep.subr.bf16.mxu0 0
        %515 = vmatpush1.bf16.msra.mxu0 0
        %516 = vmatprep.subr.bf16.mxu0 0
        %517 = vmatpush1.bf16.msra.mxu0 0
        %518 = vmatprep.subr.bf16.mxu0 0
        %519 = vmatpush1.bf16.msra.mxu0 0
        %520 = vmatprep.subr.bf16.mxu0 0
        %521 = vmatpush1.bf16.msra.mxu0 %v502
        %522 = vmatprep.subr.bf16.mxu0 0
        %523 = vmatpush1.bf16.msra.mxu0 %v501
        %524 = vmatprep.subr.bf16.mxu0 0
        %525 = vmatpush2.bf16.msra.mxu0 0
        %526 = vmatprep.subr.bf16.mxu0 0
        %527 = vmatpush2.bf16.msra.mxu0 0
        %528 = vmatprep.subr.bf16.mxu0 0
        %529 = vmatpush2.bf16.msra.mxu0 0
        %530 = vmatprep.subr.bf16.mxu0 0
        %531 = vmatpush2.bf16.msra.mxu0 0
        %532 = vmatprep.subr.bf16.mxu0 0
        %533 = vmatpush2.bf16.msra.mxu0 0
        %534 = vmatprep.subr.bf16.mxu0 0
        %535 = vmatpush2.bf16.msra.mxu0 0
        %536 = vmatprep.subr.bf16.mxu0 0
        %537 = vmatpush2.bf16.msra.mxu0 0
        %538 = vmatprep.subr.bf16.mxu0 0
        %539 = vmatpush2.bf16.msra.mxu0 0
        %540 = vmatprep.mubr.bf16.mxu0 0
        %541 = vmatmul.mubr.bf16.gmra.mxu0 %v506
        %v542 = vpop.f32.mrf.mxu0
        %v543 = vadd.f32 0.0, %v542
        %v544 = vpop.f32.mrf.mxu0
        %v545 = vpop.f32.mrf.mxu0
        %v546 = vpop.f32.mrf.mxu0
        %547 = vdwg.mxu0
        %v548 = vadd.f32 %v492, %v543
        %v549 = vmul.f32 %v548, %v485
        %v550 = vtanh.pop %v549
        %v551 = vmul.f32 %v550, %v485
        %v552 = vadd.f32 %v551, %v486
        %v553 = vmul.f32 %v552, 0.0
        %555 = vrot.lane.b32.xlu0 %v552, 64
        %v556 = vpop.permute.xlu0 %555
        %v558 = vmul.f32 %v552, %v556
        %560 = vrot.lane.b32.xlu0 %v558, 32
        %v561 = vpop.permute.xlu0 %560
        %v563 = vadd.f32 %v553, %v561
        %v564 = vtanh.pop %v563
        %566 = vrot.lane.b32.xlu0 %v564, 64
        %v567 = vpop.permute.xlu0 %566
        %v569 = vmul.f32 %v552, %v567
        %571 = vrot.lane.b32.xlu0 %v569, 32
        %v572 = vpop.permute.xlu0 %571
        %574 = vst.msk [vmem:[%s231] sm:$0xff] %vm278, %v572
        %s575 = scalar_lea.vmem [#allocation2], 4
        %v576 = vld [vmem:[%s575] sm:$0xf]
        %v577 = vunpack.c.l.bf16 %v576
        %v578 = vpack.c.bf16 %v569, %v569
        %580 = vrot.lane.b32.xlu0 %v578, 32
        %v581 = vpop.permute.xlu0 %580
        %v583 = vsel %vm278, %v581, 0
        %585 = vmatprep.subr.bf16.mxu0 0
        %586 = vmatpush1.bf16.msra.mxu0 0
        %587 = vmatprep.subr.bf16.mxu0 0
        %588 = vmatpush1.bf16.msra.mxu0 0
        %589 = vmatprep.subr.bf16.mxu0 0
        %590 = vmatpush1.bf16.msra.mxu0 0
        %591 = vmatprep.subr.bf16.mxu0 0
        %592 = vmatpush1.bf16.msra.mxu0 0
        %593 = vmatprep.subr.bf16.mxu0 0
        %594 = vmatpush1.bf16.msra.mxu0 0
        %595 = vmatprep.subr.bf16.mxu0 0
        %596 = vmatpush1.bf16.msra.mxu0 0
        %597 = vmatprep.subr.bf16.mxu0 0
        %598 = vmatpush1.bf16.msra.mxu0 %v502
        %599 = vmatprep.subr.bf16.mxu0 0
        %600 = vmatpush1.bf16.msra.mxu0 %v501
        %601 = vmatprep.subr.bf16.mxu0 0
        %602 = vmatpush2.bf16.msra.mxu0 0
        %603 = vmatprep.subr.bf16.mxu0 0
        %604 = vmatpush2.bf16.msra.mxu0 0
        %605 = vmatprep.subr.bf16.mxu0 0
        %606 = vmatpush2.bf16.msra.mxu0 0
        %607 = vmatprep.subr.bf16.mxu0 0
        %608 = vmatpush2.bf16.msra.mxu0 0
        %609 = vmatprep.subr.bf16.mxu0 0
        %610 = vmatpush2.bf16.msra.mxu0 0
        %611 = vmatprep.subr.bf16.mxu0 0
        %612 = vmatpush2.bf16.msra.mxu0 0
        %613 = vmatprep.subr.bf16.mxu0 0
        %614 = vmatpush2.bf16.msra.mxu0 0
        %615 = vmatprep.subr.bf16.mxu0 0
        %616 = vmatpush2.bf16.msra.mxu0 0
        %617 = vmatprep.mubr.bf16.mxu0 0
        %618 = vmatmul.mubr.bf16.gmra.mxu0 %v583
        %v619 = vpop.f32.mrf.mxu0
        %v620 = vadd.f32 0.0, %v619
        %v621 = vpop.f32.mrf.mxu0
        %v622 = vpop.f32.mrf.mxu0
        %v623 = vpop.f32.mrf.mxu0
        %624 = vdwg.mxu0
        %v625 = vadd.f32 %v577, %v620
        %v626 = vmul.f32 %v625, %v485
        %v627 = vtanh.pop %v626
        %v628 = vmul.f32 %v627, %v485
        %v629 = vadd.f32 %v628, %v486
        %v630 = vmul.f32 %v629, %v563
        %632 = vrot.lane.b32.xlu0 %v629, 64
        %v633 = vpop.permute.xlu0 %632
        %v635 = vmul.f32 %v629, %v633
        %637 = vrot.lane.b32.xlu0 %v635, 32
        %v638 = vpop.permute.xlu0 %637
        %v640 = vadd.f32 %v630, %v638
        %v641 = vtanh.pop %v640
        %643 = vrot.lane.b32.xlu0 %v641, 64
        %v644 = vpop.permute.xlu0 %643
        %v646 = vmul.f32 %v629, %v644
        %648 = vrot.lane.b32.xlu0 %v646, 32
        %v649 = vpop.permute.xlu0 %648
        %s651 = scalar_lea.vmem %s231, 8
        %652 = vst.msk [vmem:[%s651] sm:$0xff] %vm278, %v649
        %s653 = scalar_lea.vmem [#allocation2], 8
        %v654 = vld [vmem:[%s653] sm:$0xf]
        %v655 = vunpack.c.l.bf16 %v654
        %v656 = vpack.c.bf16 %v646, %v646
        %658 = vrot.lane.b32.xlu0 %v656, 32
        %v659 = vpop.permute.xlu0 %658
        %v661 = vsel %vm278, %v659, 0
        %663 = vmatprep.subr.bf16.mxu0 0
        %664 = vmatpush1.bf16.msra.mxu0 0
        %665 = vmatprep.subr.bf16.mxu0 0
        %666 = vmatpush1.bf16.msra.mxu0 0
        %667 = vmatprep.subr.bf16.mxu0 0
        %668 = vmatpush1.bf16.msra.mxu0 0
        %669 = vmatprep.subr.bf16.mxu0 0
        %670 = vmatpush1.bf16.msra.mxu0 0
        %671 = vmatprep.subr.bf16.mxu0 0
        %672 = vmatpush1.bf16.msra.mxu0 0
        %673 = vmatprep.subr.bf16.mxu0 0
        %674 = vmatpush1.bf16.msra.mxu0 0
        %675 = vmatprep.subr.bf16.mxu0 0
        %676 = vmatpush1.bf16.msra.mxu0 %v502
        %677 = vmatprep.subr.bf16.mxu0 0
        %678 = vmatpush1.bf16.msra.mxu0 %v501
        %679 = vmatprep.subr.bf16.mxu0 0
        %680 = vmatpush2.bf16.msra.mxu0 0
        %681 = vmatprep.subr.bf16.mxu0 0
        %682 = vmatpush2.bf16.msra.mxu0 0
        %683 = vmatprep.subr.bf16.mxu0 0
        %684 = vmatpush2.bf16.msra.mxu0 0
        %685 = vmatprep.subr.bf16.mxu0 0
        %686 = vmatpush2.bf16.msra.mxu0 0
        %687 = vmatprep.subr.bf16.mxu0 0
        %688 = vmatpush2.bf16.msra.mxu0 0
        %689 = vmatprep.subr.bf16.mxu0 0
        %690 = vmatpush2.bf16.msra.mxu0 0
        %691 = vmatprep.subr.bf16.mxu0 0
        %692 = vmatpush2.bf16.msra.mxu0 0
        %693 = vmatprep.subr.bf16.mxu0 0
        %694 = vmatpush2.bf16.msra.mxu0 0
        %695 = vmatprep.mubr.bf16.mxu0 0
        %696 = vmatmul.mubr.bf16.gmra.mxu0 %v661
        %v697 = vpop.f32.mrf.mxu0
        %v698 = vadd.f32 0.0, %v697
        %v699 = vpop.f32.mrf.mxu0
        %v700 = vpop.f32.mrf.mxu0
        %v701 = vpop.f32.mrf.mxu0
        %702 = vdwg.mxu0
        %v703 = vadd.f32 %v655, %v698
        %v704 = vmul.f32 %v703, %v485
        %v705 = vtanh.pop %v704
        %v706 = vmul.f32 %v705, %v485
        %v707 = vadd.f32 %v706, %v486
        %v708 = vmul.f32 %v707, %v640
        %710 = vrot.lane.b32.xlu0 %v707, 64
        %v711 = vpop.permute.xlu0 %710
        %v713 = vmul.f32 %v707, %v711
        %715 = vrot.lane.b32.xlu0 %v713, 32
        %v716 = vpop.permute.xlu0 %715
        %v718 = vadd.f32 %v708, %v716
        %v719 = vtanh.pop %v718
        %721 = vrot.lane.b32.xlu0 %v719, 64
        %v722 = vpop.permute.xlu0 %721
        %v724 = vmul.f32 %v707, %v722
        %726 = vrot.lane.b32.xlu0 %v724, 32
        %v727 = vpop.permute.xlu0 %726
        %s729 = scalar_lea.vmem %s231, 16
        %730 = vst.msk [vmem:[%s729] sm:$0xff] %vm278, %v727
        %s731 = scalar_lea.vmem [#allocation2], 12
        %v732 = vld [vmem:[%s731] sm:$0xf]
        %v733 = vunpack.c.l.bf16 %v732
        %v734 = vpack.c.bf16 %v724, %v724
        %736 = vrot.lane.b32.xlu0 %v734, 32
        %v737 = vpop.permute.xlu0 %736
        %v739 = vsel %vm278, %v737, 0
        %741 = vmatprep.subr.bf16.mxu0 0
        %742 = vmatpush1.bf16.msra.mxu0 0
        %743 = vmatprep.subr.bf16.mxu0 0
        %744 = vmatpush1.bf16.msra.mxu0 0
        %745 = vmatprep.subr.bf16.mxu0 0
        %746 = vmatpush1.bf16.msra.mxu0 0
        %747 = vmatprep.subr.bf16.mxu0 0
        %748 = vmatpush1.bf16.msra.mxu0 0
        %749 = vmatprep.subr.bf16.mxu0 0
        %750 = vmatpush1.bf16.msra.mxu0 0
        %751 = vmatprep.subr.bf16.mxu0 0
        %752 = vmatpush1.bf16.msra.mxu0 0
        %753 = vmatprep.subr.bf16.mxu0 0
        %754 = vmatpush1.bf16.msra.mxu0 %v502
        %755 = vmatprep.subr.bf16.mxu0 0
        %756 = vmatpush1.bf16.msra.mxu0 %v501
        %757 = vmatprep.subr.bf16.mxu0 0
        %758 = vmatpush2.bf16.msra.mxu0 0
        %759 = vmatprep.subr.bf16.mxu0 0
        %760 = vmatpush2.bf16.msra.mxu0 0
        %761 = vmatprep.subr.bf16.mxu0 0
        %762 = vmatpush2.bf16.msra.mxu0 0
        %763 = vmatprep.subr.bf16.mxu0 0
        %764 = vmatpush2.bf16.msra.mxu0 0
        %765 = vmatprep.subr.bf16.mxu0 0
        %766 = vmatpush2.bf16.msra.mxu0 0
        %767 = vmatprep.subr.bf16.mxu0 0
        %768 = vmatpush2.bf16.msra.mxu0 0
        %769 = vmatprep.subr.bf16.mxu0 0
        %770 = vmatpush2.bf16.msra.mxu0 0
        %771 = vmatprep.subr.bf16.mxu0 0
        %772 = vmatpush2.bf16.msra.mxu0 0
        %773 = vmatprep.mubr.bf16.mxu0 0
        %774 = vmatmul.mubr.bf16.gmra.mxu0 %v739
        %v775 = vpop.f32.mrf.mxu0
        %v776 = vadd.f32 0.0, %v775
        %v777 = vpop.f32.mrf.mxu0
        %v778 = vpop.f32.mrf.mxu0
        %v779 = vpop.f32.mrf.mxu0
        %780 = vdwg.mxu0
        %v781 = vadd.f32 %v733, %v776
        %v782 = vmul.f32 %v781, %v485
        %v783 = vtanh.pop %v782
        %v784 = vmul.f32 %v783, %v485
        %v785 = vadd.f32 %v784, %v486
        %v786 = vmul.f32 %v785, %v718
        %788 = vrot.lane.b32.xlu0 %v785, 64
        %v789 = vpop.permute.xlu0 %788
        %v791 = vmul.f32 %v785, %v789
        %793 = vrot.lane.b32.xlu0 %v791, 32
        %v794 = vpop.permute.xlu0 %793
        %v796 = vadd.f32 %v786, %v794
        %v797 = vtanh.pop %v796
        %799 = vrot.lane.b32.xlu0 %v797, 64
        %v800 = vpop.permute.xlu0 %799
        %v802 = vmul.f32 %v785, %v800
        %804 = vrot.lane.b32.xlu0 %v802, 32
        %v805 = vpop.permute.xlu0 %804
        %s807 = scalar_lea.vmem %s231, 24
        %808 = vst.msk [vmem:[%s807] sm:$0xff] %vm278, %v805
        %s809 = scalar_lea.vmem [#allocation2], 16
        %v810 = vld [vmem:[%s809] sm:$0xf]
        %v811 = vunpack.c.l.bf16 %v810
        %v812 = vpack.c.bf16 %v802, %v802
        %814 = vrot.lane.b32.xlu0 %v812, 32
        %v815 = vpop.permute.xlu0 %814
        %v817 = vsel %vm278, %v815, 0
        %819 = vmatprep.subr.bf16.mxu0 0
        %820 = vmatpush1.bf16.msra.mxu0 0
        %821 = vmatprep.subr.bf16.mxu0 0
        %822 = vmatpush1.bf16.msra.mxu0 0
        %823 = vmatprep.subr.bf16.mxu0 0
        %824 = vmatpush1.bf16.msra.mxu0 0
        %825 = vmatprep.subr.bf16.mxu0 0
        %826 = vmatpush1.bf16.msra.mxu0 0
        %827 = vmatprep.subr.bf16.mxu0 0
        %828 = vmatpush1.bf16.msra.mxu0 0
        %829 = vmatprep.subr.bf16.mxu0 0
        %830 = vmatpush1.bf16.msra.mxu0 0
        %831 = vmatprep.subr.bf16.mxu0 0
        %832 = vmatpush1.bf16.msra.mxu0 %v502
        %833 = vmatprep.subr.bf16.mxu0 0
        %834 = vmatpush1.bf16.msra.mxu0 %v501
        %835 = vmatprep.subr.bf16.mxu0 0
        %836 = vmatpush2.bf16.msra.mxu0 0
        %837 = vmatprep.subr.bf16.mxu0 0
        %838 = vmatpush2.bf16.msra.mxu0 0
        %839 = vmatprep.subr.bf16.mxu0 0
        %840 = vmatpush2.bf16.msra.mxu0 0
        %841 = vmatprep.subr.bf16.mxu0 0
        %842 = vmatpush2.bf16.msra.mxu0 0
        %843 = vmatprep.subr.bf16.mxu0 0
        %844 = vmatpush2.bf16.msra.mxu0 0
        %845 = vmatprep.subr.bf16.mxu0 0
        %846 = vmatpush2.bf16.msra.mxu0 0
        %847 = vmatprep.subr.bf16.mxu0 0
        %848 = vmatpush2.bf16.msra.mxu0 0
        %849 = vmatprep.subr.bf16.mxu0 0
        %850 = vmatpush2.bf16.msra.mxu0 0
        %851 = vmatprep.mubr.bf16.mxu0 0
        %852 = vmatmul.mubr.bf16.gmra.mxu0 %v817
        %v853 = vpop.f32.mrf.mxu0
        %v854 = vadd.f32 0.0, %v853
        %v855 = vpop.f32.mrf.mxu0
        %v856 = vpop.f32.mrf.mxu0
        %v857 = vpop.f32.mrf.mxu0
        %858 = vdwg.mxu0
        %v859 = vadd.f32 %v811, %v854
        %v860 = vmul.f32 %v859, %v485
        %v861 = vtanh.pop %v860
        %v862 = vmul.f32 %v861, %v485
        %v863 = vadd.f32 %v862, %v486
        %v864 = vmul.f32 %v863, %v796
        %866 = vrot.lane.b32.xlu0 %v863, 64
        %v867 = vpop.permute.xlu0 %866
        %v869 = vmul.f32 %v863, %v867
        %871 = vrot.lane.b32.xlu0 %v869, 32
        %v872 = vpop.permute.xlu0 %871
        %v874 = vadd.f32 %v864, %v872
        %v875 = vtanh.pop %v874
        %877 = vrot.lane.b32.xlu0 %v875, 64
        %v878 = vpop.permute.xlu0 %877
        %v880 = vmul.f32 %v863, %v878
        %882 = vrot.lane.b32.xlu0 %v880, 32
        %v883 = vpop.permute.xlu0 %882
        %s885 = scalar_lea.vmem %s231, 32
        %886 = vst.msk [vmem:[%s885] sm:$0xff] %vm278, %v883
        %s887 = scalar_lea.vmem [#allocation2], 20
        %v888 = vld [vmem:[%s887] sm:$0xf]
        %v889 = vunpack.c.l.bf16 %v888
        %v890 = vpack.c.bf16 %v880, %v880
        %892 = vrot.lane.b32.xlu0 %v890, 32
        %v893 = vpop.permute.xlu0 %892
        %v895 = vsel %vm278, %v893, 0
        %897 = vmatprep.subr.bf16.mxu0 0
        %898 = vmatpush1.bf16.msra.mxu0 0
        %899 = vmatprep.subr.bf16.mxu0 0
        %900 = vmatpush1.bf16.msra.mxu0 0
        %901 = vmatprep.subr.bf16.mxu0 0
        %902 = vmatpush1.bf16.msra.mxu0 0
        %903 = vmatprep.subr.bf16.mxu0 0
        %904 = vmatpush1.bf16.msra.mxu0 0
        %905 = vmatprep.subr.bf16.mxu0 0
        %906 = vmatpush1.bf16.msra.mxu0 0
        %907 = vmatprep.subr.bf16.mxu0 0
        %908 = vmatpush1.bf16.msra.mxu0 0
        %909 = vmatprep.subr.bf16.mxu0 0
        %910 = vmatpush1.bf16.msra.mxu0 %v502
        %911 = vmatprep.subr.bf16.mxu0 0
        %912 = vmatpush1.bf16.msra.mxu0 %v501
        %913 = vmatprep.subr.bf16.mxu0 0
        %914 = vmatpush2.bf16.msra.mxu0 0
        %915 = vmatprep.subr.bf16.mxu0 0
        %916 = vmatpush2.bf16.msra.mxu0 0
        %917 = vmatprep.subr.bf16.mxu0 0
        %918 = vmatpush2.bf16.msra.mxu0 0
        %919 = vmatprep.subr.bf16.mxu0 0
        %920 = vmatpush2.bf16.msra.mxu0 0
        %921 = vmatprep.subr.bf16.mxu0 0
        %922 = vmatpush2.bf16.msra.mxu0 0
        %923 = vmatprep.subr.bf16.mxu0 0
        %924 = vmatpush2.bf16.msra.mxu0 0
        %925 = vmatprep.subr.bf16.mxu0 0
        %926 = vmatpush2.bf16.msra.mxu0 0
        %927 = vmatprep.subr.bf16.mxu0 0
        %928 = vmatpush2.bf16.msra.mxu0 0
        %929 = vmatprep.mubr.bf16.mxu0 0
        %930 = vmatmul.mubr.bf16.gmra.mxu0 %v895
        %v931 = vpop.f32.mrf.mxu0
        %v932 = vadd.f32 0.0, %v931
        %v933 = vpop.f32.mrf.mxu0
        %v934 = vpop.f32.mrf.mxu0
        %v935 = vpop.f32.mrf.mxu0
        %936 = vdwg.mxu0
        %v937 = vadd.f32 %v889, %v932
        %v938 = vmul.f32 %v937, %v485
        %v939 = vtanh.pop %v938
        %v940 = vmul.f32 %v939, %v485
        %v941 = vadd.f32 %v940, %v486
        %v942 = vmul.f32 %v941, %v874
        %944 = vrot.lane.b32.xlu0 %v941, 64
        %v945 = vpop.permute.xlu0 %944
        %v947 = vmul.f32 %v941, %v945
        %949 = vrot.lane.b32.xlu0 %v947, 32
        %v950 = vpop.permute.xlu0 %949
        %v952 = vadd.f32 %v942, %v950
        %v953 = vtanh.pop %v952
        %955 = vrot.lane.b32.xlu0 %v953, 64
        %v956 = vpop.permute.xlu0 %955
        %v958 = vmul.f32 %v941, %v956
        %960 = vrot.lane.b32.xlu0 %v958, 32
        %v961 = vpop.permute.xlu0 %960
        %s963 = scalar_lea.vmem %s231, 40
        %964 = vst.msk [vmem:[%s963] sm:$0xff] %vm278, %v961
        %s965 = scalar_lea.vmem [#allocation2], 24
        %v966 = vld [vmem:[%s965] sm:$0xf]
        %v967 = vunpack.c.l.bf16 %v966
        %v968 = vpack.c.bf16 %v958, %v958
        %970 = vrot.lane.b32.xlu0 %v968, 32
        %v971 = vpop.permute.xlu0 %970
        %v973 = vsel %vm278, %v971, 0
        %975 = vmatprep.subr.bf16.mxu0 0
        %976 = vmatpush1.bf16.msra.mxu0 0
        %977 = vmatprep.subr.bf16.mxu0 0
        %978 = vmatpush1.bf16.msra.mxu0 0
        %979 = vmatprep.subr.bf16.mxu0 0
        %980 = vmatpush1.bf16.msra.mxu0 0
        %981 = vmatprep.subr.bf16.mxu0 0
        %982 = vmatpush1.bf16.msra.mxu0 0
        %983 = vmatprep.subr.bf16.mxu0 0
        %984 = vmatpush1.bf16.msra.mxu0 0
        %985 = vmatprep.subr.bf16.mxu0 0
        %986 = vmatpush1.bf16.msra.mxu0 0
        %987 = vmatprep.subr.bf16.mxu0 0
        %988 = vmatpush1.bf16.msra.mxu0 %v502
        %989 = vmatprep.subr.bf16.mxu0 0
        %990 = vmatpush1.bf16.msra.mxu0 %v501
        %991 = vmatprep.subr.bf16.mxu0 0
        %992 = vmatpush2.bf16.msra.mxu0 0
        %993 = vmatprep.subr.bf16.mxu0 0
        %994 = vmatpush2.bf16.msra.mxu0 0
        %995 = vmatprep.subr.bf16.mxu0 0
        %996 = vmatpush2.bf16.msra.mxu0 0
        %997 = vmatprep.subr.bf16.mxu0 0
        %998 = vmatpush2.bf16.msra.mxu0 0
        %999 = vmatprep.subr.bf16.mxu0 0
        %1000 = vmatpush2.bf16.msra.mxu0 0
        %1001 = vmatprep.subr.bf16.mxu0 0
        %1002 = vmatpush2.bf16.msra.mxu0 0
        %1003 = vmatprep.subr.bf16.mxu0 0
        %1004 = vmatpush2.bf16.msra.mxu0 0
        %1005 = vmatprep.subr.bf16.mxu0 0
        %1006 = vmatpush2.bf16.msra.mxu0 0
        %1007 = vmatprep.mubr.bf16.mxu0 0
        %1008 = vmatmul.mubr.bf16.gmra.mxu0 %v973
        %v1009 = vpop.f32.mrf.mxu0
        %v1010 = vadd.f32 0.0, %v1009
        %v1011 = vpop.f32.mrf.mxu0
        %v1012 = vpop.f32.mrf.mxu0
        %v1013 = vpop.f32.mrf.mxu0
        %1014 = vdwg.mxu0
        %v1015 = vadd.f32 %v967, %v1010
        %v1016 = vmul.f32 %v1015, %v485
        %v1017 = vtanh.pop %v1016
        %v1018 = vmul.f32 %v1017, %v485
        %v1019 = vadd.f32 %v1018, %v486
        %v1020 = vmul.f32 %v1019, %v952
        %1022 = vrot.lane.b32.xlu0 %v1019, 64
        %v1023 = vpop.permute.xlu0 %1022
        %v1025 = vmul.f32 %v1019, %v1023
        %1027 = vrot.lane.b32.xlu0 %v1025, 32
        %v1028 = vpop.permute.xlu0 %1027
        %v1030 = vadd.f32 %v1020, %v1028
        %v1031 = vtanh.pop %v1030
        %1033 = vrot.lane.b32.xlu0 %v1031, 64
        %v1034 = vpop.permute.xlu0 %1033
        %v1036 = vmul.f32 %v1019, %v1034
        %1038 = vrot.lane.b32.xlu0 %v1036, 32
        %v1039 = vpop.permute.xlu0 %1038
        %s1041 = scalar_lea.vmem %s231, 48
        %1042 = vst.msk [vmem:[%s1041] sm:$0xff] %vm278, %v1039
        %s1043 = scalar_lea.vmem [#allocation2], 28
        %v1044 = vld [vmem:[%s1043] sm:$0xf]
        %v1045 = vunpack.c.l.bf16 %v1044
        %v1046 = vpack.c.bf16 %v1036, %v1036
        %1048 = vrot.lane.b32.xlu0 %v1046, 32
        %v1049 = vpop.permute.xlu0 %1048
        %v1051 = vsel %vm278, %v1049, 0
        %1053 = vmatprep.subr.bf16.mxu0 0
        %1054 = vmatpush1.bf16.msra.mxu0 0
        %1055 = vmatprep.subr.bf16.mxu0 0
        %1056 = vmatpush1.bf16.msra.mxu0 0
        %1057 = vmatprep.subr.bf16.mxu0 0
        %1058 = vmatpush1.bf16.msra.mxu0 0
        %1059 = vmatprep.subr.bf16.mxu0 0
        %1060 = vmatpush1.bf16.msra.mxu0 0
        %1061 = vmatprep.subr.bf16.mxu0 0
        %1062 = vmatpush1.bf16.msra.mxu0 0
        %1063 = vmatprep.subr.bf16.mxu0 0
        %1064 = vmatpush1.bf16.msra.mxu0 0
        %1065 = vmatprep.subr.bf16.mxu0 0
        %1066 = vmatpush1.bf16.msra.mxu0 %v502
        %1067 = vmatprep.subr.bf16.mxu0 0
        %1068 = vmatpush1.bf16.msra.mxu0 %v501
        %1069 = vmatprep.subr.bf16.mxu0 0
        %1070 = vmatpush2.bf16.msra.mxu0 0
        %1071 = vmatprep.subr.bf16.mxu0 0
        %1072 = vmatpush2.bf16.msra.mxu0 0
        %1073 = vmatprep.subr.bf16.mxu0 0
        %1074 = vmatpush2.bf16.msra.mxu0 0
        %1075 = vmatprep.subr.bf16.mxu0 0
        %1076 = vmatpush2.bf16.msra.mxu0 0
        %1077 = vmatprep.subr.bf16.mxu0 0
        %1078 = vmatpush2.bf16.msra.mxu0 0
        %1079 = vmatprep.subr.bf16.mxu0 0
        %1080 = vmatpush2.bf16.msra.mxu0 0
        %1081 = vmatprep.subr.bf16.mxu0 0
        %1082 = vmatpush2.bf16.msra.mxu0 0
        %1083 = vmatprep.subr.bf16.mxu0 0
        %1084 = vmatpush2.bf16.msra.mxu0 0
        %1085 = vmatprep.mubr.bf16.mxu0 0
        %1086 = vmatmul.mubr.bf16.gmra.mxu0 %v1051
        %v1087 = vpop.f32.mrf.mxu0
        %v1088 = vadd.f32 0.0, %v1087
        %v1089 = vpop.f32.mrf.mxu0
        %v1090 = vpop.f32.mrf.mxu0
        %v1091 = vpop.f32.mrf.mxu0
        %1092 = vdwg.mxu0
        %v1093 = vadd.f32 %v1045, %v1088
        %v1094 = vmul.f32 %v1093, %v485
        %v1095 = vtanh.pop %v1094
        %v1096 = vmul.f32 %v1095, %v485
        %v1097 = vadd.f32 %v1096, %v486
        %v1098 = vmul.f32 %v1097, %v1030
        %1100 = vrot.lane.b32.xlu0 %v1097, 64
        %v1101 = vpop.permute.xlu0 %1100
        %v1103 = vmul.f32 %v1097, %v1101
        %1105 = vrot.lane.b32.xlu0 %v1103, 32
        %v1106 = vpop.permute.xlu0 %1105
        %v1108 = vadd.f32 %v1098, %v1106
        %v1109 = vtanh.pop %v1108
        %1111 = vrot.lane.b32.xlu0 %v1109, 64
        %v1112 = vpop.permute.xlu0 %1111
        %v1114 = vmul.f32 %v1097, %v1112
        %1116 = vrot.lane.b32.xlu0 %v1114, 32
        %v1117 = vpop.permute.xlu0 %1116
        %s1119 = scalar_lea.vmem %s231, 56
        %1120 = vst.msk [vmem:[%s1119] sm:$0xff] %vm278, %v1117
      $region40: #{lstm_forward.3} parent=35 // pred_fallthru
        _
      %p1121 = scmp.eq.s32.totalorder %s15, 1
      // Predicated region
      $region41: #{lstm_forward.3} parent=35 // pred_check
        %p1122 = pneg %p1121
      $region42: #{lstm_forward.3} parent=35 // pred_check_branch
        %1124 = sbr.rel (%p1122) target = $region44
      $region43: #{lstm_forward.3} parent=35 // pred_region
        %s1125 = scalar_lea.vmem [#allocation2], 28
        %v1126 = vld [vmem:[%s1125] sm:$0xf]
        %v1127 = vunpack.c.l.bf16 %v1126
        %v1132 = vunpack.c.l.b16 %v476
        %v1133 = vunpack.c.l.b16 %v477
        %v1134 = vunpack.c.l.b16 %v478
        %v1135 = vunpack.c.l.b16 %v479
        %v1136 = vpack.c.b16 %v1133, %v1132
        %v1137 = vpack.c.b16 %v1135, %v1134
        %v1141 = vsel %vm278, 0, 0
        %1143 = vmatprep.subr.bf16.mxu0 0
        %1144 = vmatpush1.bf16.msra.mxu0 0
        %1145 = vmatprep.subr.bf16.mxu0 0
        %1146 = vmatpush1.bf16.msra.mxu0 0
        %1147 = vmatprep.subr.bf16.mxu0 0
        %1148 = vmatpush1.bf16.msra.mxu0 0
        %1149 = vmatprep.subr.bf16.mxu0 0
        %1150 = vmatpush1.bf16.msra.mxu0 0
        %1151 = vmatprep.subr.bf16.mxu0 0
        %1152 = vmatpush1.bf16.msra.mxu0 0
        %1153 = vmatprep.subr.bf16.mxu0 0
        %1154 = vmatpush1.bf16.msra.mxu0 0
        %1155 = vmatprep.subr.bf16.mxu0 0
        %1156 = vmatpush1.bf16.msra.mxu0 %v1137
        %1157 = vmatprep.subr.bf16.mxu0 0
        %1158 = vmatpush1.bf16.msra.mxu0 %v1136
        %1159 = vmatprep.subr.bf16.mxu0 0
        %1160 = vmatpush2.bf16.msra.mxu0 0
        %1161 = vmatprep.subr.bf16.mxu0 0
        %1162 = vmatpush2.bf16.msra.mxu0 0
        %1163 = vmatprep.subr.bf16.mxu0 0
        %1164 = vmatpush2.bf16.msra.mxu0 0
        %1165 = vmatprep.subr.bf16.mxu0 0
        %1166 = vmatpush2.bf16.msra.mxu0 0
        %1167 = vmatprep.subr.bf16.mxu0 0
        %1168 = vmatpush2.bf16.msra.mxu0 0
        %1169 = vmatprep.subr.bf16.mxu0 0
        %1170 = vmatpush2.bf16.msra.mxu0 0
        %1171 = vmatprep.subr.bf16.mxu0 0
        %1172 = vmatpush2.bf16.msra.mxu0 0
        %1173 = vmatprep.subr.bf16.mxu0 0
        %1174 = vmatpush2.bf16.msra.mxu0 0
        %1175 = vmatprep.mubr.bf16.mxu0 0
        %1176 = vmatmul.mubr.bf16.gmra.mxu0 %v1141
        %v1177 = vpop.f32.mrf.mxu0
        %v1178 = vadd.f32 0.0, %v1177
        %v1179 = vpop.f32.mrf.mxu0
        %v1180 = vpop.f32.mrf.mxu0
        %v1181 = vpop.f32.mrf.mxu0
        %1182 = vdwg.mxu0
        %v1183 = vadd.f32 %v1127, %v1178
        %v1184 = vmul.f32 %v1183, %v485
        %v1185 = vtanh.pop %v1184
        %v1186 = vmul.f32 %v1185, %v485
        %v1187 = vadd.f32 %v1186, %v486
        %v1188 = vmul.f32 %v1187, 0.0
        %1190 = vrot.lane.b32.xlu0 %v1187, 64
        %v1191 = vpop.permute.xlu0 %1190
        %v1193 = vmul.f32 %v1187, %v1191
        %1195 = vrot.lane.b32.xlu0 %v1193, 32
        %v1196 = vpop.permute.xlu0 %1195
        %v1198 = vadd.f32 %v1188, %v1196
        %v1199 = vtanh.pop %v1198
        %1201 = vrot.lane.b32.xlu0 %v1199, 64
        %v1202 = vpop.permute.xlu0 %1201
        %v1204 = vmul.f32 %v1187, %v1202
        %1206 = vrot.lane.b32.xlu0 %v1204, 32
        %v1207 = vpop.permute.xlu0 %1206
        %s1209 = scalar_lea.vmem %s231, 56
        %1210 = vst.msk [vmem:[%s1209] sm:$0xff] %vm278, %v1207
        %s1211 = scalar_lea.vmem [#allocation2], 24
        %v1212 = vld [vmem:[%s1211] sm:$0xf]
        %v1213 = vunpack.c.l.bf16 %v1212
        %v1214 = vpack.c.bf16 %v1204, %v1204
        %1216 = vrot.lane.b32.xlu0 %v1214, 32
        %v1217 = vpop.permute.xlu0 %1216
        %v1219 = vsel %vm278, %v1217, 0
        %1221 = vmatprep.subr.bf16.mxu0 0
        %1222 = vmatpush1.bf16.msra.mxu0 0
        %1223 = vmatprep.subr.bf16.mxu0 0
        %1224 = vmatpush1.bf16.msra.mxu0 0
        %1225 = vmatprep.subr.bf16.mxu0 0
        %1226 = vmatpush1.bf16.msra.mxu0 0
        %1227 = vmatprep.subr.bf16.mxu0 0
        %1228 = vmatpush1.bf16.msra.mxu0 0
        %1229 = vmatprep.subr.bf16.mxu0 0
        %1230 = vmatpush1.bf16.msra.mxu0 0
        %1231 = vmatprep.subr.bf16.mxu0 0
        %1232 = vmatpush1.bf16.msra.mxu0 0
        %1233 = vmatprep.subr.bf16.mxu0 0
        %1234 = vmatpush1.bf16.msra.mxu0 %v1137
        %1235 = vmatprep.subr.bf16.mxu0 0
        %1236 = vmatpush1.bf16.msra.mxu0 %v1136
        %1237 = vmatprep.subr.bf16.mxu0 0
        %1238 = vmatpush2.bf16.msra.mxu0 0
        %1239 = vmatprep.subr.bf16.mxu0 0
        %1240 = vmatpush2.bf16.msra.mxu0 0
        %1241 = vmatprep.subr.bf16.mxu0 0
        %1242 = vmatpush2.bf16.msra.mxu0 0
        %1243 = vmatprep.subr.bf16.mxu0 0
        %1244 = vmatpush2.bf16.msra.mxu0 0
        %1245 = vmatprep.subr.bf16.mxu0 0
        %1246 = vmatpush2.bf16.msra.mxu0 0
        %1247 = vmatprep.subr.bf16.mxu0 0
        %1248 = vmatpush2.bf16.msra.mxu0 0
        %1249 = vmatprep.subr.bf16.mxu0 0
        %1250 = vmatpush2.bf16.msra.mxu0 0
        %1251 = vmatprep.subr.bf16.mxu0 0
        %1252 = vmatpush2.bf16.msra.mxu0 0
        %1253 = vmatprep.mubr.bf16.mxu0 0
        %1254 = vmatmul.mubr.bf16.gmra.mxu0 %v1219
        %v1255 = vpop.f32.mrf.mxu0
        %v1256 = vadd.f32 0.0, %v1255
        %v1257 = vpop.f32.mrf.mxu0
        %v1258 = vpop.f32.mrf.mxu0
        %v1259 = vpop.f32.mrf.mxu0
        %1260 = vdwg.mxu0
        %v1261 = vadd.f32 %v1213, %v1256
        %v1262 = vmul.f32 %v1261, %v485
        %v1263 = vtanh.pop %v1262
        %v1264 = vmul.f32 %v1263, %v485
        %v1265 = vadd.f32 %v1264, %v486
        %v1266 = vmul.f32 %v1265, %v1198
        %1268 = vrot.lane.b32.xlu0 %v1265, 64
        %v1269 = vpop.permute.xlu0 %1268
        %v1271 = vmul.f32 %v1265, %v1269
        %1273 = vrot.lane.b32.xlu0 %v1271, 32
        %v1274 = vpop.permute.xlu0 %1273
        %v1276 = vadd.f32 %v1266, %v1274
        %v1277 = vtanh.pop %v1276
        %1279 = vrot.lane.b32.xlu0 %v1277, 64
        %v1280 = vpop.permute.xlu0 %1279
        %v1282 = vmul.f32 %v1265, %v1280
        %1284 = vrot.lane.b32.xlu0 %v1282, 32
        %v1285 = vpop.permute.xlu0 %1284
        %s1287 = scalar_lea.vmem %s231, 48
        %1288 = vst.msk [vmem:[%s1287] sm:$0xff] %vm278, %v1285
        %s1289 = scalar_lea.vmem [#allocation2], 20
        %v1290 = vld [vmem:[%s1289] sm:$0xf]
        %v1291 = vunpack.c.l.bf16 %v1290
        %v1292 = vpack.c.bf16 %v1282, %v1282
        %1294 = vrot.lane.b32.xlu0 %v1292, 32
        %v1295 = vpop.permute.xlu0 %1294
        %v1297 = vsel %vm278, %v1295, 0
        %1299 = vmatprep.subr.bf16.mxu0 0
        %1300 = vmatpush1.bf16.msra.mxu0 0
        %1301 = vmatprep.subr.bf16.mxu0 0
        %1302 = vmatpush1.bf16.msra.mxu0 0
        %1303 = vmatprep.subr.bf16.mxu0 0
        %1304 = vmatpush1.bf16.msra.mxu0 0
        %1305 = vmatprep.subr.bf16.mxu0 0
        %1306 = vmatpush1.bf16.msra.mxu0 0
        %1307 = vmatprep.subr.bf16.mxu0 0
        %1308 = vmatpush1.bf16.msra.mxu0 0
        %1309 = vmatprep.subr.bf16.mxu0 0
        %1310 = vmatpush1.bf16.msra.mxu0 0
        %1311 = vmatprep.subr.bf16.mxu0 0
        %1312 = vmatpush1.bf16.msra.mxu0 %v1137
        %1313 = vmatprep.subr.bf16.mxu0 0
        %1314 = vmatpush1.bf16.msra.mxu0 %v1136
        %1315 = vmatprep.subr.bf16.mxu0 0
        %1316 = vmatpush2.bf16.msra.mxu0 0
        %1317 = vmatprep.subr.bf16.mxu0 0
        %1318 = vmatpush2.bf16.msra.mxu0 0
        %1319 = vmatprep.subr.bf16.mxu0 0
        %1320 = vmatpush2.bf16.msra.mxu0 0
        %1321 = vmatprep.subr.bf16.mxu0 0
        %1322 = vmatpush2.bf16.msra.mxu0 0
        %1323 = vmatprep.subr.bf16.mxu0 0
        %1324 = vmatpush2.bf16.msra.mxu0 0
        %1325 = vmatprep.subr.bf16.mxu0 0
        %1326 = vmatpush2.bf16.msra.mxu0 0
        %1327 = vmatprep.subr.bf16.mxu0 0
        %1328 = vmatpush2.bf16.msra.mxu0 0
        %1329 = vmatprep.subr.bf16.mxu0 0
        %1330 = vmatpush2.bf16.msra.mxu0 0
        %1331 = vmatprep.mubr.bf16.mxu0 0
        %1332 = vmatmul.mubr.bf16.gmra.mxu0 %v1297
        %v1333 = vpop.f32.mrf.mxu0
        %v1334 = vadd.f32 0.0, %v1333
        %v1335 = vpop.f32.mrf.mxu0
        %v1336 = vpop.f32.mrf.mxu0
        %v1337 = vpop.f32.mrf.mxu0
        %1338 = vdwg.mxu0
        %v1339 = vadd.f32 %v1291, %v1334
        %v1340 = vmul.f32 %v1339, %v485
        %v1341 = vtanh.pop %v1340
        %v1342 = vmul.f32 %v1341, %v485
        %v1343 = vadd.f32 %v1342, %v486
        %v1344 = vmul.f32 %v1343, %v1276
        %1346 = vrot.lane.b32.xlu0 %v1343, 64
        %v1347 = vpop.permute.xlu0 %1346
        %v1349 = vmul.f32 %v1343, %v1347
        %1351 = vrot.lane.b32.xlu0 %v1349, 32
        %v1352 = vpop.permute.xlu0 %1351
        %v1354 = vadd.f32 %v1344, %v1352
        %v1355 = vtanh.pop %v1354
        %1357 = vrot.lane.b32.xlu0 %v1355, 64
        %v1358 = vpop.permute.xlu0 %1357
        %v1360 = vmul.f32 %v1343, %v1358
        %1362 = vrot.lane.b32.xlu0 %v1360, 32
        %v1363 = vpop.permute.xlu0 %1362
        %s1365 = scalar_lea.vmem %s231, 40
        %1366 = vst.msk [vmem:[%s1365] sm:$0xff] %vm278, %v1363
        %s1367 = scalar_lea.vmem [#allocation2], 16
        %v1368 = vld [vmem:[%s1367] sm:$0xf]
        %v1369 = vunpack.c.l.bf16 %v1368
        %v1370 = vpack.c.bf16 %v1360, %v1360
        %1372 = vrot.lane.b32.xlu0 %v1370, 32
        %v1373 = vpop.permute.xlu0 %1372
        %v1375 = vsel %vm278, %v1373, 0
        %1377 = vmatprep.subr.bf16.mxu0 0
        %1378 = vmatpush1.bf16.msra.mxu0 0
        %1379 = vmatprep.subr.bf16.mxu0 0
        %1380 = vmatpush1.bf16.msra.mxu0 0
        %1381 = vmatprep.subr.bf16.mxu0 0
        %1382 = vmatpush1.bf16.msra.mxu0 0
        %1383 = vmatprep.subr.bf16.mxu0 0
        %1384 = vmatpush1.bf16.msra.mxu0 0
        %1385 = vmatprep.subr.bf16.mxu0 0
        %1386 = vmatpush1.bf16.msra.mxu0 0
        %1387 = vmatprep.subr.bf16.mxu0 0
        %1388 = vmatpush1.bf16.msra.mxu0 0
        %1389 = vmatprep.subr.bf16.mxu0 0
        %1390 = vmatpush1.bf16.msra.mxu0 %v1137
        %1391 = vmatprep.subr.bf16.mxu0 0
        %1392 = vmatpush1.bf16.msra.mxu0 %v1136
        %1393 = vmatprep.subr.bf16.mxu0 0
        %1394 = vmatpush2.bf16.msra.mxu0 0
        %1395 = vmatprep.subr.bf16.mxu0 0
        %1396 = vmatpush2.bf16.msra.mxu0 0
        %1397 = vmatprep.subr.bf16.mxu0 0
        %1398 = vmatpush2.bf16.msra.mxu0 0
        %1399 = vmatprep.subr.bf16.mxu0 0
        %1400 = vmatpush2.bf16.msra.mxu0 0
        %1401 = vmatprep.subr.bf16.mxu0 0
        %1402 = vmatpush2.bf16.msra.mxu0 0
        %1403 = vmatprep.subr.bf16.mxu0 0
        %1404 = vmatpush2.bf16.msra.mxu0 0
        %1405 = vmatprep.subr.bf16.mxu0 0
        %1406 = vmatpush2.bf16.msra.mxu0 0
        %1407 = vmatprep.subr.bf16.mxu0 0
        %1408 = vmatpush2.bf16.msra.mxu0 0
        %1409 = vmatprep.mubr.bf16.mxu0 0
        %1410 = vmatmul.mubr.bf16.gmra.mxu0 %v1375
        %v1411 = vpop.f32.mrf.mxu0
        %v1412 = vadd.f32 0.0, %v1411
        %v1413 = vpop.f32.mrf.mxu0
        %v1414 = vpop.f32.mrf.mxu0
        %v1415 = vpop.f32.mrf.mxu0
        %1416 = vdwg.mxu0
        %v1417 = vadd.f32 %v1369, %v1412
        %v1418 = vmul.f32 %v1417, %v485
        %v1419 = vtanh.pop %v1418
        %v1420 = vmul.f32 %v1419, %v485
        %v1421 = vadd.f32 %v1420, %v486
        %v1422 = vmul.f32 %v1421, %v1354
        %1424 = vrot.lane.b32.xlu0 %v1421, 64
        %v1425 = vpop.permute.xlu0 %1424
        %v1427 = vmul.f32 %v1421, %v1425
        %1429 = vrot.lane.b32.xlu0 %v1427, 32
        %v1430 = vpop.permute.xlu0 %1429
        %v1432 = vadd.f32 %v1422, %v1430
        %v1433 = vtanh.pop %v1432
        %1435 = vrot.lane.b32.xlu0 %v1433, 64
        %v1436 = vpop.permute.xlu0 %1435
        %v1438 = vmul.f32 %v1421, %v1436
        %1440 = vrot.lane.b32.xlu0 %v1438, 32
        %v1441 = vpop.permute.xlu0 %1440
        %s1443 = scalar_lea.vmem %s231, 32
        %1444 = vst.msk [vmem:[%s1443] sm:$0xff] %vm278, %v1441
        %s1445 = scalar_lea.vmem [#allocation2], 12
        %v1446 = vld [vmem:[%s1445] sm:$0xf]
        %v1447 = vunpack.c.l.bf16 %v1446
        %v1448 = vpack.c.bf16 %v1438, %v1438
        %1450 = vrot.lane.b32.xlu0 %v1448, 32
        %v1451 = vpop.permute.xlu0 %1450
        %v1453 = vsel %vm278, %v1451, 0
        %1455 = vmatprep.subr.bf16.mxu0 0
        %1456 = vmatpush1.bf16.msra.mxu0 0
        %1457 = vmatprep.subr.bf16.mxu0 0
        %1458 = vmatpush1.bf16.msra.mxu0 0
        %1459 = vmatprep.subr.bf16.mxu0 0
        %1460 = vmatpush1.bf16.msra.mxu0 0
        %1461 = vmatprep.subr.bf16.mxu0 0
        %1462 = vmatpush1.bf16.msra.mxu0 0
        %1463 = vmatprep.subr.bf16.mxu0 0
        %1464 = vmatpush1.bf16.msra.mxu0 0
        %1465 = vmatprep.subr.bf16.mxu0 0
        %1466 = vmatpush1.bf16.msra.mxu0 0
        %1467 = vmatprep.subr.bf16.mxu0 0
        %1468 = vmatpush1.bf16.msra.mxu0 %v1137
        %1469 = vmatprep.subr.bf16.mxu0 0
        %1470 = vmatpush1.bf16.msra.mxu0 %v1136
        %1471 = vmatprep.subr.bf16.mxu0 0
        %1472 = vmatpush2.bf16.msra.mxu0 0
        %1473 = vmatprep.subr.bf16.mxu0 0
        %1474 = vmatpush2.bf16.msra.mxu0 0
        %1475 = vmatprep.subr.bf16.mxu0 0
        %1476 = vmatpush2.bf16.msra.mxu0 0
        %1477 = vmatprep.subr.bf16.mxu0 0
        %1478 = vmatpush2.bf16.msra.mxu0 0
        %1479 = vmatprep.subr.bf16.mxu0 0
        %1480 = vmatpush2.bf16.msra.mxu0 0
        %1481 = vmatprep.subr.bf16.mxu0 0
        %1482 = vmatpush2.bf16.msra.mxu0 0
        %1483 = vmatprep.subr.bf16.mxu0 0
        %1484 = vmatpush2.bf16.msra.mxu0 0
        %1485 = vmatprep.subr.bf16.mxu0 0
        %1486 = vmatpush2.bf16.msra.mxu0 0
        %1487 = vmatprep.mubr.bf16.mxu0 0
        %1488 = vmatmul.mubr.bf16.gmra.mxu0 %v1453
        %v1489 = vpop.f32.mrf.mxu0
        %v1490 = vadd.f32 0.0, %v1489
        %v1491 = vpop.f32.mrf.mxu0
        %v1492 = vpop.f32.mrf.mxu0
        %v1493 = vpop.f32.mrf.mxu0
        %1494 = vdwg.mxu0
        %v1495 = vadd.f32 %v1447, %v1490
        %v1496 = vmul.f32 %v1495, %v485
        %v1497 = vtanh.pop %v1496
        %v1498 = vmul.f32 %v1497, %v485
        %v1499 = vadd.f32 %v1498, %v486
        %v1500 = vmul.f32 %v1499, %v1432
        %1502 = vrot.lane.b32.xlu0 %v1499, 64
        %v1503 = vpop.permute.xlu0 %1502
        %v1505 = vmul.f32 %v1499, %v1503
        %1507 = vrot.lane.b32.xlu0 %v1505, 32
        %v1508 = vpop.permute.xlu0 %1507
        %v1510 = vadd.f32 %v1500, %v1508
        %v1511 = vtanh.pop %v1510
        %1513 = vrot.lane.b32.xlu0 %v1511, 64
        %v1514 = vpop.permute.xlu0 %1513
        %v1516 = vmul.f32 %v1499, %v1514
        %1518 = vrot.lane.b32.xlu0 %v1516, 32
        %v1519 = vpop.permute.xlu0 %1518
        %s1521 = scalar_lea.vmem %s231, 24
        %1522 = vst.msk [vmem:[%s1521] sm:$0xff] %vm278, %v1519
        %s1523 = scalar_lea.vmem [#allocation2], 8
        %v1524 = vld [vmem:[%s1523] sm:$0xf]
        %v1525 = vunpack.c.l.bf16 %v1524
        %v1526 = vpack.c.bf16 %v1516, %v1516
        %1528 = vrot.lane.b32.xlu0 %v1526, 32
        %v1529 = vpop.permute.xlu0 %1528
        %v1531 = vsel %vm278, %v1529, 0
        %1533 = vmatprep.subr.bf16.mxu0 0
        %1534 = vmatpush1.bf16.msra.mxu0 0
        %1535 = vmatprep.subr.bf16.mxu0 0
        %1536 = vmatpush1.bf16.msra.mxu0 0
        %1537 = vmatprep.subr.bf16.mxu0 0
        %1538 = vmatpush1.bf16.msra.mxu0 0
        %1539 = vmatprep.subr.bf16.mxu0 0
        %1540 = vmatpush1.bf16.msra.mxu0 0
        %1541 = vmatprep.subr.bf16.mxu0 0
        %1542 = vmatpush1.bf16.msra.mxu0 0
        %1543 = vmatprep.subr.bf16.mxu0 0
        %1544 = vmatpush1.bf16.msra.mxu0 0
        %1545 = vmatprep.subr.bf16.mxu0 0
        %1546 = vmatpush1.bf16.msra.mxu0 %v1137
        %1547 = vmatprep.subr.bf16.mxu0 0
        %1548 = vmatpush1.bf16.msra.mxu0 %v1136
        %1549 = vmatprep.subr.bf16.mxu0 0
        %1550 = vmatpush2.bf16.msra.mxu0 0
        %1551 = vmatprep.subr.bf16.mxu0 0
        %1552 = vmatpush2.bf16.msra.mxu0 0
        %1553 = vmatprep.subr.bf16.mxu0 0
        %1554 = vmatpush2.bf16.msra.mxu0 0
        %1555 = vmatprep.subr.bf16.mxu0 0
        %1556 = vmatpush2.bf16.msra.mxu0 0
        %1557 = vmatprep.subr.bf16.mxu0 0
        %1558 = vmatpush2.bf16.msra.mxu0 0
        %1559 = vmatprep.subr.bf16.mxu0 0
        %1560 = vmatpush2.bf16.msra.mxu0 0
        %1561 = vmatprep.subr.bf16.mxu0 0
        %1562 = vmatpush2.bf16.msra.mxu0 0
        %1563 = vmatprep.subr.bf16.mxu0 0
        %1564 = vmatpush2.bf16.msra.mxu0 0
        %1565 = vmatprep.mubr.bf16.mxu0 0
        %1566 = vmatmul.mubr.bf16.gmra.mxu0 %v1531
        %v1567 = vpop.f32.mrf.mxu0
        %v1568 = vadd.f32 0.0, %v1567
        %v1569 = vpop.f32.mrf.mxu0
        %v1570 = vpop.f32.mrf.mxu0
        %v1571 = vpop.f32.mrf.mxu0
        %1572 = vdwg.mxu0
        %v1573 = vadd.f32 %v1525, %v1568
        %v1574 = vmul.f32 %v1573, %v485
        %v1575 = vtanh.pop %v1574
        %v1576 = vmul.f32 %v1575, %v485
        %v1577 = vadd.f32 %v1576, %v486
        %v1578 = vmul.f32 %v1577, %v1510
        %1580 = vrot.lane.b32.xlu0 %v1577, 64
        %v1581 = vpop.permute.xlu0 %1580
        %v1583 = vmul.f32 %v1577, %v1581
        %1585 = vrot.lane.b32.xlu0 %v1583, 32
        %v1586 = vpop.permute.xlu0 %1585
        %v1588 = vadd.f32 %v1578, %v1586
        %v1589 = vtanh.pop %v1588
        %1591 = vrot.lane.b32.xlu0 %v1589, 64
        %v1592 = vpop.permute.xlu0 %1591
        %v1594 = vmul.f32 %v1577, %v1592
        %1596 = vrot.lane.b32.xlu0 %v1594, 32
        %v1597 = vpop.permute.xlu0 %1596
        %s1599 = scalar_lea.vmem %s231, 16
        %1600 = vst.msk [vmem:[%s1599] sm:$0xff] %vm278, %v1597
        %s1601 = scalar_lea.vmem [#allocation2], 4
        %v1602 = vld [vmem:[%s1601] sm:$0xf]
        %v1603 = vunpack.c.l.bf16 %v1602
        %v1604 = vpack.c.bf16 %v1594, %v1594
        %1606 = vrot.lane.b32.xlu0 %v1604, 32
        %v1607 = vpop.permute.xlu0 %1606
        %v1609 = vsel %vm278, %v1607, 0
        %1611 = vmatprep.subr.bf16.mxu0 0
        %1612 = vmatpush1.bf16.msra.mxu0 0
        %1613 = vmatprep.subr.bf16.mxu0 0
        %1614 = vmatpush1.bf16.msra.mxu0 0
        %1615 = vmatprep.subr.bf16.mxu0 0
        %1616 = vmatpush1.bf16.msra.mxu0 0
        %1617 = vmatprep.subr.bf16.mxu0 0
        %1618 = vmatpush1.bf16.msra.mxu0 0
        %1619 = vmatprep.subr.bf16.mxu0 0
        %1620 = vmatpush1.bf16.msra.mxu0 0
        %1621 = vmatprep.subr.bf16.mxu0 0
        %1622 = vmatpush1.bf16.msra.mxu0 0
        %1623 = vmatprep.subr.bf16.mxu0 0
        %1624 = vmatpush1.bf16.msra.mxu0 %v1137
        %1625 = vmatprep.subr.bf16.mxu0 0
        %1626 = vmatpush1.bf16.msra.mxu0 %v1136
        %1627 = vmatprep.subr.bf16.mxu0 0
        %1628 = vmatpush2.bf16.msra.mxu0 0
        %1629 = vmatprep.subr.bf16.mxu0 0
        %1630 = vmatpush2.bf16.msra.mxu0 0
        %1631 = vmatprep.subr.bf16.mxu0 0
        %1632 = vmatpush2.bf16.msra.mxu0 0
        %1633 = vmatprep.subr.bf16.mxu0 0
        %1634 = vmatpush2.bf16.msra.mxu0 0
        %1635 = vmatprep.subr.bf16.mxu0 0
        %1636 = vmatpush2.bf16.msra.mxu0 0
        %1637 = vmatprep.subr.bf16.mxu0 0
        %1638 = vmatpush2.bf16.msra.mxu0 0
        %1639 = vmatprep.subr.bf16.mxu0 0
        %1640 = vmatpush2.bf16.msra.mxu0 0
        %1641 = vmatprep.subr.bf16.mxu0 0
        %1642 = vmatpush2.bf16.msra.mxu0 0
        %1643 = vmatprep.mubr.bf16.mxu0 0
        %1644 = vmatmul.mubr.bf16.gmra.mxu0 %v1609
        %v1645 = vpop.f32.mrf.mxu0
        %v1646 = vadd.f32 0.0, %v1645
        %v1647 = vpop.f32.mrf.mxu0
        %v1648 = vpop.f32.mrf.mxu0
        %v1649 = vpop.f32.mrf.mxu0
        %1650 = vdwg.mxu0
        %v1651 = vadd.f32 %v1603, %v1646
        %v1652 = vmul.f32 %v1651, %v485
        %v1653 = vtanh.pop %v1652
        %v1654 = vmul.f32 %v1653, %v485
        %v1655 = vadd.f32 %v1654, %v486
        %v1656 = vmul.f32 %v1655, %v1588
        %1658 = vrot.lane.b32.xlu0 %v1655, 64
        %v1659 = vpop.permute.xlu0 %1658
        %v1661 = vmul.f32 %v1655, %v1659
        %1663 = vrot.lane.b32.xlu0 %v1661, 32
        %v1664 = vpop.permute.xlu0 %1663
        %v1666 = vadd.f32 %v1656, %v1664
        %v1667 = vtanh.pop %v1666
        %1669 = vrot.lane.b32.xlu0 %v1667, 64
        %v1670 = vpop.permute.xlu0 %1669
        %v1672 = vmul.f32 %v1655, %v1670
        %1674 = vrot.lane.b32.xlu0 %v1672, 32
        %v1675 = vpop.permute.xlu0 %1674
        %s1677 = scalar_lea.vmem %s231, 8
        %1678 = vst.msk [vmem:[%s1677] sm:$0xff] %vm278, %v1675
        %v1679 = vld [vmem:[#allocation2] sm:$0xf]
        %v1680 = vunpack.c.l.bf16 %v1679
        %v1681 = vpack.c.bf16 %v1672, %v1672
        %1683 = vrot.lane.b32.xlu0 %v1681, 32
        %v1684 = vpop.permute.xlu0 %1683
        %v1686 = vsel %vm278, %v1684, 0
        %1688 = vmatprep.subr.bf16.mxu0 0
        %1689 = vmatpush1.bf16.msra.mxu0 0
        %1690 = vmatprep.subr.bf16.mxu0 0
        %1691 = vmatpush1.bf16.msra.mxu0 0
        %1692 = vmatprep.subr.bf16.mxu0 0
        %1693 = vmatpush1.bf16.msra.mxu0 0
        %1694 = vmatprep.subr.bf16.mxu0 0
        %1695 = vmatpush1.bf16.msra.mxu0 0
        %1696 = vmatprep.subr.bf16.mxu0 0
        %1697 = vmatpush1.bf16.msra.mxu0 0
        %1698 = vmatprep.subr.bf16.mxu0 0
        %1699 = vmatpush1.bf16.msra.mxu0 0
        %1700 = vmatprep.subr.bf16.mxu0 0
        %1701 = vmatpush1.bf16.msra.mxu0 %v1137
        %1702 = vmatprep.subr.bf16.mxu0 0
        %1703 = vmatpush1.bf16.msra.mxu0 %v1136
        %1704 = vmatprep.subr.bf16.mxu0 0
        %1705 = vmatpush2.bf16.msra.mxu0 0
        %1706 = vmatprep.subr.bf16.mxu0 0
        %1707 = vmatpush2.bf16.msra.mxu0 0
        %1708 = vmatprep.subr.bf16.mxu0 0
        %1709 = vmatpush2.bf16.msra.mxu0 0
        %1710 = vmatprep.subr.bf16.mxu0 0
        %1711 = vmatpush2.bf16.msra.mxu0 0
        %1712 = vmatprep.subr.bf16.mxu0 0
        %1713 = vmatpush2.bf16.msra.mxu0 0
        %1714 = vmatprep.subr.bf16.mxu0 0
        %1715 = vmatpush2.bf16.msra.mxu0 0
        %1716 = vmatprep.subr.bf16.mxu0 0
        %1717 = vmatpush2.bf16.msra.mxu0 0
        %1718 = vmatprep.subr.bf16.mxu0 0
        %1719 = vmatpush2.bf16.msra.mxu0 0
        %1720 = vmatprep.mubr.bf16.mxu0 0
        %1721 = vmatmul.mubr.bf16.gmra.mxu0 %v1686
        %v1722 = vpop.f32.mrf.mxu0
        %v1723 = vadd.f32 0.0, %v1722
        %v1724 = vpop.f32.mrf.mxu0
        %v1725 = vpop.f32.mrf.mxu0
        %v1726 = vpop.f32.mrf.mxu0
        %1727 = vdwg.mxu0
        %v1728 = vadd.f32 %v1680, %v1723
        %v1729 = vmul.f32 %v1728, %v485
        %v1730 = vtanh.pop %v1729
        %v1731 = vmul.f32 %v1730, %v485
        %v1732 = vadd.f32 %v1731, %v486
        %v1733 = vmul.f32 %v1732, %v1666
        %1735 = vrot.lane.b32.xlu0 %v1732, 64
        %v1736 = vpop.permute.xlu0 %1735
        %v1738 = vmul.f32 %v1732, %v1736
        %1740 = vrot.lane.b32.xlu0 %v1738, 32
        %v1741 = vpop.permute.xlu0 %1740
        %v1743 = vadd.f32 %v1733, %v1741
        %v1744 = vtanh.pop %v1743
        %1746 = vrot.lane.b32.xlu0 %v1744, 64
        %v1747 = vpop.permute.xlu0 %1746
        %v1749 = vmul.f32 %v1732, %v1747
        %1751 = vrot.lane.b32.xlu0 %v1749, 32
        %v1752 = vpop.permute.xlu0 %1751
        %1754 = vst.msk [vmem:[%s231] sm:$0xff] %vm278, %v1752
      $region44: #{lstm_forward.3} parent=35 // pred_fallthru
        _
      %p1755 = scmp.lt.s32.totalorder %s15, 1
      %s1756 = scalar_select %p1755, %s15, 1
      %s1757 = smul.addr %s1756, 8
      %s1758 = smul.addr %s1757, 8
      %s1759 = scalar_lea.vmem %s4, %s1758
      // Predicated region
      $region45: #{lstm_forward.3} parent=35 // pred_check
        %p1760 = pneg %p132
      $region46: #{lstm_forward.3} parent=35 // pred_check_branch
        %1762 = sbr.rel (%p1760) target = $region48
      $region47: #{lstm_forward.3} parent=35 // pred_region
        _
      $region48: #{lstm_forward.3} parent=35 // pred_fallthru
        _
    $region36: #{lstm_forward.3} parent=5 // pred_fallthru
      _
    %p1763 = scmp.le.s32.totalorder 2, %s10
    // Predicated region
    $region49: #{lstm_forward.3} parent=5 // pred_check
      %p1764 = pneg %p1763
    $region50: #{lstm_forward.3} parent=5 // pred_check_branch
      %1766 = sbr.rel (%p1764) target = $region52
    $region51: #{lstm_forward.3} parent=5 // pred_region
      %s1767 = ssub.s32 %s10, 2
      // Predicated region
      $region53: #{lstm_forward.3} parent=51 // pred_check
        %p1768 = pneg %p138
      $region54: #{lstm_forward.3} parent=51 // pred_check_branch
        %1770 = sbr.rel (%p1768) target = $region56
      $region55: #{lstm_forward.3} parent=51 // pred_region
        %p1771 = scmp.lt.s32.totalorder %s16, 1
        %s1772 = scalar_select %p1771, %s16, 1
        %s1773 = smul.addr %s1772, 8
        %s1774 = smul.addr %s1773, 8
        %s1775 = scalar_lea.vmem %s4, %s1774
      $region56: #{lstm_forward.3} parent=51 // pred_fallthru
        _
    $region52: #{lstm_forward.3} parent=5 // pred_fallthru
      _
  $region6: #{lstm_forward.3} parent=0 // loop_footer
    %s14 = sadd.s32 1, %s10
  $region7: #{lstm_forward.3} parent=0 // loop_footer_branch
    %9 = sbr.rel target = $region3
  $region8: #{lstm_forward.3} parent=0 // loop_exit
    _

// kernel: lstm_forward.3
$region0: #{lstm_forward.3}
  #allocation0 [shape = 'u32[]', space=smem, size = 0x4, offset = 0x4, fixed_abs, tag = 'smem constant byte address 0x4 - core index']
  #allocation1 [shape = 'u32[144,128]{1,0:T(1,128)}', space=vmem, size = 0x12000, scoped, tag = 'internal scratch']
  #allocation2 [shape = 'bf16[8,8,128]{2,1,0:T(8,128)(2,1)}', space=vmem, size = 0x4000, scoped, tag = 'scratch operand']
  %s0 = inlined_call_operand.vmem [shape: f32[2,8,8,32], index: 0, kind: input, shape index: {}]
  %s1 = inlined_call_operand.vmem [shape: bf16[2,64,128], index: 1, kind: input, shape index: {}]
  %s2 = inlined_call_operand.vmem [shape: bf16[2,32,128], index: 2, kind: input, shape index: {}]
  %s3 = inlined_call_operand.vmem [shape: f32[2,1,128], index: 3, kind: input, shape index: {}]
  %s4 = inlined_call_operand.vmem [shape: f32[2,8,8,32], index: 4, kind: output, shape index: {}]
  %s5 = sld [smem:[#allocation0]]
  $region57: #{lstm_forward.3} parent=0
    _
  %s7 = ssub.s32 1, %s5
  %s8 = scalar_select 0, %s7, %s5
  loop: start=0, step=1, limit=4
  $region2: #{lstm_forward.3} parent=0 // loop_pre_header
    _
  $region3: #{lstm_forward.3} parent=0 // loop_header
    %s10 = sphi 0, %s14
    %p11 = scmp.ge.s32.totalorder %s10, 4
    %s18 = sphi 0, %s18
    %s20 = sphi 0, %s18
    %s21 = sphi 0, %s20
    %s35 = sphi 0, %s21
    %s41 = sphi 0, %s43
    %s44 = sphi 0, %s41
    %s45 = sphi 0, %s44
    %s61 = sphi 0, %s45
    %s67 = sphi 0, %s69
    %s70 = sphi 0, %s67
    %s71 = sphi 0, %s70
    %s87 = sphi 0, %s71
    %s93 = sphi 0, %s95
    %s96 = sphi 0, %s93
    %s97 = sphi 0, %s96
    %s113 = sphi 0, %s97
    %s119 = sphi 0, %s121
    %s122 = sphi 0, %s119
    %s123 = sphi 0, %s122
    %s139 = sphi 0, %s123
  $region4: #{lstm_forward.3} parent=0 // loop_header_branch
    %13 = sbr.rel (%p11) target = $region8
  $region5: #{lstm_forward.3} parent=0 // loop_body
    %s15 = ssub.s32 %s10, 1
    %s16 = ssub.s32 %s10, 2
    %s17 = sadd.s32 %s10, 1
    %s19 = sadd.s32 %s18, 1
    %p22 = scmp.eq.s32.totalorder %s10, 1
    %p23 = scmp.ne.s32.totalorder %s18, %s20
    %p24 = scmp.eq.s32.totalorder %s10, 0
    %p25 = por %p23, %p24
    %p26 = scmp.ne.s32.totalorder %s18, %s20
    %p27 = scmp.eq.s32.totalorder %s15, 1
    %p28 = por %p26, %p27
    %p29 = scmp.ne.s32.totalorder %s20, %s21
    %p30 = scmp.eq.s32.totalorder %s15, 0
    %p31 = por %p29, %p30
    %p32 = scmp.ne.s32.totalorder %s20, %s21
    %p33 = scmp.eq.s32.totalorder %s16, 1
    %p34 = por %p32, %p33
    %p36 = scmp.ne.s32.totalorder %s21, %s35
    %p37 = scmp.eq.s32.totalorder %s16, 0
    %p38 = por %p36, %p37
    %s39 = ssub.s32 %s10, %s17
    %p40 = scmp.eq.s32.totalorder %s39, 0
    %s42 = sadd.s32 %s41, 1
    %s43 = scalar_select %p40, %s41, %s42
    %p46 = pneg %p40
    %p47 = scmp.eq.s32.totalorder %s10, 1
    %p48 = por %p46, %p47
    %p49 = scmp.ne.s32.totalorder %s41, %s44
    %p50 = scmp.eq.s32.totalorder %s10, 0
    %p51 = por %p49, %p50
    %p52 = scmp.ne.s32.totalorder %s41, %s44
    %p53 = scmp.eq.s32.totalorder %s15, 1
    %p54 = por %p52, %p53
    %p55 = scmp.ne.s32.totalorder %s44, %s45
    %p56 = scmp.eq.s32.totalorder %s15, 0
    %p57 = por %p55, %p56
    %p58 = scmp.ne.s32.totalorder %s44, %s45
    %p59 = scmp.eq.s32.totalorder %s16, 1
    %p60 = por %p58, %p59
    %p62 = scmp.ne.s32.totalorder %s45, %s61
    %p63 = scmp.eq.s32.totalorder %s16, 0
    %p64 = por %p62, %p63
    %s65 = ssub.s32 %s10, %s17
    %p66 = scmp.eq.s32.totalorder %s65, 0
    %s68 = sadd.s32 %s67, 1
    %s69 = scalar_select %p66, %s67, %s68
    %p72 = pneg %p66
    %p73 = scmp.eq.s32.totalorder %s10, 1
    %p74 = por %p72, %p73
    %p75 = scmp.ne.s32.totalorder %s67, %s70
    %p76 = scmp.eq.s32.totalorder %s10, 0
    %p77 = por %p75, %p76
    %p78 = scmp.ne.s32.totalorder %s67, %s70
    %p79 = scmp.eq.s32.totalorder %s15, 1
    %p80 = por %p78, %p79
    %p81 = scmp.ne.s32.totalorder %s70, %s71
    %p82 = scmp.eq.s32.totalorder %s15, 0
    %p83 = por %p81, %p82
    %p84 = scmp.ne.s32.totalorder %s70, %s71
    %p85 = scmp.eq.s32.totalorder %s16, 1
    %p86 = por %p84, %p85
    %p88 = scmp.ne.s32.totalorder %s71, %s87
    %p89 = scmp.eq.s32.totalorder %s16, 0
    %p90 = por %p88, %p89
    %s91 = ssub.s32 %s10, %s17
    %p92 = scmp.eq.s32.totalorder %s91, 0
    %s94 = sadd.s32 %s93, 1
    %s95 = scalar_select %p92, %s93, %s94
    %p98 = pneg %p92
    %p99 = scmp.eq.s32.totalorder %s10, 1
    %p100 = por %p98, %p99
    %p101 = scmp.ne.s32.totalorder %s93, %s96
    %p102 = scmp.eq.s32.totalorder %s10, 0
    %p103 = por %p101, %p102
    %p104 = scmp.ne.s32.totalorder %s93, %s96
    %p105 = scmp.eq.s32.totalorder %s15, 1
    %p106 = por %p104, %p105
    %p107 = scmp.ne.s32.totalorder %s96, %s97
    %p108 = scmp.eq.s32.totalorder %s15, 0
    %p109 = por %p107, %p108
    %p110 = scmp.ne.s32.totalorder %s96, %s97
    %p111 = scmp.eq.s32.totalorder %s16, 1
    %p112 = por %p110, %p111
    %p114 = scmp.ne.s32.totalorder %s97, %s113
    %p115 = scmp.eq.s32.totalorder %s16, 0
    %p116 = por %p114, %p115
    %s117 = ssub.s32 %s10, %s17
    %p118 = scmp.eq.s32.totalorder %s117, 0
    %s120 = sadd.s32 %s119, 1
    %s121 = scalar_select %p118, %s119, %s120
    %p124 = pneg %p118
    %p125 = scmp.eq.s32.totalorder %s10, 1
    %p126 = por %p124, %p125
    %p127 = scmp.ne.s32.totalorder %s119, %s122
    %p128 = scmp.eq.s32.totalorder %s10, 0
    %p129 = por %p127, %p128
    %p130 = scmp.ne.s32.totalorder %s119, %s122
    %p131 = scmp.eq.s32.totalorder %s15, 1
    %p132 = por %p130, %p131
    %p133 = scmp.ne.s32.totalorder %s122, %s123
    %p134 = scmp.eq.s32.totalorder %s15, 0
    %p135 = por %p133, %p134
    %p136 = scmp.ne.s32.totalorder %s122, %s123
    %p137 = scmp.eq.s32.totalorder %s16, 1
    %p138 = por %p136, %p137
    %p140 = scmp.ne.s32.totalorder %s123, %s139
    %p141 = scmp.eq.s32.totalorder %s16, 0
    %p142 = por %p140, %p141
    %p143 = scmp.le.s32.totalorder 1, %s10
    %p144 = scmp.lt.s32.totalorder %s10, 3
    %p145 = pnand %p143, %p144
    %p146 = pneg %p145
    // Predicated region
    $region9: #{lstm_forward.3} parent=5 // pred_check
      _
    $region10: #{lstm_forward.3} parent=5 // pred_check_branch
      %148 = sbr.rel (%p145) target = $region12
    $region11: #{lstm_forward.3} parent=5 // pred_region
      %s149 = ssub.s32 %s10, 1
      // Predicated region
      $region13: #{lstm_forward.3} parent=11 // pred_check
        %p150 = pneg %p31
      $region14: #{lstm_forward.3} parent=11 // pred_check_branch
        %152 = sbr.rel (%p150) target = $region16
      $region15: #{lstm_forward.3} parent=11 // pred_region
        _
      $region16: #{lstm_forward.3} parent=11 // pred_fallthru
        _
    $region12: #{lstm_forward.3} parent=5 // pred_fallthru
      _
    %p153 = scmp.lt.s32.totalorder %s10, 2
    // Predicated region
    $region17: #{lstm_forward.3} parent=5 // pred_check
      %p154 = pneg %p153
    $region18: #{lstm_forward.3} parent=5 // pred_check_branch
      %156 = sbr.rel (%p154) target = $region20
    $region19: #{lstm_forward.3} parent=5 // pred_region
      // Predicated region
      $region21: #{lstm_forward.3} parent=19 // pred_check
        %p157 = pneg %p51
      $region22: #{lstm_forward.3} parent=19 // pred_check_branch
        %159 = sbr.rel (%p157) target = $region24
      $region23: #{lstm_forward.3} parent=19 // pred_region
        %p160 = scmp.lt.s32.totalorder %s10, 1
        %s161 = scalar_select %p160, %s10, 1
        %s162 = smul.addr %s161, 8
        %s163 = smul.addr %s162, 4
        %s164 = scalar_lea.vmem %s1, %s163
      $region24: #{lstm_forward.3} parent=19 // pred_fallthru
        _
      // Predicated region
      $region25: #{lstm_forward.3} parent=19 // pred_check
        %p165 = pneg %p77
      $region26: #{lstm_forward.3} parent=19 // pred_check_branch
        %167 = sbr.rel (%p165) target = $region28
      $region27: #{lstm_forward.3} parent=19 // pred_region
        %p168 = scmp.lt.s32.totalorder %s10, 1
        %s169 = scalar_select %p168, %s10, 1
        %s170 = smul.addr %s169, 4
        %s171 = smul.addr %s170, 4
        %s172 = scalar_lea.vmem %s2, %s171
      $region28: #{lstm_forward.3} parent=19 // pred_fallthru
        _
      // Predicated region
      $region29: #{lstm_forward.3} parent=19 // pred_check
        %p173 = pneg %p103
      $region30: #{lstm_forward.3} parent=19 // pred_check_branch
        %175 = sbr.rel (%p173) target = $region32
      $region31: #{lstm_forward.3} parent=19 // pred_region
        %p176 = scmp.lt.s32.totalorder %s10, 1
        %s177 = scalar_select %p176, %s10, 1
        %s178 = scalar_lea.vmem %s3, %s177
      $region32: #{lstm_forward.3} parent=19 // pred_fallthru
        _
    $region20: #{lstm_forward.3} parent=5 // pred_fallthru
      _
    %p179 = scmp.le.s32.totalorder 1, %s10
    %p180 = scmp.lt.s32.totalorder %s10, 3
    %p181 = pnand %p179, %p180
    %p182 = pneg %p181
    // Predicated region
    $region33: #{lstm_forward.3} parent=5 // pred_check
      _
    $region34: #{lstm_forward.3} parent=5 // pred_check_branch
      %184 = sbr.rel (%p181) target = $region36
    $region35: #{lstm_forward.3} parent=5 // pred_region
      %s185 = ssub.s32 %s10, 1
      %p186 = pneg %p31
      %p187 = pneg %p28
      %p188 = scmp.lt.s32.totalorder %s15, 1
      %s189 = scalar_select %p188, %s15, 1
      %s190 = smul.addr %s189, 8
      %s191 = smul.addr %s190, 4
      %s192 = scalar_lea.vmem %s1, %s191
      %p193 = pneg %p57
      %p194 = pneg %p54
      %p195 = scmp.lt.s32.totalorder %s15, 1
      %s196 = scalar_select %p195, %s15, 1
      %s197 = smul.addr %s196, 4
      %s198 = smul.addr %s197, 4
      %s199 = scalar_lea.vmem %s2, %s198
      %p200 = pneg %p83
      %p201 = pneg %p80
      %p202 = scmp.lt.s32.totalorder %s15, 1
      %s203 = scalar_select %p202, %s15, 1
      %s204 = scalar_lea.vmem %s3, %s203
      %p205 = pneg %p109
      %p206 = pneg %p106
      %p207 = pneg %p135
      %p208 = pneg %p132
      %p209 = scmp.lt.s32.totalorder %s15, 1
      %s210 = scalar_select %p209, %s15, 1
      %s211 = smul.addr %s210, 8
      %s212 = smul.addr %s211, 8
      %s213 = scalar_lea.vmem %s4, %s212
      %p214 = scmp.lt.s32.totalorder %s15, 1
      %s215 = scalar_select %p214, %s15, 1
      %s216 = smul.addr %s215, 8
      %s217 = smul.addr %s216, 4
      %s218 = scalar_lea.vmem %s1, %s217
      %p219 = scmp.lt.s32.totalorder %s15, 1
      %s220 = scalar_select %p219, %s15, 1
      %s221 = smul.addr %s220, 4
      %s222 = smul.addr %s221, 4
      %s223 = scalar_lea.vmem %s2, %s222
      %p224 = scmp.lt.s32.totalorder %s15, 1
      %s225 = scalar_select %p224, %s15, 1
      %s226 = scalar_lea.vmem %s3, %s225
      %p227 = scmp.lt.s32.totalorder %s15, 1
      %s228 = scalar_select %p227, %s15, 1
      %s229 = smul.addr %s228, 8
      %s230 = smul.addr %s229, 8
      %s231 = scalar_lea.vmem %s4, %s230
      %v233 = vld [vmem:[%s0] sm:$0xff]
      %v234 = vld [vmem:[%s0 + $0x8] sm:$0xff]
      %v235 = vld [vmem:[%s0 + $0x10] sm:$0xff]
      %v236 = vld [vmem:[%s0 + $0x18] sm:$0xff]
      %v237 = vld [vmem:[%s0 + $0x20] sm:$0xff]
      %v238 = vld [vmem:[%s0 + $0x28] sm:$0xff]
      %v239 = vld [vmem:[%s0 + $0x30] sm:$0xff]
      %v240 = vld [vmem:[%s0 + $0x38] sm:$0xff]
      %v241 = vpack.c.bf16 %v234, %v233
      %v242 = vpack.c.bf16 %v236, %v235
      %v243 = vpack.c.bf16 %v238, %v237
      %v244 = vpack.c.bf16 %v240, %v239
      %v245 = vld [vmem:[%s218] sm:$0xf]
      %v246 = vld [vmem:[%s218 + $0x4] sm:$0xf]
      %v247 = vld [vmem:[%s218 + $0x8] sm:$0xf]
      %v248 = vld [vmem:[%s218 + $0xc] sm:$0xf]
      %s249 = scalar_lea.vmem %s0, 64
      %v250 = vld [vmem:[%s249] sm:$0xff]
      %v251 = vld [vmem:[%s249 + $0x8] sm:$0xff]
      %v252 = vld [vmem:[%s249 + $0x10] sm:$0xff]
      %v253 = vld [vmem:[%s249 + $0x18] sm:$0xff]
      %v254 = vld [vmem:[%s249 + $0x20] sm:$0xff]
      %v255 = vld [vmem:[%s249 + $0x28] sm:$0xff]
      %v256 = vld [vmem:[%s249 + $0x30] sm:$0xff]
      %v257 = vld [vmem:[%s249 + $0x38] sm:$0xff]
      %v258 = vpack.c.bf16 %v251, %v250
      %v259 = vpack.c.bf16 %v253, %v252
      %v260 = vpack.c.bf16 %v255, %v254
      %v261 = vpack.c.bf16 %v257, %v256
      %v262 = vld [vmem:[%s218 + $0x10] sm:$0xf]
      %v263 = vld [vmem:[%s218 + $0x14] sm:$0xf]
      %v264 = vld [vmem:[%s218 + $0x18] sm:$0xf]
      %v265 = vld [vmem:[%s218 + $0x1c] sm:$0xf]
      %v270 = vunpack.c.l.b16 %v262
      %v271 = vunpack.c.l.b16 %v263
      %v272 = vunpack.c.l.b16 %v264
      %v273 = vunpack.c.l.b16 %v265
      %v274 = vpack.c.b16 %v271, %v270
      %v275 = vpack.c.b16 %v273, %v272
      %vm278 = vcmask 261120
      %v280 = vsel %vm278, %v258, 0
      %v283 = vsel %vm278, %v259, 0
      %v286 = vsel %vm278, %v260, 0
      %v289 = vsel %vm278, %v261, 0
      %291 = vmatprep.subr.bf16.mxu0 0
      %292 = vmatpush1.bf16.msra.mxu0 0
      %293 = vmatprep.subr.bf16.mxu0 0
      %294 = vmatpush1.bf16.msra.mxu0 0
      %295 = vmatprep.subr.bf16.mxu0 0
      %296 = vmatpush1.bf16.msra.mxu0 0
      %297 = vmatprep.subr.bf16.mxu0 0
      %298 = vmatpush1.bf16.msra.mxu0 0
      %299 = vmatprep.subr.bf16.mxu0 0
      %300 = vmatpush1.bf16.msra.mxu0 0
      %301 = vmatprep.subr.bf16.mxu0 0
      %302 = vmatpush1.bf16.msra.mxu0 0
      %303 = vmatprep.subr.bf16.mxu0 0
      %304 = vmatpush1.bf16.msra.mxu0 %v275
      %305 = vmatprep.subr.bf16.mxu0 0
      %306 = vmatpush1.bf16.msra.mxu0 %v274
      %307 = vmatprep.subr.bf16.mxu0 0
      %308 = vmatpush2.bf16.msra.mxu0 0
      %309 = vmatprep.subr.bf16.mxu0 0
      %310 = vmatpush2.bf16.msra.mxu0 0
      %311 = vmatprep.subr.bf16.mxu0 0
      %312 = vmatpush2.bf16.msra.mxu0 0
      %313 = vmatprep.subr.bf16.mxu0 0
      %314 = vmatpush2.bf16.msra.mxu0 0
      %315 = vmatprep.subr.bf16.mxu0 0
      %316 = vmatpush2.bf16.msra.mxu0 0
      %317 = vmatprep.subr.bf16.mxu0 0
      %318 = vmatpush2.bf16.msra.mxu0 0
      %319 = vmatprep.subr.bf16.mxu0 0
      %320 = vmatpush2.bf16.msra.mxu0 0
      %321 = vmatprep.subr.bf16.mxu0 0
      %322 = vmatpush2.bf16.msra.mxu0 0
      %323 = vmatprep.mubr.bf16.mxu0 0
      %324 = vmatmul.mubr.bf16.gmra.mxu0 %v280
      %v325 = vpop.f32.mrf.mxu0
      %v326 = vadd.f32 0.0, %v325
      %v327 = vpop.f32.mrf.mxu0
      %v328 = vpop.f32.mrf.mxu0
      %v329 = vadd.f32 0.0, %v328
      %v330 = vpop.f32.mrf.mxu0
      %331 = vmatprep.mubr.bf16.mxu0 0
      %332 = vmatmul.mubr.bf16.gmra.mxu0 %v283
      %v333 = vpop.f32.mrf.mxu0
      %v334 = vadd.f32 0.0, %v333
      %v335 = vpop.f32.mrf.mxu0
      %v336 = vpop.f32.mrf.mxu0
      %v337 = vadd.f32 0.0, %v336
      %v338 = vpop.f32.mrf.mxu0
      %339 = vmatprep.mubr.bf16.mxu0 0
      %340 = vmatmul.mubr.bf16.gmra.mxu0 %v286
      %v341 = vpop.f32.mrf.mxu0
      %v342 = vadd.f32 0.0, %v341
      %v343 = vpop.f32.mrf.mxu0
      %v344 = vpop.f32.mrf.mxu0
      %v345 = vadd.f32 0.0, %v344
      %v346 = vpop.f32.mrf.mxu0
      %347 = vmatprep.mubr.bf16.mxu0 0
      %348 = vmatmul.mubr.bf16.gmra.mxu0 %v289
      %v349 = vpop.f32.mrf.mxu0
      %v350 = vadd.f32 0.0, %v349
      %v351 = vpop.f32.mrf.mxu0
      %v352 = vpop.f32.mrf.mxu0
      %v353 = vadd.f32 0.0, %v352
      %v354 = vpop.f32.mrf.mxu0
      %355 = vdwg.mxu0
      %v360 = vunpack.c.l.b16 %v245
      %v361 = vunpack.c.l.b16 %v246
      %v362 = vunpack.c.l.b16 %v247
      %v363 = vunpack.c.l.b16 %v248
      %v364 = vpack.c.b16 %v361, %v360
      %v365 = vpack.c.b16 %v363, %v362
      %v369 = vsel %vm278, %v241, 0
      %v372 = vsel %vm278, %v242, 0
      %v375 = vsel %vm278, %v243, 0
      %v378 = vsel %vm278, %v244, 0
      %380 = vmatprep.subr.bf16.mxu0 0
      %381 = vmatpush1.bf16.msra.mxu0 0
      %382 = vmatprep.subr.bf16.mxu0 0
      %383 = vmatpush1.bf16.msra.mxu0 0
      %384 = vmatprep.subr.bf16.mxu0 0
      %385 = vmatpush1.bf16.msra.mxu0 0
      %386 = vmatprep.subr.bf16.mxu0 0
      %387 = vmatpush1.bf16.msra.mxu0 0
      %388 = vmatprep.subr.bf16.mxu0 0
      %389 = vmatpush1.bf16.msra.mxu0 0
      %390 = vmatprep.subr.bf16.mxu0 0
      %391 = vmatpush1.bf16.msra.mxu0 0
      %392 = vmatprep.subr.bf16.mxu0 0
      %393 = vmatpush1.bf16.msra.mxu0 %v365
      %394 = vmatprep.subr.bf16.mxu0 0
      %395 = vmatpush1.bf16.msra.mxu0 %v364
      %396 = vmatprep.subr.bf16.mxu0 0
      %397 = vmatpush2.bf16.msra.mxu0 0
      %398 = vmatprep.subr.bf16.mxu0 0
      %399 = vmatpush2.bf16.msra.mxu0 0
      %400 = vmatprep.subr.bf16.mxu0 0
      %401 = vmatpush2.bf16.msra.mxu0 0
      %402 = vmatprep.subr.bf16.mxu0 0
      %403 = vmatpush2.bf16.msra.mxu0 0
      %404 = vmatprep.subr.bf16.mxu0 0
      %405 = vmatpush2.bf16.msra.mxu0 0
      %406 = vmatprep.subr.bf16.mxu0 0
      %407 = vmatpush2.bf16.msra.mxu0 0
      %408 = vmatprep.subr.bf16.mxu0 0
      %409 = vmatpush2.bf16.msra.mxu0 0
      %410 = vmatprep.subr.bf16.mxu0 0
      %411 = vmatpush2.bf16.msra.mxu0 0
      %412 = vmatprep.mubr.bf16.mxu0 0
      %413 = vmatmul.mubr.bf16.gmra.mxu0 %v369
      %v414 = vpop.f32.mrf.mxu0
      %v415 = vadd.f32 %v326, %v414
      %v416 = vpop.f32.mrf.mxu0
      %v417 = vpop.f32.mrf.mxu0
      %v418 = vadd.f32 %v329, %v417
      %v419 = vpop.f32.mrf.mxu0
      %420 = vmatprep.mubr.bf16.mxu0 0
      %421 = vmatmul.mubr.bf16.gmra.mxu0 %v372
      %v422 = vpop.f32.mrf.mxu0
      %v423 = vadd.f32 %v334, %v422
      %v424 = vpop.f32.mrf.mxu0
      %v425 = vpop.f32.mrf.mxu0
      %v426 = vadd.f32 %v337, %v425
      %v427 = vpop.f32.mrf.mxu0
      %428 = vmatprep.mubr.bf16.mxu0 0
      %429 = vmatmul.mubr.bf16.gmra.mxu0 %v375
      %v430 = vpop.f32.mrf.mxu0
      %v431 = vadd.f32 %v342, %v430
      %v432 = vpop.f32.mrf.mxu0
      %v433 = vpop.f32.mrf.mxu0
      %v434 = vadd.f32 %v345, %v433
      %v435 = vpop.f32.mrf.mxu0
      %436 = vmatprep.mubr.bf16.mxu0 0
      %437 = vmatmul.mubr.bf16.gmra.mxu0 %v378
      %v438 = vpop.f32.mrf.mxu0
      %v439 = vadd.f32 %v350, %v438
      %v440 = vpop.f32.mrf.mxu0
      %v441 = vpop.f32.mrf.mxu0
      %v442 = vadd.f32 %v353, %v441
      %v443 = vpop.f32.mrf.mxu0
      %444 = vdwg.mxu0
      %v445 = vld [vmem:[%s226] sm:$0x1]
      %v447 = vlaneseq
      %v448 = vshrl.u32 %v447, 7
      %v449 = vsub.s32 0, %v448
      %v450 = vrot.slane %v445, %v449
      %v452 = vadd.f32 %v415, %v450
      %v453 = vadd.f32 %v418, %v450
      %v454 = vadd.f32 %v423, %v450
      %v455 = vadd.f32 %v426, %v450
      %v456 = vadd.f32 %v431, %v450
      %v457 = vadd.f32 %v434, %v450
      %v458 = vadd.f32 %v439, %v450
      %v459 = vadd.f32 %v442, %v450
      %v460 = vpack.c.bf16 %v452, %v452
      %v461 = vpack.c.bf16 %v453, %v453
      %v462 = vpack.c.bf16 %v454, %v454
      %v463 = vpack.c.bf16 %v455, %v455
      %v464 = vpack.c.bf16 %v456, %v456
      %v465 = vpack.c.bf16 %v457, %v457
      %v466 = vpack.c.bf16 %v458, %v458
      %v467 = vpack.c.bf16 %v459, %v459
      %468 = vst [vmem:[#allocation2] sm:$0xf] %v460
      %469 = vst [vmem:[#allocation2 + $0x4] sm:$0xf] %v461
      %470 = vst [vmem:[#allocation2 + $0x8] sm:$0xf] %v462
      %471 = vst [vmem:[#allocation2 + $0xc] sm:$0xf] %v463
      %472 = vst [vmem:[#allocation2 + $0x10] sm:$0xf] %v464
      %473 = vst [vmem:[#allocation2 + $0x14] sm:$0xf] %v465
      %474 = vst [vmem:[#allocation2 + $0x18] sm:$0xf] %v466
      %475 = vst [vmem:[#allocation2 + $0x1c] sm:$0xf] %v467
      %v476 = vld [vmem:[%s223] sm:$0xf]
      %v477 = vld [vmem:[%s223 + $0x4] sm:$0xf]
      %v478 = vld [vmem:[%s223 + $0x8] sm:$0xf]
      %v479 = vld [vmem:[%s223 + $0xc] sm:$0xf]
      %v480 = vlaneseq
      %v481 = vand.u32 %v480, 127
      %vm482 = vcmp.ge.s32.totalorder %v481, 64
      %vm483 = vcmp.lt.s32.totalorder %v481, 96
      %vm484 = vmand %vm482, %vm483
      %v485 = vsel %vm484, 1.0, 0.5
      %v486 = vsel %vm484, 0.0, 0.5
      %p487 = scmp.eq.s32.totalorder %s15, 0
      // Predicated region
      $region37: #{lstm_forward.3} parent=35 // pred_check
        %p488 = pneg %p487
      $region38: #{lstm_forward.3} parent=35 // pred_check_branch
        %490 = sbr.rel (%p488) target = $region40
      $region39: #{lstm_forward.3} parent=35 // pred_region
        %v491 = vld [vmem:[#allocation2] sm:$0xf]
        %v492 = vunpack.c.l.bf16 %v491
        %v497 = vunpack.c.l.b16 %v476
        %v498 = vunpack.c.l.b16 %v477
        %v499 = vunpack.c.l.b16 %v478
        %v500 = vunpack.c.l.b16 %v479
        %v501 = vpack.c.b16 %v498, %v497
        %v502 = vpack.c.b16 %v500, %v499
        %v506 = vsel %vm278, 0, 0
        %508 = vmatprep.subr.bf16.mxu0 0
        %509 = vmatpush1.bf16.msra.mxu0 0
        %510 = vmatprep.subr.bf16.mxu0 0
        %511 = vmatpush1.bf16.msra.mxu0 0
        %512 = vmatprep.subr.bf16.mxu0 0
        %513 = vmatpush1.bf16.msra.mxu0 0
        %514 = vmatprep.subr.bf16.mxu0 0
        %515 = vmatpush1.bf16.msra.mxu0 0
        %516 = vmatprep.subr.bf16.mxu0 0
        %517 = vmatpush1.bf16.msra.mxu0 0
        %518 = vmatprep.subr.bf16.mxu0 0
        %519 = vmatpush1.bf16.msra.mxu0 0
        %520 = vmatprep.subr.bf16.mxu0 0
        %521 = vmatpush1.bf16.msra.mxu0 %v502
        %522 = vmatprep.subr.bf16.mxu0 0
        %523 = vmatpush1.bf16.msra.mxu0 %v501
        %524 = vmatprep.subr.bf16.mxu0 0
        %525 = vmatpush2.bf16.msra.mxu0 0
        %526 = vmatprep.subr.bf16.mxu0 0
        %527 = vmatpush2.bf16.msra.mxu0 0
        %528 = vmatprep.subr.bf16.mxu0 0
        %529 = vmatpush2.bf16.msra.mxu0 0
        %530 = vmatprep.subr.bf16.mxu0 0
        %531 = vmatpush2.bf16.msra.mxu0 0
        %532 = vmatprep.subr.bf16.mxu0 0
        %533 = vmatpush2.bf16.msra.mxu0 0
        %534 = vmatprep.subr.bf16.mxu0 0
        %535 = vmatpush2.bf16.msra.mxu0 0
        %536 = vmatprep.subr.bf16.mxu0 0
        %537 = vmatpush2.bf16.msra.mxu0 0
        %538 = vmatprep.subr.bf16.mxu0 0
        %539 = vmatpush2.bf16.msra.mxu0 0
        %540 = vmatprep.mubr.bf16.mxu0 0
        %541 = vmatmul.mubr.bf16.gmra.mxu0 %v506
        %v542 = vpop.f32.mrf.mxu0
        %v543 = vadd.f32 0.0, %v542
        %v544 = vpop.f32.mrf.mxu0
        %v545 = vpop.f32.mrf.mxu0
        %v546 = vpop.f32.mrf.mxu0
        %547 = vdwg.mxu0
        %v548 = vadd.f32 %v492, %v543
        %v549 = vmul.f32 %v548, %v485
        %v550 = vtanh.pop %v549
        %v551 = vmul.f32 %v550, %v485
        %v552 = vadd.f32 %v551, %v486
        %v553 = vmul.f32 %v552, 0.0
        %555 = vrot.lane.b32.xlu0 %v552, 64
        %v556 = vpop.permute.xlu0 %555
        %v558 = vmul.f32 %v552, %v556
        %560 = vrot.lane.b32.xlu0 %v558, 32
        %v561 = vpop.permute.xlu0 %560
        %v563 = vadd.f32 %v553, %v561
        %v564 = vtanh.pop %v563
        %566 = vrot.lane.b32.xlu0 %v564, 64
        %v567 = vpop.permute.xlu0 %566
        %v569 = vmul.f32 %v552, %v567
        %571 = vrot.lane.b32.xlu0 %v569, 32
        %v572 = vpop.permute.xlu0 %571
        %574 = vst.msk [vmem:[%s231] sm:$0xff] %vm278, %v572
        %s575 = scalar_lea.vmem [#allocation2], 4
        %v576 = vld [vmem:[%s575] sm:$0xf]
        %v577 = vunpack.c.l.bf16 %v576
        %v578 = vpack.c.bf16 %v569, %v569
        %580 = vrot.lane.b32.xlu0 %v578, 32
        %v581 = vpop.permute.xlu0 %580
        %v583 = vsel %vm278, %v581, 0
        %585 = vmatprep.subr.bf16.mxu0 0
        %586 = vmatpush1.bf16.msra.mxu0 0
        %587 = vmatprep.subr.bf16.mxu0 0
        %588 = vmatpush1.bf16.msra.mxu0 0
        %589 = vmatprep.subr.bf16.mxu0 0
        %590 = vmatpush1.bf16.msra.mxu0 0
        %591 = vmatprep.subr.bf16.mxu0 0
        %592 = vmatpush1.bf16.msra.mxu0 0
        %593 = vmatprep.subr.bf16.mxu0 0
        %594 = vmatpush1.bf16.msra.mxu0 0
        %595 = vmatprep.subr.bf16.mxu0 0
        %596 = vmatpush1.bf16.msra.mxu0 0
        %597 = vmatprep.subr.bf16.mxu0 0
        %598 = vmatpush1.bf16.msra.mxu0 %v502
        %599 = vmatprep.subr.bf16.mxu0 0
        %600 = vmatpush1.bf16.msra.mxu0 %v501
        %601 = vmatprep.subr.bf16.mxu0 0
        %602 = vmatpush2.bf16.msra.mxu0 0
        %603 = vmatprep.subr.bf16.mxu0 0
        %604 = vmatpush2.bf16.msra.mxu0 0
        %605 = vmatprep.subr.bf16.mxu0 0
        %606 = vmatpush2.bf16.msra.mxu0 0
        %607 = vmatprep.subr.bf16.mxu0 0
        %608 = vmatpush2.bf16.msra.mxu0 0
        %609 = vmatprep.subr.bf16.mxu0 0
        %610 = vmatpush2.bf16.msra.mxu0 0
        %611 = vmatprep.subr.bf16.mxu0 0
        %612 = vmatpush2.bf16.msra.mxu0 0
        %613 = vmatprep.subr.bf16.mxu0 0
        %614 = vmatpush2.bf16.msra.mxu0 0
        %615 = vmatprep.subr.bf16.mxu0 0
        %616 = vmatpush2.bf16.msra.mxu0 0
        %617 = vmatprep.mubr.bf16.mxu0 0
        %618 = vmatmul.mubr.bf16.gmra.mxu0 %v583
        %v619 = vpop.f32.mrf.mxu0
        %v620 = vadd.f32 0.0, %v619
        %v621 = vpop.f32.mrf.mxu0
        %v622 = vpop.f32.mrf.mxu0
        %v623 = vpop.f32.mrf.mxu0
        %624 = vdwg.mxu0
        %v625 = vadd.f32 %v577, %v620
        %v626 = vmul.f32 %v625, %v485
        %v627 = vtanh.pop %v626
        %v628 = vmul.f32 %v627, %v485
        %v629 = vadd.f32 %v628, %v486
        %v630 = vmul.f32 %v629, %v563
        %632 = vrot.lane.b32.xlu0 %v629, 64
        %v633 = vpop.permute.xlu0 %632
        %v635 = vmul.f32 %v629, %v633
        %637 = vrot.lane.b32.xlu0 %v635, 32
        %v638 = vpop.permute.xlu0 %637
        %v640 = vadd.f32 %v630, %v638
        %v641 = vtanh.pop %v640
        %643 = vrot.lane.b32.xlu0 %v641, 64
        %v644 = vpop.permute.xlu0 %643
        %v646 = vmul.f32 %v629, %v644
        %648 = vrot.lane.b32.xlu0 %v646, 32
        %v649 = vpop.permute.xlu0 %648
        %s651 = scalar_lea.vmem %s231, 8
        %652 = vst.msk [vmem:[%s651] sm:$0xff] %vm278, %v649
        %s653 = scalar_lea.vmem [#allocation2], 8
        %v654 = vld [vmem:[%s653] sm:$0xf]
        %v655 = vunpack.c.l.bf16 %v654
        %v656 = vpack.c.bf16 %v646, %v646
        %658 = vrot.lane.b32.xlu0 %v656, 32
        %v659 = vpop.permute.xlu0 %658
        %v661 = vsel %vm278, %v659, 0
        %663 = vmatprep.subr.bf16.mxu0 0
        %664 = vmatpush1.bf16.msra.mxu0 0
        %665 = vmatprep.subr.bf16.mxu0 0
        %666 = vmatpush1.bf16.msra.mxu0 0
        %667 = vmatprep.subr.bf16.mxu0 0
        %668 = vmatpush1.bf16.msra.mxu0 0
        %669 = vmatprep.subr.bf16.mxu0 0
        %670 = vmatpush1.bf16.msra.mxu0 0
        %671 = vmatprep.subr.bf16.mxu0 0
        %672 = vmatpush1.bf16.msra.mxu0 0
        %673 = vmatprep.subr.bf16.mxu0 0
        %674 = vmatpush1.bf16.msra.mxu0 0
        %675 = vmatprep.subr.bf16.mxu0 0
        %676 = vmatpush1.bf16.msra.mxu0 %v502
        %677 = vmatprep.subr.bf16.mxu0 0
        %678 = vmatpush1.bf16.msra.mxu0 %v501
        %679 = vmatprep.subr.bf16.mxu0 0
        %680 = vmatpush2.bf16.msra.mxu0 0
        %681 = vmatprep.subr.bf16.mxu0 0
        %682 = vmatpush2.bf16.msra.mxu0 0
        %683 = vmatprep.subr.bf16.mxu0 0
        %684 = vmatpush2.bf16.msra.mxu0 0
        %685 = vmatprep.subr.bf16.mxu0 0
        %686 = vmatpush2.bf16.msra.mxu0 0
        %687 = vmatprep.subr.bf16.mxu0 0
        %688 = vmatpush2.bf16.msra.mxu0 0
        %689 = vmatprep.subr.bf16.mxu0 0
        %690 = vmatpush2.bf16.msra.mxu0 0
        %691 = vmatprep.subr.bf16.mxu0 0
        %692 = vmatpush2.bf16.msra.mxu0 0
        %693 = vmatprep.subr.bf16.mxu0 0
        %694 = vmatpush2.bf16.msra.mxu0 0
        %695 = vmatprep.mubr.bf16.mxu0 0
        %696 = vmatmul.mubr.bf16.gmra.mxu0 %v661
        %v697 = vpop.f32.mrf.mxu0
        %v698 = vadd.f32 0.0, %v697
        %v699 = vpop.f32.mrf.mxu0
        %v700 = vpop.f32.mrf.mxu0
        %v701 = vpop.f32.mrf.mxu0
        %702 = vdwg.mxu0
        %v703 = vadd.f32 %v655, %v698
        %v704 = vmul.f32 %v703, %v485
        %v705 = vtanh.pop %v704
        %v706 = vmul.f32 %v705, %v485
        %v707 = vadd.f32 %v706, %v486
        %v708 = vmul.f32 %v707, %v640
        %710 = vrot.lane.b32.xlu0 %v707, 64
        %v711 = vpop.permute.xlu0 %710
        %v713 = vmul.f32 %v707, %v711
        %715 = vrot.lane.b32.xlu0 %v713, 32
        %v716 = vpop.permute.xlu0 %715
        %v718 = vadd.f32 %v708, %v716
        %v719 = vtanh.pop %v718
        %721 = vrot.lane.b32.xlu0 %v719, 64
        %v722 = vpop.permute.xlu0 %721
        %v724 = vmul.f32 %v707, %v722
        %726 = vrot.lane.b32.xlu0 %v724, 32
        %v727 = vpop.permute.xlu0 %726
        %s729 = scalar_lea.vmem %s231, 16
        %730 = vst.msk [vmem:[%s729] sm:$0xff] %vm278, %v727
        %s731 = scalar_lea.vmem [#allocation2], 12
        %v732 = vld [vmem:[%s731] sm:$0xf]
        %v733 = vunpack.c.l.bf16 %v732
        %v734 = vpack.c.bf16 %v724, %v724
        %736 = vrot.lane.b32.xlu0 %v734, 32
        %v737 = vpop.permute.xlu0 %736
        %v739 = vsel %vm278, %v737, 0
        %741 = vmatprep.subr.bf16.mxu0 0
        %742 = vmatpush1.bf16.msra.mxu0 0
        %743 = vmatprep.subr.bf16.mxu0 0
        %744 = vmatpush1.bf16.msra.mxu0 0
        %745 = vmatprep.subr.bf16.mxu0 0
        %746 = vmatpush1.bf16.msra.mxu0 0
        %747 = vmatprep.subr.bf16.mxu0 0
        %748 = vmatpush1.bf16.msra.mxu0 0
        %749 = vmatprep.subr.bf16.mxu0 0
        %750 = vmatpush1.bf16.msra.mxu0 0
        %751 = vmatprep.subr.bf16.mxu0 0
        %752 = vmatpush1.bf16.msra.mxu0 0
        %753 = vmatprep.subr.bf16.mxu0 0
        %754 = vmatpush1.bf16.msra.mxu0 %v502
        %755 = vmatprep.subr.bf16.mxu0 0
        %756 = vmatpush1.bf16.msra.mxu0 %v501
        %757 = vmatprep.subr.bf16.mxu0 0
        %758 = vmatpush2.bf16.msra.mxu0 0
        %759 = vmatprep.subr.bf16.mxu0 0
        %760 = vmatpush2.bf16.msra.mxu0 0
        %761 = vmatprep.subr.bf16.mxu0 0
        %762 = vmatpush2.bf16.msra.mxu0 0
        %763 = vmatprep.subr.bf16.mxu0 0
        %764 = vmatpush2.bf16.msra.mxu0 0
        %765 = vmatprep.subr.bf16.mxu0 0
        %766 = vmatpush2.bf16.msra.mxu0 0
        %767 = vmatprep.subr.bf16.mxu0 0
        %768 = vmatpush2.bf16.msra.mxu0 0
        %769 = vmatprep.subr.bf16.mxu0 0
        %770 = vmatpush2.bf16.msra.mxu0 0
        %771 = vmatprep.subr.bf16.mxu0 0
        %772 = vmatpush2.bf16.msra.mxu0 0
        %773 = vmatprep.mubr.bf16.mxu0 0
        %774 = vmatmul.mubr.bf16.gmra.mxu0 %v739
        %v775 = vpop.f32.mrf.mxu0
        %v776 = vadd.f32 0.0, %v775
        %v777 = vpop.f32.mrf.mxu0
        %v778 = vpop.f32.mrf.mxu0
        %v779 = vpop.f32.mrf.mxu0
        %780 = vdwg.mxu0
        %v781 = vadd.f32 %v733, %v776
        %v782 = vmul.f32 %v781, %v485
        %v783 = vtanh.pop %v782
        %v784 = vmul.f32 %v783, %v485
        %v785 = vadd.f32 %v784, %v486
        %v786 = vmul.f32 %v785, %v718
        %788 = vrot.lane.b32.xlu0 %v785, 64
        %v789 = vpop.permute.xlu0 %788
        %v791 = vmul.f32 %v785, %v789
        %793 = vrot.lane.b32.xlu0 %v791, 32
        %v794 = vpop.permute.xlu0 %793
        %v796 = vadd.f32 %v786, %v794
        %v797 = vtanh.pop %v796
        %799 = vrot.lane.b32.xlu0 %v797, 64
        %v800 = vpop.permute.xlu0 %799
        %v802 = vmul.f32 %v785, %v800
        %804 = vrot.lane.b32.xlu0 %v802, 32
        %v805 = vpop.permute.xlu0 %804
        %s807 = scalar_lea.vmem %s231, 24
        %808 = vst.msk [vmem:[%s807] sm:$0xff] %vm278, %v805
        %s809 = scalar_lea.vmem [#allocation2], 16
        %v810 = vld [vmem:[%s809] sm:$0xf]
        %v811 = vunpack.c.l.bf16 %v810
        %v812 = vpack.c.bf16 %v802, %v802
        %814 = vrot.lane.b32.xlu0 %v812, 32
        %v815 = vpop.permute.xlu0 %814
        %v817 = vsel %vm278, %v815, 0
        %819 = vmatprep.subr.bf16.mxu0 0
        %820 = vmatpush1.bf16.msra.mxu0 0
        %821 = vmatprep.subr.bf16.mxu0 0
        %822 = vmatpush1.bf16.msra.mxu0 0
        %823 = vmatprep.subr.bf16.mxu0 0
        %824 = vmatpush1.bf16.msra.mxu0 0
        %825 = vmatprep.subr.bf16.mxu0 0
        %826 = vmatpush1.bf16.msra.mxu0 0
        %827 = vmatprep.subr.bf16.mxu0 0
        %828 = vmatpush1.bf16.msra.mxu0 0
        %829 = vmatprep.subr.bf16.mxu0 0
        %830 = vmatpush1.bf16.msra.mxu0 0
        %831 = vmatprep.subr.bf16.mxu0 0
        %832 = vmatpush1.bf16.msra.mxu0 %v502
        %833 = vmatprep.subr.bf16.mxu0 0
        %834 = vmatpush1.bf16.msra.mxu0 %v501
        %835 = vmatprep.subr.bf16.mxu0 0
        %836 = vmatpush2.bf16.msra.mxu0 0
        %837 = vmatprep.subr.bf16.mxu0 0
        %838 = vmatpush2.bf16.msra.mxu0 0
        %839 = vmatprep.subr.bf16.mxu0 0
        %840 = vmatpush2.bf16.msra.mxu0 0
        %841 = vmatprep.subr.bf16.mxu0 0
        %842 = vmatpush2.bf16.msra.mxu0 0
        %843 = vmatprep.subr.bf16.mxu0 0
        %844 = vmatpush2.bf16.msra.mxu0 0
        %845 = vmatprep.subr.bf16.mxu0 0
        %846 = vmatpush2.bf16.msra.mxu0 0
        %847 = vmatprep.subr.bf16.mxu0 0
        %848 = vmatpush2.bf16.msra.mxu0 0
        %849 = vmatprep.subr.bf16.mxu0 0
        %850 = vmatpush2.bf16.msra.mxu0 0
        %851 = vmatprep.mubr.bf16.mxu0 0
        %852 = vmatmul.mubr.bf16.gmra.mxu0 %v817
        %v853 = vpop.f32.mrf.mxu0
        %v854 = vadd.f32 0.0, %v853
        %v855 = vpop.f32.mrf.mxu0
        %v856 = vpop.f32.mrf.mxu0
        %v857 = vpop.f32.mrf.mxu0
        %858 = vdwg.mxu0
        %v859 = vadd.f32 %v811, %v854
        %v860 = vmul.f32 %v859, %v485
        %v861 = vtanh.pop %v860
        %v862 = vmul.f32 %v861, %v485
        %v863 = vadd.f32 %v862, %v486
        %v864 = vmul.f32 %v863, %v796
        %866 = vrot.lane.b32.xlu0 %v863, 64
        %v867 = vpop.permute.xlu0 %866
        %v869 = vmul.f32 %v863, %v867
        %871 = vrot.lane.b32.xlu0 %v869, 32
        %v872 = vpop.permute.xlu0 %871
        %v874 = vadd.f32 %v864, %v872
        %v875 = vtanh.pop %v874
        %877 = vrot.lane.b32.xlu0 %v875, 64
        %v878 = vpop.permute.xlu0 %877
        %v880 = vmul.f32 %v863, %v878
        %882 = vrot.lane.b32.xlu0 %v880, 32
        %v883 = vpop.permute.xlu0 %882
        %s885 = scalar_lea.vmem %s231, 32
        %886 = vst.msk [vmem:[%s885] sm:$0xff] %vm278, %v883
        %s887 = scalar_lea.vmem [#allocation2], 20
        %v888 = vld [vmem:[%s887] sm:$0xf]
        %v889 = vunpack.c.l.bf16 %v888
        %v890 = vpack.c.bf16 %v880, %v880
        %892 = vrot.lane.b32.xlu0 %v890, 32
        %v893 = vpop.permute.xlu0 %892
        %v895 = vsel %vm278, %v893, 0
        %897 = vmatprep.subr.bf16.mxu0 0
        %898 = vmatpush1.bf16.msra.mxu0 0
        %899 = vmatprep.subr.bf16.mxu0 0
        %900 = vmatpush1.bf16.msra.mxu0 0
        %901 = vmatprep.subr.bf16.mxu0 0
        %902 = vmatpush1.bf16.msra.mxu0 0
        %903 = vmatprep.subr.bf16.mxu0 0
        %904 = vmatpush1.bf16.msra.mxu0 0
        %905 = vmatprep.subr.bf16.mxu0 0
        %906 = vmatpush1.bf16.msra.mxu0 0
        %907 = vmatprep.subr.bf16.mxu0 0
        %908 = vmatpush1.bf16.msra.mxu0 0
        %909 = vmatprep.subr.bf16.mxu0 0
        %910 = vmatpush1.bf16.msra.mxu0 %v502
        %911 = vmatprep.subr.bf16.mxu0 0
        %912 = vmatpush1.bf16.msra.mxu0 %v501
        %913 = vmatprep.subr.bf16.mxu0 0
        %914 = vmatpush2.bf16.msra.mxu0 0
        %915 = vmatprep.subr.bf16.mxu0 0
        %916 = vmatpush2.bf16.msra.mxu0 0
        %917 = vmatprep.subr.bf16.mxu0 0
        %918 = vmatpush2.bf16.msra.mxu0 0
        %919 = vmatprep.subr.bf16.mxu0 0
        %920 = vmatpush2.bf16.msra.mxu0 0
        %921 = vmatprep.subr.bf16.mxu0 0
        %922 = vmatpush2.bf16.msra.mxu0 0
        %923 = vmatprep.subr.bf16.mxu0 0
        %924 = vmatpush2.bf16.msra.mxu0 0
        %925 = vmatprep.subr.bf16.mxu0 0
        %926 = vmatpush2.bf16.msra.mxu0 0
        %927 = vmatprep.subr.bf16.mxu0 0
        %928 = vmatpush2.bf16.msra.mxu0 0
        %929 = vmatprep.mubr.bf16.mxu0 0
        %930 = vmatmul.mubr.bf16.gmra.mxu0 %v895
        %v931 = vpop.f32.mrf.mxu0
        %v932 = vadd.f32 0.0, %v931
        %v933 = vpop.f32.mrf.mxu0
        %v934 = vpop.f32.mrf.mxu0
        %v935 = vpop.f32.mrf.mxu0
        %936 = vdwg.mxu0
        %v937 = vadd.f32 %v889, %v932
        %v938 = vmul.f32 %v937, %v485
        %v939 = vtanh.pop %v938
        %v940 = vmul.f32 %v939, %v485
        %v941 = vadd.f32 %v940, %v486
        %v942 = vmul.f32 %v941, %v874
        %944 = vrot.lane.b32.xlu0 %v941, 64
        %v945 = vpop.permute.xlu0 %944
        %v947 = vmul.f32 %v941, %v945
        %949 = vrot.lane.b32.xlu0 %v947, 32
        %v950 = vpop.permute.xlu0 %949
        %v952 = vadd.f32 %v942, %v950
        %v953 = vtanh.pop %v952
        %955 = vrot.lane.b32.xlu0 %v953, 64
        %v956 = vpop.permute.xlu0 %955
        %v958 = vmul.f32 %v941, %v956
        %960 = vrot.lane.b32.xlu0 %v958, 32
        %v961 = vpop.permute.xlu0 %960
        %s963 = scalar_lea.vmem %s231, 40
        %964 = vst.msk [vmem:[%s963] sm:$0xff] %vm278, %v961
        %s965 = scalar_lea.vmem [#allocation2], 24
        %v966 = vld [vmem:[%s965] sm:$0xf]
        %v967 = vunpack.c.l.bf16 %v966
        %v968 = vpack.c.bf16 %v958, %v958
        %970 = vrot.lane.b32.xlu0 %v968, 32
        %v971 = vpop.permute.xlu0 %970
        %v973 = vsel %vm278, %v971, 0
        %975 = vmatprep.subr.bf16.mxu0 0
        %976 = vmatpush1.bf16.msra.mxu0 0
        %977 = vmatprep.subr.bf16.mxu0 0
        %978 = vmatpush1.bf16.msra.mxu0 0
        %979 = vmatprep.subr.bf16.mxu0 0
        %980 = vmatpush1.bf16.msra.mxu0 0
        %981 = vmatprep.subr.bf16.mxu0 0
        %982 = vmatpush1.bf16.msra.mxu0 0
        %983 = vmatprep.subr.bf16.mxu0 0
        %984 = vmatpush1.bf16.msra.mxu0 0
        %985 = vmatprep.subr.bf16.mxu0 0
        %986 = vmatpush1.bf16.msra.mxu0 0
        %987 = vmatprep.subr.bf16.mxu0 0
        %988 = vmatpush1.bf16.msra.mxu0 %v502
        %989 = vmatprep.subr.bf16.mxu0 0
        %990 = vmatpush1.bf16.msra.mxu0 %v501
        %991 = vmatprep.subr.bf16.mxu0 0
        %992 = vmatpush2.bf16.msra.mxu0 0
        %993 = vmatprep.subr.bf16.mxu0 0
        %994 = vmatpush2.bf16.msra.mxu0 0
        %995 = vmatprep.subr.bf16.mxu0 0
        %996 = vmatpush2.bf16.msra.mxu0 0
        %997 = vmatprep.subr.bf16.mxu0 0
        %998 = vmatpush2.bf16.msra.mxu0 0
        %999 = vmatprep.subr.bf16.mxu0 0
        %1000 = vmatpush2.bf16.msra.mxu0 0
        %1001 = vmatprep.subr.bf16.mxu0 0
        %1002 = vmatpush2.bf16.msra.mxu0 0
        %1003 = vmatprep.subr.bf16.mxu0 0
        %1004 = vmatpush2.bf16.msra.mxu0 0
        %1005 = vmatprep.subr.bf16.mxu0 0
        %1006 = vmatpush2.bf16.msra.mxu0 0
        %1007 = vmatprep.mubr.bf16.mxu0 0
        %1008 = vmatmul.mubr.bf16.gmra.mxu0 %v973
        %v1009 = vpop.f32.mrf.mxu0
        %v1010 = vadd.f32 0.0, %v1009
        %v1011 = vpop.f32.mrf.mxu0
        %v1012 = vpop.f32.mrf.mxu0
        %v1013 = vpop.f32.mrf.mxu0
        %1014 = vdwg.mxu0
        %v1015 = vadd.f32 %v967, %v1010
        %v1016 = vmul.f32 %v1015, %v485
        %v1017 = vtanh.pop %v1016
        %v1018 = vmul.f32 %v1017, %v485
        %v1019 = vadd.f32 %v1018, %v486
        %v1020 = vmul.f32 %v1019, %v952
        %1022 = vrot.lane.b32.xlu0 %v1019, 64
        %v1023 = vpop.permute.xlu0 %1022
        %v1025 = vmul.f32 %v1019, %v1023
        %1027 = vrot.lane.b32.xlu0 %v1025, 32
        %v1028 = vpop.permute.xlu0 %1027
        %v1030 = vadd.f32 %v1020, %v1028
        %v1031 = vtanh.pop %v1030
        %1033 = vrot.lane.b32.xlu0 %v1031, 64
        %v1034 = vpop.permute.xlu0 %1033
        %v1036 = vmul.f32 %v1019, %v1034
        %1038 = vrot.lane.b32.xlu0 %v1036, 32
        %v1039 = vpop.permute.xlu0 %1038
        %s1041 = scalar_lea.vmem %s231, 48
        %1042 = vst.msk [vmem:[%s1041] sm:$0xff] %vm278, %v1039
        %s1043 = scalar_lea.vmem [#allocation2], 28
        %v1044 = vld [vmem:[%s1043] sm:$0xf]
        %v1045 = vunpack.c.l.bf16 %v1044
        %v1046 = vpack.c.bf16 %v1036, %v1036
        %1048 = vrot.lane.b32.xlu0 %v1046, 32
        %v1049 = vpop.permute.xlu0 %1048
        %v1051 = vsel %vm278, %v1049, 0
        %1053 = vmatprep.subr.bf16.mxu0 0
        %1054 = vmatpush1.bf16.msra.mxu0 0
        %1055 = vmatprep.subr.bf16.mxu0 0
        %1056 = vmatpush1.bf16.msra.mxu0 0
        %1057 = vmatprep.subr.bf16.mxu0 0
        %1058 = vmatpush1.bf16.msra.mxu0 0
        %1059 = vmatprep.subr.bf16.mxu0 0
        %1060 = vmatpush1.bf16.msra.mxu0 0
        %1061 = vmatprep.subr.bf16.mxu0 0
        %1062 = vmatpush1.bf16.msra.mxu0 0
        %1063 = vmatprep.subr.bf16.mxu0 0
        %1064 = vmatpush1.bf16.msra.mxu0 0
        %1065 = vmatprep.subr.bf16.mxu0 0
        %1066 = vmatpush1.bf16.msra.mxu0 %v502
        %1067 = vmatprep.subr.bf16.mxu0 0
        %1068 = vmatpush1.bf16.msra.mxu0 %v501
        %1069 = vmatprep.subr.bf16.mxu0 0
        %1070 = vmatpush2.bf16.msra.mxu0 0
        %1071 = vmatprep.subr.bf16.mxu0 0
        %1072 = vmatpush2.bf16.msra.mxu0 0
        %1073 = vmatprep.subr.bf16.mxu0 0
        %1074 = vmatpush2.bf16.msra.mxu0 0
        %1075 = vmatprep.subr.bf16.mxu0 0
        %1076 = vmatpush2.bf16.msra.mxu0 0
        %1077 = vmatprep.subr.bf16.mxu0 0
        %1078 = vmatpush2.bf16.msra.mxu0 0
        %1079 = vmatprep.subr.bf16.mxu0 0
        %1080 = vmatpush2.bf16.msra.mxu0 0
        %1081 = vmatprep.subr.bf16.mxu0 0
        %1082 = vmatpush2.bf16.msra.mxu0 0
        %1083 = vmatprep.subr.bf16.mxu0 0
        %1084 = vmatpush2.bf16.msra.mxu0 0
        %1085 = vmatprep.mubr.bf16.mxu0 0
        %1086 = vmatmul.mubr.bf16.gmra.mxu0 %v1051
        %v1087 = vpop.f32.mrf.mxu0
        %v1088 = vadd.f32 0.0, %v1087
        %v1089 = vpop.f32.mrf.mxu0
        %v1090 = vpop.f32.mrf.mxu0
        %v1091 = vpop.f32.mrf.mxu0
        %1092 = vdwg.mxu0
        %v1093 = vadd.f32 %v1045, %v1088
        %v1094 = vmul.f32 %v1093, %v485
        %v1095 = vtanh.pop %v1094
        %v1096 = vmul.f32 %v1095, %v485
        %v1097 = vadd.f32 %v1096, %v486
        %v1098 = vmul.f32 %v1097, %v1030
        %1100 = vrot.lane.b32.xlu0 %v1097, 64
        %v1101 = vpop.permute.xlu0 %1100
        %v1103 = vmul.f32 %v1097, %v1101
        %1105 = vrot.lane.b32.xlu0 %v1103, 32
        %v1106 = vpop.permute.xlu0 %1105
        %v1108 = vadd.f32 %v1098, %v1106
        %v1109 = vtanh.pop %v1108
        %1111 = vrot.lane.b32.xlu0 %v1109, 64
        %v1112 = vpop.permute.xlu0 %1111
        %v1114 = vmul.f32 %v1097, %v1112
        %1116 = vrot.lane.b32.xlu0 %v1114, 32
        %v1117 = vpop.permute.xlu0 %1116
        %s1119 = scalar_lea.vmem %s231, 56
        %1120 = vst.msk [vmem:[%s1119] sm:$0xff] %vm278, %v1117
      $region40: #{lstm_forward.3} parent=35 // pred_fallthru
        _
      %p1121 = scmp.eq.s32.totalorder %s15, 1
      // Predicated region
      $region41: #{lstm_forward.3} parent=35 // pred_check
        %p1122 = pneg %p1121
      $region42: #{lstm_forward.3} parent=35 // pred_check_branch
        %1124 = sbr.rel (%p1122) target = $region44
      $region43: #{lstm_forward.3} parent=35 // pred_region
        %s1125 = scalar_lea.vmem [#allocation2], 28
        %v1126 = vld [vmem:[%s1125] sm:$0xf]
        %v1127 = vunpack.c.l.bf16 %v1126
        %v1132 = vunpack.c.l.b16 %v476
        %v1133 = vunpack.c.l.b16 %v477
        %v1134 = vunpack.c.l.b16 %v478
        %v1135 = vunpack.c.l.b16 %v479
        %v1136 = vpack.c.b16 %v1133, %v1132
        %v1137 = vpack.c.b16 %v1135, %v1134
        %v1141 = vsel %vm278, 0, 0
        %1143 = vmatprep.subr.bf16.mxu0 0
        %1144 = vmatpush1.bf16.msra.mxu0 0
        %1145 = vmatprep.subr.bf16.mxu0 0
        %1146 = vmatpush1.bf16.msra.mxu0 0
        %1147 = vmatprep.subr.bf16.mxu0 0
        %1148 = vmatpush1.bf16.msra.mxu0 0
        %1149 = vmatprep.subr.bf16.mxu0 0
        %1150 = vmatpush1.bf16.msra.mxu0 0
        %1151 = vmatprep.subr.bf16.mxu0 0
        %1152 = vmatpush1.bf16.msra.mxu0 0
        %1153 = vmatprep.subr.bf16.mxu0 0
        %1154 = vmatpush1.bf16.msra.mxu0 0
        %1155 = vmatprep.subr.bf16.mxu0 0
        %1156 = vmatpush1.bf16.msra.mxu0 %v1137
        %1157 = vmatprep.subr.bf16.mxu0 0
        %1158 = vmatpush1.bf16.msra.mxu0 %v1136
        %1159 = vmatprep.subr.bf16.mxu0 0
        %1160 = vmatpush2.bf16.msra.mxu0 0
        %1161 = vmatprep.subr.bf16.mxu0 0
        %1162 = vmatpush2.bf16.msra.mxu0 0
        %1163 = vmatprep.subr.bf16.mxu0 0
        %1164 = vmatpush2.bf16.msra.mxu0 0
        %1165 = vmatprep.subr.bf16.mxu0 0
        %1166 = vmatpush2.bf16.msra.mxu0 0
        %1167 = vmatprep.subr.bf16.mxu0 0
        %1168 = vmatpush2.bf16.msra.mxu0 0
        %1169 = vmatprep.subr.bf16.mxu0 0
        %1170 = vmatpush2.bf16.msra.mxu0 0
        %1171 = vmatprep.subr.bf16.mxu0 0
        %1172 = vmatpush2.bf16.msra.mxu0 0
        %1173 = vmatprep.subr.bf16.mxu0 0
        %1174 = vmatpush2.bf16.msra.mxu0 0
        %1175 = vmatprep.mubr.bf16.mxu0 0
        %1176 = vmatmul.mubr.bf16.gmra.mxu0 %v1141
        %v1177 = vpop.f32.mrf.mxu0
        %v1178 = vadd.f32 0.0, %v1177
        %v1179 = vpop.f32.mrf.mxu0
        %v1180 = vpop.f32.mrf.mxu0
        %v1181 = vpop.f32.mrf.mxu0
        %1182 = vdwg.mxu0
        %v1183 = vadd.f32 %v1127, %v1178
        %v1184 = vmul.f32 %v1183, %v485
        %v1185 = vtanh.pop %v1184
        %v1186 = vmul.f32 %v1185, %v485
        %v1187 = vadd.f32 %v1186, %v486
        %v1188 = vmul.f32 %v1187, 0.0
        %1190 = vrot.lane.b32.xlu0 %v1187, 64
        %v1191 = vpop.permute.xlu0 %1190
        %v1193 = vmul.f32 %v1187, %v1191
        %1195 = vrot.lane.b32.xlu0 %v1193, 32
        %v1196 = vpop.permute.xlu0 %1195
        %v1198 = vadd.f32 %v1188, %v1196
        %v1199 = vtanh.pop %v1198
        %1201 = vrot.lane.b32.xlu0 %v1199, 64
        %v1202 = vpop.permute.xlu0 %1201
        %v1204 = vmul.f32 %v1187, %v1202
        %1206 = vrot.lane.b32.xlu0 %v1204, 32
        %v1207 = vpop.permute.xlu0 %1206
        %s1209 = scalar_lea.vmem %s231, 56
        %1210 = vst.msk [vmem:[%s1209] sm:$0xff] %vm278, %v1207
        %s1211 = scalar_lea.vmem [#allocation2], 24
        %v1212 = vld [vmem:[%s1211] sm:$0xf]
        %v1213 = vunpack.c.l.bf16 %v1212
        %v1214 = vpack.c.bf16 %v1204, %v1204
        %1216 = vrot.lane.b32.xlu0 %v1214, 32
        %v1217 = vpop.permute.xlu0 %1216
        %v1219 = vsel %vm278, %v1217, 0
        %1221 = vmatprep.subr.bf16.mxu0 0
        %1222 = vmatpush1.bf16.msra.mxu0 0
        %1223 = vmatprep.subr.bf16.mxu0 0
        %1224 = vmatpush1.bf16.msra.mxu0 0
        %1225 = vmatprep.subr.bf16.mxu0 0
        %1226 = vmatpush1.bf16.msra.mxu0 0
        %1227 = vmatprep.subr.bf16.mxu0 0
        %1228 = vmatpush1.bf16.msra.mxu0 0
        %1229 = vmatprep.subr.bf16.mxu0 0
        %1230 = vmatpush1.bf16.msra.mxu0 0
        %1231 = vmatprep.subr.bf16.mxu0 0
        %1232 = vmatpush1.bf16.msra.mxu0 0
        %1233 = vmatprep.subr.bf16.mxu0 0
        %1234 = vmatpush1.bf16.msra.mxu0 %v1137
        %1235 = vmatprep.subr.bf16.mxu0 0
        %1236 = vmatpush1.bf16.msra.mxu0 %v1136
        %1237 = vmatprep.subr.bf16.mxu0 0
        %1238 = vmatpush2.bf16.msra.mxu0 0
        %1239 = vmatprep.subr.bf16.mxu0 0
        %1240 = vmatpush2.bf16.msra.mxu0 0
        %1241 = vmatprep.subr.bf16.mxu0 0
        %1242 = vmatpush2.bf16.msra.mxu0 0
        %1243 = vmatprep.subr.bf16.mxu0 0
        %1244 = vmatpush2.bf16.msra.mxu0 0
        %1245 = vmatprep.subr.bf16.mxu0 0
        %1246 = vmatpush2.bf16.msra.mxu0 0
        %1247 = vmatprep.subr.bf16.mxu0 0
        %1248 = vmatpush2.bf16.msra.mxu0 0
        %1249 = vmatprep.subr.bf16.mxu0 0
        %1250 = vmatpush2.bf16.msra.mxu0 0
        %1251 = vmatprep.subr.bf16.mxu0 0
        %1252 = vmatpush2.bf16.msra.mxu0 0
        %1253 = vmatprep.mubr.bf16.mxu0 0
        %1254 = vmatmul.mubr.bf16.gmra.mxu0 %v1219
        %v1255 = vpop.f32.mrf.mxu0
        %v1256 = vadd.f32 0.0, %v1255
        %v1257 = vpop.f32.mrf.mxu0
        %v1258 = vpop.f32.mrf.mxu0
        %v1259 = vpop.f32.mrf.mxu0
        %1260 = vdwg.mxu0
        %v1261 = vadd.f32 %v1213, %v1256
        %v1262 = vmul.f32 %v1261, %v485
        %v1263 = vtanh.pop %v1262
        %v1264 = vmul.f32 %v1263, %v485
        %v1265 = vadd.f32 %v1264, %v486
        %v1266 = vmul.f32 %v1265, %v1198
        %1268 = vrot.lane.b32.xlu0 %v1265, 64
        %v1269 = vpop.permute.xlu0 %1268
        %v1271 = vmul.f32 %v1265, %v1269
        %1273 = vrot.lane.b32.xlu0 %v1271, 32
        %v1274 = vpop.permute.xlu0 %1273
        %v1276 = vadd.f32 %v1266, %v1274
        %v1277 = vtanh.pop %v1276
        %1279 = vrot.lane.b32.xlu0 %v1277, 64
        %v1280 = vpop.permute.xlu0 %1279
        %v1282 = vmul.f32 %v1265, %v1280
        %1284 = vrot.lane.b32.xlu0 %v1282, 32
        %v1285 = vpop.permute.xlu0 %1284
        %s1287 = scalar_lea.vmem %s231, 48
        %1288 = vst.msk [vmem:[%s1287] sm:$0xff] %vm278, %v1285
        %s1289 = scalar_lea.vmem [#allocation2], 20
        %v1290 = vld [vmem:[%s1289] sm:$0xf]
        %v1291 = vunpack.c.l.bf16 %v1290
        %v1292 = vpack.c.bf16 %v1282, %v1282
        %1294 = vrot.lane.b32.xlu0 %v1292, 32
        %v1295 = vpop.permute.xlu0 %1294
        %v1297 = vsel %vm278, %v1295, 0
        %1299 = vmatprep.subr.bf16.mxu0 0
        %1300 = vmatpush1.bf16.msra.mxu0 0
        %1301 = vmatprep.subr.bf16.mxu0 0
        %1302 = vmatpush1.bf16.msra.mxu0 0
        %1303 = vmatprep.subr.bf16.mxu0 0
        %1304 = vmatpush1.bf16.msra.mxu0 0
        %1305 = vmatprep.subr.bf16.mxu0 0
        %1306 = vmatpush1.bf16.msra.mxu0 0
        %1307 = vmatprep.subr.bf16.mxu0 0
        %1308 = vmatpush1.bf16.msra.mxu0 0
        %1309 = vmatprep.subr.bf16.mxu0 0
        %1310 = vmatpush1.bf16.msra.mxu0 0
        %1311 = vmatprep.subr.bf16.mxu0 0
        %1312 = vmatpush1.bf16.msra.mxu0 %v1137
        %1313 = vmatprep.subr.bf16.mxu0 0
        %1314 = vmatpush1.bf16.msra.mxu0 %v1136
        %1315 = vmatprep.subr.bf16.mxu0 0
        %1316 = vmatpush2.bf16.msra.mxu0 0
        %1317 = vmatprep.subr.bf16.mxu0 0
        %1318 = vmatpush2.bf16.msra.mxu0 0
        %1319 = vmatprep.subr.bf16.mxu0 0
        %1320 = vmatpush2.bf16.msra.mxu0 0
        %1321 = vmatprep.subr.bf16.mxu0 0
        %1322 = vmatpush2.bf16.msra.mxu0 0
        %1323 = vmatprep.subr.bf16.mxu0 0
        %1324 = vmatpush2.bf16.msra.mxu0 0
        %1325 = vmatprep.subr.bf16.mxu0 0
        %1326 = vmatpush2.bf16.msra.mxu0 0
        %1327 = vmatprep.subr.bf16.mxu0 0
        %1328 = vmatpush2.bf16.msra.mxu0 0
        %1329 = vmatprep.subr.bf16.mxu0 0
        %1330 = vmatpush2.bf16.msra.mxu0 0
        %1331 = vmatprep.mubr.bf16.mxu0 0
        %1332 = vmatmul.mubr.bf16.gmra.mxu0 %v1297
        %v1333 = vpop.f32.mrf.mxu0
        %v1334 = vadd.f32 0.0, %v1333
        %v1335 = vpop.f32.mrf.mxu0
        %v1336 = vpop.f32.mrf.mxu0
        %v1337 = vpop.f32.mrf.mxu0
        %1338 = vdwg.mxu0
        %v1339 = vadd.f32 %v1291, %v1334
        %v1340 = vmul.f32 %v1339, %v485
        %v1341 = vtanh.pop %v1340
        %v1342 = vmul.f32 %v1341, %v485
        %v1343 = vadd.f32 %v1342, %v486
        %v1344 = vmul.f32 %v1343, %v1276
        %1346 = vrot.lane.b32.xlu0 %v1343, 64
        %v1347 = vpop.permute.xlu0 %1346
        %v1349 = vmul.f32 %v1343, %v1347
        %1351 = vrot.lane.b32.xlu0 %v1349, 32
        %v1352 = vpop.permute.xlu0 %1351
        %v1354 = vadd.f32 %v1344, %v1352
        %v1355 = vtanh.pop %v1354
        %1357 = vrot.lane.b32.xlu0 %v1355, 64
        %v1358 = vpop.permute.xlu0 %1357
        %v1360 = vmul.f32 %v1343, %v1358
        %1362 = vrot.lane.b32.xlu0 %v1360, 32
        %v1363 = vpop.permute.xlu0 %1362
        %s1365 = scalar_lea.vmem %s231, 40
        %1366 = vst.msk [vmem:[%s1365] sm:$0xff] %vm278, %v1363
        %s1367 = scalar_lea.vmem [#allocation2], 16
        %v1368 = vld [vmem:[%s1367] sm:$0xf]
        %v1369 = vunpack.c.l.bf16 %v1368
        %v1370 = vpack.c.bf16 %v1360, %v1360
        %1372 = vrot.lane.b32.xlu0 %v1370, 32
        %v1373 = vpop.permute.xlu0 %1372
        %v1375 = vsel %vm278, %v1373, 0
        %1377 = vmatprep.subr.bf16.mxu0 0
        %1378 = vmatpush1.bf16.msra.mxu0 0
        %1379 = vmatprep.subr.bf16.mxu0 0
        %1380 = vmatpush1.bf16.msra.mxu0 0
        %1381 = vmatprep.subr.bf16.mxu0 0
        %1382 = vmatpush1.bf16.msra.mxu0 0
        %1383 = vmatprep.subr.bf16.mxu0 0
        %1384 = vmatpush1.bf16.msra.mxu0 0
        %1385 = vmatprep.subr.bf16.mxu0 0
        %1386 = vmatpush1.bf16.msra.mxu0 0
        %1387 = vmatprep.subr.bf16.mxu0 0
        %1388 = vmatpush1.bf16.msra.mxu0 0
        %1389 = vmatprep.subr.bf16.mxu0 0
        %1390 = vmatpush1.bf16.msra.mxu0 %v1137
        %1391 = vmatprep.subr.bf16.mxu0 0
        %1392 = vmatpush1.bf16.msra.mxu0 %v1136
        %1393 = vmatprep.subr.bf16.mxu0 0
        %1394 = vmatpush2.bf16.msra.mxu0 0
        %1395 = vmatprep.subr.bf16.mxu0 0
        %1396 = vmatpush2.bf16.msra.mxu0 0
        %1397 = vmatprep.subr.bf16.mxu0 0
        %1398 = vmatpush2.bf16.msra.mxu0 0
        %1399 = vmatprep.subr.bf16.mxu0 0
        %1400 = vmatpush2.bf16.msra.mxu0 0
        %1401 = vmatprep.subr.bf16.mxu0 0
        %1402 = vmatpush2.bf16.msra.mxu0 0
        %1403 = vmatprep.subr.bf16.mxu0 0
        %1404 = vmatpush2.bf16.msra.mxu0 0
        %1405 = vmatprep.subr.bf16.mxu0 0
        %1406 = vmatpush2.bf16.msra.mxu0 0
        %1407 = vmatprep.subr.bf16.mxu0 0
        %1408 = vmatpush2.bf16.msra.mxu0 0
        %1409 = vmatprep.mubr.bf16.mxu0 0
        %1410 = vmatmul.mubr.bf16.gmra.mxu0 %v1375
        %v1411 = vpop.f32.mrf.mxu0
        %v1412 = vadd.f32 0.0, %v1411
        %v1413 = vpop.f32.mrf.mxu0
        %v1414 = vpop.f32.mrf.mxu0
        %v1415 = vpop.f32.mrf.mxu0
        %1416 = vdwg.mxu0
        %v1417 = vadd.f32 %v1369, %v1412
        %v1418 = vmul.f32 %v1417, %v485
        %v1419 = vtanh.pop %v1418
        %v1420 = vmul.f32 %v1419, %v485
        %v1421 = vadd.f32 %v1420, %v486
        %v1422 = vmul.f32 %v1421, %v1354
        %1424 = vrot.lane.b32.xlu0 %v1421, 64
        %v1425 = vpop.permute.xlu0 %1424
        %v1427 = vmul.f32 %v1421, %v1425
        %1429 = vrot.lane.b32.xlu0 %v1427, 32
        %v1430 = vpop.permute.xlu0 %1429
        %v1432 = vadd.f32 %v1422, %v1430
        %v1433 = vtanh.pop %v1432
        %1435 = vrot.lane.b32.xlu0 %v1433, 64
        %v1436 = vpop.permute.xlu0 %1435
        %v1438 = vmul.f32 %v1421, %v1436
        %1440 = vrot.lane.b32.xlu0 %v1438, 32
        %v1441 = vpop.permute.xlu0 %1440
        %s1443 = scalar_lea.vmem %s231, 32
        %1444 = vst.msk [vmem:[%s1443] sm:$0xff] %vm278, %v1441
        %s1445 = scalar_lea.vmem [#allocation2], 12
        %v1446 = vld [vmem:[%s1445] sm:$0xf]
        %v1447 = vunpack.c.l.bf16 %v1446
        %v1448 = vpack.c.bf16 %v1438, %v1438
        %1450 = vrot.lane.b32.xlu0 %v1448, 32
        %v1451 = vpop.permute.xlu0 %1450
        %v1453 = vsel %vm278, %v1451, 0
        %1455 = vmatprep.subr.bf16.mxu0 0
        %1456 = vmatpush1.bf16.msra.mxu0 0
        %1457 = vmatprep.subr.bf16.mxu0 0
        %1458 = vmatpush1.bf16.msra.mxu0 0
        %1459 = vmatprep.subr.bf16.mxu0 0
        %1460 = vmatpush1.bf16.msra.mxu0 0
        %1461 = vmatprep.subr.bf16.mxu0 0
        %1462 = vmatpush1.bf16.msra.mxu0 0
        %1463 = vmatprep.subr.bf16.mxu0 0
        %1464 = vmatpush1.bf16.msra.mxu0 0
        %1465 = vmatprep.subr.bf16.mxu0 0
        %1466 = vmatpush1.bf16.msra.mxu0 0
        %1467 = vmatprep.subr.bf16.mxu0 0
        %1468 = vmatpush1.bf16.msra.mxu0 %v1137
        %1469 = vmatprep.subr.bf16.mxu0 0
        %1470 = vmatpush1.bf16.msra.mxu0 %v1136
        %1471 = vmatprep.subr.bf16.mxu0 0
        %1472 = vmatpush2.bf16.msra.mxu0 0
        %1473 = vmatprep.subr.bf16.mxu0 0
        %1474 = vmatpush2.bf16.msra.mxu0 0
        %1475 = vmatprep.subr.bf16.mxu0 0
        %1476 = vmatpush2.bf16.msra.mxu0 0
        %1477 = vmatprep.subr.bf16.mxu0 0
        %1478 = vmatpush2.bf16.msra.mxu0 0
        %1479 = vmatprep.subr.bf16.mxu0 0
        %1480 = vmatpush2.bf16.msra.mxu0 0
        %1481 = vmatprep.subr.bf16.mxu0 0
        %1482 = vmatpush2.bf16.msra.mxu0 0
        %1483 = vmatprep.subr.bf16.mxu0 0
        %1484 = vmatpush2.bf16.msra.mxu0 0
        %1485 = vmatprep.subr.bf16.mxu0 0
        %1486 = vmatpush2.bf16.msra.mxu0 0
        %1487 = vmatprep.mubr.bf16.mxu0 0
        %1488 = vmatmul.mubr.bf16.gmra.mxu0 %v1453
        %v1489 = vpop.f32.mrf.mxu0
        %v1490 = vadd.f32 0.0, %v1489
        %v1491 = vpop.f32.mrf.mxu0
        %v1492 = vpop.f32.mrf.mxu0
        %v1493 = vpop.f32.mrf.mxu0
        %1494 = vdwg.mxu0
        %v1495 = vadd.f32 %v1447, %v1490
        %v1496 = vmul.f32 %v1495, %v485
        %v1497 = vtanh.pop %v1496
        %v1498 = vmul.f32 %v1497, %v485
        %v1499 = vadd.f32 %v1498, %v486
        %v1500 = vmul.f32 %v1499, %v1432
        %1502 = vrot.lane.b32.xlu0 %v1499, 64
        %v1503 = vpop.permute.xlu0 %1502
        %v1505 = vmul.f32 %v1499, %v1503
        %1507 = vrot.lane.b32.xlu0 %v1505, 32
        %v1508 = vpop.permute.xlu0 %1507
        %v1510 = vadd.f32 %v1500, %v1508
        %v1511 = vtanh.pop %v1510
        %1513 = vrot.lane.b32.xlu0 %v1511, 64
        %v1514 = vpop.permute.xlu0 %1513
        %v1516 = vmul.f32 %v1499, %v1514
        %1518 = vrot.lane.b32.xlu0 %v1516, 32
        %v1519 = vpop.permute.xlu0 %1518
        %s1521 = scalar_lea.vmem %s231, 24
        %1522 = vst.msk [vmem:[%s1521] sm:$0xff] %vm278, %v1519
        %s1523 = scalar_lea.vmem [#allocation2], 8
        %v1524 = vld [vmem:[%s1523] sm:$0xf]
        %v1525 = vunpack.c.l.bf16 %v1524
        %v1526 = vpack.c.bf16 %v1516, %v1516
        %1528 = vrot.lane.b32.xlu0 %v1526, 32
        %v1529 = vpop.permute.xlu0 %1528
        %v1531 = vsel %vm278, %v1529, 0
        %1533 = vmatprep.subr.bf16.mxu0 0
        %1534 = vmatpush1.bf16.msra.mxu0 0
        %1535 = vmatprep.subr.bf16.mxu0 0
        %1536 = vmatpush1.bf16.msra.mxu0 0
        %1537 = vmatprep.subr.bf16.mxu0 0
        %1538 = vmatpush1.bf16.msra.mxu0 0
        %1539 = vmatprep.subr.bf16.mxu0 0
        %1540 = vmatpush1.bf16.msra.mxu0 0
        %1541 = vmatprep.subr.bf16.mxu0 0
        %1542 = vmatpush1.bf16.msra.mxu0 0
        %1543 = vmatprep.subr.bf16.mxu0 0
        %1544 = vmatpush1.bf16.msra.mxu0 0
        %1545 = vmatprep.subr.bf16.mxu0 0
        %1546 = vmatpush1.bf16.msra.mxu0 %v1137
        %1547 = vmatprep.subr.bf16.mxu0 0
        %1548 = vmatpush1.bf16.msra.mxu0 %v1136
        %1549 = vmatprep.subr.bf16.mxu0 0
        %1550 = vmatpush2.bf16.msra.mxu0 0
        %1551 = vmatprep.subr.bf16.mxu0 0
        %1552 = vmatpush2.bf16.msra.mxu0 0
        %1553 = vmatprep.subr.bf16.mxu0 0
        %1554 = vmatpush2.bf16.msra.mxu0 0
        %1555 = vmatprep.subr.bf16.mxu0 0
        %1556 = vmatpush2.bf16.msra.mxu0 0
        %1557 = vmatprep.subr.bf16.mxu0 0
        %1558 = vmatpush2.bf16.msra.mxu0 0
        %1559 = vmatprep.subr.bf16.mxu0 0
        %1560 = vmatpush2.bf16.msra.mxu0 0
        %1561 = vmatprep.subr.bf16.mxu0 0
        %1562 = vmatpush2.bf16.msra.mxu0 0
        %1563 = vmatprep.subr.bf16.mxu0 0
        %1564 = vmatpush2.bf16.msra.mxu0 0
        %1565 = vmatprep.mubr.bf16.mxu0 0
        %1566 = vmatmul.mubr.bf16.gmra.mxu0 %v1531
        %v1567 = vpop.f32.mrf.mxu0
        %v1568 = vadd.f32 0.0, %v1567
        %v1569 = vpop.f32.mrf.mxu0
        %v1570 = vpop.f32.mrf.mxu0
        %v1571 = vpop.f32.mrf.mxu0
        %1572 = vdwg.mxu0
        %v1573 = vadd.f32 %v1525, %v1568
        %v1574 = vmul.f32 %v1573, %v485
        %v1575 = vtanh.pop %v1574
        %v1576 = vmul.f32 %v1575, %v485
        %v1577 = vadd.f32 %v1576, %v486
        %v1578 = vmul.f32 %v1577, %v1510
        %1580 = vrot.lane.b32.xlu0 %v1577, 64
        %v1581 = vpop.permute.xlu0 %1580
        %v1583 = vmul.f32 %v1577, %v1581
        %1585 = vrot.lane.b32.xlu0 %v1583, 32
        %v1586 = vpop.permute.xlu0 %1585
        %v1588 = vadd.f32 %v1578, %v1586
        %v1589 = vtanh.pop %v1588
        %1591 = vrot.lane.b32.xlu0 %v1589, 64
        %v1592 = vpop.permute.xlu0 %1591
        %v1594 = vmul.f32 %v1577, %v1592
        %1596 = vrot.lane.b32.xlu0 %v1594, 32
        %v1597 = vpop.permute.xlu0 %1596
        %s1599 = scalar_lea.vmem %s231, 16
        %1600 = vst.msk [vmem:[%s1599] sm:$0xff] %vm278, %v1597
        %s1601 = scalar_lea.vmem [#allocation2], 4
        %v1602 = vld [vmem:[%s1601] sm:$0xf]
        %v1603 = vunpack.c.l.bf16 %v1602
        %v1604 = vpack.c.bf16 %v1594, %v1594
        %1606 = vrot.lane.b32.xlu0 %v1604, 32
        %v1607 = vpop.permute.xlu0 %1606
        %v1609 = vsel %vm278, %v1607, 0
        %1611 = vmatprep.subr.bf16.mxu0 0
        %1612 = vmatpush1.bf16.msra.mxu0 0
        %1613 = vmatprep.subr.bf16.mxu0 0
        %1614 = vmatpush1.bf16.msra.mxu0 0
        %1615 = vmatprep.subr.bf16.mxu0 0
        %1616 = vmatpush1.bf16.msra.mxu0 0
        %1617 = vmatprep.subr.bf16.mxu0 0
        %1618 = vmatpush1.bf16.msra.mxu0 0
        %1619 = vmatprep.subr.bf16.mxu0 0
        %1620 = vmatpush1.bf16.msra.mxu0 0
        %1621 = vmatprep.subr.bf16.mxu0 0
        %1622 = vmatpush1.bf16.msra.mxu0 0
        %1623 = vmatprep.subr.bf16.mxu0 0
        %1624 = vmatpush1.bf16.msra.mxu0 %v1137
        %1625 = vmatprep.subr.bf16.mxu0 0
        %1626 = vmatpush1.bf16.msra.mxu0 %v1136
        %1627 = vmatprep.subr.bf16.mxu0 0
        %1628 = vmatpush2.bf16.msra.mxu0 0
        %1629 = vmatprep.subr.bf16.mxu0 0
        %1630 = vmatpush2.bf16.msra.mxu0 0
        %1631 = vmatprep.subr.bf16.mxu0 0
        %1632 = vmatpush2.bf16.msra.mxu0 0
        %1633 = vmatprep.subr.bf16.mxu0 0
        %1634 = vmatpush2.bf16.msra.mxu0 0
        %1635 = vmatprep.subr.bf16.mxu0 0
        %1636 = vmatpush2.bf16.msra.mxu0 0
        %1637 = vmatprep.subr.bf16.mxu0 0
        %1638 = vmatpush2.bf16.msra.mxu0 0
        %1639 = vmatprep.subr.bf16.mxu0 0
        %1640 = vmatpush2.bf16.msra.mxu0 0
        %1641 = vmatprep.subr.bf16.mxu0 0
        %1642 = vmatpush2.bf16.msra.mxu0 0
        %1643 = vmatprep.mubr.bf16.mxu0 0
        %1644 = vmatmul.mubr.bf16.gmra.mxu0 %v1609
        %v1645 = vpop.f32.mrf.mxu0
        %v1646 = vadd.f32 0.0, %v1645
        %v1647 = vpop.f32.mrf.mxu0
        %v1648 = vpop.f32.mrf.mxu0
        %v1649 = vpop.f32.mrf.mxu0
        %1650 = vdwg.mxu0
        %v1651 = vadd.f32 %v1603, %v1646
        %v1652 = vmul.f32 %v1651, %v485
        %v1653 = vtanh.pop %v1652
        %v1654 = vmul.f32 %v1653, %v485
        %v1655 = vadd.f32 %v1654, %v486
        %v1656 = vmul.f32 %v1655, %v1588
        %1658 = vrot.lane.b32.xlu0 %v1655, 64
        %v1659 = vpop.permute.xlu0 %1658
        %v1661 = vmul.f32 %v1655, %v1659
        %1663 = vrot.lane.b32.xlu0 %v1661, 32
        %v1664 = vpop.permute.xlu0 %1663
        %v1666 = vadd.f32 %v1656, %v1664
        %v1667 = vtanh.pop %v1666
        %1669 = vrot.lane.b32.xlu0 %v1667, 64
        %v1670 = vpop.permute.xlu0 %1669
        %v1672 = vmul.f32 %v1655, %v1670
        %1674 = vrot.lane.b32.xlu0 %v1672, 32
        %v1675 = vpop.permute.xlu0 %1674
        %s1677 = scalar_lea.vmem %s231, 8
        %1678 = vst.msk [vmem:[%s1677] sm:$0xff] %vm278, %v1675
        %v1679 = vld [vmem:[#allocation2] sm:$0xf]
        %v1680 = vunpack.c.l.bf16 %v1679
        %v1681 = vpack.c.bf16 %v1672, %v1672
        %1683 = vrot.lane.b32.xlu0 %v1681, 32
        %v1684 = vpop.permute.xlu0 %1683
        %v1686 = vsel %vm278, %v1684, 0
        %1688 = vmatprep.subr.bf16.mxu0 0
        %1689 = vmatpush1.bf16.msra.mxu0 0
        %1690 = vmatprep.subr.bf16.mxu0 0
        %1691 = vmatpush1.bf16.msra.mxu0 0
        %1692 = vmatprep.subr.bf16.mxu0 0
        %1693 = vmatpush1.bf16.msra.mxu0 0
        %1694 = vmatprep.subr.bf16.mxu0 0
        %1695 = vmatpush1.bf16.msra.mxu0 0
        %1696 = vmatprep.subr.bf16.mxu0 0
        %1697 = vmatpush1.bf16.msra.mxu0 0
        %1698 = vmatprep.subr.bf16.mxu0 0
        %1699 = vmatpush1.bf16.msra.mxu0 0
        %1700 = vmatprep.subr.bf16.mxu0 0
        %1701 = vmatpush1.bf16.msra.mxu0 %v1137
        %1702 = vmatprep.subr.bf16.mxu0 0
        %1703 = vmatpush1.bf16.msra.mxu0 %v1136
        %1704 = vmatprep.subr.bf16.mxu0 0
        %1705 = vmatpush2.bf16.msra.mxu0 0
        %1706 = vmatprep.subr.bf16.mxu0 0
        %1707 = vmatpush2.bf16.msra.mxu0 0
        %1708 = vmatprep.subr.bf16.mxu0 0
        %1709 = vmatpush2.bf16.msra.mxu0 0
        %1710 = vmatprep.subr.bf16.mxu0 0
        %1711 = vmatpush2.bf16.msra.mxu0 0
        %1712 = vmatprep.subr.bf16.mxu0 0
        %1713 = vmatpush2.bf16.msra.mxu0 0
        %1714 = vmatprep.subr.bf16.mxu0 0
        %1715 = vmatpush2.bf16.msra.mxu0 0
        %1716 = vmatprep.subr.bf16.mxu0 0
        %1717 = vmatpush2.bf16.msra.mxu0 0
        %1718 = vmatprep.subr.bf16.mxu0 0
        %1719 = vmatpush2.bf16.msra.mxu0 0
        %1720 = vmatprep.mubr.bf16.mxu0 0
        %1721 = vmatmul.mubr.bf16.gmra.mxu0 %v1686
        %v1722 = vpop.f32.mrf.mxu0
        %v1723 = vadd.f32 0.0, %v1722
        %v1724 = vpop.f32.mrf.mxu0
        %v1725 = vpop.f32.mrf.mxu0
        %v1726 = vpop.f32.mrf.mxu0
        %1727 = vdwg.mxu0
        %v1728 = vadd.f32 %v1680, %v1723
        %v1729 = vmul.f32 %v1728, %v485
        %v1730 = vtanh.pop %v1729
        %v1731 = vmul.f32 %v1730, %v485
        %v1732 = vadd.f32 %v1731, %v486
        %v1733 = vmul.f32 %v1732, %v1666
        %1735 = vrot.lane.b32.xlu0 %v1732, 64
        %v1736 = vpop.permute.xlu0 %1735
        %v1738 = vmul.f32 %v1732, %v1736
        %1740 = vrot.lane.b32.xlu0 %v1738, 32
        %v1741 = vpop.permute.xlu0 %1740
        %v1743 = vadd.f32 %v1733, %v1741
        %v1744 = vtanh.pop %v1743
        %1746 = vrot.lane.b32.xlu0 %v1744, 64
        %v1747 = vpop.permute.xlu0 %1746
        %v1749 = vmul.f32 %v1732, %v1747
        %1751 = vrot.lane.b32.xlu0 %v1749, 32
        %v1752 = vpop.permute.xlu0 %1751
        %1754 = vst.msk [vmem:[%s231] sm:$0xff] %vm278, %v1752
      $region44: #{lstm_forward.3} parent=35 // pred_fallthru
        _
      %p1755 = scmp.lt.s32.totalorder %s15, 1
      %s1756 = scalar_select %p1755, %s15, 1
      %s1757 = smul.addr %s1756, 8
      %s1758 = smul.addr %s1757, 8
      %s1759 = scalar_lea.vmem %s4, %s1758
      // Predicated region
      $region45: #{lstm_forward.3} parent=35 // pred_check
        %p1760 = pneg %p132
      $region46: #{lstm_forward.3} parent=35 // pred_check_branch
        %1762 = sbr.rel (%p1760) target = $region48
      $region47: #{lstm_forward.3} parent=35 // pred_region
        _
      $region48: #{lstm_forward.3} parent=35 // pred_fallthru
        _
    $region36: #{lstm_forward.3} parent=5 // pred_fallthru
      _
    %p1763 = scmp.le.s32.totalorder 2, %s10
    // Predicated region
    $region49: #{lstm_forward.3} parent=5 // pred_check
      %p1764 = pneg %p1763
    $region50: #{lstm_forward.3} parent=5 // pred_check_branch
      %1766 = sbr.rel (%p1764) target = $region52
    $region51: #{lstm_forward.3} parent=5 // pred_region
      %s1767 = ssub.s32 %s10, 2
      // Predicated region
      $region53: #{lstm_forward.3} parent=51 // pred_check
        %p1768 = pneg %p138
      $region54: #{lstm_forward.3} parent=51 // pred_check_branch
        %1770 = sbr.rel (%p1768) target = $region56
      $region55: #{lstm_forward.3} parent=51 // pred_region
        %p1771 = scmp.lt.s32.totalorder %s16, 1
        %s1772 = scalar_select %p1771, %s16, 1
        %s1773 = smul.addr %s1772, 8
        %s1774 = smul.addr %s1773, 8
        %s1775 = scalar_lea.vmem %s4, %s1774
      $region56: #{lstm_forward.3} parent=51 // pred_fallthru
        _
    $region52: #{lstm_forward.3} parent=5 // pred_fallthru
      _
  $region6: #{lstm_forward.3} parent=0 // loop_footer
    %s14 = sadd.s32 1, %s10
  $region7: #{lstm_forward.3} parent=0 // loop_footer_branch
    %9 = sbr.rel target = $region3
  $region8: #{lstm_forward.3} parent=0 // loop_exit
    _

// kernel: lstm_forward.2
$region0: #{lstm_forward.2}
  #allocation0 [shape = 'u32[]', space=smem, size = 0x4, offset = 0x4, fixed_abs, tag = 'smem constant byte address 0x4 - core index']
  #allocation1 [shape = 'u32[144,128]{1,0:T(1,128)}', space=vmem, size = 0x12000, scoped, tag = 'internal scratch']
  #allocation2 [shape = 'bf16[8,8,128]{2,1,0:T(8,128)(2,1)}', space=vmem, size = 0x4000, scoped, tag = 'scratch operand']
  %s0 = inlined_call_operand.vmem [shape: f32[1,8,8,32], index: 0, kind: input, shape index: {}]
  %s1 = inlined_call_operand.vmem [shape: bf16[2,32,128], index: 1, kind: input, shape index: {}]
  %s2 = inlined_call_operand.vmem [shape: bf16[2,32,128], index: 2, kind: input, shape index: {}]
  %s3 = inlined_call_operand.vmem [shape: f32[2,1,128], index: 3, kind: input, shape index: {}]
  %s4 = inlined_call_operand.vmem [shape: f32[2,8,8,32], index: 4, kind: output, shape index: {}]
  %s5 = sld [smem:[#allocation0]]
  $region57: #{lstm_forward.2} parent=0
    _
  %s7 = ssub.s32 1, %s5
  %s8 = scalar_select 0, %s7, %s5
  loop: start=0, step=1, limit=4
  $region2: #{lstm_forward.2} parent=0 // loop_pre_header
    _
  $region3: #{lstm_forward.2} parent=0 // loop_header
    %s10 = sphi 0, %s14
    %p11 = scmp.ge.s32.totalorder %s10, 4
    %s18 = sphi 0, %s18
    %s20 = sphi 0, %s18
    %s21 = sphi 0, %s20
    %s35 = sphi 0, %s21
    %s41 = sphi 0, %s43
    %s44 = sphi 0, %s41
    %s45 = sphi 0, %s44
    %s61 = sphi 0, %s45
    %s67 = sphi 0, %s69
    %s70 = sphi 0, %s67
    %s71 = sphi 0, %s70
    %s87 = sphi 0, %s71
    %s93 = sphi 0, %s95
    %s96 = sphi 0, %s93
    %s97 = sphi 0, %s96
    %s113 = sphi 0, %s97
    %s119 = sphi 0, %s121
    %s122 = sphi 0, %s119
    %s123 = sphi 0, %s122
    %s139 = sphi 0, %s123
  $region4: #{lstm_forward.2} parent=0 // loop_header_branch
    %13 = sbr.rel (%p11) target = $region8
  $region5: #{lstm_forward.2} parent=0 // loop_body
    %s15 = ssub.s32 %s10, 1
    %s16 = ssub.s32 %s10, 2
    %s17 = sadd.s32 %s10, 1
    %s19 = sadd.s32 %s18, 1
    %p22 = scmp.eq.s32.totalorder %s10, 1
    %p23 = scmp.ne.s32.totalorder %s18, %s20
    %p24 = scmp.eq.s32.totalorder %s10, 0
    %p25 = por %p23, %p24
    %p26 = scmp.ne.s32.totalorder %s18, %s20
    %p27 = scmp.eq.s32.totalorder %s15, 1
    %p28 = por %p26, %p27
    %p29 = scmp.ne.s32.totalorder %s20, %s21
    %p30 = scmp.eq.s32.totalorder %s15, 0
    %p31 = por %p29, %p30
    %p32 = scmp.ne.s32.totalorder %s20, %s21
    %p33 = scmp.eq.s32.totalorder %s16, 1
    %p34 = por %p32, %p33
    %p36 = scmp.ne.s32.totalorder %s21, %s35
    %p37 = scmp.eq.s32.totalorder %s16, 0
    %p38 = por %p36, %p37
    %s39 = ssub.s32 %s10, %s17
    %p40 = scmp.eq.s32.totalorder %s39, 0
    %s42 = sadd.s32 %s41, 1
    %s43 = scalar_select %p40, %s41, %s42
    %p46 = pneg %p40
    %p47 = scmp.eq.s32.totalorder %s10, 1
    %p48 = por %p46, %p47
    %p49 = scmp.ne.s32.totalorder %s41, %s44
    %p50 = scmp.eq.s32.totalorder %s10, 0
    %p51 = por %p49, %p50
    %p52 = scmp.ne.s32.totalorder %s41, %s44
    %p53 = scmp.eq.s32.totalorder %s15, 1
    %p54 = por %p52, %p53
    %p55 = scmp.ne.s32.totalorder %s44, %s45
    %p56 = scmp.eq.s32.totalorder %s15, 0
    %p57 = por %p55, %p56
    %p58 = scmp.ne.s32.totalorder %s44, %s45
    %p59 = scmp.eq.s32.totalorder %s16, 1
    %p60 = por %p58, %p59
    %p62 = scmp.ne.s32.totalorder %s45, %s61
    %p63 = scmp.eq.s32.totalorder %s16, 0
    %p64 = por %p62, %p63
    %s65 = ssub.s32 %s10, %s17
    %p66 = scmp.eq.s32.totalorder %s65, 0
    %s68 = sadd.s32 %s67, 1
    %s69 = scalar_select %p66, %s67, %s68
    %p72 = pneg %p66
    %p73 = scmp.eq.s32.totalorder %s10, 1
    %p74 = por %p72, %p73
    %p75 = scmp.ne.s32.totalorder %s67, %s70
    %p76 = scmp.eq.s32.totalorder %s10, 0
    %p77 = por %p75, %p76
    %p78 = scmp.ne.s32.totalorder %s67, %s70
    %p79 = scmp.eq.s32.totalorder %s15, 1
    %p80 = por %p78, %p79
    %p81 = scmp.ne.s32.totalorder %s70, %s71
    %p82 = scmp.eq.s32.totalorder %s15, 0
    %p83 = por %p81, %p82
    %p84 = scmp.ne.s32.totalorder %s70, %s71
    %p85 = scmp.eq.s32.totalorder %s16, 1
    %p86 = por %p84, %p85
    %p88 = scmp.ne.s32.totalorder %s71, %s87
    %p89 = scmp.eq.s32.totalorder %s16, 0
    %p90 = por %p88, %p89
    %s91 = ssub.s32 %s10, %s17
    %p92 = scmp.eq.s32.totalorder %s91, 0
    %s94 = sadd.s32 %s93, 1
    %s95 = scalar_select %p92, %s93, %s94
    %p98 = pneg %p92
    %p99 = scmp.eq.s32.totalorder %s10, 1
    %p100 = por %p98, %p99
    %p101 = scmp.ne.s32.totalorder %s93, %s96
    %p102 = scmp.eq.s32.totalorder %s10, 0
    %p103 = por %p101, %p102
    %p104 = scmp.ne.s32.totalorder %s93, %s96
    %p105 = scmp.eq.s32.totalorder %s15, 1
    %p106 = por %p104, %p105
    %p107 = scmp.ne.s32.totalorder %s96, %s97
    %p108 = scmp.eq.s32.totalorder %s15, 0
    %p109 = por %p107, %p108
    %p110 = scmp.ne.s32.totalorder %s96, %s97
    %p111 = scmp.eq.s32.totalorder %s16, 1
    %p112 = por %p110, %p111
    %p114 = scmp.ne.s32.totalorder %s97, %s113
    %p115 = scmp.eq.s32.totalorder %s16, 0
    %p116 = por %p114, %p115
    %s117 = ssub.s32 %s10, %s17
    %p118 = scmp.eq.s32.totalorder %s117, 0
    %s120 = sadd.s32 %s119, 1
    %s121 = scalar_select %p118, %s119, %s120
    %p124 = pneg %p118
    %p125 = scmp.eq.s32.totalorder %s10, 1
    %p126 = por %p124, %p125
    %p127 = scmp.ne.s32.totalorder %s119, %s122
    %p128 = scmp.eq.s32.totalorder %s10, 0
    %p129 = por %p127, %p128
    %p130 = scmp.ne.s32.totalorder %s119, %s122
    %p131 = scmp.eq.s32.totalorder %s15, 1
    %p132 = por %p130, %p131
    %p133 = scmp.ne.s32.totalorder %s122, %s123
    %p134 = scmp.eq.s32.totalorder %s15, 0
    %p135 = por %p133, %p134
    %p136 = scmp.ne.s32.totalorder %s122, %s123
    %p137 = scmp.eq.s32.totalorder %s16, 1
    %p138 = por %p136, %p137
    %p140 = scmp.ne.s32.totalorder %s123, %s139
    %p141 = scmp.eq.s32.totalorder %s16, 0
    %p142 = por %p140, %p141
    %p143 = scmp.le.s32.totalorder 1, %s10
    %p144 = scmp.lt.s32.totalorder %s10, 3
    %p145 = pnand %p143, %p144
    %p146 = pneg %p145
    // Predicated region
    $region9: #{lstm_forward.2} parent=5 // pred_check
      _
    $region10: #{lstm_forward.2} parent=5 // pred_check_branch
      %148 = sbr.rel (%p145) target = $region12
    $region11: #{lstm_forward.2} parent=5 // pred_region
      %s149 = ssub.s32 %s10, 1
      // Predicated region
      $region13: #{lstm_forward.2} parent=11 // pred_check
        %p150 = pneg %p31
      $region14: #{lstm_forward.2} parent=11 // pred_check_branch
        %152 = sbr.rel (%p150) target = $region16
      $region15: #{lstm_forward.2} parent=11 // pred_region
        _
      $region16: #{lstm_forward.2} parent=11 // pred_fallthru
        _
    $region12: #{lstm_forward.2} parent=5 // pred_fallthru
      _
    %p153 = scmp.lt.s32.totalorder %s10, 2
    // Predicated region
    $region17: #{lstm_forward.2} parent=5 // pred_check
      %p154 = pneg %p153
    $region18: #{lstm_forward.2} parent=5 // pred_check_branch
      %156 = sbr.rel (%p154) target = $region20
    $region19: #{lstm_forward.2} parent=5 // pred_region
      // Predicated region
      $region21: #{lstm_forward.2} parent=19 // pred_check
        %p157 = pneg %p51
      $region22: #{lstm_forward.2} parent=19 // pred_check_branch
        %159 = sbr.rel (%p157) target = $region24
      $region23: #{lstm_forward.2} parent=19 // pred_region
        %p160 = scmp.lt.s32.totalorder %s10, 1
        %s161 = scalar_select %p160, %s10, 1
        %s162 = smul.addr %s161, 4
        %s163 = smul.addr %s162, 4
        %s164 = scalar_lea.vmem %s1, %s163
      $region24: #{lstm_forward.2} parent=19 // pred_fallthru
        _
      // Predicated region
      $region25: #{lstm_forward.2} parent=19 // pred_check
        %p165 = pneg %p77
      $region26: #{lstm_forward.2} parent=19 // pred_check_branch
        %167 = sbr.rel (%p165) target = $region28
      $region27: #{lstm_forward.2} parent=19 // pred_region
        %p168 = scmp.lt.s32.totalorder %s10, 1
        %s169 = scalar_select %p168, %s10, 1
        %s170 = smul.addr %s169, 4
        %s171 = smul.addr %s170, 4
        %s172 = scalar_lea.vmem %s2, %s171
      $region28: #{lstm_forward.2} parent=19 // pred_fallthru
        _
      // Predicated region
      $region29: #{lstm_forward.2} parent=19 // pred_check
        %p173 = pneg %p103
      $region30: #{lstm_forward.2} parent=19 // pred_check_branch
        %175 = sbr.rel (%p173) target = $region32
      $region31: #{lstm_forward.2} parent=19 // pred_region
        %p176 = scmp.lt.s32.totalorder %s10, 1
        %s177 = scalar_select %p176, %s10, 1
        %s178 = scalar_lea.vmem %s3, %s177
      $region32: #{lstm_forward.2} parent=19 // pred_fallthru
        _
    $region20: #{lstm_forward.2} parent=5 // pred_fallthru
      _
    %p179 = scmp.le.s32.totalorder 1, %s10
    %p180 = scmp.lt.s32.totalorder %s10, 3
    %p181 = pnand %p179, %p180
    %p182 = pneg %p181
    // Predicated region
    $region33: #{lstm_forward.2} parent=5 // pred_check
      _
    $region34: #{lstm_forward.2} parent=5 // pred_check_branch
      %184 = sbr.rel (%p181) target = $region36
    $region35: #{lstm_forward.2} parent=5 // pred_region
      %s185 = ssub.s32 %s10, 1
      %p186 = pneg %p31
      %p187 = pneg %p28
      %p188 = scmp.lt.s32.totalorder %s15, 1
      %s189 = scalar_select %p188, %s15, 1
      %s190 = smul.addr %s189, 4
      %s191 = smul.addr %s190, 4
      %s192 = scalar_lea.vmem %s1, %s191
      %p193 = pneg %p57
      %p194 = pneg %p54
      %p195 = scmp.lt.s32.totalorder %s15, 1
      %s196 = scalar_select %p195, %s15, 1
      %s197 = smul.addr %s196, 4
      %s198 = smul.addr %s197, 4
      %s199 = scalar_lea.vmem %s2, %s198
      %p200 = pneg %p83
      %p201 = pneg %p80
      %p202 = scmp.lt.s32.totalorder %s15, 1
      %s203 = scalar_select %p202, %s15, 1
      %s204 = scalar_lea.vmem %s3, %s203
      %p205 = pneg %p109
      %p206 = pneg %p106
      %p207 = pneg %p135
      %p208 = pneg %p132
      %p209 = scmp.lt.s32.totalorder %s15, 1
      %s210 = scalar_select %p209, %s15, 1
      %s211 = smul.addr %s210, 8
      %s212 = smul.addr %s211, 8
      %s213 = scalar_lea.vmem %s4, %s212
      %p214 = scmp.lt.s32.totalorder %s15, 1
      %s215 = scalar_select %p214, %s15, 1
      %s216 = smul.addr %s215, 4
      %s217 = smul.addr %s216, 4
      %s218 = scalar_lea.vmem %s1, %s217
      %p219 = scmp.lt.s32.totalorder %s15, 1
      %s220 = scalar_select %p219, %s15, 1
      %s221 = smul.addr %s220, 4
      %s222 = smul.addr %s221, 4
      %s223 = scalar_lea.vmem %s2, %s222
      %p224 = scmp.lt.s32.totalorder %s15, 1
      %s225 = scalar_select %p224, %s15, 1
      %s226 = scalar_lea.vmem %s3, %s225
      %p227 = scmp.lt.s32.totalorder %s15, 1
      %s228 = scalar_select %p227, %s15, 1
      %s229 = smul.addr %s228, 8
      %s230 = smul.addr %s229, 8
      %s231 = scalar_lea.vmem %s4, %s230
      %v233 = vld [vmem:[%s0] sm:$0xff]
      %v234 = vld [vmem:[%s0 + $0x8] sm:$0xff]
      %v235 = vld [vmem:[%s0 + $0x10] sm:$0xff]
      %v236 = vld [vmem:[%s0 + $0x18] sm:$0xff]
      %v237 = vld [vmem:[%s0 + $0x20] sm:$0xff]
      %v238 = vld [vmem:[%s0 + $0x28] sm:$0xff]
      %v239 = vld [vmem:[%s0 + $0x30] sm:$0xff]
      %v240 = vld [vmem:[%s0 + $0x38] sm:$0xff]
      %v241 = vpack.c.bf16 %v234, %v233
      %v242 = vpack.c.bf16 %v236, %v235
      %v243 = vpack.c.bf16 %v238, %v237
      %v244 = vpack.c.bf16 %v240, %v239
      %v245 = vld [vmem:[%s218] sm:$0xf]
      %v246 = vld [vmem:[%s218 + $0x4] sm:$0xf]
      %v247 = vld [vmem:[%s218 + $0x8] sm:$0xf]
      %v248 = vld [vmem:[%s218 + $0xc] sm:$0xf]
      %v249 = vld [vmem:[%s226] sm:$0x1]
      %v251 = vlaneseq
      %v252 = vshrl.u32 %v251, 7
      %v253 = vsub.s32 0, %v252
      %v254 = vrot.slane %v249, %v253
      %v260 = vunpack.c.l.b16 %v245
      %v261 = vunpack.c.l.b16 %v246
      %v262 = vunpack.c.l.b16 %v247
      %v263 = vunpack.c.l.b16 %v248
      %v264 = vpack.c.b16 %v261, %v260
      %v265 = vpack.c.b16 %v263, %v262
      %vm268 = vcmask 261120
      %v270 = vsel %vm268, %v241, 0
      %v273 = vsel %vm268, %v242, 0
      %v276 = vsel %vm268, %v243, 0
      %v279 = vsel %vm268, %v244, 0
      %281 = vmatprep.subr.bf16.mxu0 0
      %282 = vmatpush1.bf16.msra.mxu0 0
      %283 = vmatprep.subr.bf16.mxu0 0
      %284 = vmatpush1.bf16.msra.mxu0 0
      %285 = vmatprep.subr.bf16.mxu0 0
      %286 = vmatpush1.bf16.msra.mxu0 0
      %287 = vmatprep.subr.bf16.mxu0 0
      %288 = vmatpush1.bf16.msra.mxu0 0
      %289 = vmatprep.subr.bf16.mxu0 0
      %290 = vmatpush1.bf16.msra.mxu0 0
      %291 = vmatprep.subr.bf16.mxu0 0
      %292 = vmatpush1.bf16.msra.mxu0 0
      %293 = vmatprep.subr.bf16.mxu0 0
      %294 = vmatpush1.bf16.msra.mxu0 %v265
      %295 = vmatprep.subr.bf16.mxu0 0
      %296 = vmatpush1.bf16.msra.mxu0 %v264
      %297 = vmatprep.subr.bf16.mxu0 0
      %298 = vmatpush2.bf16.msra.mxu0 0
      %299 = vmatprep.subr.bf16.mxu0 0
      %300 = vmatpush2.bf16.msra.mxu0 0
      %301 = vmatprep.subr.bf16.mxu0 0
      %302 = vmatpush2.bf16.msra.mxu0 0
      %303 = vmatprep.subr.bf16.mxu0 0
      %304 = vmatpush2.bf16.msra.mxu0 0
      %305 = vmatprep.subr.bf16.mxu0 0
      %306 = vmatpush2.bf16.msra.mxu0 0
      %307 = vmatprep.subr.bf16.mxu0 0
      %308 = vmatpush2.bf16.msra.mxu0 0
      %309 = vmatprep.subr.bf16.mxu0 0
      %310 = vmatpush2.bf16.msra.mxu0 0
      %311 = vmatprep.subr.bf16.mxu0 0
      %312 = vmatpush2.bf16.msra.mxu0 0
      %313 = vmatprep.mubr.bf16.mxu0 0
      %314 = vmatmul.mubr.bf16.gmra.mxu0 %v270
      %v315 = vpop.f32.mrf.mxu0
      %v316 = vadd.f32 %v254, %v315
      %v317 = vpop.f32.mrf.mxu0
      %v318 = vpop.f32.mrf.mxu0
      %v319 = vadd.f32 %v254, %v318
      %v320 = vpop.f32.mrf.mxu0
      %321 = vmatprep.mubr.bf16.mxu0 0
      %322 = vmatmul.mubr.bf16.gmra.mxu0 %v273
      %v323 = vpop.f32.mrf.mxu0
      %v324 = vadd.f32 %v254, %v323
      %v325 = vpop.f32.mrf.mxu0
      %v326 = vpop.f32.mrf.mxu0
      %v327 = vadd.f32 %v254, %v326
      %v328 = vpop.f32.mrf.mxu0
      %329 = vmatprep.mubr.bf16.mxu0 0
      %330 = vmatmul.mubr.bf16.gmra.mxu0 %v276
      %v331 = vpop.f32.mrf.mxu0
      %v332 = vadd.f32 %v254, %v331
      %v333 = vpop.f32.mrf.mxu0
      %v334 = vpop.f32.mrf.mxu0
      %v335 = vadd.f32 %v254, %v334
      %v336 = vpop.f32.mrf.mxu0
      %337 = vmatprep.mubr.bf16.mxu0 0
      %338 = vmatmul.mubr.bf16.gmra.mxu0 %v279
      %v339 = vpop.f32.mrf.mxu0
      %v340 = vadd.f32 %v254, %v339
      %v341 = vpop.f32.mrf.mxu0
      %v342 = vpop.f32.mrf.mxu0
      %v343 = vadd.f32 %v254, %v342
      %v344 = vpop.f32.mrf.mxu0
      %345 = vdwg.mxu0
      %v346 = vpack.c.bf16 %v316, %v316
      %v347 = vpack.c.bf16 %v319, %v319
      %v348 = vpack.c.bf16 %v324, %v324
      %v349 = vpack.c.bf16 %v327, %v327
      %v350 = vpack.c.bf16 %v332, %v332
      %v351 = vpack.c.bf16 %v335, %v335
      %v352 = vpack.c.bf16 %v340, %v340
      %v353 = vpack.c.bf16 %v343, %v343
      %354 = vst [vmem:[#allocation2] sm:$0xf] %v346
      %355 = vst [vmem:[#allocation2 + $0x4] sm:$0xf] %v347
      %356 = vst [vmem:[#allocation2 + $0x8] sm:$0xf] %v348
      %357 = vst [vmem:[#allocation2 + $0xc] sm:$0xf] %v349
      %358 = vst [vmem:[#allocation2 + $0x10] sm:$0xf] %v350
      %359 = vst [vmem:[#allocation2 + $0x14] sm:$0xf] %v351
      %360 = vst [vmem:[#allocation2 + $0x18] sm:$0xf] %v352
      %361 = vst [vmem:[#allocation2 + $0x1c] sm:$0xf] %v353
      %v362 = vld [vmem:[%s223] sm:$0xf]
      %v363 = vld [vmem:[%s223 + $0x4] sm:$0xf]
      %v364 = vld [vmem:[%s223 + $0x8] sm:$0xf]
      %v365 = vld [vmem:[%s223 + $0xc] sm:$0xf]
      %v366 = vlaneseq
      %v367 = vand.u32 %v366, 127
      %vm368 = vcmp.ge.s32.totalorder %v367, 64
      %vm369 = vcmp.lt.s32.totalorder %v367, 96
      %vm370 = vmand %vm368, %vm369
      %v371 = vsel %vm370, 1.0, 0.5
      %v372 = vsel %vm370, 0.0, 0.5
      %p373 = scmp.eq.s32.totalorder %s15, 0
      // Predicated region
      $region37: #{lstm_forward.2} parent=35 // pred_check
        %p374 = pneg %p373
      $region38: #{lstm_forward.2} parent=35 // pred_check_branch
        %376 = sbr.rel (%p374) target = $region40
      $region39: #{lstm_forward.2} parent=35 // pred_region
        %v377 = vld [vmem:[#allocation2] sm:$0xf]
        %v378 = vunpack.c.l.bf16 %v377
        %v383 = vunpack.c.l.b16 %v362
        %v384 = vunpack.c.l.b16 %v363
        %v385 = vunpack.c.l.b16 %v364
        %v386 = vunpack.c.l.b16 %v365
        %v387 = vpack.c.b16 %v384, %v383
        %v388 = vpack.c.b16 %v386, %v385
        %v392 = vsel %vm268, 0, 0
        %394 = vmatprep.subr.bf16.mxu0 0
        %395 = vmatpush1.bf16.msra.mxu0 0
        %396 = vmatprep.subr.bf16.mxu0 0
        %397 = vmatpush1.bf16.msra.mxu0 0
        %398 = vmatprep.subr.bf16.mxu0 0
        %399 = vmatpush1.bf16.msra.mxu0 0
        %400 = vmatprep.subr.bf16.mxu0 0
        %401 = vmatpush1.bf16.msra.mxu0 0
        %402 = vmatprep.subr.bf16.mxu0 0
        %403 = vmatpush1.bf16.msra.mxu0 0
        %404 = vmatprep.subr.bf16.mxu0 0
        %405 = vmatpush1.bf16.msra.mxu0 0
        %406 = vmatprep.subr.bf16.mxu0 0
        %407 = vmatpush1.bf16.msra.mxu0 %v388
        %408 = vmatprep.subr.bf16.mxu0 0
        %409 = vmatpush1.bf16.msra.mxu0 %v387
        %410 = vmatprep.subr.bf16.mxu0 0
        %411 = vmatpush2.bf16.msra.mxu0 0
        %412 = vmatprep.subr.bf16.mxu0 0
        %413 = vmatpush2.bf16.msra.mxu0 0
        %414 = vmatprep.subr.bf16.mxu0 0
        %415 = vmatpush2.bf16.msra.mxu0 0
        %416 = vmatprep.subr.bf16.mxu0 0
        %417 = vmatpush2.bf16.msra.mxu0 0
        %418 = vmatprep.subr.bf16.mxu0 0
        %419 = vmatpush2.bf16.msra.mxu0 0
        %420 = vmatprep.subr.bf16.mxu0 0
        %421 = vmatpush2.bf16.msra.mxu0 0
        %422 = vmatprep.subr.bf16.mxu0 0
        %423 = vmatpush2.bf16.msra.mxu0 0
        %424 = vmatprep.subr.bf16.mxu0 0
        %425 = vmatpush2.bf16.msra.mxu0 0
        %426 = vmatprep.mubr.bf16.mxu0 0
        %427 = vmatmul.mubr.bf16.gmra.mxu0 %v392
        %v428 = vpop.f32.mrf.mxu0
        %v429 = vadd.f32 0.0, %v428
        %v430 = vpop.f32.mrf.mxu0
        %v431 = vpop.f32.mrf.mxu0
        %v432 = vpop.f32.mrf.mxu0
        %433 = vdwg.mxu0
        %v434 = vadd.f32 %v378, %v429
        %v435 = vmul.f32 %v434, %v371
        %v436 = vtanh.pop %v435
        %v437 = vmul.f32 %v436, %v371
        %v438 = vadd.f32 %v437, %v372
        %v439 = vmul.f32 %v438, 0.0
        %441 = vrot.lane.b32.xlu0 %v438, 64
        %v442 = vpop.permute.xlu0 %441
        %v444 = vmul.f32 %v438, %v442
        %446 = vrot.lane.b32.xlu0 %v444, 32
        %v447 = vpop.permute.xlu0 %446
        %v449 = vadd.f32 %v439, %v447
        %v450 = vtanh.pop %v449
        %452 = vrot.lane.b32.xlu0 %v450, 64
        %v453 = vpop.permute.xlu0 %452
        %v455 = vmul.f32 %v438, %v453
        %457 = vrot.lane.b32.xlu0 %v455, 32
        %v458 = vpop.permute.xlu0 %457
        %460 = vst.msk [vmem:[%s231] sm:$0xff] %vm268, %v458
        %s461 = scalar_lea.vmem [#allocation2], 4
        %v462 = vld [vmem:[%s461] sm:$0xf]
        %v463 = vunpack.c.l.bf16 %v462
        %v464 = vpack.c.bf16 %v455, %v455
        %466 = vrot.lane.b32.xlu0 %v464, 32
        %v467 = vpop.permute.xlu0 %466
        %v469 = vsel %vm268, %v467, 0
        %471 = vmatprep.subr.bf16.mxu0 0
        %472 = vmatpush1.bf16.msra.mxu0 0
        %473 = vmatprep.subr.bf16.mxu0 0
        %474 = vmatpush1.bf16.msra.mxu0 0
        %475 = vmatprep.subr.bf16.mxu0 0
        %476 = vmatpush1.bf16.msra.mxu0 0
        %477 = vmatprep.subr.bf16.mxu0 0
        %478 = vmatpush1.bf16.msra.mxu0 0
        %479 = vmatprep.subr.bf16.mxu0 0
        %480 = vmatpush1.bf16.msra.mxu0 0
        %481 = vmatprep.subr.bf16.mxu0 0
        %482 = vmatpush1.bf16.msra.mxu0 0
        %483 = vmatprep.subr.bf16.mxu0 0
        %484 = vmatpush1.bf16.msra.mxu0 %v388
        %485 = vmatprep.subr.bf16.mxu0 0
        %486 = vmatpush1.bf16.msra.mxu0 %v387
        %487 = vmatprep.subr.bf16.mxu0 0
        %488 = vmatpush2.bf16.msra.mxu0 0
        %489 = vmatprep.subr.bf16.mxu0 0
        %490 = vmatpush2.bf16.msra.mxu0 0
        %491 = vmatprep.subr.bf16.mxu0 0
        %492 = vmatpush2.bf16.msra.mxu0 0
        %493 = vmatprep.subr.bf16.mxu0 0
        %494 = vmatpush2.bf16.msra.mxu0 0
        %495 = vmatprep.subr.bf16.mxu0 0
        %496 = vmatpush2.bf16.msra.mxu0 0
        %497 = vmatprep.subr.bf16.mxu0 0
        %498 = vmatpush2.bf16.msra.mxu0 0
        %499 = vmatprep.subr.bf16.mxu0 0
        %500 = vmatpush2.bf16.msra.mxu0 0
        %501 = vmatprep.subr.bf16.mxu0 0
        %502 = vmatpush2.bf16.msra.mxu0 0
        %503 = vmatprep.mubr.bf16.mxu0 0
        %504 = vmatmul.mubr.bf16.gmra.mxu0 %v469
        %v505 = vpop.f32.mrf.mxu0
        %v506 = vadd.f32 0.0, %v505
        %v507 = vpop.f32.mrf.mxu0
        %v508 = vpop.f32.mrf.mxu0
        %v509 = vpop.f32.mrf.mxu0
        %510 = vdwg.mxu0
        %v511 = vadd.f32 %v463, %v506
        %v512 = vmul.f32 %v511, %v371
        %v513 = vtanh.pop %v512
        %v514 = vmul.f32 %v513, %v371
        %v515 = vadd.f32 %v514, %v372
        %v516 = vmul.f32 %v515, %v449
        %518 = vrot.lane.b32.xlu0 %v515, 64
        %v519 = vpop.permute.xlu0 %518
        %v521 = vmul.f32 %v515, %v519
        %523 = vrot.lane.b32.xlu0 %v521, 32
        %v524 = vpop.permute.xlu0 %523
        %v526 = vadd.f32 %v516, %v524
        %v527 = vtanh.pop %v526
        %529 = vrot.lane.b32.xlu0 %v527, 64
        %v530 = vpop.permute.xlu0 %529
        %v532 = vmul.f32 %v515, %v530
        %534 = vrot.lane.b32.xlu0 %v532, 32
        %v535 = vpop.permute.xlu0 %534
        %s537 = scalar_lea.vmem %s231, 8
        %538 = vst.msk [vmem:[%s537] sm:$0xff] %vm268, %v535
        %s539 = scalar_lea.vmem [#allocation2], 8
        %v540 = vld [vmem:[%s539] sm:$0xf]
        %v541 = vunpack.c.l.bf16 %v540
        %v542 = vpack.c.bf16 %v532, %v532
        %544 = vrot.lane.b32.xlu0 %v542, 32
        %v545 = vpop.permute.xlu0 %544
        %v547 = vsel %vm268, %v545, 0
        %549 = vmatprep.subr.bf16.mxu0 0
        %550 = vmatpush1.bf16.msra.mxu0 0
        %551 = vmatprep.subr.bf16.mxu0 0
        %552 = vmatpush1.bf16.msra.mxu0 0
        %553 = vmatprep.subr.bf16.mxu0 0
        %554 = vmatpush1.bf16.msra.mxu0 0
        %555 = vmatprep.subr.bf16.mxu0 0
        %556 = vmatpush1.bf16.msra.mxu0 0
        %557 = vmatprep.subr.bf16.mxu0 0
        %558 = vmatpush1.bf16.msra.mxu0 0
        %559 = vmatprep.subr.bf16.mxu0 0
        %560 = vmatpush1.bf16.msra.mxu0 0
        %561 = vmatprep.subr.bf16.mxu0 0
        %562 = vmatpush1.bf16.msra.mxu0 %v388
        %563 = vmatprep.subr.bf16.mxu0 0
        %564 = vmatpush1.bf16.msra.mxu0 %v387
        %565 = vmatprep.subr.bf16.mxu0 0
        %566 = vmatpush2.bf16.msra.mxu0 0
        %567 = vmatprep.subr.bf16.mxu0 0
        %568 = vmatpush2.bf16.msra.mxu0 0
        %569 = vmatprep.subr.bf16.mxu0 0
        %570 = vmatpush2.bf16.msra.mxu0 0
        %571 = vmatprep.subr.bf16.mxu0 0
        %572 = vmatpush2.bf16.msra.mxu0 0
        %573 = vmatprep.subr.bf16.mxu0 0
        %574 = vmatpush2.bf16.msra.mxu0 0
        %575 = vmatprep.subr.bf16.mxu0 0
        %576 = vmatpush2.bf16.msra.mxu0 0
        %577 = vmatprep.subr.bf16.mxu0 0
        %578 = vmatpush2.bf16.msra.mxu0 0
        %579 = vmatprep.subr.bf16.mxu0 0
        %580 = vmatpush2.bf16.msra.mxu0 0
        %581 = vmatprep.mubr.bf16.mxu0 0
        %582 = vmatmul.mubr.bf16.gmra.mxu0 %v547
        %v583 = vpop.f32.mrf.mxu0
        %v584 = vadd.f32 0.0, %v583
        %v585 = vpop.f32.mrf.mxu0
        %v586 = vpop.f32.mrf.mxu0
        %v587 = vpop.f32.mrf.mxu0
        %588 = vdwg.mxu0
        %v589 = vadd.f32 %v541, %v584
        %v590 = vmul.f32 %v589, %v371
        %v591 = vtanh.pop %v590
        %v592 = vmul.f32 %v591, %v371
        %v593 = vadd.f32 %v592, %v372
        %v594 = vmul.f32 %v593, %v526
        %596 = vrot.lane.b32.xlu0 %v593, 64
        %v597 = vpop.permute.xlu0 %596
        %v599 = vmul.f32 %v593, %v597
        %601 = vrot.lane.b32.xlu0 %v599, 32
        %v602 = vpop.permute.xlu0 %601
        %v604 = vadd.f32 %v594, %v602
        %v605 = vtanh.pop %v604
        %607 = vrot.lane.b32.xlu0 %v605, 64
        %v608 = vpop.permute.xlu0 %607
        %v610 = vmul.f32 %v593, %v608
        %612 = vrot.lane.b32.xlu0 %v610, 32
        %v613 = vpop.permute.xlu0 %612
        %s615 = scalar_lea.vmem %s231, 16
        %616 = vst.msk [vmem:[%s615] sm:$0xff] %vm268, %v613
        %s617 = scalar_lea.vmem [#allocation2], 12
        %v618 = vld [vmem:[%s617] sm:$0xf]
        %v619 = vunpack.c.l.bf16 %v618
        %v620 = vpack.c.bf16 %v610, %v610
        %622 = vrot.lane.b32.xlu0 %v620, 32
        %v623 = vpop.permute.xlu0 %622
        %v625 = vsel %vm268, %v623, 0
        %627 = vmatprep.subr.bf16.mxu0 0
        %628 = vmatpush1.bf16.msra.mxu0 0
        %629 = vmatprep.subr.bf16.mxu0 0
        %630 = vmatpush1.bf16.msra.mxu0 0
        %631 = vmatprep.subr.bf16.mxu0 0
        %632 = vmatpush1.bf16.msra.mxu0 0
        %633 = vmatprep.subr.bf16.mxu0 0
        %634 = vmatpush1.bf16.msra.mxu0 0
        %635 = vmatprep.subr.bf16.mxu0 0
        %636 = vmatpush1.bf16.msra.mxu0 0
        %637 = vmatprep.subr.bf16.mxu0 0
        %638 = vmatpush1.bf16.msra.mxu0 0
        %639 = vmatprep.subr.bf16.mxu0 0
        %640 = vmatpush1.bf16.msra.mxu0 %v388
        %641 = vmatprep.subr.bf16.mxu0 0
        %642 = vmatpush1.bf16.msra.mxu0 %v387
        %643 = vmatprep.subr.bf16.mxu0 0
        %644 = vmatpush2.bf16.msra.mxu0 0
        %645 = vmatprep.subr.bf16.mxu0 0
        %646 = vmatpush2.bf16.msra.mxu0 0
        %647 = vmatprep.subr.bf16.mxu0 0
        %648 = vmatpush2.bf16.msra.mxu0 0
        %649 = vmatprep.subr.bf16.mxu0 0
        %650 = vmatpush2.bf16.msra.mxu0 0
        %651 = vmatprep.subr.bf16.mxu0 0
        %652 = vmatpush2.bf16.msra.mxu0 0
        %653 = vmatprep.subr.bf16.mxu0 0
        %654 = vmatpush2.bf16.msra.mxu0 0
        %655 = vmatprep.subr.bf16.mxu0 0
        %656 = vmatpush2.bf16.msra.mxu0 0
        %657 = vmatprep.subr.bf16.mxu0 0
        %658 = vmatpush2.bf16.msra.mxu0 0
        %659 = vmatprep.mubr.bf16.mxu0 0
        %660 = vmatmul.mubr.bf16.gmra.mxu0 %v625
        %v661 = vpop.f32.mrf.mxu0
        %v662 = vadd.f32 0.0, %v661
        %v663 = vpop.f32.mrf.mxu0
        %v664 = vpop.f32.mrf.mxu0
        %v665 = vpop.f32.mrf.mxu0
        %666 = vdwg.mxu0
        %v667 = vadd.f32 %v619, %v662
        %v668 = vmul.f32 %v667, %v371
        %v669 = vtanh.pop %v668
        %v670 = vmul.f32 %v669, %v371
        %v671 = vadd.f32 %v670, %v372
        %v672 = vmul.f32 %v671, %v604
        %674 = vrot.lane.b32.xlu0 %v671, 64
        %v675 = vpop.permute.xlu0 %674
        %v677 = vmul.f32 %v671, %v675
        %679 = vrot.lane.b32.xlu0 %v677, 32
        %v680 = vpop.permute.xlu0 %679
        %v682 = vadd.f32 %v672, %v680
        %v683 = vtanh.pop %v682
        %685 = vrot.lane.b32.xlu0 %v683, 64
        %v686 = vpop.permute.xlu0 %685
        %v688 = vmul.f32 %v671, %v686
        %690 = vrot.lane.b32.xlu0 %v688, 32
        %v691 = vpop.permute.xlu0 %690
        %s693 = scalar_lea.vmem %s231, 24
        %694 = vst.msk [vmem:[%s693] sm:$0xff] %vm268, %v691
        %s695 = scalar_lea.vmem [#allocation2], 16
        %v696 = vld [vmem:[%s695] sm:$0xf]
        %v697 = vunpack.c.l.bf16 %v696
        %v698 = vpack.c.bf16 %v688, %v688
        %700 = vrot.lane.b32.xlu0 %v698, 32
        %v701 = vpop.permute.xlu0 %700
        %v703 = vsel %vm268, %v701, 0
        %705 = vmatprep.subr.bf16.mxu0 0
        %706 = vmatpush1.bf16.msra.mxu0 0
        %707 = vmatprep.subr.bf16.mxu0 0
        %708 = vmatpush1.bf16.msra.mxu0 0
        %709 = vmatprep.subr.bf16.mxu0 0
        %710 = vmatpush1.bf16.msra.mxu0 0
        %711 = vmatprep.subr.bf16.mxu0 0
        %712 = vmatpush1.bf16.msra.mxu0 0
        %713 = vmatprep.subr.bf16.mxu0 0
        %714 = vmatpush1.bf16.msra.mxu0 0
        %715 = vmatprep.subr.bf16.mxu0 0
        %716 = vmatpush1.bf16.msra.mxu0 0
        %717 = vmatprep.subr.bf16.mxu0 0
        %718 = vmatpush1.bf16.msra.mxu0 %v388
        %719 = vmatprep.subr.bf16.mxu0 0
        %720 = vmatpush1.bf16.msra.mxu0 %v387
        %721 = vmatprep.subr.bf16.mxu0 0
        %722 = vmatpush2.bf16.msra.mxu0 0
        %723 = vmatprep.subr.bf16.mxu0 0
        %724 = vmatpush2.bf16.msra.mxu0 0
        %725 = vmatprep.subr.bf16.mxu0 0
        %726 = vmatpush2.bf16.msra.mxu0 0
        %727 = vmatprep.subr.bf16.mxu0 0
        %728 = vmatpush2.bf16.msra.mxu0 0
        %729 = vmatprep.subr.bf16.mxu0 0
        %730 = vmatpush2.bf16.msra.mxu0 0
        %731 = vmatprep.subr.bf16.mxu0 0
        %732 = vmatpush2.bf16.msra.mxu0 0
        %733 = vmatprep.subr.bf16.mxu0 0
        %734 = vmatpush2.bf16.msra.mxu0 0
        %735 = vmatprep.subr.bf16.mxu0 0
        %736 = vmatpush2.bf16.msra.mxu0 0
        %737 = vmatprep.mubr.bf16.mxu0 0
        %738 = vmatmul.mubr.bf16.gmra.mxu0 %v703
        %v739 = vpop.f32.mrf.mxu0
        %v740 = vadd.f32 0.0, %v739
        %v741 = vpop.f32.mrf.mxu0
        %v742 = vpop.f32.mrf.mxu0
        %v743 = vpop.f32.mrf.mxu0
        %744 = vdwg.mxu0
        %v745 = vadd.f32 %v697, %v740
        %v746 = vmul.f32 %v745, %v371
        %v747 = vtanh.pop %v746
        %v748 = vmul.f32 %v747, %v371
        %v749 = vadd.f32 %v748, %v372
        %v750 = vmul.f32 %v749, %v682
        %752 = vrot.lane.b32.xlu0 %v749, 64
        %v753 = vpop.permute.xlu0 %752
        %v755 = vmul.f32 %v749, %v753
        %757 = vrot.lane.b32.xlu0 %v755, 32
        %v758 = vpop.permute.xlu0 %757
        %v760 = vadd.f32 %v750, %v758
        %v761 = vtanh.pop %v760
        %763 = vrot.lane.b32.xlu0 %v761, 64
        %v764 = vpop.permute.xlu0 %763
        %v766 = vmul.f32 %v749, %v764
        %768 = vrot.lane.b32.xlu0 %v766, 32
        %v769 = vpop.permute.xlu0 %768
        %s771 = scalar_lea.vmem %s231, 32
        %772 = vst.msk [vmem:[%s771] sm:$0xff] %vm268, %v769
        %s773 = scalar_lea.vmem [#allocation2], 20
        %v774 = vld [vmem:[%s773] sm:$0xf]
        %v775 = vunpack.c.l.bf16 %v774
        %v776 = vpack.c.bf16 %v766, %v766
        %778 = vrot.lane.b32.xlu0 %v776, 32
        %v779 = vpop.permute.xlu0 %778
        %v781 = vsel %vm268, %v779, 0
        %783 = vmatprep.subr.bf16.mxu0 0
        %784 = vmatpush1.bf16.msra.mxu0 0
        %785 = vmatprep.subr.bf16.mxu0 0
        %786 = vmatpush1.bf16.msra.mxu0 0
        %787 = vmatprep.subr.bf16.mxu0 0
        %788 = vmatpush1.bf16.msra.mxu0 0
        %789 = vmatprep.subr.bf16.mxu0 0
        %790 = vmatpush1.bf16.msra.mxu0 0
        %791 = vmatprep.subr.bf16.mxu0 0
        %792 = vmatpush1.bf16.msra.mxu0 0
        %793 = vmatprep.subr.bf16.mxu0 0
        %794 = vmatpush1.bf16.msra.mxu0 0
        %795 = vmatprep.subr.bf16.mxu0 0
        %796 = vmatpush1.bf16.msra.mxu0 %v388
        %797 = vmatprep.subr.bf16.mxu0 0
        %798 = vmatpush1.bf16.msra.mxu0 %v387
        %799 = vmatprep.subr.bf16.mxu0 0
        %800 = vmatpush2.bf16.msra.mxu0 0
        %801 = vmatprep.subr.bf16.mxu0 0
        %802 = vmatpush2.bf16.msra.mxu0 0
        %803 = vmatprep.subr.bf16.mxu0 0
        %804 = vmatpush2.bf16.msra.mxu0 0
        %805 = vmatprep.subr.bf16.mxu0 0
        %806 = vmatpush2.bf16.msra.mxu0 0
        %807 = vmatprep.subr.bf16.mxu0 0
        %808 = vmatpush2.bf16.msra.mxu0 0
        %809 = vmatprep.subr.bf16.mxu0 0
        %810 = vmatpush2.bf16.msra.mxu0 0
        %811 = vmatprep.subr.bf16.mxu0 0
        %812 = vmatpush2.bf16.msra.mxu0 0
        %813 = vmatprep.subr.bf16.mxu0 0
        %814 = vmatpush2.bf16.msra.mxu0 0
        %815 = vmatprep.mubr.bf16.mxu0 0
        %816 = vmatmul.mubr.bf16.gmra.mxu0 %v781
        %v817 = vpop.f32.mrf.mxu0
        %v818 = vadd.f32 0.0, %v817
        %v819 = vpop.f32.mrf.mxu0
        %v820 = vpop.f32.mrf.mxu0
        %v821 = vpop.f32.mrf.mxu0
        %822 = vdwg.mxu0
        %v823 = vadd.f32 %v775, %v818
        %v824 = vmul.f32 %v823, %v371
        %v825 = vtanh.pop %v824
        %v826 = vmul.f32 %v825, %v371
        %v827 = vadd.f32 %v826, %v372
        %v828 = vmul.f32 %v827, %v760
        %830 = vrot.lane.b32.xlu0 %v827, 64
        %v831 = vpop.permute.xlu0 %830
        %v833 = vmul.f32 %v827, %v831
        %835 = vrot.lane.b32.xlu0 %v833, 32
        %v836 = vpop.permute.xlu0 %835
        %v838 = vadd.f32 %v828, %v836
        %v839 = vtanh.pop %v838
        %841 = vrot.lane.b32.xlu0 %v839, 64
        %v842 = vpop.permute.xlu0 %841
        %v844 = vmul.f32 %v827, %v842
        %846 = vrot.lane.b32.xlu0 %v844, 32
        %v847 = vpop.permute.xlu0 %846
        %s849 = scalar_lea.vmem %s231, 40
        %850 = vst.msk [vmem:[%s849] sm:$0xff] %vm268, %v847
        %s851 = scalar_lea.vmem [#allocation2], 24
        %v852 = vld [vmem:[%s851] sm:$0xf]
        %v853 = vunpack.c.l.bf16 %v852
        %v854 = vpack.c.bf16 %v844, %v844
        %856 = vrot.lane.b32.xlu0 %v854, 32
        %v857 = vpop.permute.xlu0 %856
        %v859 = vsel %vm268, %v857, 0
        %861 = vmatprep.subr.bf16.mxu0 0
        %862 = vmatpush1.bf16.msra.mxu0 0
        %863 = vmatprep.subr.bf16.mxu0 0
        %864 = vmatpush1.bf16.msra.mxu0 0
        %865 = vmatprep.subr.bf16.mxu0 0
        %866 = vmatpush1.bf16.msra.mxu0 0
        %867 = vmatprep.subr.bf16.mxu0 0
        %868 = vmatpush1.bf16.msra.mxu0 0
        %869 = vmatprep.subr.bf16.mxu0 0
        %870 = vmatpush1.bf16.msra.mxu0 0
        %871 = vmatprep.subr.bf16.mxu0 0
        %872 = vmatpush1.bf16.msra.mxu0 0
        %873 = vmatprep.subr.bf16.mxu0 0
        %874 = vmatpush1.bf16.msra.mxu0 %v388
        %875 = vmatprep.subr.bf16.mxu0 0
        %876 = vmatpush1.bf16.msra.mxu0 %v387
        %877 = vmatprep.subr.bf16.mxu0 0
        %878 = vmatpush2.bf16.msra.mxu0 0
        %879 = vmatprep.subr.bf16.mxu0 0
        %880 = vmatpush2.bf16.msra.mxu0 0
        %881 = vmatprep.subr.bf16.mxu0 0
        %882 = vmatpush2.bf16.msra.mxu0 0
        %883 = vmatprep.subr.bf16.mxu0 0
        %884 = vmatpush2.bf16.msra.mxu0 0
        %885 = vmatprep.subr.bf16.mxu0 0
        %886 = vmatpush2.bf16.msra.mxu0 0
        %887 = vmatprep.subr.bf16.mxu0 0
        %888 = vmatpush2.bf16.msra.mxu0 0
        %889 = vmatprep.subr.bf16.mxu0 0
        %890 = vmatpush2.bf16.msra.mxu0 0
        %891 = vmatprep.subr.bf16.mxu0 0
        %892 = vmatpush2.bf16.msra.mxu0 0
        %893 = vmatprep.mubr.bf16.mxu0 0
        %894 = vmatmul.mubr.bf16.gmra.mxu0 %v859
        %v895 = vpop.f32.mrf.mxu0
        %v896 = vadd.f32 0.0, %v895
        %v897 = vpop.f32.mrf.mxu0
        %v898 = vpop.f32.mrf.mxu0
        %v899 = vpop.f32.mrf.mxu0
        %900 = vdwg.mxu0
        %v901 = vadd.f32 %v853, %v896
        %v902 = vmul.f32 %v901, %v371
        %v903 = vtanh.pop %v902
        %v904 = vmul.f32 %v903, %v371
        %v905 = vadd.f32 %v904, %v372
        %v906 = vmul.f32 %v905, %v838
        %908 = vrot.lane.b32.xlu0 %v905, 64
        %v909 = vpop.permute.xlu0 %908
        %v911 = vmul.f32 %v905, %v909
        %913 = vrot.lane.b32.xlu0 %v911, 32
        %v914 = vpop.permute.xlu0 %913
        %v916 = vadd.f32 %v906, %v914
        %v917 = vtanh.pop %v916
        %919 = vrot.lane.b32.xlu0 %v917, 64
        %v920 = vpop.permute.xlu0 %919
        %v922 = vmul.f32 %v905, %v920
        %924 = vrot.lane.b32.xlu0 %v922, 32
        %v925 = vpop.permute.xlu0 %924
        %s927 = scalar_lea.vmem %s231, 48
        %928 = vst.msk [vmem:[%s927] sm:$0xff] %vm268, %v925
        %s929 = scalar_lea.vmem [#allocation2], 28
        %v930 = vld [vmem:[%s929] sm:$0xf]
        %v931 = vunpack.c.l.bf16 %v930
        %v932 = vpack.c.bf16 %v922, %v922
        %934 = vrot.lane.b32.xlu0 %v932, 32
        %v935 = vpop.permute.xlu0 %934
        %v937 = vsel %vm268, %v935, 0
        %939 = vmatprep.subr.bf16.mxu0 0
        %940 = vmatpush1.bf16.msra.mxu0 0
        %941 = vmatprep.subr.bf16.mxu0 0
        %942 = vmatpush1.bf16.msra.mxu0 0
        %943 = vmatprep.subr.bf16.mxu0 0
        %944 = vmatpush1.bf16.msra.mxu0 0
        %945 = vmatprep.subr.bf16.mxu0 0
        %946 = vmatpush1.bf16.msra.mxu0 0
        %947 = vmatprep.subr.bf16.mxu0 0
        %948 = vmatpush1.bf16.msra.mxu0 0
        %949 = vmatprep.subr.bf16.mxu0 0
        %950 = vmatpush1.bf16.msra.mxu0 0
        %951 = vmatprep.subr.bf16.mxu0 0
        %952 = vmatpush1.bf16.msra.mxu0 %v388
        %953 = vmatprep.subr.bf16.mxu0 0
        %954 = vmatpush1.bf16.msra.mxu0 %v387
        %955 = vmatprep.subr.bf16.mxu0 0
        %956 = vmatpush2.bf16.msra.mxu0 0
        %957 = vmatprep.subr.bf16.mxu0 0
        %958 = vmatpush2.bf16.msra.mxu0 0
        %959 = vmatprep.subr.bf16.mxu0 0
        %960 = vmatpush2.bf16.msra.mxu0 0
        %961 = vmatprep.subr.bf16.mxu0 0
        %962 = vmatpush2.bf16.msra.mxu0 0
        %963 = vmatprep.subr.bf16.mxu0 0
        %964 = vmatpush2.bf16.msra.mxu0 0
        %965 = vmatprep.subr.bf16.mxu0 0
        %966 = vmatpush2.bf16.msra.mxu0 0
        %967 = vmatprep.subr.bf16.mxu0 0
        %968 = vmatpush2.bf16.msra.mxu0 0
        %969 = vmatprep.subr.bf16.mxu0 0
        %970 = vmatpush2.bf16.msra.mxu0 0
        %971 = vmatprep.mubr.bf16.mxu0 0
        %972 = vmatmul.mubr.bf16.gmra.mxu0 %v937
        %v973 = vpop.f32.mrf.mxu0
        %v974 = vadd.f32 0.0, %v973
        %v975 = vpop.f32.mrf.mxu0
        %v976 = vpop.f32.mrf.mxu0
        %v977 = vpop.f32.mrf.mxu0
        %978 = vdwg.mxu0
        %v979 = vadd.f32 %v931, %v974
        %v980 = vmul.f32 %v979, %v371
        %v981 = vtanh.pop %v980
        %v982 = vmul.f32 %v981, %v371
        %v983 = vadd.f32 %v982, %v372
        %v984 = vmul.f32 %v983, %v916
        %986 = vrot.lane.b32.xlu0 %v983, 64
        %v987 = vpop.permute.xlu0 %986
        %v989 = vmul.f32 %v983, %v987
        %991 = vrot.lane.b32.xlu0 %v989, 32
        %v992 = vpop.permute.xlu0 %991
        %v994 = vadd.f32 %v984, %v992
        %v995 = vtanh.pop %v994
        %997 = vrot.lane.b32.xlu0 %v995, 64
        %v998 = vpop.permute.xlu0 %997
        %v1000 = vmul.f32 %v983, %v998
        %1002 = vrot.lane.b32.xlu0 %v1000, 32
        %v1003 = vpop.permute.xlu0 %1002
        %s1005 = scalar_lea.vmem %s231, 56
        %1006 = vst.msk [vmem:[%s1005] sm:$0xff] %vm268, %v1003
      $region40: #{lstm_forward.2} parent=35 // pred_fallthru
        _
      %p1007 = scmp.eq.s32.totalorder %s15, 1
      // Predicated region
      $region41: #{lstm_forward.2} parent=35 // pred_check
        %p1008 = pneg %p1007
      $region42: #{lstm_forward.2} parent=35 // pred_check_branch
        %1010 = sbr.rel (%p1008) target = $region44
      $region43: #{lstm_forward.2} parent=35 // pred_region
        %s1011 = scalar_lea.vmem [#allocation2], 28
        %v1012 = vld [vmem:[%s1011] sm:$0xf]
        %v1013 = vunpack.c.l.bf16 %v1012
        %v1018 = vunpack.c.l.b16 %v362
        %v1019 = vunpack.c.l.b16 %v363
        %v1020 = vunpack.c.l.b16 %v364
        %v1021 = vunpack.c.l.b16 %v365
        %v1022 = vpack.c.b16 %v1019, %v1018
        %v1023 = vpack.c.b16 %v1021, %v1020
        %v1027 = vsel %vm268, 0, 0
        %1029 = vmatprep.subr.bf16.mxu0 0
        %1030 = vmatpush1.bf16.msra.mxu0 0
        %1031 = vmatprep.subr.bf16.mxu0 0
        %1032 = vmatpush1.bf16.msra.mxu0 0
        %1033 = vmatprep.subr.bf16.mxu0 0
        %1034 = vmatpush1.bf16.msra.mxu0 0
        %1035 = vmatprep.subr.bf16.mxu0 0
        %1036 = vmatpush1.bf16.msra.mxu0 0
        %1037 = vmatprep.subr.bf16.mxu0 0
        %1038 = vmatpush1.bf16.msra.mxu0 0
        %1039 = vmatprep.subr.bf16.mxu0 0
        %1040 = vmatpush1.bf16.msra.mxu0 0
        %1041 = vmatprep.subr.bf16.mxu0 0
        %1042 = vmatpush1.bf16.msra.mxu0 %v1023
        %1043 = vmatprep.subr.bf16.mxu0 0
        %1044 = vmatpush1.bf16.msra.mxu0 %v1022
        %1045 = vmatprep.subr.bf16.mxu0 0
        %1046 = vmatpush2.bf16.msra.mxu0 0
        %1047 = vmatprep.subr.bf16.mxu0 0
        %1048 = vmatpush2.bf16.msra.mxu0 0
        %1049 = vmatprep.subr.bf16.mxu0 0
        %1050 = vmatpush2.bf16.msra.mxu0 0
        %1051 = vmatprep.subr.bf16.mxu0 0
        %1052 = vmatpush2.bf16.msra.mxu0 0
        %1053 = vmatprep.subr.bf16.mxu0 0
        %1054 = vmatpush2.bf16.msra.mxu0 0
        %1055 = vmatprep.subr.bf16.mxu0 0
        %1056 = vmatpush2.bf16.msra.mxu0 0
        %1057 = vmatprep.subr.bf16.mxu0 0
        %1058 = vmatpush2.bf16.msra.mxu0 0
        %1059 = vmatprep.subr.bf16.mxu0 0
        %1060 = vmatpush2.bf16.msra.mxu0 0
        %1061 = vmatprep.mubr.bf16.mxu0 0
        %1062 = vmatmul.mubr.bf16.gmra.mxu0 %v1027
        %v1063 = vpop.f32.mrf.mxu0
        %v1064 = vadd.f32 0.0, %v1063
        %v1065 = vpop.f32.mrf.mxu0
        %v1066 = vpop.f32.mrf.mxu0
        %v1067 = vpop.f32.mrf.mxu0
        %1068 = vdwg.mxu0
        %v1069 = vadd.f32 %v1013, %v1064
        %v1070 = vmul.f32 %v1069, %v371
        %v1071 = vtanh.pop %v1070
        %v1072 = vmul.f32 %v1071, %v371
        %v1073 = vadd.f32 %v1072, %v372
        %v1074 = vmul.f32 %v1073, 0.0
        %1076 = vrot.lane.b32.xlu0 %v1073, 64
        %v1077 = vpop.permute.xlu0 %1076
        %v1079 = vmul.f32 %v1073, %v1077
        %1081 = vrot.lane.b32.xlu0 %v1079, 32
        %v1082 = vpop.permute.xlu0 %1081
        %v1084 = vadd.f32 %v1074, %v1082
        %v1085 = vtanh.pop %v1084
        %1087 = vrot.lane.b32.xlu0 %v1085, 64
        %v1088 = vpop.permute.xlu0 %1087
        %v1090 = vmul.f32 %v1073, %v1088
        %1092 = vrot.lane.b32.xlu0 %v1090, 32
        %v1093 = vpop.permute.xlu0 %1092
        %s1095 = scalar_lea.vmem %s231, 56
        %1096 = vst.msk [vmem:[%s1095] sm:$0xff] %vm268, %v1093
        %s1097 = scalar_lea.vmem [#allocation2], 24
        %v1098 = vld [vmem:[%s1097] sm:$0xf]
        %v1099 = vunpack.c.l.bf16 %v1098
        %v1100 = vpack.c.bf16 %v1090, %v1090
        %1102 = vrot.lane.b32.xlu0 %v1100, 32
        %v1103 = vpop.permute.xlu0 %1102
        %v1105 = vsel %vm268, %v1103, 0
        %1107 = vmatprep.subr.bf16.mxu0 0
        %1108 = vmatpush1.bf16.msra.mxu0 0
        %1109 = vmatprep.subr.bf16.mxu0 0
        %1110 = vmatpush1.bf16.msra.mxu0 0
        %1111 = vmatprep.subr.bf16.mxu0 0
        %1112 = vmatpush1.bf16.msra.mxu0 0
        %1113 = vmatprep.subr.bf16.mxu0 0
        %1114 = vmatpush1.bf16.msra.mxu0 0
        %1115 = vmatprep.subr.bf16.mxu0 0
        %1116 = vmatpush1.bf16.msra.mxu0 0
        %1117 = vmatprep.subr.bf16.mxu0 0
        %1118 = vmatpush1.bf16.msra.mxu0 0
        %1119 = vmatprep.subr.bf16.mxu0 0
        %1120 = vmatpush1.bf16.msra.mxu0 %v1023
        %1121 = vmatprep.subr.bf16.mxu0 0
        %1122 = vmatpush1.bf16.msra.mxu0 %v1022
        %1123 = vmatprep.subr.bf16.mxu0 0
        %1124 = vmatpush2.bf16.msra.mxu0 0
        %1125 = vmatprep.subr.bf16.mxu0 0
        %1126 = vmatpush2.bf16.msra.mxu0 0
        %1127 = vmatprep.subr.bf16.mxu0 0
        %1128 = vmatpush2.bf16.msra.mxu0 0
        %1129 = vmatprep.subr.bf16.mxu0 0
        %1130 = vmatpush2.bf16.msra.mxu0 0
        %1131 = vmatprep.subr.bf16.mxu0 0
        %1132 = vmatpush2.bf16.msra.mxu0 0
        %1133 = vmatprep.subr.bf16.mxu0 0
        %1134 = vmatpush2.bf16.msra.mxu0 0
        %1135 = vmatprep.subr.bf16.mxu0 0
        %1136 = vmatpush2.bf16.msra.mxu0 0
        %1137 = vmatprep.subr.bf16.mxu0 0
        %1138 = vmatpush2.bf16.msra.mxu0 0
        %1139 = vmatprep.mubr.bf16.mxu0 0
        %1140 = vmatmul.mubr.bf16.gmra.mxu0 %v1105
        %v1141 = vpop.f32.mrf.mxu0
        %v1142 = vadd.f32 0.0, %v1141
        %v1143 = vpop.f32.mrf.mxu0
        %v1144 = vpop.f32.mrf.mxu0
        %v1145 = vpop.f32.mrf.mxu0
        %1146 = vdwg.mxu0
        %v1147 = vadd.f32 %v1099, %v1142
        %v1148 = vmul.f32 %v1147, %v371
        %v1149 = vtanh.pop %v1148
        %v1150 = vmul.f32 %v1149, %v371
        %v1151 = vadd.f32 %v1150, %v372
        %v1152 = vmul.f32 %v1151, %v1084
        %1154 = vrot.lane.b32.xlu0 %v1151, 64
        %v1155 = vpop.permute.xlu0 %1154
        %v1157 = vmul.f32 %v1151, %v1155
        %1159 = vrot.lane.b32.xlu0 %v1157, 32
        %v1160 = vpop.permute.xlu0 %1159
        %v1162 = vadd.f32 %v1152, %v1160
        %v1163 = vtanh.pop %v1162
        %1165 = vrot.lane.b32.xlu0 %v1163, 64
        %v1166 = vpop.permute.xlu0 %1165
        %v1168 = vmul.f32 %v1151, %v1166
        %1170 = vrot.lane.b32.xlu0 %v1168, 32
        %v1171 = vpop.permute.xlu0 %1170
        %s1173 = scalar_lea.vmem %s231, 48
        %1174 = vst.msk [vmem:[%s1173] sm:$0xff] %vm268, %v1171
        %s1175 = scalar_lea.vmem [#allocation2], 20
        %v1176 = vld [vmem:[%s1175] sm:$0xf]
        %v1177 = vunpack.c.l.bf16 %v1176
        %v1178 = vpack.c.bf16 %v1168, %v1168
        %1180 = vrot.lane.b32.xlu0 %v1178, 32
        %v1181 = vpop.permute.xlu0 %1180
        %v1183 = vsel %vm268, %v1181, 0
        %1185 = vmatprep.subr.bf16.mxu0 0
        %1186 = vmatpush1.bf16.msra.mxu0 0
        %1187 = vmatprep.subr.bf16.mxu0 0
        %1188 = vmatpush1.bf16.msra.mxu0 0
        %1189 = vmatprep.subr.bf16.mxu0 0
        %1190 = vmatpush1.bf16.msra.mxu0 0
        %1191 = vmatprep.subr.bf16.mxu0 0
        %1192 = vmatpush1.bf16.msra.mxu0 0
        %1193 = vmatprep.subr.bf16.mxu0 0
        %1194 = vmatpush1.bf16.msra.mxu0 0
        %1195 = vmatprep.subr.bf16.mxu0 0
        %1196 = vmatpush1.bf16.msra.mxu0 0
        %1197 = vmatprep.subr.bf16.mxu0 0
        %1198 = vmatpush1.bf16.msra.mxu0 %v1023
        %1199 = vmatprep.subr.bf16.mxu0 0
        %1200 = vmatpush1.bf16.msra.mxu0 %v1022
        %1201 = vmatprep.subr.bf16.mxu0 0
        %1202 = vmatpush2.bf16.msra.mxu0 0
        %1203 = vmatprep.subr.bf16.mxu0 0
        %1204 = vmatpush2.bf16.msra.mxu0 0
        %1205 = vmatprep.subr.bf16.mxu0 0
        %1206 = vmatpush2.bf16.msra.mxu0 0
        %1207 = vmatprep.subr.bf16.mxu0 0
        %1208 = vmatpush2.bf16.msra.mxu0 0
        %1209 = vmatprep.subr.bf16.mxu0 0
        %1210 = vmatpush2.bf16.msra.mxu0 0
        %1211 = vmatprep.subr.bf16.mxu0 0
        %1212 = vmatpush2.bf16.msra.mxu0 0
        %1213 = vmatprep.subr.bf16.mxu0 0
        %1214 = vmatpush2.bf16.msra.mxu0 0
        %1215 = vmatprep.subr.bf16.mxu0 0
        %1216 = vmatpush2.bf16.msra.mxu0 0
        %1217 = vmatprep.mubr.bf16.mxu0 0
        %1218 = vmatmul.mubr.bf16.gmra.mxu0 %v1183
        %v1219 = vpop.f32.mrf.mxu0
        %v1220 = vadd.f32 0.0, %v1219
        %v1221 = vpop.f32.mrf.mxu0
        %v1222 = vpop.f32.mrf.mxu0
        %v1223 = vpop.f32.mrf.mxu0
        %1224 = vdwg.mxu0
        %v1225 = vadd.f32 %v1177, %v1220
        %v1226 = vmul.f32 %v1225, %v371
        %v1227 = vtanh.pop %v1226
        %v1228 = vmul.f32 %v1227, %v371
        %v1229 = vadd.f32 %v1228, %v372
        %v1230 = vmul.f32 %v1229, %v1162
        %1232 = vrot.lane.b32.xlu0 %v1229, 64
        %v1233 = vpop.permute.xlu0 %1232
        %v1235 = vmul.f32 %v1229, %v1233
        %1237 = vrot.lane.b32.xlu0 %v1235, 32
        %v1238 = vpop.permute.xlu0 %1237
        %v1240 = vadd.f32 %v1230, %v1238
        %v1241 = vtanh.pop %v1240
        %1243 = vrot.lane.b32.xlu0 %v1241, 64
        %v1244 = vpop.permute.xlu0 %1243
        %v1246 = vmul.f32 %v1229, %v1244
        %1248 = vrot.lane.b32.xlu0 %v1246, 32
        %v1249 = vpop.permute.xlu0 %1248
        %s1251 = scalar_lea.vmem %s231, 40
        %1252 = vst.msk [vmem:[%s1251] sm:$0xff] %vm268, %v1249
        %s1253 = scalar_lea.vmem [#allocation2], 16
        %v1254 = vld [vmem:[%s1253] sm:$0xf]
        %v1255 = vunpack.c.l.bf16 %v1254
        %v1256 = vpack.c.bf16 %v1246, %v1246
        %1258 = vrot.lane.b32.xlu0 %v1256, 32
        %v1259 = vpop.permute.xlu0 %1258
        %v1261 = vsel %vm268, %v1259, 0
        %1263 = vmatprep.subr.bf16.mxu0 0
        %1264 = vmatpush1.bf16.msra.mxu0 0
        %1265 = vmatprep.subr.bf16.mxu0 0
        %1266 = vmatpush1.bf16.msra.mxu0 0
        %1267 = vmatprep.subr.bf16.mxu0 0
        %1268 = vmatpush1.bf16.msra.mxu0 0
        %1269 = vmatprep.subr.bf16.mxu0 0
        %1270 = vmatpush1.bf16.msra.mxu0 0
        %1271 = vmatprep.subr.bf16.mxu0 0
        %1272 = vmatpush1.bf16.msra.mxu0 0
        %1273 = vmatprep.subr.bf16.mxu0 0
        %1274 = vmatpush1.bf16.msra.mxu0 0
        %1275 = vmatprep.subr.bf16.mxu0 0
        %1276 = vmatpush1.bf16.msra.mxu0 %v1023
        %1277 = vmatprep.subr.bf16.mxu0 0
        %1278 = vmatpush1.bf16.msra.mxu0 %v1022
        %1279 = vmatprep.subr.bf16.mxu0 0
        %1280 = vmatpush2.bf16.msra.mxu0 0
        %1281 = vmatprep.subr.bf16.mxu0 0
        %1282 = vmatpush2.bf16.msra.mxu0 0
        %1283 = vmatprep.subr.bf16.mxu0 0
        %1284 = vmatpush2.bf16.msra.mxu0 0
        %1285 = vmatprep.subr.bf16.mxu0 0
        %1286 = vmatpush2.bf16.msra.mxu0 0
        %1287 = vmatprep.subr.bf16.mxu0 0
        %1288 = vmatpush2.bf16.msra.mxu0 0
        %1289 = vmatprep.subr.bf16.mxu0 0
        %1290 = vmatpush2.bf16.msra.mxu0 0
        %1291 = vmatprep.subr.bf16.mxu0 0
        %1292 = vmatpush2.bf16.msra.mxu0 0
        %1293 = vmatprep.subr.bf16.mxu0 0
        %1294 = vmatpush2.bf16.msra.mxu0 0
        %1295 = vmatprep.mubr.bf16.mxu0 0
        %1296 = vmatmul.mubr.bf16.gmra.mxu0 %v1261
        %v1297 = vpop.f32.mrf.mxu0
        %v1298 = vadd.f32 0.0, %v1297
        %v1299 = vpop.f32.mrf.mxu0
        %v1300 = vpop.f32.mrf.mxu0
        %v1301 = vpop.f32.mrf.mxu0
        %1302 = vdwg.mxu0
        %v1303 = vadd.f32 %v1255, %v1298
        %v1304 = vmul.f32 %v1303, %v371
        %v1305 = vtanh.pop %v1304
        %v1306 = vmul.f32 %v1305, %v371
        %v1307 = vadd.f32 %v1306, %v372
        %v1308 = vmul.f32 %v1307, %v1240
        %1310 = vrot.lane.b32.xlu0 %v1307, 64
        %v1311 = vpop.permute.xlu0 %1310
        %v1313 = vmul.f32 %v1307, %v1311
        %1315 = vrot.lane.b32.xlu0 %v1313, 32
        %v1316 = vpop.permute.xlu0 %1315
        %v1318 = vadd.f32 %v1308, %v1316
        %v1319 = vtanh.pop %v1318
        %1321 = vrot.lane.b32.xlu0 %v1319, 64
        %v1322 = vpop.permute.xlu0 %1321
        %v1324 = vmul.f32 %v1307, %v1322
        %1326 = vrot.lane.b32.xlu0 %v1324, 32
        %v1327 = vpop.permute.xlu0 %1326
        %s1329 = scalar_lea.vmem %s231, 32
        %1330 = vst.msk [vmem:[%s1329] sm:$0xff] %vm268, %v1327
        %s1331 = scalar_lea.vmem [#allocation2], 12
        %v1332 = vld [vmem:[%s1331] sm:$0xf]
        %v1333 = vunpack.c.l.bf16 %v1332
        %v1334 = vpack.c.bf16 %v1324, %v1324
        %1336 = vrot.lane.b32.xlu0 %v1334, 32
        %v1337 = vpop.permute.xlu0 %1336
        %v1339 = vsel %vm268, %v1337, 0
        %1341 = vmatprep.subr.bf16.mxu0 0
        %1342 = vmatpush1.bf16.msra.mxu0 0
        %1343 = vmatprep.subr.bf16.mxu0 0
        %1344 = vmatpush1.bf16.msra.mxu0 0
        %1345 = vmatprep.subr.bf16.mxu0 0
        %1346 = vmatpush1.bf16.msra.mxu0 0
        %1347 = vmatprep.subr.bf16.mxu0 0
        %1348 = vmatpush1.bf16.msra.mxu0 0
        %1349 = vmatprep.subr.bf16.mxu0 0
        %1350 = vmatpush1.bf16.msra.mxu0 0
        %1351 = vmatprep.subr.bf16.mxu0 0
        %1352 = vmatpush1.bf16.msra.mxu0 0
        %1353 = vmatprep.subr.bf16.mxu0 0
        %1354 = vmatpush1.bf16.msra.mxu0 %v1023
        %1355 = vmatprep.subr.bf16.mxu0 0
        %1356 = vmatpush1.bf16.msra.mxu0 %v1022
        %1357 = vmatprep.subr.bf16.mxu0 0
        %1358 = vmatpush2.bf16.msra.mxu0 0
        %1359 = vmatprep.subr.bf16.mxu0 0
        %1360 = vmatpush2.bf16.msra.mxu0 0
        %1361 = vmatprep.subr.bf16.mxu0 0
        %1362 = vmatpush2.bf16.msra.mxu0 0
        %1363 = vmatprep.subr.bf16.mxu0 0
        %1364 = vmatpush2.bf16.msra.mxu0 0
        %1365 = vmatprep.subr.bf16.mxu0 0
        %1366 = vmatpush2.bf16.msra.mxu0 0
        %1367 = vmatprep.subr.bf16.mxu0 0
        %1368 = vmatpush2.bf16.msra.mxu0 0
        %1369 = vmatprep.subr.bf16.mxu0 0
        %1370 = vmatpush2.bf16.msra.mxu0 0
        %1371 = vmatprep.subr.bf16.mxu0 0
        %1372 = vmatpush2.bf16.msra.mxu0 0
        %1373 = vmatprep.mubr.bf16.mxu0 0
        %1374 = vmatmul.mubr.bf16.gmra.mxu0 %v1339
        %v1375 = vpop.f32.mrf.mxu0
        %v1376 = vadd.f32 0.0, %v1375
        %v1377 = vpop.f32.mrf.mxu0
        %v1378 = vpop.f32.mrf.mxu0
        %v1379 = vpop.f32.mrf.mxu0
        %1380 = vdwg.mxu0
        %v1381 = vadd.f32 %v1333, %v1376
        %v1382 = vmul.f32 %v1381, %v371
        %v1383 = vtanh.pop %v1382
        %v1384 = vmul.f32 %v1383, %v371
        %v1385 = vadd.f32 %v1384, %v372
        %v1386 = vmul.f32 %v1385, %v1318
        %1388 = vrot.lane.b32.xlu0 %v1385, 64
        %v1389 = vpop.permute.xlu0 %1388
        %v1391 = vmul.f32 %v1385, %v1389
        %1393 = vrot.lane.b32.xlu0 %v1391, 32
        %v1394 = vpop.permute.xlu0 %1393
        %v1396 = vadd.f32 %v1386, %v1394
        %v1397 = vtanh.pop %v1396
        %1399 = vrot.lane.b32.xlu0 %v1397, 64
        %v1400 = vpop.permute.xlu0 %1399
        %v1402 = vmul.f32 %v1385, %v1400
        %1404 = vrot.lane.b32.xlu0 %v1402, 32
        %v1405 = vpop.permute.xlu0 %1404
        %s1407 = scalar_lea.vmem %s231, 24
        %1408 = vst.msk [vmem:[%s1407] sm:$0xff] %vm268, %v1405
        %s1409 = scalar_lea.vmem [#allocation2], 8
        %v1410 = vld [vmem:[%s1409] sm:$0xf]
        %v1411 = vunpack.c.l.bf16 %v1410
        %v1412 = vpack.c.bf16 %v1402, %v1402
        %1414 = vrot.lane.b32.xlu0 %v1412, 32
        %v1415 = vpop.permute.xlu0 %1414
        %v1417 = vsel %vm268, %v1415, 0
        %1419 = vmatprep.subr.bf16.mxu0 0
        %1420 = vmatpush1.bf16.msra.mxu0 0
        %1421 = vmatprep.subr.bf16.mxu0 0
        %1422 = vmatpush1.bf16.msra.mxu0 0
        %1423 = vmatprep.subr.bf16.mxu0 0
        %1424 = vmatpush1.bf16.msra.mxu0 0
        %1425 = vmatprep.subr.bf16.mxu0 0
        %1426 = vmatpush1.bf16.msra.mxu0 0
        %1427 = vmatprep.subr.bf16.mxu0 0
        %1428 = vmatpush1.bf16.msra.mxu0 0
        %1429 = vmatprep.subr.bf16.mxu0 0
        %1430 = vmatpush1.bf16.msra.mxu0 0
        %1431 = vmatprep.subr.bf16.mxu0 0
        %1432 = vmatpush1.bf16.msra.mxu0 %v1023
        %1433 = vmatprep.subr.bf16.mxu0 0
        %1434 = vmatpush1.bf16.msra.mxu0 %v1022
        %1435 = vmatprep.subr.bf16.mxu0 0
        %1436 = vmatpush2.bf16.msra.mxu0 0
        %1437 = vmatprep.subr.bf16.mxu0 0
        %1438 = vmatpush2.bf16.msra.mxu0 0
        %1439 = vmatprep.subr.bf16.mxu0 0
        %1440 = vmatpush2.bf16.msra.mxu0 0
        %1441 = vmatprep.subr.bf16.mxu0 0
        %1442 = vmatpush2.bf16.msra.mxu0 0
        %1443 = vmatprep.subr.bf16.mxu0 0
        %1444 = vmatpush2.bf16.msra.mxu0 0
        %1445 = vmatprep.subr.bf16.mxu0 0
        %1446 = vmatpush2.bf16.msra.mxu0 0
        %1447 = vmatprep.subr.bf16.mxu0 0
        %1448 = vmatpush2.bf16.msra.mxu0 0
        %1449 = vmatprep.subr.bf16.mxu0 0
        %1450 = vmatpush2.bf16.msra.mxu0 0
        %1451 = vmatprep.mubr.bf16.mxu0 0
        %1452 = vmatmul.mubr.bf16.gmra.mxu0 %v1417
        %v1453 = vpop.f32.mrf.mxu0
        %v1454 = vadd.f32 0.0, %v1453
        %v1455 = vpop.f32.mrf.mxu0
        %v1456 = vpop.f32.mrf.mxu0
        %v1457 = vpop.f32.mrf.mxu0
        %1458 = vdwg.mxu0
        %v1459 = vadd.f32 %v1411, %v1454
        %v1460 = vmul.f32 %v1459, %v371
        %v1461 = vtanh.pop %v1460
        %v1462 = vmul.f32 %v1461, %v371
        %v1463 = vadd.f32 %v1462, %v372
        %v1464 = vmul.f32 %v1463, %v1396
        %1466 = vrot.lane.b32.xlu0 %v1463, 64
        %v1467 = vpop.permute.xlu0 %1466
        %v1469 = vmul.f32 %v1463, %v1467
        %1471 = vrot.lane.b32.xlu0 %v1469, 32
        %v1472 = vpop.permute.xlu0 %1471
        %v1474 = vadd.f32 %v1464, %v1472
        %v1475 = vtanh.pop %v1474
        %1477 = vrot.lane.b32.xlu0 %v1475, 64
        %v1478 = vpop.permute.xlu0 %1477
        %v1480 = vmul.f32 %v1463, %v1478
        %1482 = vrot.lane.b32.xlu0 %v1480, 32
        %v1483 = vpop.permute.xlu0 %1482
        %s1485 = scalar_lea.vmem %s231, 16
        %1486 = vst.msk [vmem:[%s1485] sm:$0xff] %vm268, %v1483
        %s1487 = scalar_lea.vmem [#allocation2], 4
        %v1488 = vld [vmem:[%s1487] sm:$0xf]
        %v1489 = vunpack.c.l.bf16 %v1488
        %v1490 = vpack.c.bf16 %v1480, %v1480
        %1492 = vrot.lane.b32.xlu0 %v1490, 32
        %v1493 = vpop.permute.xlu0 %1492
        %v1495 = vsel %vm268, %v1493, 0
        %1497 = vmatprep.subr.bf16.mxu0 0
        %1498 = vmatpush1.bf16.msra.mxu0 0
        %1499 = vmatprep.subr.bf16.mxu0 0
        %1500 = vmatpush1.bf16.msra.mxu0 0
        %1501 = vmatprep.subr.bf16.mxu0 0
        %1502 = vmatpush1.bf16.msra.mxu0 0
        %1503 = vmatprep.subr.bf16.mxu0 0
        %1504 = vmatpush1.bf16.msra.mxu0 0
        %1505 = vmatprep.subr.bf16.mxu0 0
        %1506 = vmatpush1.bf16.msra.mxu0 0
        %1507 = vmatprep.subr.bf16.mxu0 0
        %1508 = vmatpush1.bf16.msra.mxu0 0
        %1509 = vmatprep.subr.bf16.mxu0 0
        %1510 = vmatpush1.bf16.msra.mxu0 %v1023
        %1511 = vmatprep.subr.bf16.mxu0 0
        %1512 = vmatpush1.bf16.msra.mxu0 %v1022
        %1513 = vmatprep.subr.bf16.mxu0 0
        %1514 = vmatpush2.bf16.msra.mxu0 0
        %1515 = vmatprep.subr.bf16.mxu0 0
        %1516 = vmatpush2.bf16.msra.mxu0 0
        %1517 = vmatprep.subr.bf16.mxu0 0
        %1518 = vmatpush2.bf16.msra.mxu0 0
        %1519 = vmatprep.subr.bf16.mxu0 0
        %1520 = vmatpush2.bf16.msra.mxu0 0
        %1521 = vmatprep.subr.bf16.mxu0 0
        %1522 = vmatpush2.bf16.msra.mxu0 0
        %1523 = vmatprep.subr.bf16.mxu0 0
        %1524 = vmatpush2.bf16.msra.mxu0 0
        %1525 = vmatprep.subr.bf16.mxu0 0
        %1526 = vmatpush2.bf16.msra.mxu0 0
        %1527 = vmatprep.subr.bf16.mxu0 0
        %1528 = vmatpush2.bf16.msra.mxu0 0
        %1529 = vmatprep.mubr.bf16.mxu0 0
        %1530 = vmatmul.mubr.bf16.gmra.mxu0 %v1495
        %v1531 = vpop.f32.mrf.mxu0
        %v1532 = vadd.f32 0.0, %v1531
        %v1533 = vpop.f32.mrf.mxu0
        %v1534 = vpop.f32.mrf.mxu0
        %v1535 = vpop.f32.mrf.mxu0
        %1536 = vdwg.mxu0
        %v1537 = vadd.f32 %v1489, %v1532
        %v1538 = vmul.f32 %v1537, %v371
        %v1539 = vtanh.pop %v1538
        %v1540 = vmul.f32 %v1539, %v371
        %v1541 = vadd.f32 %v1540, %v372
        %v1542 = vmul.f32 %v1541, %v1474
        %1544 = vrot.lane.b32.xlu0 %v1541, 64
        %v1545 = vpop.permute.xlu0 %1544
        %v1547 = vmul.f32 %v1541, %v1545
        %1549 = vrot.lane.b32.xlu0 %v1547, 32
        %v1550 = vpop.permute.xlu0 %1549
        %v1552 = vadd.f32 %v1542, %v1550
        %v1553 = vtanh.pop %v1552
        %1555 = vrot.lane.b32.xlu0 %v1553, 64
        %v1556 = vpop.permute.xlu0 %1555
        %v1558 = vmul.f32 %v1541, %v1556
        %1560 = vrot.lane.b32.xlu0 %v1558, 32
        %v1561 = vpop.permute.xlu0 %1560
        %s1563 = scalar_lea.vmem %s231, 8
        %1564 = vst.msk [vmem:[%s1563] sm:$0xff] %vm268, %v1561
        %v1565 = vld [vmem:[#allocation2] sm:$0xf]
        %v1566 = vunpack.c.l.bf16 %v1565
        %v1567 = vpack.c.bf16 %v1558, %v1558
        %1569 = vrot.lane.b32.xlu0 %v1567, 32
        %v1570 = vpop.permute.xlu0 %1569
        %v1572 = vsel %vm268, %v1570, 0
        %1574 = vmatprep.subr.bf16.mxu0 0
        %1575 = vmatpush1.bf16.msra.mxu0 0
        %1576 = vmatprep.subr.bf16.mxu0 0
        %1577 = vmatpush1.bf16.msra.mxu0 0
        %1578 = vmatprep.subr.bf16.mxu0 0
        %1579 = vmatpush1.bf16.msra.mxu0 0
        %1580 = vmatprep.subr.bf16.mxu0 0
        %1581 = vmatpush1.bf16.msra.mxu0 0
        %1582 = vmatprep.subr.bf16.mxu0 0
        %1583 = vmatpush1.bf16.msra.mxu0 0
        %1584 = vmatprep.subr.bf16.mxu0 0
        %1585 = vmatpush1.bf16.msra.mxu0 0
        %1586 = vmatprep.subr.bf16.mxu0 0
        %1587 = vmatpush1.bf16.msra.mxu0 %v1023
        %1588 = vmatprep.subr.bf16.mxu0 0
        %1589 = vmatpush1.bf16.msra.mxu0 %v1022
        %1590 = vmatprep.subr.bf16.mxu0 0
        %1591 = vmatpush2.bf16.msra.mxu0 0
        %1592 = vmatprep.subr.bf16.mxu0 0
        %1593 = vmatpush2.bf16.msra.mxu0 0
        %1594 = vmatprep.subr.bf16.mxu0 0
        %1595 = vmatpush2.bf16.msra.mxu0 0
        %1596 = vmatprep.subr.bf16.mxu0 0
        %1597 = vmatpush2.bf16.msra.mxu0 0
        %1598 = vmatprep.subr.bf16.mxu0 0
        %1599 = vmatpush2.bf16.msra.mxu0 0
        %1600 = vmatprep.subr.bf16.mxu0 0
        %1601 = vmatpush2.bf16.msra.mxu0 0
        %1602 = vmatprep.subr.bf16.mxu0 0
        %1603 = vmatpush2.bf16.msra.mxu0 0
        %1604 = vmatprep.subr.bf16.mxu0 0
        %1605 = vmatpush2.bf16.msra.mxu0 0
        %1606 = vmatprep.mubr.bf16.mxu0 0
        %1607 = vmatmul.mubr.bf16.gmra.mxu0 %v1572
        %v1608 = vpop.f32.mrf.mxu0
        %v1609 = vadd.f32 0.0, %v1608
        %v1610 = vpop.f32.mrf.mxu0
        %v1611 = vpop.f32.mrf.mxu0
        %v1612 = vpop.f32.mrf.mxu0
        %1613 = vdwg.mxu0
        %v1614 = vadd.f32 %v1566, %v1609
        %v1615 = vmul.f32 %v1614, %v371
        %v1616 = vtanh.pop %v1615
        %v1617 = vmul.f32 %v1616, %v371
        %v1618 = vadd.f32 %v1617, %v372
        %v1619 = vmul.f32 %v1618, %v1552
        %1621 = vrot.lane.b32.xlu0 %v1618, 64
        %v1622 = vpop.permute.xlu0 %1621
        %v1624 = vmul.f32 %v1618, %v1622
        %1626 = vrot.lane.b32.xlu0 %v1624, 32
        %v1627 = vpop.permute.xlu0 %1626
        %v1629 = vadd.f32 %v1619, %v1627
        %v1630 = vtanh.pop %v1629
        %1632 = vrot.lane.b32.xlu0 %v1630, 64
        %v1633 = vpop.permute.xlu0 %1632
        %v1635 = vmul.f32 %v1618, %v1633
        %1637 = vrot.lane.b32.xlu0 %v1635, 32
        %v1638 = vpop.permute.xlu0 %1637
        %1640 = vst.msk [vmem:[%s231] sm:$0xff] %vm268, %v1638
      $region44: #{lstm_forward.2} parent=35 // pred_fallthru
        _
      %p1641 = scmp.lt.s32.totalorder %s15, 1
      %s1642 = scalar_select %p1641, %s15, 1
      %s1643 = smul.addr %s1642, 8
      %s1644 = smul.addr %s1643, 8
      %s1645 = scalar_lea.vmem %s4, %s1644
      // Predicated region
      $region45: #{lstm_forward.2} parent=35 // pred_check
        %p1646 = pneg %p132
      $region46: #{lstm_forward.2} parent=35 // pred_check_branch
        %1648 = sbr.rel (%p1646) target = $region48
      $region47: #{lstm_forward.2} parent=35 // pred_region
        _
      $region48: #{lstm_forward.2} parent=35 // pred_fallthru
        _
    $region36: #{lstm_forward.2} parent=5 // pred_fallthru
      _
    %p1649 = scmp.le.s32.totalorder 2, %s10
    // Predicated region
    $region49: #{lstm_forward.2} parent=5 // pred_check
      %p1650 = pneg %p1649
    $region50: #{lstm_forward.2} parent=5 // pred_check_branch
      %1652 = sbr.rel (%p1650) target = $region52
    $region51: #{lstm_forward.2} parent=5 // pred_region
      %s1653 = ssub.s32 %s10, 2
      // Predicated region
      $region53: #{lstm_forward.2} parent=51 // pred_check
        %p1654 = pneg %p138
      $region54: #{lstm_forward.2} parent=51 // pred_check_branch
        %1656 = sbr.rel (%p1654) target = $region56
      $region55: #{lstm_forward.2} parent=51 // pred_region
        %p1657 = scmp.lt.s32.totalorder %s16, 1
        %s1658 = scalar_select %p1657, %s16, 1
        %s1659 = smul.addr %s1658, 8
        %s1660 = smul.addr %s1659, 8
        %s1661 = scalar_lea.vmem %s4, %s1660
      $region56: #{lstm_forward.2} parent=51 // pred_fallthru
        _
    $region52: #{lstm_forward.2} parent=5 // pred_fallthru
      _
  $region6: #{lstm_forward.2} parent=0 // loop_footer
    %s14 = sadd.s32 1, %s10
  $region7: #{lstm_forward.2} parent=0 // loop_footer_branch
    %9 = sbr.rel target = $region3
  $region8: #{lstm_forward.2} parent=0 // loop_exit
    _

</llo_original>
